<compile_context>
chip_gen: v7x
topology: tpu7x:2x2x1
jax: 0.10.0
libtpu: 0.0.40
codegen_flags: <defaults>
</compile_context>

<pallas_src>
import numpy as np
import jax
import jax.numpy as jnp
from jax.experimental import pallas as pl
from jax.experimental.pallas import tpu as pltpu


# ----------------------------- Pallas kernels ------------------------------

def _conv_mm_relu_kernel(x_ref, w_ref, b_ref, o_ref):
    # x: (1, K, M) bf16   w: (Co, K) bf16   b: (Co, 1) f32   o: (1, Co, M) f32
    acc = jnp.dot(w_ref[...], x_ref[0], preferred_element_type=jnp.float32)
    o_ref[0] = jnp.maximum(acc + b_ref[...], 0.0)


def _tail_kernel(x_ref, w1_ref, b1_ref, w2_ref, b2_ref, o_ref):
    # x: (9, N, 1156) stacked 3x3 pool windows (already in NCHW flatten order)
    # MaxPool2d(3) -> Linear(1156,16) -> Linear(16,2) -> Softmax(dim=1)
    flat = jnp.max(x_ref[...], axis=0)                                   # (N, 1156)
    h = jnp.dot(flat, w1_ref[...], preferred_element_type=jnp.float32) + b1_ref[...]
    logits = jnp.dot(h, w2_ref[...], preferred_element_type=jnp.float32) + b2_ref[...]
    m = jnp.max(logits, axis=-1, keepdims=True)
    e = jnp.exp(logits - m)
    o_ref[...] = e / jnp.sum(e, axis=-1, keepdims=True)


# ------------------------------- glue / wrappers ---------------------------

def _patches_T_nchw(x_nchw, kh, kw, stride):
    """Transposed im2col straight from NCHW: (N,C,H,W) -> (N, C*KH*KW, OH*OW) bf16.

    K ordering is (c, i, j), matching w.reshape(Co, Ci*KH*KW).  Only strided
    slices + one stack + a contiguous reshape: no transposes, no padding.
    """
    x = x_nchw.astype(jnp.bfloat16)
    n, c, h, w = x.shape
    oh = (h - kh) // stride + 1
    ow = (w - kw) // stride + 1
    slabs = [x[:, :, i:i + (oh - 1) * stride + 1:stride,
                     j:j + (ow - 1) * stride + 1:stride]          # (N, C, OH, OW)
             for i in range(kh) for j in range(kw)]
    p = jnp.stack(slabs, axis=2)                                  # (N, C, KH*KW, OH, OW)
    return p.reshape(n, c * kh * kw, oh * ow), oh, ow


def conv2d_bias_relu(x_nchw, w_torch, bias, stride):
    """Valid conv + bias + ReLU, NCHW in / NCHW out.  w_torch: (Co, Ci, KH, KW)."""
    co, ci, kh, kw = w_torch.shape
    xT, oh, ow = _patches_T_nchw(x_nchw, kh, kw, stride)          # (N, K, M) bf16
    n, k, m = xT.shape
    wcol = w_torch.reshape(co, k).astype(jnp.bfloat16)            # (Co, K), (c,i,j) order
    b2 = bias.reshape(co, 1).astype(jnp.float32)

    out = pl.pallas_call(
        _conv_mm_relu_kernel,
        out_shape=jax.ShapeDtypeStruct((n, co, m), jnp.float32),
        grid=(n,),
        in_specs=[pl.BlockSpec((1, k, m), lambda i: (i, 0, 0)),
                  pl.BlockSpec((co, k), lambda i: (0, 0)),
                  pl.BlockSpec((co, 1), lambda i: (0, 0))],
        out_specs=pl.BlockSpec((1, co, m), lambda i: (i, 0, 0)),
        compiler_params=pltpu.CompilerParams(dimension_semantics=("parallel",)),
    )(xT, wcol, b2)
    return out.reshape(n, co, oh, ow)                              # NCHW


def _pool_windows_nchw(y_nchw):
    """MaxPool2d(3) windows: (N,C,H,W) -> (9, N, C*OH*OW) in NCHW flatten order."""
    n, c, h, w = y_nchw.shape
    oh, ow = (h - 3) // 3 + 1, (w - 3) // 3 + 1
    wins = [y_nchw[:, :, di:di + (oh - 1) * 3 + 1:3, dj:dj + (ow - 1) * 3 + 1:3]
            for di in range(3) for dj in range(3)]                # each (N, C, OH, OW)
    stacked = jnp.stack(wins, axis=0)                             # (9, N, C, OH, OW)
    return stacked.reshape(9, n, c * oh * ow)                     # (9, N, 1156)


def tail_fused(stacked, w1, b1, w2, b2):
    nine, n, d = stacked.shape
    hdim, odim = w1.shape[1], w2.shape[1]
    return pl.pallas_call(
        _tail_kernel,
        out_shape=jax.ShapeDtypeStruct((n, odim), jnp.float32),
        grid=(1,),
        in_specs=[pl.BlockSpec((nine, n, d), lambda i: (0, 0, 0)),
                  pl.BlockSpec((d, hdim), lambda i: (0, 0)),
                  pl.BlockSpec((1, hdim), lambda i: (0, 0)),
                  pl.BlockSpec((hdim, odim), lambda i: (0, 0)),
                  pl.BlockSpec((1, odim), lambda i: (0, 0))],
        out_specs=pl.BlockSpec((n, odim), lambda i: (0, 0)),
        compiler_params=pltpu.CompilerParams(dimension_semantics=("arbitrary",)),
    )(stacked, w1, b1.reshape(1, -1), w2, b2.reshape(1, -1))


# ------------------------------- parameters --------------------------------

def init_params():
    key = jax.random.PRNGKey(0)
    ks = jax.random.split(key, 10)

    def u(k, shape, fan_in):
        b = 1.0 / np.sqrt(fan_in)
        return jax.random.uniform(k, shape, jnp.float32, -b, b)

    p = {}
    p["c1_w"] = u(ks[0], (5, 3, 5, 5), 3 * 25)
    p["c1_b"] = u(ks[1], (5,), 3 * 25)
    p["c2_w"] = u(ks[2], (7, 5, 3, 3), 5 * 9)
    p["c2_b"] = u(ks[3], (7,), 5 * 9)
    p["c3_w"] = u(ks[4], (4, 7, 3, 3), 7 * 9)
    p["c3_b"] = u(ks[5], (4,), 7 * 9)
    p["f1_w"] = u(ks[6], (1156, 16), 1156)   # stored as (in, out)
    p["f1_b"] = u(ks[7], (16,), 1156)
    p["f2_w"] = u(ks[8], (16, 2), 16)
    p["f2_b"] = u(ks[9], (2,), 16)

    eps = 1e-5
    # BatchNorm2d(3) before conv1 (eval mode, default params) folded into conv1
    g1, be1 = jnp.ones(3), jnp.zeros(3)
    mu1, var1 = jnp.zeros(3), jnp.ones(3)
    s1 = g1 / jnp.sqrt(var1 + eps)
    p["c1_w_f"] = p["c1_w"] * s1[None, :, None, None]
    p["c1_b_f"] = p["c1_b"] + jnp.einsum("ocij,c->o", p["c1_w"], be1 - s1 * mu1)

    # BatchNorm2d(4) after conv3 (eval mode, default params) folded into conv3
    g2, be2 = jnp.ones(4), jnp.zeros(4)
    mu2, var2 = jnp.zeros(4), jnp.ones(4)
    s2 = g2 / jnp.sqrt(var2 + eps)
    p["c3_w_f"] = p["c3_w"] * s2[:, None, None, None]
    p["c3_b_f"] = s2 * (p["c3_b"] - mu2) + be2
    return p


# --------------------------------- forward ---------------------------------

def net_forward(x_nchw, p):
    # Input stays NCHW throughout (matches PyTorch, flatten order is free).
    y = conv2d_bias_relu(x_nchw, p["c1_w_f"], p["c1_b_f"], stride=2)  # (N,5,110,110)
    y = conv2d_bias_relu(y, p["c2_w"], p["c2_b"], stride=2)           # (N,7, 54, 54)
    y = conv2d_bias_relu(y, p["c3_w_f"], p["c3_b_f"], stride=1)       # (N,4, 52, 52)
    stacked = _pool_windows_nchw(y)                                   # (9, N, 1156)
    return tail_fused(stacked, p["f1_w"], p["f1_b"], p["f2_w"], p["f2_b"])  # (N,2)


if __name__ == "__main__":
    params = init_params()
    # Spatial size 224 is required so the flattened conv output is 1156 = 4*17*17.
    x = jax.random.normal(jax.random.PRNGKey(0), (2, 3, 224, 224), jnp.float32)
    fwd = jax.jit(net_forward)
    out = fwd(x, params)
    out = jax.block_until_ready(out)
    assert out.shape == (2, 2)
    assert bool(jnp.all(jnp.isfinite(out)))
    print("KERNEL_OK")
</pallas_src>

<mosaic_0001>
module attributes {stable_mosaic.version = 11 : i64} {
  func.func @_conv_mm_relu_kernel(%arg0: i32, %arg1: memref<1x75x12100xbf16, #tpu.memory_space<vmem>>, %arg2: memref<5x75xbf16, #tpu.memory_space<vmem>>, %arg3: memref<5x1xf32, #tpu.memory_space<vmem>>, %arg4: memref<1x5x12100xf32, #tpu.memory_space<vmem>>) attributes {dimension_semantics = [#tpu.dimension_semantics<parallel>], iteration_bounds = array<i64: 2>, scalar_prefetch = 0 : i64, scratch_operands = 0 : i64, tpu.core_type = #tpu.core_type<tc>, window_params = [{transform_indices = @transform_0, window_bounds = array<i64: 1, 75, 12100>}, {pipeline_mode = #tpu.pipeline_mode<synchronous>, transform_indices = @transform_1, window_bounds = array<i64: 5, 75>}, {pipeline_mode = #tpu.pipeline_mode<synchronous>, transform_indices = @transform_2, window_bounds = array<i64: 5, 1>}, {transform_indices = @transform_3, window_bounds = array<i64: 1, 5, 12100>}]} {
    %c0 = arith.constant 0 : index
    %c0_0 = arith.constant 0 : index
    %0 = vector.load %arg2[%c0, %c0_0] : memref<5x75xbf16, #tpu.memory_space<vmem>>, vector<5x75xbf16>
    %c0_1 = arith.constant 0 : index
    %c0_2 = arith.constant 0 : index
    %c0_3 = arith.constant 0 : index
    %1 = vector.load %arg1[%c0_1, %c0_2, %c0_3] : memref<1x75x12100xbf16, #tpu.memory_space<vmem>>, vector<1x75x12100xbf16>
    %2 = vector.shape_cast %1 : vector<1x75x12100xbf16> to vector<75x12100xbf16>
    %cst = arith.constant dense<0.000000e+00> : vector<5x12100xf32>
    %3 = tpu.matmul %0, %2, %cst {dimension_numbers = #tpu.dot_dimension_numbers<[1], [0], [0], [1], [0, 0, 1, 1], [], []>} : vector<5x75xbf16>, vector<75x12100xbf16>, vector<5x12100xf32> -> vector<5x12100xf32>
    %c0_4 = arith.constant 0 : index
    %c0_5 = arith.constant 0 : index
    %4 = vector.load %arg3[%c0_4, %c0_5] : memref<5x1xf32, #tpu.memory_space<vmem>>, vector<5x1xf32>
    %5 = vector.broadcast %4 : vector<5x1xf32> to vector<5x12100xf32>
    %6 = arith.addf %3, %5 : vector<5x12100xf32>
    %cst_6 = arith.constant 0.000000e+00 : f32
    %7 = vector.broadcast %cst_6 : f32 to vector<5x12100xf32>
    %8 = arith.maximumf %6, %7 : vector<5x12100xf32>
    %c0_7 = arith.constant 0 : index
    %c0_8 = arith.constant 0 : index
    %c0_9 = arith.constant 0 : index
    %9 = vector.load %arg4[%c0_7, %c0_8, %c0_9] : memref<1x5x12100xf32, #tpu.memory_space<vmem>>, vector<1x5x12100xf32>
    %10 = vector.shape_cast %9 : vector<1x5x12100xf32> to vector<5x12100xf32>
    %11 = vector.shape_cast %8 : vector<5x12100xf32> to vector<1x5x12100xf32>
    tpu.vector_store %arg4[%c0_7, %c0_8, %c0_9], %11 {strides = array<i32>} : memref<1x5x12100xf32, #tpu.memory_space<vmem>>, vector<1x5x12100xf32>,
    return
  }
  func.func @transform_0(%arg0: i32) -> (i32, i32, i32) {
    %c0_i32 = arith.constant 0 : i32
    %c0_i32_0 = arith.constant 0 : i32
    %c0_i32_1 = arith.constant 0 : i32
    return %arg0, %c0_i32, %c0_i32_0 : i32, i32, i32
  }
  func.func @transform_1(%arg0: i32) -> (i32, i32) {
    %c0_i32 = arith.constant 0 : i32
    %c0_i32_0 = arith.constant 0 : i32
    %c0_i32_1 = arith.constant 0 : i32
    return %c0_i32, %c0_i32_0 : i32, i32
  }
  func.func @transform_2(%arg0: i32) -> (i32, i32) {
    %c0_i32 = arith.constant 0 : i32
    %c0_i32_0 = arith.constant 0 : i32
    %c0_i32_1 = arith.constant 0 : i32
    return %c0_i32, %c0_i32_0 : i32, i32
  }
  func.func @transform_3(%arg0: i32) -> (i32, i32, i32) {
    %c0_i32 = arith.constant 0 : i32
    %c0_i32_0 = arith.constant 0 : i32
    %c0_i32_1 = arith.constant 0 : i32
    return %arg0, %c0_i32, %c0_i32_0 : i32, i32, i32
  }
}

module attributes {stable_mosaic.version = 11 : i64} {
  func.func @_conv_mm_relu_kernel(%arg0: i32, %arg1: memref<1x45x2916xbf16, #tpu.memory_space<vmem>>, %arg2: memref<7x45xbf16, #tpu.memory_space<vmem>>, %arg3: memref<7x1xf32, #tpu.memory_space<vmem>>, %arg4: memref<1x7x2916xf32, #tpu.memory_space<vmem>>) attributes {dimension_semantics = [#tpu.dimension_semantics<parallel>], iteration_bounds = array<i64: 2>, scalar_prefetch = 0 : i64, scratch_operands = 0 : i64, tpu.core_type = #tpu.core_type<tc>, window_params = [{transform_indices = @transform_0, window_bounds = array<i64: 1, 45, 2916>}, {pipeline_mode = #tpu.pipeline_mode<synchronous>, transform_indices = @transform_1, window_bounds = array<i64: 7, 45>}, {pipeline_mode = #tpu.pipeline_mode<synchronous>, transform_indices = @transform_2, window_bounds = array<i64: 7, 1>}, {transform_indices = @transform_3, window_bounds = array<i64: 1, 7, 2916>}]} {
    %c0 = arith.constant 0 : index
    %c0_0 = arith.constant 0 : index
    %0 = vector.load %arg2[%c0, %c0_0] : memref<7x45xbf16, #tpu.memory_space<vmem>>, vector<7x45xbf16>
    %c0_1 = arith.constant 0 : index
    %c0_2 = arith.constant 0 : index
    %c0_3 = arith.constant 0 : index
    %1 = vector.load %arg1[%c0_1, %c0_2, %c0_3] : memref<1x45x2916xbf16, #tpu.memory_space<vmem>>, vector<1x45x2916xbf16>
    %2 = vector.shape_cast %1 : vector<1x45x2916xbf16> to vector<45x2916xbf16>
    %cst = arith.constant dense<0.000000e+00> : vector<7x2916xf32>
    %3 = tpu.matmul %0, %2, %cst {dimension_numbers = #tpu.dot_dimension_numbers<[1], [0], [0], [1], [0, 0, 1, 1], [], []>} : vector<7x45xbf16>, vector<45x2916xbf16>, vector<7x2916xf32> -> vector<7x2916xf32>
    %c0_4 = arith.constant 0 : index
    %c0_5 = arith.constant 0 : index
    %4 = vector.load %arg3[%c0_4, %c0_5] : memref<7x1xf32, #tpu.memory_space<vmem>>, vector<7x1xf32>
    %5 = vector.broadcast %4 : vector<7x1xf32> to vector<7x2916xf32>
    %6 = arith.addf %3, %5 : vector<7x2916xf32>
    %cst_6 = arith.constant 0.000000e+00 : f32
    %7 = vector.broadcast %cst_6 : f32 to vector<7x2916xf32>
    %8 = arith.maximumf %6, %7 : vector<7x2916xf32>
    %c0_7 = arith.constant 0 : index
    %c0_8 = arith.constant 0 : index
    %c0_9 = arith.constant 0 : index
    %9 = vector.load %arg4[%c0_7, %c0_8, %c0_9] : memref<1x7x2916xf32, #tpu.memory_space<vmem>>, vector<1x7x2916xf32>
    %10 = vector.shape_cast %9 : vector<1x7x2916xf32> to vector<7x2916xf32>
    %11 = vector.shape_cast %8 : vector<7x2916xf32> to vector<1x7x2916xf32>
    tpu.vector_store %arg4[%c0_7, %c0_8, %c0_9], %11 {strides = array<i32>} : memref<1x7x2916xf32, #tpu.memory_space<vmem>>, vector<1x7x2916xf32>,
    return
  }
  func.func @transform_0(%arg0: i32) -> (i32, i32, i32) {
    %c0_i32 = arith.constant 0 : i32
    %c0_i32_0 = arith.constant 0 : i32
    %c0_i32_1 = arith.constant 0 : i32
    return %arg0, %c0_i32, %c0_i32_0 : i32, i32, i32
  }
  func.func @transform_1(%arg0: i32) -> (i32, i32) {
    %c0_i32 = arith.constant 0 : i32
    %c0_i32_0 = arith.constant 0 : i32
    %c0_i32_1 = arith.constant 0 : i32
    return %c0_i32, %c0_i32_0 : i32, i32
  }
  func.func @transform_2(%arg0: i32) -> (i32, i32) {
    %c0_i32 = arith.constant 0 : i32
    %c0_i32_0 = arith.constant 0 : i32
    %c0_i32_1 = arith.constant 0 : i32
    return %c0_i32, %c0_i32_0 : i32, i32
  }
  func.func @transform_3(%arg0: i32) -> (i32, i32, i32) {
    %c0_i32 = arith.constant 0 : i32
    %c0_i32_0 = arith.constant 0 : i32
    %c0_i32_1 = arith.constant 0 : i32
    return %arg0, %c0_i32, %c0_i32_0 : i32, i32, i32
  }
}

module attributes {stable_mosaic.version = 11 : i64} {
  func.func @_conv_mm_relu_kernel(%arg0: i32, %arg1: memref<1x63x2704xbf16, #tpu.memory_space<vmem>>, %arg2: memref<4x63xbf16, #tpu.memory_space<vmem>>, %arg3: memref<4x1xf32, #tpu.memory_space<vmem>>, %arg4: memref<1x4x2704xf32, #tpu.memory_space<vmem>>) attributes {dimension_semantics = [#tpu.dimension_semantics<parallel>], iteration_bounds = array<i64: 2>, scalar_prefetch = 0 : i64, scratch_operands = 0 : i64, tpu.core_type = #tpu.core_type<tc>, window_params = [{transform_indices = @transform_0, window_bounds = array<i64: 1, 63, 2704>}, {pipeline_mode = #tpu.pipeline_mode<synchronous>, transform_indices = @transform_1, window_bounds = array<i64: 4, 63>}, {pipeline_mode = #tpu.pipeline_mode<synchronous>, transform_indices = @transform_2, window_bounds = array<i64: 4, 1>}, {transform_indices = @transform_3, window_bounds = array<i64: 1, 4, 2704>}]} {
    %c0 = arith.constant 0 : index
    %c0_0 = arith.constant 0 : index
    %0 = vector.load %arg2[%c0, %c0_0] : memref<4x63xbf16, #tpu.memory_space<vmem>>, vector<4x63xbf16>
    %c0_1 = arith.constant 0 : index
    %c0_2 = arith.constant 0 : index
    %c0_3 = arith.constant 0 : index
    %1 = vector.load %arg1[%c0_1, %c0_2, %c0_3] : memref<1x63x2704xbf16, #tpu.memory_space<vmem>>, vector<1x63x2704xbf16>
    %2 = vector.shape_cast %1 : vector<1x63x2704xbf16> to vector<63x2704xbf16>
    %cst = arith.constant dense<0.000000e+00> : vector<4x2704xf32>
    %3 = tpu.matmul %0, %2, %cst {dimension_numbers = #tpu.dot_dimension_numbers<[1], [0], [0], [1], [0, 0, 1, 1], [], []>} : vector<4x63xbf16>, vector<63x2704xbf16>, vector<4x2704xf32> -> vector<4x2704xf32>
    %c0_4 = arith.constant 0 : index
    %c0_5 = arith.constant 0 : index
    %4 = vector.load %arg3[%c0_4, %c0_5] : memref<4x1xf32, #tpu.memory_space<vmem>>, vector<4x1xf32>
    %5 = vector.broadcast %4 : vector<4x1xf32> to vector<4x2704xf32>
    %6 = arith.addf %3, %5 : vector<4x2704xf32>
    %cst_6 = arith.constant 0.000000e+00 : f32
    %7 = vector.broadcast %cst_6 : f32 to vector<4x2704xf32>
    %8 = arith.maximumf %6, %7 : vector<4x2704xf32>
    %c0_7 = arith.constant 0 : index
    %c0_8 = arith.constant 0 : index
    %c0_9 = arith.constant 0 : index
    %9 = vector.load %arg4[%c0_7, %c0_8, %c0_9] : memref<1x4x2704xf32, #tpu.memory_space<vmem>>, vector<1x4x2704xf32>
    %10 = vector.shape_cast %9 : vector<1x4x2704xf32> to vector<4x2704xf32>
    %11 = vector.shape_cast %8 : vector<4x2704xf32> to vector<1x4x2704xf32>
    tpu.vector_store %arg4[%c0_7, %c0_8, %c0_9], %11 {strides = array<i32>} : memref<1x4x2704xf32, #tpu.memory_space<vmem>>, vector<1x4x2704xf32>,
    return
  }
  func.func @transform_0(%arg0: i32) -> (i32, i32, i32) {
    %c0_i32 = arith.constant 0 : i32
    %c0_i32_0 = arith.constant 0 : i32
    %c0_i32_1 = arith.constant 0 : i32
    return %arg0, %c0_i32, %c0_i32_0 : i32, i32, i32
  }
  func.func @transform_1(%arg0: i32) -> (i32, i32) {
    %c0_i32 = arith.constant 0 : i32
    %c0_i32_0 = arith.constant 0 : i32
    %c0_i32_1 = arith.constant 0 : i32
    return %c0_i32, %c0_i32_0 : i32, i32
  }
  func.func @transform_2(%arg0: i32) -> (i32, i32) {
    %c0_i32 = arith.constant 0 : i32
    %c0_i32_0 = arith.constant 0 : i32
    %c0_i32_1 = arith.constant 0 : i32
    return %c0_i32, %c0_i32_0 : i32, i32
  }
  func.func @transform_3(%arg0: i32) -> (i32, i32, i32) {
    %c0_i32 = arith.constant 0 : i32
    %c0_i32_0 = arith.constant 0 : i32
    %c0_i32_1 = arith.constant 0 : i32
    return %arg0, %c0_i32, %c0_i32_0 : i32, i32, i32
  }
}

module attributes {stable_mosaic.version = 11 : i64} {
  func.func @_tail_kernel(%arg0: i32, %arg1: memref<9x2x1156xf32, #tpu.memory_space<vmem>>, %arg2: memref<1156x16xf32, #tpu.memory_space<vmem>>, %arg3: memref<1x16xf32, #tpu.memory_space<vmem>>, %arg4: memref<16x2xf32, #tpu.memory_space<vmem>>, %arg5: memref<1x2xf32, #tpu.memory_space<vmem>>, %arg6: memref<2x2xf32, #tpu.memory_space<vmem>>) attributes {dimension_semantics = [#tpu.dimension_semantics<arbitrary>], iteration_bounds = array<i64: 1>, scalar_prefetch = 0 : i64, scratch_operands = 0 : i64, tpu.core_type = #tpu.core_type<tc>, window_params = [{pipeline_mode = #tpu.pipeline_mode<synchronous>, transform_indices = @transform_0, window_bounds = array<i64: 9, 2, 1156>}, {pipeline_mode = #tpu.pipeline_mode<synchronous>, transform_indices = @transform_1, window_bounds = array<i64: 1156, 16>}, {pipeline_mode = #tpu.pipeline_mode<synchronous>, transform_indices = @transform_2, window_bounds = array<i64: 1, 16>}, {pipeline_mode = #tpu.pipeline_mode<synchronous>, transform_indices = @transform_3, window_bounds = array<i64: 16, 2>}, {pipeline_mode = #tpu.pipeline_mode<synchronous>, transform_indices = @transform_4, window_bounds = array<i64: 1, 2>}, {pipeline_mode = #tpu.pipeline_mode<synchronous>, transform_indices = @transform_5, window_bounds = array<i64: 2, 2>}]} {
    %c0 = arith.constant 0 : index
    %c0_0 = arith.constant 0 : index
    %c0_1 = arith.constant 0 : index
    %0 = vector.load %arg1[%c0, %c0_0, %c0_1] : memref<9x2x1156xf32, #tpu.memory_space<vmem>>, vector<9x2x1156xf32>
    %cst = arith.constant dense<0xFF800000> : vector<2x1156xf32>
    %1 = vector.multi_reduction <maximumf>, %0, %cst [0] : vector<9x2x1156xf32> to vector<2x1156xf32>
    %c0_2 = arith.constant 0 : index
    %c0_3 = arith.constant 0 : index
    %2 = vector.load %arg2[%c0_2, %c0_3] : memref<1156x16xf32, #tpu.memory_space<vmem>>, vector<1156x16xf32>
    %cst_4 = arith.constant dense<0.000000e+00> : vector<2x16xf32>
    %3 = tpu.matmul %1, %2, %cst_4 {dimension_numbers = #tpu.dot_dimension_numbers<[1], [0], [0], [1], [0, 0, 1, 1], [], []>} : vector<2x1156xf32>, vector<1156x16xf32>, vector<2x16xf32> -> vector<2x16xf32>
    %c0_5 = arith.constant 0 : index
    %c0_6 = arith.constant 0 : index
    %4 = vector.load %arg3[%c0_5, %c0_6] : memref<1x16xf32, #tpu.memory_space<vmem>>, vector<1x16xf32>
    %5 = vector.broadcast %4 : vector<1x16xf32> to vector<2x16xf32>
    %6 = arith.addf %3, %5 : vector<2x16xf32>
    %c0_7 = arith.constant 0 : index
    %c0_8 = arith.constant 0 : index
    %7 = vector.load %arg4[%c0_7, %c0_8] : memref<16x2xf32, #tpu.memory_space<vmem>>, vector<16x2xf32>
    %cst_9 = arith.constant dense<0.000000e+00> : vector<2x2xf32>
    %8 = tpu.matmul %6, %7, %cst_9 {dimension_numbers = #tpu.dot_dimension_numbers<[1], [0], [0], [1], [0, 0, 1, 1], [], []>} : vector<2x16xf32>, vector<16x2xf32>, vector<2x2xf32> -> vector<2x2xf32>
    %c0_10 = arith.constant 0 : index
    %c0_11 = arith.constant 0 : index
    %9 = vector.load %arg5[%c0_10, %c0_11] : memref<1x2xf32, #tpu.memory_space<vmem>>, vector<1x2xf32>
    %10 = vector.broadcast %9 : vector<1x2xf32> to vector<2x2xf32>
    %11 = arith.addf %8, %10 : vector<2x2xf32>
    %cst_12 = arith.constant dense<0xFF800000> : vector<2xf32>
    %12 = vector.multi_reduction <maximumf>, %11, %cst_12 [1] : vector<2x2xf32> to vector<2xf32>
    %13 = vector.shape_cast %12 : vector<2xf32> to vector<2x1xf32>
    %14 = vector.broadcast %13 : vector<2x1xf32> to vector<2x2xf32>
    %15 = arith.subf %11, %14 : vector<2x2xf32>
    %16 = math.exp %15 : vector<2x2xf32>
    %cst_13 = arith.constant dense<0.000000e+00> : vector<2xf32>
    %17 = vector.multi_reduction <add>, %16, %cst_13 [1] : vector<2x2xf32> to vector<2xf32>
    %18 = vector.shape_cast %17 : vector<2xf32> to vector<2x1xf32>
    %19 = vector.broadcast %18 : vector<2x1xf32> to vector<2x2xf32>
    %20 = arith.divf %16, %19 : vector<2x2xf32>
    %c0_14 = arith.constant 0 : index
    %c0_15 = arith.constant 0 : index
    %21 = vector.load %arg6[%c0_14, %c0_15] : memref<2x2xf32, #tpu.memory_space<vmem>>, vector<2x2xf32>
    tpu.vector_store %arg6[%c0_14, %c0_15], %20 {strides = array<i32>} : memref<2x2xf32, #tpu.memory_space<vmem>>, vector<2x2xf32>,
    return
  }
  func.func @transform_0(%arg0: i32) -> (i32, i32, i32) {
    %c0_i32 = arith.constant 0 : i32
    %c0_i32_0 = arith.constant 0 : i32
    %c0_i32_1 = arith.constant 0 : i32
    %c0_i32_2 = arith.constant 0 : i32
    return %c0_i32, %c0_i32_0, %c0_i32_1 : i32, i32, i32
  }
  func.func @transform_1(%arg0: i32) -> (i32, i32) {
    %c0_i32 = arith.constant 0 : i32
    %c0_i32_0 = arith.constant 0 : i32
    %c0_i32_1 = arith.constant 0 : i32
    return %c0_i32, %c0_i32_0 : i32, i32
  }
  func.func @transform_2(%arg0: i32) -> (i32, i32) {
    %c0_i32 = arith.constant 0 : i32
    %c0_i32_0 = arith.constant 0 : i32
    %c0_i32_1 = arith.constant 0 : i32
    return %c0_i32, %c0_i32_0 : i32, i32
  }
  func.func @transform_3(%arg0: i32) -> (i32, i32) {
    %c0_i32 = arith.constant 0 : i32
    %c0_i32_0 = arith.constant 0 : i32
    %c0_i32_1 = arith.constant 0 : i32
    return %c0_i32, %c0_i32_0 : i32, i32
  }
  func.func @transform_4(%arg0: i32) -> (i32, i32) {
    %c0_i32 = arith.constant 0 : i32
    %c0_i32_0 = arith.constant 0 : i32
    %c0_i32_1 = arith.constant 0 : i32
    return %c0_i32, %c0_i32_0 : i32, i32
  }
  func.func @transform_5(%arg0: i32) -> (i32, i32) {
    %c0_i32 = arith.constant 0 : i32
    %c0_i32_0 = arith.constant 0 : i32
    %c0_i32_1 = arith.constant 0 : i32
    return %c0_i32, %c0_i32_0 : i32, i32
  }
}

</mosaic_0001>

<llo_original>
// kernel: net_forward.4
$region0: #{net_forward.4}
  #allocation0 [shape = 'u32[]', space=smem, size = 0x4, offset = 0x4, fixed_abs, tag = 'smem constant byte address 0x4 - core index']
  #allocation1 [shape = 'u32[144,128]{1,0:T(1,128)}', space=vmem, size = 0x12000, scoped, tag = 'internal scratch']
  %s0 = inlined_call_operand.vmem [shape: bf16[2,75,12100], index: 0, kind: input, shape index: {}]
  %s1 = inlined_call_operand.vmem [shape: bf16[5,75], index: 1, kind: input, shape index: {}]
  %s2 = inlined_call_operand.vmem [shape: f32[5,1], index: 2, kind: input, shape index: {}]
  %s3 = inlined_call_operand.vmem [shape: f32[2,5,12100], index: 3, kind: output, shape index: {}]
  %s4 = sld [smem:[#allocation0]]
  $region45: #{net_forward.4} parent=0
    _
  %s6 = ssub.s32 1, %s4
  %s7 = scalar_select 0, %s6, %s4
  loop: start=0, step=1, limit=4
  $region2: #{net_forward.4} parent=0 // loop_pre_header
    _
  $region3: #{net_forward.4} parent=0 // loop_header
    %s9 = sphi 0, %s13
    %p10 = scmp.ge.s32.totalorder %s9, 4
    %s19 = sphi 0, %s21
    %s22 = sphi 0, %s19
    %s23 = sphi 0, %s22
    %s39 = sphi 0, %s23
    %s43 = sphi 0, %s43
    %s45 = sphi 0, %s43
    %s46 = sphi 0, %s45
    %s60 = sphi 0, %s46
    %s64 = sphi 0, %s64
    %s66 = sphi 0, %s64
    %s67 = sphi 0, %s66
    %s81 = sphi 0, %s67
    %s87 = sphi 0, %s89
    %s90 = sphi 0, %s87
    %s91 = sphi 0, %s90
    %s107 = sphi 0, %s91
  $region4: #{net_forward.4} parent=0 // loop_header_branch
    %12 = sbr.rel (%p10) target = $region8
  $region5: #{net_forward.4} parent=0 // loop_body
    %s14 = ssub.s32 %s9, 1
    %s15 = ssub.s32 %s9, 2
    %s16 = sadd.s32 %s9, 1
    %s17 = ssub.s32 %s9, %s16
    %p18 = scmp.eq.s32.totalorder %s17, 0
    %s20 = sadd.s32 %s19, 1
    %s21 = scalar_select %p18, %s19, %s20
    %p24 = pneg %p18
    %p25 = scmp.eq.s32.totalorder %s9, 1
    %p26 = por %p24, %p25
    %p27 = scmp.ne.s32.totalorder %s19, %s22
    %p28 = scmp.eq.s32.totalorder %s9, 0
    %p29 = por %p27, %p28
    %p30 = scmp.ne.s32.totalorder %s19, %s22
    %p31 = scmp.eq.s32.totalorder %s14, 1
    %p32 = por %p30, %p31
    %p33 = scmp.ne.s32.totalorder %s22, %s23
    %p34 = scmp.eq.s32.totalorder %s14, 0
    %p35 = por %p33, %p34
    %p36 = scmp.ne.s32.totalorder %s22, %s23
    %p37 = scmp.eq.s32.totalorder %s15, 1
    %p38 = por %p36, %p37
    %p40 = scmp.ne.s32.totalorder %s23, %s39
    %p41 = scmp.eq.s32.totalorder %s15, 0
    %p42 = por %p40, %p41
    %s44 = sadd.s32 %s43, 1
    %p47 = scmp.eq.s32.totalorder %s9, 1
    %p48 = scmp.ne.s32.totalorder %s43, %s45
    %p49 = scmp.eq.s32.totalorder %s9, 0
    %p50 = por %p48, %p49
    %p51 = scmp.ne.s32.totalorder %s43, %s45
    %p52 = scmp.eq.s32.totalorder %s14, 1
    %p53 = por %p51, %p52
    %p54 = scmp.ne.s32.totalorder %s45, %s46
    %p55 = scmp.eq.s32.totalorder %s14, 0
    %p56 = por %p54, %p55
    %p57 = scmp.ne.s32.totalorder %s45, %s46
    %p58 = scmp.eq.s32.totalorder %s15, 1
    %p59 = por %p57, %p58
    %p61 = scmp.ne.s32.totalorder %s46, %s60
    %p62 = scmp.eq.s32.totalorder %s15, 0
    %p63 = por %p61, %p62
    %s65 = sadd.s32 %s64, 1
    %p68 = scmp.eq.s32.totalorder %s9, 1
    %p69 = scmp.ne.s32.totalorder %s64, %s66
    %p70 = scmp.eq.s32.totalorder %s9, 0
    %p71 = por %p69, %p70
    %p72 = scmp.ne.s32.totalorder %s64, %s66
    %p73 = scmp.eq.s32.totalorder %s14, 1
    %p74 = por %p72, %p73
    %p75 = scmp.ne.s32.totalorder %s66, %s67
    %p76 = scmp.eq.s32.totalorder %s14, 0
    %p77 = por %p75, %p76
    %p78 = scmp.ne.s32.totalorder %s66, %s67
    %p79 = scmp.eq.s32.totalorder %s15, 1
    %p80 = por %p78, %p79
    %p82 = scmp.ne.s32.totalorder %s67, %s81
    %p83 = scmp.eq.s32.totalorder %s15, 0
    %p84 = por %p82, %p83
    %s85 = ssub.s32 %s9, %s16
    %p86 = scmp.eq.s32.totalorder %s85, 0
    %s88 = sadd.s32 %s87, 1
    %s89 = scalar_select %p86, %s87, %s88
    %p92 = pneg %p86
    %p93 = scmp.eq.s32.totalorder %s9, 1
    %p94 = por %p92, %p93
    %p95 = scmp.ne.s32.totalorder %s87, %s90
    %p96 = scmp.eq.s32.totalorder %s9, 0
    %p97 = por %p95, %p96
    %p98 = scmp.ne.s32.totalorder %s87, %s90
    %p99 = scmp.eq.s32.totalorder %s14, 1
    %p100 = por %p98, %p99
    %p101 = scmp.ne.s32.totalorder %s90, %s91
    %p102 = scmp.eq.s32.totalorder %s14, 0
    %p103 = por %p101, %p102
    %p104 = scmp.ne.s32.totalorder %s90, %s91
    %p105 = scmp.eq.s32.totalorder %s15, 1
    %p106 = por %p104, %p105
    %p108 = scmp.ne.s32.totalorder %s91, %s107
    %p109 = scmp.eq.s32.totalorder %s15, 0
    %p110 = por %p108, %p109
    %p111 = scmp.le.s32.totalorder 1, %s9
    %p112 = scmp.lt.s32.totalorder %s9, 3
    %p113 = pnand %p111, %p112
    %p114 = pneg %p113
    // Predicated region
    $region9: #{net_forward.4} parent=5 // pred_check
      _
    $region10: #{net_forward.4} parent=5 // pred_check_branch
      %116 = sbr.rel (%p113) target = $region12
    $region11: #{net_forward.4} parent=5 // pred_region
      %s117 = ssub.s32 %s9, 1
      // Predicated region
      $region13: #{net_forward.4} parent=11 // pred_check
        %p118 = pneg %p56
      $region14: #{net_forward.4} parent=11 // pred_check_branch
        %120 = sbr.rel (%p118) target = $region16
      $region15: #{net_forward.4} parent=11 // pred_region
        _
      $region16: #{net_forward.4} parent=11 // pred_fallthru
        _
      // Predicated region
      $region17: #{net_forward.4} parent=11 // pred_check
        %p121 = pneg %p77
      $region18: #{net_forward.4} parent=11 // pred_check_branch
        %123 = sbr.rel (%p121) target = $region20
      $region19: #{net_forward.4} parent=11 // pred_region
        _
      $region20: #{net_forward.4} parent=11 // pred_fallthru
        _
    $region12: #{net_forward.4} parent=5 // pred_fallthru
      _
    %p124 = scmp.lt.s32.totalorder %s9, 2
    // Predicated region
    $region21: #{net_forward.4} parent=5 // pred_check
      %p125 = pneg %p124
    $region22: #{net_forward.4} parent=5 // pred_check_branch
      %127 = sbr.rel (%p125) target = $region24
    $region23: #{net_forward.4} parent=5 // pred_region
      // Predicated region
      $region25: #{net_forward.4} parent=23 // pred_check
        %p128 = pneg %p29
      $region26: #{net_forward.4} parent=23 // pred_check_branch
        %130 = sbr.rel (%p128) target = $region28
      $region27: #{net_forward.4} parent=23 // pred_region
        %p131 = scmp.lt.s32.totalorder %s9, 1
        %s132 = scalar_select %p131, %s9, 1
        %s133 = smul.addr %s132, 950
        %s134 = smul.addr %s133, 4
        %s135 = scalar_lea.vmem %s0, %s134
      $region28: #{net_forward.4} parent=23 // pred_fallthru
        _
    $region24: #{net_forward.4} parent=5 // pred_fallthru
      _
    %p136 = scmp.le.s32.totalorder 1, %s9
    %p137 = scmp.lt.s32.totalorder %s9, 3
    %p138 = pnand %p136, %p137
    %p139 = pneg %p138
    // Predicated region
    $region29: #{net_forward.4} parent=5 // pred_check
      _
    $region30: #{net_forward.4} parent=5 // pred_check_branch
      %141 = sbr.rel (%p138) target = $region32
    $region31: #{net_forward.4} parent=5 // pred_region
      %s142 = ssub.s32 %s9, 1
      %p143 = scmp.lt.s32.totalorder %s14, 1
      %s144 = scalar_select %p143, %s14, 1
      %s145 = smul.addr %s144, 950
      %s146 = smul.addr %s145, 4
      %s147 = scalar_lea.vmem %s0, %s146
      %p148 = pneg %p35
      %p149 = pneg %p32
      %p150 = pneg %p56
      %p151 = pneg %p53
      %p152 = pneg %p77
      %p153 = pneg %p74
      %p154 = pneg %p103
      %p155 = pneg %p100
      %p156 = scmp.lt.s32.totalorder %s14, 1
      %s157 = scalar_select %p156, %s14, 1
      %s158 = smul.addr %s157, 95
      %s159 = smul.addr %s158, 8
      %s160 = scalar_lea.vmem %s3, %s159
      %p161 = scmp.lt.s32.totalorder %s14, 1
      %s162 = scalar_select %p161, %s14, 1
      %s163 = smul.addr %s162, 950
      %s164 = smul.addr %s163, 4
      %s165 = scalar_lea.vmem %s0, %s164
      %p166 = scmp.lt.s32.totalorder %s14, 1
      %s167 = scalar_select %p166, %s14, 1
      %s168 = smul.addr %s167, 95
      %s169 = smul.addr %s168, 8
      %s170 = scalar_lea.vmem %s3, %s169
      %v172 = vld [vmem:[%s1] sm:$0x7]
      %v173 = vld [vmem:[%s165] sm:$0xff]
      %v174 = vld [vmem:[%s165 + $0x8] sm:$0xff]
      %v175 = vld [vmem:[%s165 + $0x10] sm:$0xff]
      %v176 = vld [vmem:[%s165 + $0x18] sm:$0xff]
      %v177 = vld [vmem:[%s165 + $0x20] sm:$0xff]
      %v178 = vld [vmem:[%s165 + $0x28] sm:$0xff]
      %v179 = vld [vmem:[%s165 + $0x30] sm:$0xff]
      %v180 = vld [vmem:[%s165 + $0x38] sm:$0xff]
      %v181 = vld [vmem:[%s165 + $0x40] sm:$0xff]
      %v182 = vld [vmem:[%s165 + $0x48] sm:$0xff]
      %v183 = vld [vmem:[%s165 + $0x50] sm:$0xff]
      %v184 = vld [vmem:[%s165 + $0x58] sm:$0xff]
      %v185 = vld [vmem:[%s165 + $0x60] sm:$0xff]
      %v186 = vld [vmem:[%s165 + $0x68] sm:$0xff]
      %v187 = vld [vmem:[%s165 + $0x70] sm:$0xff]
      %v188 = vld [vmem:[%s165 + $0x78] sm:$0xff]
      %v189 = vld [vmem:[%s165 + $0x80] sm:$0xff]
      %v190 = vld [vmem:[%s165 + $0x88] sm:$0xff]
      %v191 = vld [vmem:[%s165 + $0x90] sm:$0xff]
      %v192 = vld [vmem:[%s165 + $0x98] sm:$0xff]
      %v193 = vld [vmem:[%s165 + $0xa0] sm:$0xff]
      %v194 = vld [vmem:[%s165 + $0xa8] sm:$0xff]
      %v195 = vld [vmem:[%s165 + $0xb0] sm:$0xff]
      %v196 = vld [vmem:[%s165 + $0xb8] sm:$0xff]
      %v197 = vld [vmem:[%s165 + $0xc0] sm:$0xff]
      %v198 = vld [vmem:[%s165 + $0xc8] sm:$0xff]
      %v199 = vld [vmem:[%s165 + $0xd0] sm:$0xff]
      %v200 = vld [vmem:[%s165 + $0xd8] sm:$0xff]
      %v201 = vld [vmem:[%s165 + $0xe0] sm:$0xff]
      %v202 = vld [vmem:[%s165 + $0xe8] sm:$0xff]
      %v203 = vld [vmem:[%s165 + $0xf0] sm:$0xff]
      %v204 = vld [vmem:[%s165 + $0xf8] sm:$0xff]
      %v205 = vld [vmem:[%s165 + $0x100] sm:$0xff]
      %v206 = vld [vmem:[%s165 + $0x108] sm:$0xff]
      %v207 = vld [vmem:[%s165 + $0x110] sm:$0xff]
      %v208 = vld [vmem:[%s165 + $0x118] sm:$0xff]
      %v209 = vld [vmem:[%s165 + $0x120] sm:$0xff]
      %v210 = vld [vmem:[%s165 + $0x128] sm:$0xff]
      %v211 = vld [vmem:[%s165 + $0x130] sm:$0xff]
      %v212 = vld [vmem:[%s165 + $0x138] sm:$0xff]
      %v213 = vld [vmem:[%s165 + $0x140] sm:$0xff]
      %v214 = vld [vmem:[%s165 + $0x148] sm:$0xff]
      %v215 = vld [vmem:[%s165 + $0x150] sm:$0xff]
      %v216 = vld [vmem:[%s165 + $0x158] sm:$0xff]
      %v217 = vld [vmem:[%s165 + $0x160] sm:$0xff]
      %v218 = vld [vmem:[%s165 + $0x168] sm:$0xff]
      %v219 = vld [vmem:[%s165 + $0x170] sm:$0xff]
      %v220 = vld [vmem:[%s165 + $0x178] sm:$0xf]
      %v221 = vld [vmem:[%s165 + $0x17c] sm:$0xff]
      %v222 = vld [vmem:[%s165 + $0x184] sm:$0xff]
      %v223 = vld [vmem:[%s165 + $0x18c] sm:$0xff]
      %v224 = vld [vmem:[%s165 + $0x194] sm:$0xff]
      %v225 = vld [vmem:[%s165 + $0x19c] sm:$0xff]
      %v226 = vld [vmem:[%s165 + $0x1a4] sm:$0xff]
      %v227 = vld [vmem:[%s165 + $0x1ac] sm:$0xff]
      %v228 = vld [vmem:[%s165 + $0x1b4] sm:$0xff]
      %v229 = vld [vmem:[%s165 + $0x1bc] sm:$0xff]
      %v230 = vld [vmem:[%s165 + $0x1c4] sm:$0xff]
      %v231 = vld [vmem:[%s165 + $0x1cc] sm:$0xff]
      %v232 = vld [vmem:[%s165 + $0x1d4] sm:$0xff]
      %v233 = vld [vmem:[%s165 + $0x1dc] sm:$0xff]
      %v234 = vld [vmem:[%s165 + $0x1e4] sm:$0xff]
      %v235 = vld [vmem:[%s165 + $0x1ec] sm:$0xff]
      %v236 = vld [vmem:[%s165 + $0x1f4] sm:$0xff]
      %v237 = vld [vmem:[%s165 + $0x1fc] sm:$0xff]
      %v238 = vld [vmem:[%s165 + $0x204] sm:$0xff]
      %v239 = vld [vmem:[%s165 + $0x20c] sm:$0xff]
      %v240 = vld [vmem:[%s165 + $0x214] sm:$0xff]
      %v241 = vld [vmem:[%s165 + $0x21c] sm:$0xff]
      %v242 = vld [vmem:[%s165 + $0x224] sm:$0xff]
      %v243 = vld [vmem:[%s165 + $0x22c] sm:$0xff]
      %v244 = vld [vmem:[%s165 + $0x234] sm:$0xff]
      %v245 = vld [vmem:[%s165 + $0x23c] sm:$0xff]
      %v246 = vld [vmem:[%s165 + $0x244] sm:$0xff]
      %v247 = vld [vmem:[%s165 + $0x24c] sm:$0xff]
      %v248 = vld [vmem:[%s165 + $0x254] sm:$0xff]
      %v249 = vld [vmem:[%s165 + $0x25c] sm:$0xff]
      %v250 = vld [vmem:[%s165 + $0x264] sm:$0xff]
      %v251 = vld [vmem:[%s165 + $0x26c] sm:$0xff]
      %v252 = vld [vmem:[%s165 + $0x274] sm:$0xff]
      %v253 = vld [vmem:[%s165 + $0x27c] sm:$0xff]
      %v254 = vld [vmem:[%s165 + $0x284] sm:$0xff]
      %v255 = vld [vmem:[%s165 + $0x28c] sm:$0xff]
      %v256 = vld [vmem:[%s165 + $0x294] sm:$0xff]
      %v257 = vld [vmem:[%s165 + $0x29c] sm:$0xff]
      %v258 = vld [vmem:[%s165 + $0x2a4] sm:$0xff]
      %v259 = vld [vmem:[%s165 + $0x2ac] sm:$0xff]
      %v260 = vld [vmem:[%s165 + $0x2b4] sm:$0xff]
      %v261 = vld [vmem:[%s165 + $0x2bc] sm:$0xff]
      %v262 = vld [vmem:[%s165 + $0x2c4] sm:$0xff]
      %v263 = vld [vmem:[%s165 + $0x2cc] sm:$0xff]
      %v264 = vld [vmem:[%s165 + $0x2d4] sm:$0xff]
      %v265 = vld [vmem:[%s165 + $0x2dc] sm:$0xff]
      %v266 = vld [vmem:[%s165 + $0x2e4] sm:$0xff]
      %v267 = vld [vmem:[%s165 + $0x2ec] sm:$0xff]
      %v268 = vld [vmem:[%s165 + $0x2f4] sm:$0xf]
      %v269 = vld [vmem:[%s165 + $0x2f8] sm:$0xff]
      %v270 = vld [vmem:[%s165 + $0x300] sm:$0xff]
      %v271 = vld [vmem:[%s165 + $0x308] sm:$0xff]
      %v272 = vld [vmem:[%s165 + $0x310] sm:$0xff]
      %v273 = vld [vmem:[%s165 + $0x318] sm:$0xff]
      %v274 = vld [vmem:[%s165 + $0x320] sm:$0xff]
      %v275 = vld [vmem:[%s165 + $0x328] sm:$0xff]
      %v276 = vld [vmem:[%s165 + $0x330] sm:$0xff]
      %v277 = vld [vmem:[%s165 + $0x338] sm:$0xff]
      %v278 = vld [vmem:[%s165 + $0x340] sm:$0xff]
      %v279 = vld [vmem:[%s165 + $0x348] sm:$0xff]
      %v280 = vld [vmem:[%s165 + $0x350] sm:$0xff]
      %v281 = vld [vmem:[%s165 + $0x358] sm:$0xff]
      %v282 = vld [vmem:[%s165 + $0x360] sm:$0xff]
      %v283 = vld [vmem:[%s165 + $0x368] sm:$0xff]
      %v284 = vld [vmem:[%s165 + $0x370] sm:$0xff]
      %v285 = vld [vmem:[%s165 + $0x378] sm:$0xff]
      %v286 = vld [vmem:[%s165 + $0x380] sm:$0xff]
      %v287 = vld [vmem:[%s165 + $0x388] sm:$0xff]
      %v288 = vld [vmem:[%s165 + $0x390] sm:$0xff]
      %v289 = vld [vmem:[%s165 + $0x398] sm:$0xff]
      %v290 = vld [vmem:[%s165 + $0x3a0] sm:$0xff]
      %v291 = vld [vmem:[%s165 + $0x3a8] sm:$0xff]
      %v292 = vld [vmem:[%s165 + $0x3b0] sm:$0xff]
      %v293 = vld [vmem:[%s165 + $0x3b8] sm:$0xff]
      %v294 = vld [vmem:[%s165 + $0x3c0] sm:$0xff]
      %v295 = vld [vmem:[%s165 + $0x3c8] sm:$0xff]
      %v296 = vld [vmem:[%s165 + $0x3d0] sm:$0xff]
      %v297 = vld [vmem:[%s165 + $0x3d8] sm:$0xff]
      %v298 = vld [vmem:[%s165 + $0x3e0] sm:$0xff]
      %v299 = vld [vmem:[%s165 + $0x3e8] sm:$0xff]
      %v300 = vld [vmem:[%s165 + $0x3f0] sm:$0xff]
      %v301 = vld [vmem:[%s165 + $0x3f8] sm:$0xff]
      %v302 = vld [vmem:[%s165 + $0x400] sm:$0xff]
      %v303 = vld [vmem:[%s165 + $0x408] sm:$0xff]
      %v304 = vld [vmem:[%s165 + $0x410] sm:$0xff]
      %v305 = vld [vmem:[%s165 + $0x418] sm:$0xff]
      %v306 = vld [vmem:[%s165 + $0x420] sm:$0xff]
      %v307 = vld [vmem:[%s165 + $0x428] sm:$0xff]
      %v308 = vld [vmem:[%s165 + $0x430] sm:$0xff]
      %v309 = vld [vmem:[%s165 + $0x438] sm:$0xff]
      %v310 = vld [vmem:[%s165 + $0x440] sm:$0xff]
      %v311 = vld [vmem:[%s165 + $0x448] sm:$0xff]
      %v312 = vld [vmem:[%s165 + $0x450] sm:$0xff]
      %v313 = vld [vmem:[%s165 + $0x458] sm:$0xff]
      %v314 = vld [vmem:[%s165 + $0x460] sm:$0xff]
      %v315 = vld [vmem:[%s165 + $0x468] sm:$0xff]
      %v316 = vld [vmem:[%s165 + $0x470] sm:$0xf]
      %v317 = vld [vmem:[%s165 + $0x474] sm:$0xff]
      %v318 = vld [vmem:[%s165 + $0x47c] sm:$0xff]
      %v319 = vld [vmem:[%s165 + $0x484] sm:$0xff]
      %v320 = vld [vmem:[%s165 + $0x48c] sm:$0xff]
      %v321 = vld [vmem:[%s165 + $0x494] sm:$0xff]
      %v322 = vld [vmem:[%s165 + $0x49c] sm:$0xff]
      %v323 = vld [vmem:[%s165 + $0x4a4] sm:$0xff]
      %v324 = vld [vmem:[%s165 + $0x4ac] sm:$0xff]
      %v325 = vld [vmem:[%s165 + $0x4b4] sm:$0xff]
      %v326 = vld [vmem:[%s165 + $0x4bc] sm:$0xff]
      %v327 = vld [vmem:[%s165 + $0x4c4] sm:$0xff]
      %v328 = vld [vmem:[%s165 + $0x4cc] sm:$0xff]
      %v329 = vld [vmem:[%s165 + $0x4d4] sm:$0xff]
      %v330 = vld [vmem:[%s165 + $0x4dc] sm:$0xff]
      %v331 = vld [vmem:[%s165 + $0x4e4] sm:$0xff]
      %v332 = vld [vmem:[%s165 + $0x4ec] sm:$0xff]
      %v333 = vld [vmem:[%s165 + $0x4f4] sm:$0xff]
      %v334 = vld [vmem:[%s165 + $0x4fc] sm:$0xff]
      %v335 = vld [vmem:[%s165 + $0x504] sm:$0xff]
      %v336 = vld [vmem:[%s165 + $0x50c] sm:$0xff]
      %v337 = vld [vmem:[%s165 + $0x514] sm:$0xff]
      %v338 = vld [vmem:[%s165 + $0x51c] sm:$0xff]
      %v339 = vld [vmem:[%s165 + $0x524] sm:$0xff]
      %v340 = vld [vmem:[%s165 + $0x52c] sm:$0xff]
      %v341 = vld [vmem:[%s165 + $0x534] sm:$0xff]
      %v342 = vld [vmem:[%s165 + $0x53c] sm:$0xff]
      %v343 = vld [vmem:[%s165 + $0x544] sm:$0xff]
      %v344 = vld [vmem:[%s165 + $0x54c] sm:$0xff]
      %v345 = vld [vmem:[%s165 + $0x554] sm:$0xff]
      %v346 = vld [vmem:[%s165 + $0x55c] sm:$0xff]
      %v347 = vld [vmem:[%s165 + $0x564] sm:$0xff]
      %v348 = vld [vmem:[%s165 + $0x56c] sm:$0xff]
      %v349 = vld [vmem:[%s165 + $0x574] sm:$0xff]
      %v350 = vld [vmem:[%s165 + $0x57c] sm:$0xff]
      %v351 = vld [vmem:[%s165 + $0x584] sm:$0xff]
      %v352 = vld [vmem:[%s165 + $0x58c] sm:$0xff]
      %v353 = vld [vmem:[%s165 + $0x594] sm:$0xff]
      %v354 = vld [vmem:[%s165 + $0x59c] sm:$0xff]
      %v355 = vld [vmem:[%s165 + $0x5a4] sm:$0xff]
      %v356 = vld [vmem:[%s165 + $0x5ac] sm:$0xff]
      %v357 = vld [vmem:[%s165 + $0x5b4] sm:$0xff]
      %v358 = vld [vmem:[%s165 + $0x5bc] sm:$0xff]
      %v359 = vld [vmem:[%s165 + $0x5c4] sm:$0xff]
      %v360 = vld [vmem:[%s165 + $0x5cc] sm:$0xff]
      %v361 = vld [vmem:[%s165 + $0x5d4] sm:$0xff]
      %v362 = vld [vmem:[%s165 + $0x5dc] sm:$0xff]
      %v363 = vld [vmem:[%s165 + $0x5e4] sm:$0xff]
      %v364 = vld [vmem:[%s165 + $0x5ec] sm:$0xf]
      %v365 = vld [vmem:[%s165 + $0x5f0] sm:$0xff]
      %v366 = vld [vmem:[%s165 + $0x5f8] sm:$0xff]
      %v367 = vld [vmem:[%s165 + $0x600] sm:$0xff]
      %v368 = vld [vmem:[%s165 + $0x608] sm:$0xff]
      %v369 = vld [vmem:[%s165 + $0x610] sm:$0xff]
      %v370 = vld [vmem:[%s165 + $0x618] sm:$0xff]
      %v371 = vld [vmem:[%s165 + $0x620] sm:$0xff]
      %v372 = vld [vmem:[%s165 + $0x628] sm:$0xff]
      %v373 = vld [vmem:[%s165 + $0x630] sm:$0xff]
      %v374 = vld [vmem:[%s165 + $0x638] sm:$0xff]
      %v375 = vld [vmem:[%s165 + $0x640] sm:$0xff]
      %v376 = vld [vmem:[%s165 + $0x648] sm:$0xff]
      %v377 = vld [vmem:[%s165 + $0x650] sm:$0xff]
      %v378 = vld [vmem:[%s165 + $0x658] sm:$0xff]
      %v379 = vld [vmem:[%s165 + $0x660] sm:$0xff]
      %v380 = vld [vmem:[%s165 + $0x668] sm:$0xff]
      %v381 = vld [vmem:[%s165 + $0x670] sm:$0xff]
      %v382 = vld [vmem:[%s165 + $0x678] sm:$0xff]
      %v383 = vld [vmem:[%s165 + $0x680] sm:$0xff]
      %v384 = vld [vmem:[%s165 + $0x688] sm:$0xff]
      %v385 = vld [vmem:[%s165 + $0x690] sm:$0xff]
      %v386 = vld [vmem:[%s165 + $0x698] sm:$0xff]
      %v387 = vld [vmem:[%s165 + $0x6a0] sm:$0xff]
      %v388 = vld [vmem:[%s165 + $0x6a8] sm:$0xff]
      %v389 = vld [vmem:[%s165 + $0x6b0] sm:$0xff]
      %v390 = vld [vmem:[%s165 + $0x6b8] sm:$0xff]
      %v391 = vld [vmem:[%s165 + $0x6c0] sm:$0xff]
      %v392 = vld [vmem:[%s165 + $0x6c8] sm:$0xff]
      %v393 = vld [vmem:[%s165 + $0x6d0] sm:$0xff]
      %v394 = vld [vmem:[%s165 + $0x6d8] sm:$0xff]
      %v395 = vld [vmem:[%s165 + $0x6e0] sm:$0xff]
      %v396 = vld [vmem:[%s165 + $0x6e8] sm:$0xff]
      %v397 = vld [vmem:[%s165 + $0x6f0] sm:$0xff]
      %v398 = vld [vmem:[%s165 + $0x6f8] sm:$0xff]
      %v399 = vld [vmem:[%s165 + $0x700] sm:$0xff]
      %v400 = vld [vmem:[%s165 + $0x708] sm:$0xff]
      %v401 = vld [vmem:[%s165 + $0x710] sm:$0xff]
      %v402 = vld [vmem:[%s165 + $0x718] sm:$0xff]
      %v403 = vld [vmem:[%s165 + $0x720] sm:$0xff]
      %v404 = vld [vmem:[%s165 + $0x728] sm:$0xff]
      %v405 = vld [vmem:[%s165 + $0x730] sm:$0xff]
      %v406 = vld [vmem:[%s165 + $0x738] sm:$0xff]
      %v407 = vld [vmem:[%s165 + $0x740] sm:$0xff]
      %v408 = vld [vmem:[%s165 + $0x748] sm:$0xff]
      %v409 = vld [vmem:[%s165 + $0x750] sm:$0xff]
      %v410 = vld [vmem:[%s165 + $0x758] sm:$0xff]
      %v411 = vld [vmem:[%s165 + $0x760] sm:$0xff]
      %v412 = vld [vmem:[%s165 + $0x768] sm:$0xf]
      %v413 = vld [vmem:[%s165 + $0x76c] sm:$0xff]
      %v414 = vld [vmem:[%s165 + $0x774] sm:$0xff]
      %v415 = vld [vmem:[%s165 + $0x77c] sm:$0xff]
      %v416 = vld [vmem:[%s165 + $0x784] sm:$0xff]
      %v417 = vld [vmem:[%s165 + $0x78c] sm:$0xff]
      %v418 = vld [vmem:[%s165 + $0x794] sm:$0xff]
      %v419 = vld [vmem:[%s165 + $0x79c] sm:$0xff]
      %v420 = vld [vmem:[%s165 + $0x7a4] sm:$0xff]
      %v421 = vld [vmem:[%s165 + $0x7ac] sm:$0xff]
      %v422 = vld [vmem:[%s165 + $0x7b4] sm:$0xff]
      %v423 = vld [vmem:[%s165 + $0x7bc] sm:$0xff]
      %v424 = vld [vmem:[%s165 + $0x7c4] sm:$0xff]
      %v425 = vld [vmem:[%s165 + $0x7cc] sm:$0xff]
      %v426 = vld [vmem:[%s165 + $0x7d4] sm:$0xff]
      %v427 = vld [vmem:[%s165 + $0x7dc] sm:$0xff]
      %v428 = vld [vmem:[%s165 + $0x7e4] sm:$0xff]
      %v429 = vld [vmem:[%s165 + $0x7ec] sm:$0xff]
      %v430 = vld [vmem:[%s165 + $0x7f4] sm:$0xff]
      %v431 = vld [vmem:[%s165 + $0x7fc] sm:$0xff]
      %v432 = vld [vmem:[%s165 + $0x804] sm:$0xff]
      %v433 = vld [vmem:[%s165 + $0x80c] sm:$0xff]
      %v434 = vld [vmem:[%s165 + $0x814] sm:$0xff]
      %v435 = vld [vmem:[%s165 + $0x81c] sm:$0xff]
      %v436 = vld [vmem:[%s165 + $0x824] sm:$0xff]
      %v437 = vld [vmem:[%s165 + $0x82c] sm:$0xff]
      %v438 = vld [vmem:[%s165 + $0x834] sm:$0xff]
      %v439 = vld [vmem:[%s165 + $0x83c] sm:$0xff]
      %v440 = vld [vmem:[%s165 + $0x844] sm:$0xff]
      %v441 = vld [vmem:[%s165 + $0x84c] sm:$0xff]
      %v442 = vld [vmem:[%s165 + $0x854] sm:$0xff]
      %v443 = vld [vmem:[%s165 + $0x85c] sm:$0xff]
      %v444 = vld [vmem:[%s165 + $0x864] sm:$0xff]
      %v445 = vld [vmem:[%s165 + $0x86c] sm:$0xff]
      %v446 = vld [vmem:[%s165 + $0x874] sm:$0xff]
      %v447 = vld [vmem:[%s165 + $0x87c] sm:$0xff]
      %v448 = vld [vmem:[%s165 + $0x884] sm:$0xff]
      %v449 = vld [vmem:[%s165 + $0x88c] sm:$0xff]
      %v450 = vld [vmem:[%s165 + $0x894] sm:$0xff]
      %v451 = vld [vmem:[%s165 + $0x89c] sm:$0xff]
      %v452 = vld [vmem:[%s165 + $0x8a4] sm:$0xff]
      %v453 = vld [vmem:[%s165 + $0x8ac] sm:$0xff]
      %v454 = vld [vmem:[%s165 + $0x8b4] sm:$0xff]
      %v455 = vld [vmem:[%s165 + $0x8bc] sm:$0xff]
      %v456 = vld [vmem:[%s165 + $0x8c4] sm:$0xff]
      %v457 = vld [vmem:[%s165 + $0x8cc] sm:$0xff]
      %v458 = vld [vmem:[%s165 + $0x8d4] sm:$0xff]
      %v459 = vld [vmem:[%s165 + $0x8dc] sm:$0xff]
      %v460 = vld [vmem:[%s165 + $0x8e4] sm:$0xf]
      %v461 = vld [vmem:[%s165 + $0x8e8] sm:$0xff]
      %v462 = vld [vmem:[%s165 + $0x8f0] sm:$0xff]
      %v463 = vld [vmem:[%s165 + $0x8f8] sm:$0xff]
      %v464 = vld [vmem:[%s165 + $0x900] sm:$0xff]
      %v465 = vld [vmem:[%s165 + $0x908] sm:$0xff]
      %v466 = vld [vmem:[%s165 + $0x910] sm:$0xff]
      %v467 = vld [vmem:[%s165 + $0x918] sm:$0xff]
      %v468 = vld [vmem:[%s165 + $0x920] sm:$0xff]
      %v469 = vld [vmem:[%s165 + $0x928] sm:$0xff]
      %v470 = vld [vmem:[%s165 + $0x930] sm:$0xff]
      %v471 = vld [vmem:[%s165 + $0x938] sm:$0xff]
      %v472 = vld [vmem:[%s165 + $0x940] sm:$0xff]
      %v473 = vld [vmem:[%s165 + $0x948] sm:$0xff]
      %v474 = vld [vmem:[%s165 + $0x950] sm:$0xff]
      %v475 = vld [vmem:[%s165 + $0x958] sm:$0xff]
      %v476 = vld [vmem:[%s165 + $0x960] sm:$0xff]
      %v477 = vld [vmem:[%s165 + $0x968] sm:$0xff]
      %v478 = vld [vmem:[%s165 + $0x970] sm:$0xff]
      %v479 = vld [vmem:[%s165 + $0x978] sm:$0xff]
      %v480 = vld [vmem:[%s165 + $0x980] sm:$0xff]
      %v481 = vld [vmem:[%s165 + $0x988] sm:$0xff]
      %v482 = vld [vmem:[%s165 + $0x990] sm:$0xff]
      %v483 = vld [vmem:[%s165 + $0x998] sm:$0xff]
      %v484 = vld [vmem:[%s165 + $0x9a0] sm:$0xff]
      %v485 = vld [vmem:[%s165 + $0x9a8] sm:$0xff]
      %v486 = vld [vmem:[%s165 + $0x9b0] sm:$0xff]
      %v487 = vld [vmem:[%s165 + $0x9b8] sm:$0xff]
      %v488 = vld [vmem:[%s165 + $0x9c0] sm:$0xff]
      %v489 = vld [vmem:[%s165 + $0x9c8] sm:$0xff]
      %v490 = vld [vmem:[%s165 + $0x9d0] sm:$0xff]
      %v491 = vld [vmem:[%s165 + $0x9d8] sm:$0xff]
      %v492 = vld [vmem:[%s165 + $0x9e0] sm:$0xff]
      %v493 = vld [vmem:[%s165 + $0x9e8] sm:$0xff]
      %v494 = vld [vmem:[%s165 + $0x9f0] sm:$0xff]
      %v495 = vld [vmem:[%s165 + $0x9f8] sm:$0xff]
      %v496 = vld [vmem:[%s165 + $0xa00] sm:$0xff]
      %v497 = vld [vmem:[%s165 + $0xa08] sm:$0xff]
      %v498 = vld [vmem:[%s165 + $0xa10] sm:$0xff]
      %v499 = vld [vmem:[%s165 + $0xa18] sm:$0xff]
      %v500 = vld [vmem:[%s165 + $0xa20] sm:$0xff]
      %v501 = vld [vmem:[%s165 + $0xa28] sm:$0xff]
      %v502 = vld [vmem:[%s165 + $0xa30] sm:$0xff]
      %v503 = vld [vmem:[%s165 + $0xa38] sm:$0xff]
      %v504 = vld [vmem:[%s165 + $0xa40] sm:$0xff]
      %v505 = vld [vmem:[%s165 + $0xa48] sm:$0xff]
      %v506 = vld [vmem:[%s165 + $0xa50] sm:$0xff]
      %v507 = vld [vmem:[%s165 + $0xa58] sm:$0xff]
      %v508 = vld [vmem:[%s165 + $0xa60] sm:$0xf]
      %v509 = vld [vmem:[%s165 + $0xa64] sm:$0xff]
      %v510 = vld [vmem:[%s165 + $0xa6c] sm:$0xff]
      %v511 = vld [vmem:[%s165 + $0xa74] sm:$0xff]
      %v512 = vld [vmem:[%s165 + $0xa7c] sm:$0xff]
      %v513 = vld [vmem:[%s165 + $0xa84] sm:$0xff]
      %v514 = vld [vmem:[%s165 + $0xa8c] sm:$0xff]
      %v515 = vld [vmem:[%s165 + $0xa94] sm:$0xff]
      %v516 = vld [vmem:[%s165 + $0xa9c] sm:$0xff]
      %v517 = vld [vmem:[%s165 + $0xaa4] sm:$0xff]
      %v518 = vld [vmem:[%s165 + $0xaac] sm:$0xff]
      %v519 = vld [vmem:[%s165 + $0xab4] sm:$0xff]
      %v520 = vld [vmem:[%s165 + $0xabc] sm:$0xff]
      %v521 = vld [vmem:[%s165 + $0xac4] sm:$0xff]
      %v522 = vld [vmem:[%s165 + $0xacc] sm:$0xff]
      %v523 = vld [vmem:[%s165 + $0xad4] sm:$0xff]
      %v524 = vld [vmem:[%s165 + $0xadc] sm:$0xff]
      %v525 = vld [vmem:[%s165 + $0xae4] sm:$0xff]
      %v526 = vld [vmem:[%s165 + $0xaec] sm:$0xff]
      %v527 = vld [vmem:[%s165 + $0xaf4] sm:$0xff]
      %v528 = vld [vmem:[%s165 + $0xafc] sm:$0xff]
      %v529 = vld [vmem:[%s165 + $0xb04] sm:$0xff]
      %v530 = vld [vmem:[%s165 + $0xb0c] sm:$0xff]
      %v531 = vld [vmem:[%s165 + $0xb14] sm:$0xff]
      %v532 = vld [vmem:[%s165 + $0xb1c] sm:$0xff]
      %v533 = vld [vmem:[%s165 + $0xb24] sm:$0xff]
      %v534 = vld [vmem:[%s165 + $0xb2c] sm:$0xff]
      %v535 = vld [vmem:[%s165 + $0xb34] sm:$0xff]
      %v536 = vld [vmem:[%s165 + $0xb3c] sm:$0xff]
      %v537 = vld [vmem:[%s165 + $0xb44] sm:$0xff]
      %v538 = vld [vmem:[%s165 + $0xb4c] sm:$0xff]
      %v539 = vld [vmem:[%s165 + $0xb54] sm:$0xff]
      %v540 = vld [vmem:[%s165 + $0xb5c] sm:$0xff]
      %v541 = vld [vmem:[%s165 + $0xb64] sm:$0xff]
      %v542 = vld [vmem:[%s165 + $0xb6c] sm:$0xff]
      %v543 = vld [vmem:[%s165 + $0xb74] sm:$0xff]
      %v544 = vld [vmem:[%s165 + $0xb7c] sm:$0xff]
      %v545 = vld [vmem:[%s165 + $0xb84] sm:$0xff]
      %v546 = vld [vmem:[%s165 + $0xb8c] sm:$0xff]
      %v547 = vld [vmem:[%s165 + $0xb94] sm:$0xff]
      %v548 = vld [vmem:[%s165 + $0xb9c] sm:$0xff]
      %v549 = vld [vmem:[%s165 + $0xba4] sm:$0xff]
      %v550 = vld [vmem:[%s165 + $0xbac] sm:$0xff]
      %v551 = vld [vmem:[%s165 + $0xbb4] sm:$0xff]
      %v552 = vld [vmem:[%s165 + $0xbbc] sm:$0xff]
      %v553 = vld [vmem:[%s165 + $0xbc4] sm:$0xff]
      %v554 = vld [vmem:[%s165 + $0xbcc] sm:$0xff]
      %v555 = vld [vmem:[%s165 + $0xbd4] sm:$0xff]
      %v556 = vld [vmem:[%s165 + $0xbdc] sm:$0xf]
      %v557 = vld [vmem:[%s165 + $0xbe0] sm:$0xff]
      %v558 = vld [vmem:[%s165 + $0xbe8] sm:$0xff]
      %v559 = vld [vmem:[%s165 + $0xbf0] sm:$0xff]
      %v560 = vld [vmem:[%s165 + $0xbf8] sm:$0xff]
      %v561 = vld [vmem:[%s165 + $0xc00] sm:$0xff]
      %v562 = vld [vmem:[%s165 + $0xc08] sm:$0xff]
      %v563 = vld [vmem:[%s165 + $0xc10] sm:$0xff]
      %v564 = vld [vmem:[%s165 + $0xc18] sm:$0xff]
      %v565 = vld [vmem:[%s165 + $0xc20] sm:$0xff]
      %v566 = vld [vmem:[%s165 + $0xc28] sm:$0xff]
      %v567 = vld [vmem:[%s165 + $0xc30] sm:$0xff]
      %v568 = vld [vmem:[%s165 + $0xc38] sm:$0xff]
      %v569 = vld [vmem:[%s165 + $0xc40] sm:$0xff]
      %v570 = vld [vmem:[%s165 + $0xc48] sm:$0xff]
      %v571 = vld [vmem:[%s165 + $0xc50] sm:$0xff]
      %v572 = vld [vmem:[%s165 + $0xc58] sm:$0xff]
      %v573 = vld [vmem:[%s165 + $0xc60] sm:$0xff]
      %v574 = vld [vmem:[%s165 + $0xc68] sm:$0xff]
      %v575 = vld [vmem:[%s165 + $0xc70] sm:$0xff]
      %v576 = vld [vmem:[%s165 + $0xc78] sm:$0xff]
      %v577 = vld [vmem:[%s165 + $0xc80] sm:$0xff]
      %v578 = vld [vmem:[%s165 + $0xc88] sm:$0xff]
      %v579 = vld [vmem:[%s165 + $0xc90] sm:$0xff]
      %v580 = vld [vmem:[%s165 + $0xc98] sm:$0xff]
      %v581 = vld [vmem:[%s165 + $0xca0] sm:$0xff]
      %v582 = vld [vmem:[%s165 + $0xca8] sm:$0xff]
      %v583 = vld [vmem:[%s165 + $0xcb0] sm:$0xff]
      %v584 = vld [vmem:[%s165 + $0xcb8] sm:$0xff]
      %v585 = vld [vmem:[%s165 + $0xcc0] sm:$0xff]
      %v586 = vld [vmem:[%s165 + $0xcc8] sm:$0xff]
      %v587 = vld [vmem:[%s165 + $0xcd0] sm:$0xff]
      %v588 = vld [vmem:[%s165 + $0xcd8] sm:$0xff]
      %v589 = vld [vmem:[%s165 + $0xce0] sm:$0xff]
      %v590 = vld [vmem:[%s165 + $0xce8] sm:$0xff]
      %v591 = vld [vmem:[%s165 + $0xcf0] sm:$0xff]
      %v592 = vld [vmem:[%s165 + $0xcf8] sm:$0xff]
      %v593 = vld [vmem:[%s165 + $0xd00] sm:$0xff]
      %v594 = vld [vmem:[%s165 + $0xd08] sm:$0xff]
      %v595 = vld [vmem:[%s165 + $0xd10] sm:$0xff]
      %v596 = vld [vmem:[%s165 + $0xd18] sm:$0xff]
      %v597 = vld [vmem:[%s165 + $0xd20] sm:$0xff]
      %v598 = vld [vmem:[%s165 + $0xd28] sm:$0xff]
      %v599 = vld [vmem:[%s165 + $0xd30] sm:$0xff]
      %v600 = vld [vmem:[%s165 + $0xd38] sm:$0xff]
      %v601 = vld [vmem:[%s165 + $0xd40] sm:$0xff]
      %v602 = vld [vmem:[%s165 + $0xd48] sm:$0xff]
      %v603 = vld [vmem:[%s165 + $0xd50] sm:$0xff]
      %v604 = vld [vmem:[%s165 + $0xd58] sm:$0xf]
      %v605 = vld [vmem:[%s165 + $0xd5c] sm:$0x33]
      %v606 = vld [vmem:[%s165 + $0xd64] sm:$0x33]
      %v607 = vld [vmem:[%s165 + $0xd6c] sm:$0x33]
      %v608 = vld [vmem:[%s165 + $0xd74] sm:$0x33]
      %v609 = vld [vmem:[%s165 + $0xd7c] sm:$0x33]
      %v610 = vld [vmem:[%s165 + $0xd84] sm:$0x33]
      %v611 = vld [vmem:[%s165 + $0xd8c] sm:$0x33]
      %v612 = vld [vmem:[%s165 + $0xd94] sm:$0x33]
      %v613 = vld [vmem:[%s165 + $0xd9c] sm:$0x33]
      %v614 = vld [vmem:[%s165 + $0xda4] sm:$0x33]
      %v615 = vld [vmem:[%s165 + $0xdac] sm:$0x33]
      %v616 = vld [vmem:[%s165 + $0xdb4] sm:$0x33]
      %v617 = vld [vmem:[%s165 + $0xdbc] sm:$0x33]
      %v618 = vld [vmem:[%s165 + $0xdc4] sm:$0x33]
      %v619 = vld [vmem:[%s165 + $0xdcc] sm:$0x33]
      %v620 = vld [vmem:[%s165 + $0xdd4] sm:$0x33]
      %v621 = vld [vmem:[%s165 + $0xddc] sm:$0x33]
      %v622 = vld [vmem:[%s165 + $0xde4] sm:$0x33]
      %v623 = vld [vmem:[%s165 + $0xdec] sm:$0x33]
      %v624 = vld [vmem:[%s165 + $0xdf4] sm:$0x33]
      %v625 = vld [vmem:[%s165 + $0xdfc] sm:$0x33]
      %v626 = vld [vmem:[%s165 + $0xe04] sm:$0x33]
      %v627 = vld [vmem:[%s165 + $0xe0c] sm:$0x33]
      %v628 = vld [vmem:[%s165 + $0xe14] sm:$0x33]
      %v629 = vld [vmem:[%s165 + $0xe1c] sm:$0x33]
      %v630 = vld [vmem:[%s165 + $0xe24] sm:$0x33]
      %v631 = vld [vmem:[%s165 + $0xe2c] sm:$0x33]
      %v632 = vld [vmem:[%s165 + $0xe34] sm:$0x33]
      %v633 = vld [vmem:[%s165 + $0xe3c] sm:$0x33]
      %v634 = vld [vmem:[%s165 + $0xe44] sm:$0x33]
      %v635 = vld [vmem:[%s165 + $0xe4c] sm:$0x33]
      %v636 = vld [vmem:[%s165 + $0xe54] sm:$0x33]
      %v637 = vld [vmem:[%s165 + $0xe5c] sm:$0x33]
      %v638 = vld [vmem:[%s165 + $0xe64] sm:$0x33]
      %v639 = vld [vmem:[%s165 + $0xe6c] sm:$0x33]
      %v640 = vld [vmem:[%s165 + $0xe74] sm:$0x33]
      %v641 = vld [vmem:[%s165 + $0xe7c] sm:$0x33]
      %v642 = vld [vmem:[%s165 + $0xe84] sm:$0x33]
      %v643 = vld [vmem:[%s165 + $0xe8c] sm:$0x33]
      %v644 = vld [vmem:[%s165 + $0xe94] sm:$0x33]
      %v645 = vld [vmem:[%s165 + $0xe9c] sm:$0x33]
      %v646 = vld [vmem:[%s165 + $0xea4] sm:$0x33]
      %v647 = vld [vmem:[%s165 + $0xeac] sm:$0x33]
      %v648 = vld [vmem:[%s165 + $0xeb4] sm:$0x33]
      %v649 = vld [vmem:[%s165 + $0xebc] sm:$0x33]
      %v650 = vld [vmem:[%s165 + $0xec4] sm:$0x33]
      %v651 = vld [vmem:[%s165 + $0xecc] sm:$0x33]
      %v652 = vld [vmem:[%s165 + $0xed4] sm:$0x3]
      %v653 = vld [vmem:[%s2] sm:$0x1f]
      %655 = vset.pattern.permute.xlu0 0
      %656 = vperm.xlu0 %655, %v653
      %v657 = vpop.permute.xlu0 %656
      %v1139 = vunpack.c.l.b16 %v173
      %v1140 = vunpack.c.h.b16 %v173
      %v1141 = vunpack.c.l.b16 %v174
      %v1142 = vunpack.c.h.b16 %v174
      %v1143 = vunpack.c.l.b16 %v175
      %v1144 = vunpack.c.h.b16 %v175
      %v1145 = vunpack.c.l.b16 %v176
      %v1146 = vunpack.c.h.b16 %v176
      %v1147 = vunpack.c.l.b16 %v177
      %v1148 = vunpack.c.h.b16 %v177
      %v1149 = vunpack.c.l.b16 %v178
      %v1150 = vunpack.c.h.b16 %v178
      %v1151 = vunpack.c.l.b16 %v179
      %v1152 = vunpack.c.h.b16 %v179
      %v1153 = vunpack.c.l.b16 %v180
      %v1154 = vunpack.c.h.b16 %v180
      %v1155 = vunpack.c.l.b16 %v181
      %v1156 = vunpack.c.h.b16 %v181
      %v1157 = vunpack.c.l.b16 %v182
      %v1158 = vunpack.c.h.b16 %v182
      %v1159 = vunpack.c.l.b16 %v183
      %v1160 = vunpack.c.h.b16 %v183
      %v1161 = vunpack.c.l.b16 %v184
      %v1162 = vunpack.c.h.b16 %v184
      %v1163 = vunpack.c.l.b16 %v185
      %v1164 = vunpack.c.h.b16 %v185
      %v1165 = vunpack.c.l.b16 %v186
      %v1166 = vunpack.c.h.b16 %v186
      %v1167 = vunpack.c.l.b16 %v187
      %v1168 = vunpack.c.h.b16 %v187
      %v1169 = vunpack.c.l.b16 %v188
      %v1170 = vunpack.c.h.b16 %v188
      %v1171 = vunpack.c.l.b16 %v189
      %v1172 = vunpack.c.h.b16 %v189
      %v1173 = vunpack.c.l.b16 %v190
      %v1174 = vunpack.c.h.b16 %v190
      %v1175 = vunpack.c.l.b16 %v191
      %v1176 = vunpack.c.h.b16 %v191
      %v1177 = vunpack.c.l.b16 %v192
      %v1178 = vunpack.c.h.b16 %v192
      %v1179 = vunpack.c.l.b16 %v193
      %v1180 = vunpack.c.h.b16 %v193
      %v1181 = vunpack.c.l.b16 %v194
      %v1182 = vunpack.c.h.b16 %v194
      %v1183 = vunpack.c.l.b16 %v195
      %v1184 = vunpack.c.h.b16 %v195
      %v1185 = vunpack.c.l.b16 %v196
      %v1186 = vunpack.c.h.b16 %v196
      %v1187 = vunpack.c.l.b16 %v197
      %v1188 = vunpack.c.h.b16 %v197
      %v1189 = vunpack.c.l.b16 %v198
      %v1190 = vunpack.c.h.b16 %v198
      %v1191 = vunpack.c.l.b16 %v199
      %v1192 = vunpack.c.h.b16 %v199
      %v1193 = vunpack.c.l.b16 %v200
      %v1194 = vunpack.c.h.b16 %v200
      %v1195 = vunpack.c.l.b16 %v201
      %v1196 = vunpack.c.h.b16 %v201
      %v1197 = vunpack.c.l.b16 %v202
      %v1198 = vunpack.c.h.b16 %v202
      %v1199 = vunpack.c.l.b16 %v203
      %v1200 = vunpack.c.h.b16 %v203
      %v1201 = vunpack.c.l.b16 %v204
      %v1202 = vunpack.c.h.b16 %v204
      %v1203 = vunpack.c.l.b16 %v205
      %v1204 = vunpack.c.h.b16 %v205
      %v1205 = vunpack.c.l.b16 %v206
      %v1206 = vunpack.c.h.b16 %v206
      %v1207 = vunpack.c.l.b16 %v207
      %v1208 = vunpack.c.h.b16 %v207
      %v1209 = vunpack.c.l.b16 %v208
      %v1210 = vunpack.c.h.b16 %v208
      %v1211 = vunpack.c.l.b16 %v209
      %v1212 = vunpack.c.h.b16 %v209
      %v1213 = vunpack.c.l.b16 %v210
      %v1214 = vunpack.c.h.b16 %v210
      %v1215 = vunpack.c.l.b16 %v211
      %v1216 = vunpack.c.h.b16 %v211
      %v1217 = vunpack.c.l.b16 %v212
      %v1218 = vunpack.c.h.b16 %v212
      %v1219 = vunpack.c.l.b16 %v213
      %v1220 = vunpack.c.h.b16 %v213
      %v1221 = vunpack.c.l.b16 %v214
      %v1222 = vunpack.c.h.b16 %v214
      %v1223 = vunpack.c.l.b16 %v215
      %v1224 = vunpack.c.h.b16 %v215
      %v1225 = vunpack.c.l.b16 %v216
      %v1226 = vunpack.c.h.b16 %v216
      %v1227 = vunpack.c.l.b16 %v217
      %v1228 = vunpack.c.h.b16 %v217
      %v1229 = vunpack.c.l.b16 %v218
      %v1230 = vunpack.c.h.b16 %v218
      %v1231 = vunpack.c.l.b16 %v219
      %v1232 = vunpack.c.h.b16 %v219
      %v1233 = vunpack.c.l.b16 %v220
      %v1234 = vunpack.c.l.b16 %v221
      %v1235 = vunpack.c.h.b16 %v221
      %v1236 = vunpack.c.l.b16 %v222
      %v1237 = vunpack.c.h.b16 %v222
      %v1238 = vunpack.c.l.b16 %v223
      %v1239 = vunpack.c.h.b16 %v223
      %v1240 = vunpack.c.l.b16 %v224
      %v1241 = vunpack.c.h.b16 %v224
      %v1242 = vunpack.c.l.b16 %v225
      %v1243 = vunpack.c.h.b16 %v225
      %v1244 = vunpack.c.l.b16 %v226
      %v1245 = vunpack.c.h.b16 %v226
      %v1246 = vunpack.c.l.b16 %v227
      %v1247 = vunpack.c.h.b16 %v227
      %v1248 = vunpack.c.l.b16 %v228
      %v1249 = vunpack.c.h.b16 %v228
      %v1250 = vunpack.c.l.b16 %v229
      %v1251 = vunpack.c.h.b16 %v229
      %v1252 = vunpack.c.l.b16 %v230
      %v1253 = vunpack.c.h.b16 %v230
      %v1254 = vunpack.c.l.b16 %v231
      %v1255 = vunpack.c.h.b16 %v231
      %v1256 = vunpack.c.l.b16 %v232
      %v1257 = vunpack.c.h.b16 %v232
      %v1258 = vunpack.c.l.b16 %v233
      %v1259 = vunpack.c.h.b16 %v233
      %v1260 = vunpack.c.l.b16 %v234
      %v1261 = vunpack.c.h.b16 %v234
      %v1262 = vunpack.c.l.b16 %v235
      %v1263 = vunpack.c.h.b16 %v235
      %v1264 = vunpack.c.l.b16 %v236
      %v1265 = vunpack.c.h.b16 %v236
      %v1266 = vunpack.c.l.b16 %v237
      %v1267 = vunpack.c.h.b16 %v237
      %v1268 = vunpack.c.l.b16 %v238
      %v1269 = vunpack.c.h.b16 %v238
      %v1270 = vunpack.c.l.b16 %v239
      %v1271 = vunpack.c.h.b16 %v239
      %v1272 = vunpack.c.l.b16 %v240
      %v1273 = vunpack.c.h.b16 %v240
      %v1274 = vunpack.c.l.b16 %v241
      %v1275 = vunpack.c.h.b16 %v241
      %v1276 = vunpack.c.l.b16 %v242
      %v1277 = vunpack.c.h.b16 %v242
      %v1278 = vunpack.c.l.b16 %v243
      %v1279 = vunpack.c.h.b16 %v243
      %v1280 = vunpack.c.l.b16 %v244
      %v1281 = vunpack.c.h.b16 %v244
      %v1282 = vunpack.c.l.b16 %v245
      %v1283 = vunpack.c.h.b16 %v245
      %v1284 = vunpack.c.l.b16 %v246
      %v1285 = vunpack.c.h.b16 %v246
      %v1286 = vunpack.c.l.b16 %v247
      %v1287 = vunpack.c.h.b16 %v247
      %v1288 = vunpack.c.l.b16 %v248
      %v1289 = vunpack.c.h.b16 %v248
      %v1290 = vunpack.c.l.b16 %v249
      %v1291 = vunpack.c.h.b16 %v249
      %v1292 = vunpack.c.l.b16 %v250
      %v1293 = vunpack.c.h.b16 %v250
      %v1294 = vunpack.c.l.b16 %v251
      %v1295 = vunpack.c.h.b16 %v251
      %v1296 = vunpack.c.l.b16 %v252
      %v1297 = vunpack.c.h.b16 %v252
      %v1298 = vunpack.c.l.b16 %v253
      %v1299 = vunpack.c.h.b16 %v253
      %v1300 = vunpack.c.l.b16 %v254
      %v1301 = vunpack.c.h.b16 %v254
      %v1302 = vunpack.c.l.b16 %v255
      %v1303 = vunpack.c.h.b16 %v255
      %v1304 = vunpack.c.l.b16 %v256
      %v1305 = vunpack.c.h.b16 %v256
      %v1306 = vunpack.c.l.b16 %v257
      %v1307 = vunpack.c.h.b16 %v257
      %v1308 = vunpack.c.l.b16 %v258
      %v1309 = vunpack.c.h.b16 %v258
      %v1310 = vunpack.c.l.b16 %v259
      %v1311 = vunpack.c.h.b16 %v259
      %v1312 = vunpack.c.l.b16 %v260
      %v1313 = vunpack.c.h.b16 %v260
      %v1314 = vunpack.c.l.b16 %v261
      %v1315 = vunpack.c.h.b16 %v261
      %v1316 = vunpack.c.l.b16 %v262
      %v1317 = vunpack.c.h.b16 %v262
      %v1318 = vunpack.c.l.b16 %v263
      %v1319 = vunpack.c.h.b16 %v263
      %v1320 = vunpack.c.l.b16 %v264
      %v1321 = vunpack.c.h.b16 %v264
      %v1322 = vunpack.c.l.b16 %v265
      %v1323 = vunpack.c.h.b16 %v265
      %v1324 = vunpack.c.l.b16 %v266
      %v1325 = vunpack.c.h.b16 %v266
      %v1326 = vunpack.c.l.b16 %v267
      %v1327 = vunpack.c.h.b16 %v267
      %v1328 = vunpack.c.l.b16 %v268
      %v1329 = vunpack.c.l.b16 %v269
      %v1330 = vunpack.c.h.b16 %v269
      %v1331 = vunpack.c.l.b16 %v270
      %v1332 = vunpack.c.h.b16 %v270
      %v1333 = vunpack.c.l.b16 %v271
      %v1334 = vunpack.c.h.b16 %v271
      %v1335 = vunpack.c.l.b16 %v272
      %v1336 = vunpack.c.h.b16 %v272
      %v1337 = vunpack.c.l.b16 %v273
      %v1338 = vunpack.c.h.b16 %v273
      %v1339 = vunpack.c.l.b16 %v274
      %v1340 = vunpack.c.h.b16 %v274
      %v1341 = vunpack.c.l.b16 %v275
      %v1342 = vunpack.c.h.b16 %v275
      %v1343 = vunpack.c.l.b16 %v276
      %v1344 = vunpack.c.h.b16 %v276
      %v1345 = vunpack.c.l.b16 %v277
      %v1346 = vunpack.c.h.b16 %v277
      %v1347 = vunpack.c.l.b16 %v278
      %v1348 = vunpack.c.h.b16 %v278
      %v1349 = vunpack.c.l.b16 %v279
      %v1350 = vunpack.c.h.b16 %v279
      %v1351 = vunpack.c.l.b16 %v280
      %v1352 = vunpack.c.h.b16 %v280
      %v1353 = vunpack.c.l.b16 %v281
      %v1354 = vunpack.c.h.b16 %v281
      %v1355 = vunpack.c.l.b16 %v282
      %v1356 = vunpack.c.h.b16 %v282
      %v1357 = vunpack.c.l.b16 %v283
      %v1358 = vunpack.c.h.b16 %v283
      %v1359 = vunpack.c.l.b16 %v284
      %v1360 = vunpack.c.h.b16 %v284
      %v1361 = vunpack.c.l.b16 %v285
      %v1362 = vunpack.c.h.b16 %v285
      %v1363 = vunpack.c.l.b16 %v286
      %v1364 = vunpack.c.h.b16 %v286
      %v1365 = vunpack.c.l.b16 %v287
      %v1366 = vunpack.c.h.b16 %v287
      %v1367 = vunpack.c.l.b16 %v288
      %v1368 = vunpack.c.h.b16 %v288
      %v1369 = vunpack.c.l.b16 %v289
      %v1370 = vunpack.c.h.b16 %v289
      %v1371 = vunpack.c.l.b16 %v290
      %v1372 = vunpack.c.h.b16 %v290
      %v1373 = vunpack.c.l.b16 %v291
      %v1374 = vunpack.c.h.b16 %v291
      %v1375 = vunpack.c.l.b16 %v292
      %v1376 = vunpack.c.h.b16 %v292
      %v1377 = vunpack.c.l.b16 %v293
      %v1378 = vunpack.c.h.b16 %v293
      %v1379 = vunpack.c.l.b16 %v294
      %v1380 = vunpack.c.h.b16 %v294
      %v1381 = vunpack.c.l.b16 %v295
      %v1382 = vunpack.c.h.b16 %v295
      %v1383 = vunpack.c.l.b16 %v296
      %v1384 = vunpack.c.h.b16 %v296
      %v1385 = vunpack.c.l.b16 %v297
      %v1386 = vunpack.c.h.b16 %v297
      %v1387 = vunpack.c.l.b16 %v298
      %v1388 = vunpack.c.h.b16 %v298
      %v1389 = vunpack.c.l.b16 %v299
      %v1390 = vunpack.c.h.b16 %v299
      %v1391 = vunpack.c.l.b16 %v300
      %v1392 = vunpack.c.h.b16 %v300
      %v1393 = vunpack.c.l.b16 %v301
      %v1394 = vunpack.c.h.b16 %v301
      %v1395 = vunpack.c.l.b16 %v302
      %v1396 = vunpack.c.h.b16 %v302
      %v1397 = vunpack.c.l.b16 %v303
      %v1398 = vunpack.c.h.b16 %v303
      %v1399 = vunpack.c.l.b16 %v304
      %v1400 = vunpack.c.h.b16 %v304
      %v1401 = vunpack.c.l.b16 %v305
      %v1402 = vunpack.c.h.b16 %v305
      %v1403 = vunpack.c.l.b16 %v306
      %v1404 = vunpack.c.h.b16 %v306
      %v1405 = vunpack.c.l.b16 %v307
      %v1406 = vunpack.c.h.b16 %v307
      %v1407 = vunpack.c.l.b16 %v308
      %v1408 = vunpack.c.h.b16 %v308
      %v1409 = vunpack.c.l.b16 %v309
      %v1410 = vunpack.c.h.b16 %v309
      %v1411 = vunpack.c.l.b16 %v310
      %v1412 = vunpack.c.h.b16 %v310
      %v1413 = vunpack.c.l.b16 %v311
      %v1414 = vunpack.c.h.b16 %v311
      %v1415 = vunpack.c.l.b16 %v312
      %v1416 = vunpack.c.h.b16 %v312
      %v1417 = vunpack.c.l.b16 %v313
      %v1418 = vunpack.c.h.b16 %v313
      %v1419 = vunpack.c.l.b16 %v314
      %v1420 = vunpack.c.h.b16 %v314
      %v1421 = vunpack.c.l.b16 %v315
      %v1422 = vunpack.c.h.b16 %v315
      %v1423 = vunpack.c.l.b16 %v316
      %v1424 = vunpack.c.l.b16 %v317
      %v1425 = vunpack.c.h.b16 %v317
      %v1426 = vunpack.c.l.b16 %v318
      %v1427 = vunpack.c.h.b16 %v318
      %v1428 = vunpack.c.l.b16 %v319
      %v1429 = vunpack.c.h.b16 %v319
      %v1430 = vunpack.c.l.b16 %v320
      %v1431 = vunpack.c.h.b16 %v320
      %v1432 = vunpack.c.l.b16 %v321
      %v1433 = vunpack.c.h.b16 %v321
      %v1434 = vunpack.c.l.b16 %v322
      %v1435 = vunpack.c.h.b16 %v322
      %v1436 = vunpack.c.l.b16 %v323
      %v1437 = vunpack.c.h.b16 %v323
      %v1438 = vunpack.c.l.b16 %v324
      %v1439 = vunpack.c.h.b16 %v324
      %v1440 = vunpack.c.l.b16 %v325
      %v1441 = vunpack.c.h.b16 %v325
      %v1442 = vunpack.c.l.b16 %v326
      %v1443 = vunpack.c.h.b16 %v326
      %v1444 = vunpack.c.l.b16 %v327
      %v1445 = vunpack.c.h.b16 %v327
      %v1446 = vunpack.c.l.b16 %v328
      %v1447 = vunpack.c.h.b16 %v328
      %v1448 = vunpack.c.l.b16 %v329
      %v1449 = vunpack.c.h.b16 %v329
      %v1450 = vunpack.c.l.b16 %v330
      %v1451 = vunpack.c.h.b16 %v330
      %v1452 = vunpack.c.l.b16 %v331
      %v1453 = vunpack.c.h.b16 %v331
      %v1454 = vunpack.c.l.b16 %v332
      %v1455 = vunpack.c.h.b16 %v332
      %v1456 = vunpack.c.l.b16 %v333
      %v1457 = vunpack.c.h.b16 %v333
      %v1458 = vunpack.c.l.b16 %v334
      %v1459 = vunpack.c.h.b16 %v334
      %v1460 = vunpack.c.l.b16 %v335
      %v1461 = vunpack.c.h.b16 %v335
      %v1462 = vunpack.c.l.b16 %v336
      %v1463 = vunpack.c.h.b16 %v336
      %v1464 = vunpack.c.l.b16 %v337
      %v1465 = vunpack.c.h.b16 %v337
      %v1466 = vunpack.c.l.b16 %v338
      %v1467 = vunpack.c.h.b16 %v338
      %v1468 = vunpack.c.l.b16 %v339
      %v1469 = vunpack.c.h.b16 %v339
      %v1470 = vunpack.c.l.b16 %v340
      %v1471 = vunpack.c.h.b16 %v340
      %v1472 = vunpack.c.l.b16 %v341
      %v1473 = vunpack.c.h.b16 %v341
      %v1474 = vunpack.c.l.b16 %v342
      %v1475 = vunpack.c.h.b16 %v342
      %v1476 = vunpack.c.l.b16 %v343
      %v1477 = vunpack.c.h.b16 %v343
      %v1478 = vunpack.c.l.b16 %v344
      %v1479 = vunpack.c.h.b16 %v344
      %v1480 = vunpack.c.l.b16 %v345
      %v1481 = vunpack.c.h.b16 %v345
      %v1482 = vunpack.c.l.b16 %v346
      %v1483 = vunpack.c.h.b16 %v346
      %v1484 = vunpack.c.l.b16 %v347
      %v1485 = vunpack.c.h.b16 %v347
      %v1486 = vunpack.c.l.b16 %v348
      %v1487 = vunpack.c.h.b16 %v348
      %v1488 = vunpack.c.l.b16 %v349
      %v1489 = vunpack.c.h.b16 %v349
      %v1490 = vunpack.c.l.b16 %v350
      %v1491 = vunpack.c.h.b16 %v350
      %v1492 = vunpack.c.l.b16 %v351
      %v1493 = vunpack.c.h.b16 %v351
      %v1494 = vunpack.c.l.b16 %v352
      %v1495 = vunpack.c.h.b16 %v352
      %v1496 = vunpack.c.l.b16 %v353
      %v1497 = vunpack.c.h.b16 %v353
      %v1498 = vunpack.c.l.b16 %v354
      %v1499 = vunpack.c.h.b16 %v354
      %v1500 = vunpack.c.l.b16 %v355
      %v1501 = vunpack.c.h.b16 %v355
      %v1502 = vunpack.c.l.b16 %v356
      %v1503 = vunpack.c.h.b16 %v356
      %v1504 = vunpack.c.l.b16 %v357
      %v1505 = vunpack.c.h.b16 %v357
      %v1506 = vunpack.c.l.b16 %v358
      %v1507 = vunpack.c.h.b16 %v358
      %v1508 = vunpack.c.l.b16 %v359
      %v1509 = vunpack.c.h.b16 %v359
      %v1510 = vunpack.c.l.b16 %v360
      %v1511 = vunpack.c.h.b16 %v360
      %v1512 = vunpack.c.l.b16 %v361
      %v1513 = vunpack.c.h.b16 %v361
      %v1514 = vunpack.c.l.b16 %v362
      %v1515 = vunpack.c.h.b16 %v362
      %v1516 = vunpack.c.l.b16 %v363
      %v1517 = vunpack.c.h.b16 %v363
      %v1518 = vunpack.c.l.b16 %v364
      %v1519 = vunpack.c.l.b16 %v365
      %v1520 = vunpack.c.h.b16 %v365
      %v1521 = vunpack.c.l.b16 %v366
      %v1522 = vunpack.c.h.b16 %v366
      %v1523 = vunpack.c.l.b16 %v367
      %v1524 = vunpack.c.h.b16 %v367
      %v1525 = vunpack.c.l.b16 %v368
      %v1526 = vunpack.c.h.b16 %v368
      %v1527 = vunpack.c.l.b16 %v369
      %v1528 = vunpack.c.h.b16 %v369
      %v1529 = vunpack.c.l.b16 %v370
      %v1530 = vunpack.c.h.b16 %v370
      %v1531 = vunpack.c.l.b16 %v371
      %v1532 = vunpack.c.h.b16 %v371
      %v1533 = vunpack.c.l.b16 %v372
      %v1534 = vunpack.c.h.b16 %v372
      %v1535 = vunpack.c.l.b16 %v373
      %v1536 = vunpack.c.h.b16 %v373
      %v1537 = vunpack.c.l.b16 %v374
      %v1538 = vunpack.c.h.b16 %v374
      %v1539 = vunpack.c.l.b16 %v375
      %v1540 = vunpack.c.h.b16 %v375
      %v1541 = vunpack.c.l.b16 %v376
      %v1542 = vunpack.c.h.b16 %v376
      %v1543 = vunpack.c.l.b16 %v377
      %v1544 = vunpack.c.h.b16 %v377
      %v1545 = vunpack.c.l.b16 %v378
      %v1546 = vunpack.c.h.b16 %v378
      %v1547 = vunpack.c.l.b16 %v379
      %v1548 = vunpack.c.h.b16 %v379
      %v1549 = vunpack.c.l.b16 %v380
      %v1550 = vunpack.c.h.b16 %v380
      %v1551 = vunpack.c.l.b16 %v381
      %v1552 = vunpack.c.h.b16 %v381
      %v1553 = vunpack.c.l.b16 %v382
      %v1554 = vunpack.c.h.b16 %v382
      %v1555 = vunpack.c.l.b16 %v383
      %v1556 = vunpack.c.h.b16 %v383
      %v1557 = vunpack.c.l.b16 %v384
      %v1558 = vunpack.c.h.b16 %v384
      %v1559 = vunpack.c.l.b16 %v385
      %v1560 = vunpack.c.h.b16 %v385
      %v1561 = vunpack.c.l.b16 %v386
      %v1562 = vunpack.c.h.b16 %v386
      %v1563 = vunpack.c.l.b16 %v387
      %v1564 = vunpack.c.h.b16 %v387
      %v1565 = vunpack.c.l.b16 %v388
      %v1566 = vunpack.c.h.b16 %v388
      %v1567 = vunpack.c.l.b16 %v389
      %v1568 = vunpack.c.h.b16 %v389
      %v1569 = vunpack.c.l.b16 %v390
      %v1570 = vunpack.c.h.b16 %v390
      %v1571 = vunpack.c.l.b16 %v391
      %v1572 = vunpack.c.h.b16 %v391
      %v1573 = vunpack.c.l.b16 %v392
      %v1574 = vunpack.c.h.b16 %v392
      %v1575 = vunpack.c.l.b16 %v393
      %v1576 = vunpack.c.h.b16 %v393
      %v1577 = vunpack.c.l.b16 %v394
      %v1578 = vunpack.c.h.b16 %v394
      %v1579 = vunpack.c.l.b16 %v395
      %v1580 = vunpack.c.h.b16 %v395
      %v1581 = vunpack.c.l.b16 %v396
      %v1582 = vunpack.c.h.b16 %v396
      %v1583 = vunpack.c.l.b16 %v397
      %v1584 = vunpack.c.h.b16 %v397
      %v1585 = vunpack.c.l.b16 %v398
      %v1586 = vunpack.c.h.b16 %v398
      %v1587 = vunpack.c.l.b16 %v399
      %v1588 = vunpack.c.h.b16 %v399
      %v1589 = vunpack.c.l.b16 %v400
      %v1590 = vunpack.c.h.b16 %v400
      %v1591 = vunpack.c.l.b16 %v401
      %v1592 = vunpack.c.h.b16 %v401
      %v1593 = vunpack.c.l.b16 %v402
      %v1594 = vunpack.c.h.b16 %v402
      %v1595 = vunpack.c.l.b16 %v403
      %v1596 = vunpack.c.h.b16 %v403
      %v1597 = vunpack.c.l.b16 %v404
      %v1598 = vunpack.c.h.b16 %v404
      %v1599 = vunpack.c.l.b16 %v405
      %v1600 = vunpack.c.h.b16 %v405
      %v1601 = vunpack.c.l.b16 %v406
      %v1602 = vunpack.c.h.b16 %v406
      %v1603 = vunpack.c.l.b16 %v407
      %v1604 = vunpack.c.h.b16 %v407
      %v1605 = vunpack.c.l.b16 %v408
      %v1606 = vunpack.c.h.b16 %v408
      %v1607 = vunpack.c.l.b16 %v409
      %v1608 = vunpack.c.h.b16 %v409
      %v1609 = vunpack.c.l.b16 %v410
      %v1610 = vunpack.c.h.b16 %v410
      %v1611 = vunpack.c.l.b16 %v411
      %v1612 = vunpack.c.h.b16 %v411
      %v1613 = vunpack.c.l.b16 %v412
      %v1614 = vunpack.c.l.b16 %v413
      %v1615 = vunpack.c.h.b16 %v413
      %v1616 = vunpack.c.l.b16 %v414
      %v1617 = vunpack.c.h.b16 %v414
      %v1618 = vunpack.c.l.b16 %v415
      %v1619 = vunpack.c.h.b16 %v415
      %v1620 = vunpack.c.l.b16 %v416
      %v1621 = vunpack.c.h.b16 %v416
      %v1622 = vunpack.c.l.b16 %v417
      %v1623 = vunpack.c.h.b16 %v417
      %v1624 = vunpack.c.l.b16 %v418
      %v1625 = vunpack.c.h.b16 %v418
      %v1626 = vunpack.c.l.b16 %v419
      %v1627 = vunpack.c.h.b16 %v419
      %v1628 = vunpack.c.l.b16 %v420
      %v1629 = vunpack.c.h.b16 %v420
      %v1630 = vunpack.c.l.b16 %v421
      %v1631 = vunpack.c.h.b16 %v421
      %v1632 = vunpack.c.l.b16 %v422
      %v1633 = vunpack.c.h.b16 %v422
      %v1634 = vunpack.c.l.b16 %v423
      %v1635 = vunpack.c.h.b16 %v423
      %v1636 = vunpack.c.l.b16 %v424
      %v1637 = vunpack.c.h.b16 %v424
      %v1638 = vunpack.c.l.b16 %v425
      %v1639 = vunpack.c.h.b16 %v425
      %v1640 = vunpack.c.l.b16 %v426
      %v1641 = vunpack.c.h.b16 %v426
      %v1642 = vunpack.c.l.b16 %v427
      %v1643 = vunpack.c.h.b16 %v427
      %v1644 = vunpack.c.l.b16 %v428
      %v1645 = vunpack.c.h.b16 %v428
      %v1646 = vunpack.c.l.b16 %v429
      %v1647 = vunpack.c.h.b16 %v429
      %v1648 = vunpack.c.l.b16 %v430
      %v1649 = vunpack.c.h.b16 %v430
      %v1650 = vunpack.c.l.b16 %v431
      %v1651 = vunpack.c.h.b16 %v431
      %v1652 = vunpack.c.l.b16 %v432
      %v1653 = vunpack.c.h.b16 %v432
      %v1654 = vunpack.c.l.b16 %v433
      %v1655 = vunpack.c.h.b16 %v433
      %v1656 = vunpack.c.l.b16 %v434
      %v1657 = vunpack.c.h.b16 %v434
      %v1658 = vunpack.c.l.b16 %v435
      %v1659 = vunpack.c.h.b16 %v435
      %v1660 = vunpack.c.l.b16 %v436
      %v1661 = vunpack.c.h.b16 %v436
      %v1662 = vunpack.c.l.b16 %v437
      %v1663 = vunpack.c.h.b16 %v437
      %v1664 = vunpack.c.l.b16 %v438
      %v1665 = vunpack.c.h.b16 %v438
      %v1666 = vunpack.c.l.b16 %v439
      %v1667 = vunpack.c.h.b16 %v439
      %v1668 = vunpack.c.l.b16 %v440
      %v1669 = vunpack.c.h.b16 %v440
      %v1670 = vunpack.c.l.b16 %v441
      %v1671 = vunpack.c.h.b16 %v441
      %v1672 = vunpack.c.l.b16 %v442
      %v1673 = vunpack.c.h.b16 %v442
      %v1674 = vunpack.c.l.b16 %v443
      %v1675 = vunpack.c.h.b16 %v443
      %v1676 = vunpack.c.l.b16 %v444
      %v1677 = vunpack.c.h.b16 %v444
      %v1678 = vunpack.c.l.b16 %v445
      %v1679 = vunpack.c.h.b16 %v445
      %v1680 = vunpack.c.l.b16 %v446
      %v1681 = vunpack.c.h.b16 %v446
      %v1682 = vunpack.c.l.b16 %v447
      %v1683 = vunpack.c.h.b16 %v447
      %v1684 = vunpack.c.l.b16 %v448
      %v1685 = vunpack.c.h.b16 %v448
      %v1686 = vunpack.c.l.b16 %v449
      %v1687 = vunpack.c.h.b16 %v449
      %v1688 = vunpack.c.l.b16 %v450
      %v1689 = vunpack.c.h.b16 %v450
      %v1690 = vunpack.c.l.b16 %v451
      %v1691 = vunpack.c.h.b16 %v451
      %v1692 = vunpack.c.l.b16 %v452
      %v1693 = vunpack.c.h.b16 %v452
      %v1694 = vunpack.c.l.b16 %v453
      %v1695 = vunpack.c.h.b16 %v453
      %v1696 = vunpack.c.l.b16 %v454
      %v1697 = vunpack.c.h.b16 %v454
      %v1698 = vunpack.c.l.b16 %v455
      %v1699 = vunpack.c.h.b16 %v455
      %v1700 = vunpack.c.l.b16 %v456
      %v1701 = vunpack.c.h.b16 %v456
      %v1702 = vunpack.c.l.b16 %v457
      %v1703 = vunpack.c.h.b16 %v457
      %v1704 = vunpack.c.l.b16 %v458
      %v1705 = vunpack.c.h.b16 %v458
      %v1706 = vunpack.c.l.b16 %v459
      %v1707 = vunpack.c.h.b16 %v459
      %v1708 = vunpack.c.l.b16 %v460
      %v1709 = vunpack.c.l.b16 %v461
      %v1710 = vunpack.c.h.b16 %v461
      %v1711 = vunpack.c.l.b16 %v462
      %v1712 = vunpack.c.h.b16 %v462
      %v1713 = vunpack.c.l.b16 %v463
      %v1714 = vunpack.c.h.b16 %v463
      %v1715 = vunpack.c.l.b16 %v464
      %v1716 = vunpack.c.h.b16 %v464
      %v1717 = vunpack.c.l.b16 %v465
      %v1718 = vunpack.c.h.b16 %v465
      %v1719 = vunpack.c.l.b16 %v466
      %v1720 = vunpack.c.h.b16 %v466
      %v1721 = vunpack.c.l.b16 %v467
      %v1722 = vunpack.c.h.b16 %v467
      %v1723 = vunpack.c.l.b16 %v468
      %v1724 = vunpack.c.h.b16 %v468
      %v1725 = vunpack.c.l.b16 %v469
      %v1726 = vunpack.c.h.b16 %v469
      %v1727 = vunpack.c.l.b16 %v470
      %v1728 = vunpack.c.h.b16 %v470
      %v1729 = vunpack.c.l.b16 %v471
      %v1730 = vunpack.c.h.b16 %v471
      %v1731 = vunpack.c.l.b16 %v472
      %v1732 = vunpack.c.h.b16 %v472
      %v1733 = vunpack.c.l.b16 %v473
      %v1734 = vunpack.c.h.b16 %v473
      %v1735 = vunpack.c.l.b16 %v474
      %v1736 = vunpack.c.h.b16 %v474
      %v1737 = vunpack.c.l.b16 %v475
      %v1738 = vunpack.c.h.b16 %v475
      %v1739 = vunpack.c.l.b16 %v476
      %v1740 = vunpack.c.h.b16 %v476
      %v1741 = vunpack.c.l.b16 %v477
      %v1742 = vunpack.c.h.b16 %v477
      %v1743 = vunpack.c.l.b16 %v478
      %v1744 = vunpack.c.h.b16 %v478
      %v1745 = vunpack.c.l.b16 %v479
      %v1746 = vunpack.c.h.b16 %v479
      %v1747 = vunpack.c.l.b16 %v480
      %v1748 = vunpack.c.h.b16 %v480
      %v1749 = vunpack.c.l.b16 %v481
      %v1750 = vunpack.c.h.b16 %v481
      %v1751 = vunpack.c.l.b16 %v482
      %v1752 = vunpack.c.h.b16 %v482
      %v1753 = vunpack.c.l.b16 %v483
      %v1754 = vunpack.c.h.b16 %v483
      %v1755 = vunpack.c.l.b16 %v484
      %v1756 = vunpack.c.h.b16 %v484
      %v1757 = vunpack.c.l.b16 %v485
      %v1758 = vunpack.c.h.b16 %v485
      %v1759 = vunpack.c.l.b16 %v486
      %v1760 = vunpack.c.h.b16 %v486
      %v1761 = vunpack.c.l.b16 %v487
      %v1762 = vunpack.c.h.b16 %v487
      %v1763 = vunpack.c.l.b16 %v488
      %v1764 = vunpack.c.h.b16 %v488
      %v1765 = vunpack.c.l.b16 %v489
      %v1766 = vunpack.c.h.b16 %v489
      %v1767 = vunpack.c.l.b16 %v490
      %v1768 = vunpack.c.h.b16 %v490
      %v1769 = vunpack.c.l.b16 %v491
      %v1770 = vunpack.c.h.b16 %v491
      %v1771 = vunpack.c.l.b16 %v492
      %v1772 = vunpack.c.h.b16 %v492
      %v1773 = vunpack.c.l.b16 %v493
      %v1774 = vunpack.c.h.b16 %v493
      %v1775 = vunpack.c.l.b16 %v494
      %v1776 = vunpack.c.h.b16 %v494
      %v1777 = vunpack.c.l.b16 %v495
      %v1778 = vunpack.c.h.b16 %v495
      %v1779 = vunpack.c.l.b16 %v496
      %v1780 = vunpack.c.h.b16 %v496
      %v1781 = vunpack.c.l.b16 %v497
      %v1782 = vunpack.c.h.b16 %v497
      %v1783 = vunpack.c.l.b16 %v498
      %v1784 = vunpack.c.h.b16 %v498
      %v1785 = vunpack.c.l.b16 %v499
      %v1786 = vunpack.c.h.b16 %v499
      %v1787 = vunpack.c.l.b16 %v500
      %v1788 = vunpack.c.h.b16 %v500
      %v1789 = vunpack.c.l.b16 %v501
      %v1790 = vunpack.c.h.b16 %v501
      %v1791 = vunpack.c.l.b16 %v502
      %v1792 = vunpack.c.h.b16 %v502
      %v1793 = vunpack.c.l.b16 %v503
      %v1794 = vunpack.c.h.b16 %v503
      %v1795 = vunpack.c.l.b16 %v504
      %v1796 = vunpack.c.h.b16 %v504
      %v1797 = vunpack.c.l.b16 %v505
      %v1798 = vunpack.c.h.b16 %v505
      %v1799 = vunpack.c.l.b16 %v506
      %v1800 = vunpack.c.h.b16 %v506
      %v1801 = vunpack.c.l.b16 %v507
      %v1802 = vunpack.c.h.b16 %v507
      %v1803 = vunpack.c.l.b16 %v508
      %v1804 = vunpack.c.l.b16 %v509
      %v1805 = vunpack.c.h.b16 %v509
      %v1806 = vunpack.c.l.b16 %v510
      %v1807 = vunpack.c.h.b16 %v510
      %v1808 = vunpack.c.l.b16 %v511
      %v1809 = vunpack.c.h.b16 %v511
      %v1810 = vunpack.c.l.b16 %v512
      %v1811 = vunpack.c.h.b16 %v512
      %v1812 = vunpack.c.l.b16 %v513
      %v1813 = vunpack.c.h.b16 %v513
      %v1814 = vunpack.c.l.b16 %v514
      %v1815 = vunpack.c.h.b16 %v514
      %v1816 = vunpack.c.l.b16 %v515
      %v1817 = vunpack.c.h.b16 %v515
      %v1818 = vunpack.c.l.b16 %v516
      %v1819 = vunpack.c.h.b16 %v516
      %v1820 = vunpack.c.l.b16 %v517
      %v1821 = vunpack.c.h.b16 %v517
      %v1822 = vunpack.c.l.b16 %v518
      %v1823 = vunpack.c.h.b16 %v518
      %v1824 = vunpack.c.l.b16 %v519
      %v1825 = vunpack.c.h.b16 %v519
      %v1826 = vunpack.c.l.b16 %v520
      %v1827 = vunpack.c.h.b16 %v520
      %v1828 = vunpack.c.l.b16 %v521
      %v1829 = vunpack.c.h.b16 %v521
      %v1830 = vunpack.c.l.b16 %v522
      %v1831 = vunpack.c.h.b16 %v522
      %v1832 = vunpack.c.l.b16 %v523
      %v1833 = vunpack.c.h.b16 %v523
      %v1834 = vunpack.c.l.b16 %v524
      %v1835 = vunpack.c.h.b16 %v524
      %v1836 = vunpack.c.l.b16 %v525
      %v1837 = vunpack.c.h.b16 %v525
      %v1838 = vunpack.c.l.b16 %v526
      %v1839 = vunpack.c.h.b16 %v526
      %v1840 = vunpack.c.l.b16 %v527
      %v1841 = vunpack.c.h.b16 %v527
      %v1842 = vunpack.c.l.b16 %v528
      %v1843 = vunpack.c.h.b16 %v528
      %v1844 = vunpack.c.l.b16 %v529
      %v1845 = vunpack.c.h.b16 %v529
      %v1846 = vunpack.c.l.b16 %v530
      %v1847 = vunpack.c.h.b16 %v530
      %v1848 = vunpack.c.l.b16 %v531
      %v1849 = vunpack.c.h.b16 %v531
      %v1850 = vunpack.c.l.b16 %v532
      %v1851 = vunpack.c.h.b16 %v532
      %v1852 = vunpack.c.l.b16 %v533
      %v1853 = vunpack.c.h.b16 %v533
      %v1854 = vunpack.c.l.b16 %v534
      %v1855 = vunpack.c.h.b16 %v534
      %v1856 = vunpack.c.l.b16 %v535
      %v1857 = vunpack.c.h.b16 %v535
      %v1858 = vunpack.c.l.b16 %v536
      %v1859 = vunpack.c.h.b16 %v536
      %v1860 = vunpack.c.l.b16 %v537
      %v1861 = vunpack.c.h.b16 %v537
      %v1862 = vunpack.c.l.b16 %v538
      %v1863 = vunpack.c.h.b16 %v538
      %v1864 = vunpack.c.l.b16 %v539
      %v1865 = vunpack.c.h.b16 %v539
      %v1866 = vunpack.c.l.b16 %v540
      %v1867 = vunpack.c.h.b16 %v540
      %v1868 = vunpack.c.l.b16 %v541
      %v1869 = vunpack.c.h.b16 %v541
      %v1870 = vunpack.c.l.b16 %v542
      %v1871 = vunpack.c.h.b16 %v542
      %v1872 = vunpack.c.l.b16 %v543
      %v1873 = vunpack.c.h.b16 %v543
      %v1874 = vunpack.c.l.b16 %v544
      %v1875 = vunpack.c.h.b16 %v544
      %v1876 = vunpack.c.l.b16 %v545
      %v1877 = vunpack.c.h.b16 %v545
      %v1878 = vunpack.c.l.b16 %v546
      %v1879 = vunpack.c.h.b16 %v546
      %v1880 = vunpack.c.l.b16 %v547
      %v1881 = vunpack.c.h.b16 %v547
      %v1882 = vunpack.c.l.b16 %v548
      %v1883 = vunpack.c.h.b16 %v548
      %v1884 = vunpack.c.l.b16 %v549
      %v1885 = vunpack.c.h.b16 %v549
      %v1886 = vunpack.c.l.b16 %v550
      %v1887 = vunpack.c.h.b16 %v550
      %v1888 = vunpack.c.l.b16 %v551
      %v1889 = vunpack.c.h.b16 %v551
      %v1890 = vunpack.c.l.b16 %v552
      %v1891 = vunpack.c.h.b16 %v552
      %v1892 = vunpack.c.l.b16 %v553
      %v1893 = vunpack.c.h.b16 %v553
      %v1894 = vunpack.c.l.b16 %v554
      %v1895 = vunpack.c.h.b16 %v554
      %v1896 = vunpack.c.l.b16 %v555
      %v1897 = vunpack.c.h.b16 %v555
      %v1898 = vunpack.c.l.b16 %v556
      %v1899 = vunpack.c.l.b16 %v557
      %v1900 = vunpack.c.h.b16 %v557
      %v1901 = vunpack.c.l.b16 %v558
      %v1902 = vunpack.c.h.b16 %v558
      %v1903 = vunpack.c.l.b16 %v559
      %v1904 = vunpack.c.h.b16 %v559
      %v1905 = vunpack.c.l.b16 %v560
      %v1906 = vunpack.c.h.b16 %v560
      %v1907 = vunpack.c.l.b16 %v561
      %v1908 = vunpack.c.h.b16 %v561
      %v1909 = vunpack.c.l.b16 %v562
      %v1910 = vunpack.c.h.b16 %v562
      %v1911 = vunpack.c.l.b16 %v563
      %v1912 = vunpack.c.h.b16 %v563
      %v1913 = vunpack.c.l.b16 %v564
      %v1914 = vunpack.c.h.b16 %v564
      %v1915 = vunpack.c.l.b16 %v565
      %v1916 = vunpack.c.h.b16 %v565
      %v1917 = vunpack.c.l.b16 %v566
      %v1918 = vunpack.c.h.b16 %v566
      %v1919 = vunpack.c.l.b16 %v567
      %v1920 = vunpack.c.h.b16 %v567
      %v1921 = vunpack.c.l.b16 %v568
      %v1922 = vunpack.c.h.b16 %v568
      %v1923 = vunpack.c.l.b16 %v569
      %v1924 = vunpack.c.h.b16 %v569
      %v1925 = vunpack.c.l.b16 %v570
      %v1926 = vunpack.c.h.b16 %v570
      %v1927 = vunpack.c.l.b16 %v571
      %v1928 = vunpack.c.h.b16 %v571
      %v1929 = vunpack.c.l.b16 %v572
      %v1930 = vunpack.c.h.b16 %v572
      %v1931 = vunpack.c.l.b16 %v573
      %v1932 = vunpack.c.h.b16 %v573
      %v1933 = vunpack.c.l.b16 %v574
      %v1934 = vunpack.c.h.b16 %v574
      %v1935 = vunpack.c.l.b16 %v575
      %v1936 = vunpack.c.h.b16 %v575
      %v1937 = vunpack.c.l.b16 %v576
      %v1938 = vunpack.c.h.b16 %v576
      %v1939 = vunpack.c.l.b16 %v577
      %v1940 = vunpack.c.h.b16 %v577
      %v1941 = vunpack.c.l.b16 %v578
      %v1942 = vunpack.c.h.b16 %v578
      %v1943 = vunpack.c.l.b16 %v579
      %v1944 = vunpack.c.h.b16 %v579
      %v1945 = vunpack.c.l.b16 %v580
      %v1946 = vunpack.c.h.b16 %v580
      %v1947 = vunpack.c.l.b16 %v581
      %v1948 = vunpack.c.h.b16 %v581
      %v1949 = vunpack.c.l.b16 %v582
      %v1950 = vunpack.c.h.b16 %v582
      %v1951 = vunpack.c.l.b16 %v583
      %v1952 = vunpack.c.h.b16 %v583
      %v1953 = vunpack.c.l.b16 %v584
      %v1954 = vunpack.c.h.b16 %v584
      %v1955 = vunpack.c.l.b16 %v585
      %v1956 = vunpack.c.h.b16 %v585
      %v1957 = vunpack.c.l.b16 %v586
      %v1958 = vunpack.c.h.b16 %v586
      %v1959 = vunpack.c.l.b16 %v587
      %v1960 = vunpack.c.h.b16 %v587
      %v1961 = vunpack.c.l.b16 %v588
      %v1962 = vunpack.c.h.b16 %v588
      %v1963 = vunpack.c.l.b16 %v589
      %v1964 = vunpack.c.h.b16 %v589
      %v1965 = vunpack.c.l.b16 %v590
      %v1966 = vunpack.c.h.b16 %v590
      %v1967 = vunpack.c.l.b16 %v591
      %v1968 = vunpack.c.h.b16 %v591
      %v1969 = vunpack.c.l.b16 %v592
      %v1970 = vunpack.c.h.b16 %v592
      %v1971 = vunpack.c.l.b16 %v593
      %v1972 = vunpack.c.h.b16 %v593
      %v1973 = vunpack.c.l.b16 %v594
      %v1974 = vunpack.c.h.b16 %v594
      %v1975 = vunpack.c.l.b16 %v595
      %v1976 = vunpack.c.h.b16 %v595
      %v1977 = vunpack.c.l.b16 %v596
      %v1978 = vunpack.c.h.b16 %v596
      %v1979 = vunpack.c.l.b16 %v597
      %v1980 = vunpack.c.h.b16 %v597
      %v1981 = vunpack.c.l.b16 %v598
      %v1982 = vunpack.c.h.b16 %v598
      %v1983 = vunpack.c.l.b16 %v599
      %v1984 = vunpack.c.h.b16 %v599
      %v1985 = vunpack.c.l.b16 %v600
      %v1986 = vunpack.c.h.b16 %v600
      %v1987 = vunpack.c.l.b16 %v601
      %v1988 = vunpack.c.h.b16 %v601
      %v1989 = vunpack.c.l.b16 %v602
      %v1990 = vunpack.c.h.b16 %v602
      %v1991 = vunpack.c.l.b16 %v603
      %v1992 = vunpack.c.h.b16 %v603
      %v1993 = vunpack.c.l.b16 %v604
      %v1994 = vunpack.c.l.b16 %v605
      %v1995 = vunpack.c.h.b16 %v605
      %v1996 = vunpack.c.l.b16 %v606
      %v1997 = vunpack.c.h.b16 %v606
      %v1998 = vunpack.c.l.b16 %v607
      %v1999 = vunpack.c.h.b16 %v607
      %v2000 = vunpack.c.l.b16 %v608
      %v2001 = vunpack.c.h.b16 %v608
      %v2002 = vunpack.c.l.b16 %v609
      %v2003 = vunpack.c.h.b16 %v609
      %v2004 = vunpack.c.l.b16 %v610
      %v2005 = vunpack.c.h.b16 %v610
      %v2006 = vunpack.c.l.b16 %v611
      %v2007 = vunpack.c.h.b16 %v611
      %v2008 = vunpack.c.l.b16 %v612
      %v2009 = vunpack.c.h.b16 %v612
      %v2010 = vunpack.c.l.b16 %v613
      %v2011 = vunpack.c.h.b16 %v613
      %v2012 = vunpack.c.l.b16 %v614
      %v2013 = vunpack.c.h.b16 %v614
      %v2014 = vunpack.c.l.b16 %v615
      %v2015 = vunpack.c.h.b16 %v615
      %v2016 = vunpack.c.l.b16 %v616
      %v2017 = vunpack.c.h.b16 %v616
      %v2018 = vunpack.c.l.b16 %v617
      %v2019 = vunpack.c.h.b16 %v617
      %v2020 = vunpack.c.l.b16 %v618
      %v2021 = vunpack.c.h.b16 %v618
      %v2022 = vunpack.c.l.b16 %v619
      %v2023 = vunpack.c.h.b16 %v619
      %v2024 = vunpack.c.l.b16 %v620
      %v2025 = vunpack.c.h.b16 %v620
      %v2026 = vunpack.c.l.b16 %v621
      %v2027 = vunpack.c.h.b16 %v621
      %v2028 = vunpack.c.l.b16 %v622
      %v2029 = vunpack.c.h.b16 %v622
      %v2030 = vunpack.c.l.b16 %v623
      %v2031 = vunpack.c.h.b16 %v623
      %v2032 = vunpack.c.l.b16 %v624
      %v2033 = vunpack.c.h.b16 %v624
      %v2034 = vunpack.c.l.b16 %v625
      %v2035 = vunpack.c.h.b16 %v625
      %v2036 = vunpack.c.l.b16 %v626
      %v2037 = vunpack.c.h.b16 %v626
      %v2038 = vunpack.c.l.b16 %v627
      %v2039 = vunpack.c.h.b16 %v627
      %v2040 = vunpack.c.l.b16 %v628
      %v2041 = vunpack.c.h.b16 %v628
      %v2042 = vunpack.c.l.b16 %v629
      %v2043 = vunpack.c.h.b16 %v629
      %v2044 = vunpack.c.l.b16 %v630
      %v2045 = vunpack.c.h.b16 %v630
      %v2046 = vunpack.c.l.b16 %v631
      %v2047 = vunpack.c.h.b16 %v631
      %v2048 = vunpack.c.l.b16 %v632
      %v2049 = vunpack.c.h.b16 %v632
      %v2050 = vunpack.c.l.b16 %v633
      %v2051 = vunpack.c.h.b16 %v633
      %v2052 = vunpack.c.l.b16 %v634
      %v2053 = vunpack.c.h.b16 %v634
      %v2054 = vunpack.c.l.b16 %v635
      %v2055 = vunpack.c.h.b16 %v635
      %v2056 = vunpack.c.l.b16 %v636
      %v2057 = vunpack.c.h.b16 %v636
      %v2058 = vunpack.c.l.b16 %v637
      %v2059 = vunpack.c.h.b16 %v637
      %v2060 = vunpack.c.l.b16 %v638
      %v2061 = vunpack.c.h.b16 %v638
      %v2062 = vunpack.c.l.b16 %v639
      %v2063 = vunpack.c.h.b16 %v639
      %v2064 = vunpack.c.l.b16 %v640
      %v2065 = vunpack.c.h.b16 %v640
      %v2066 = vunpack.c.l.b16 %v641
      %v2067 = vunpack.c.h.b16 %v641
      %v2068 = vunpack.c.l.b16 %v642
      %v2069 = vunpack.c.h.b16 %v642
      %v2070 = vunpack.c.l.b16 %v643
      %v2071 = vunpack.c.h.b16 %v643
      %v2072 = vunpack.c.l.b16 %v644
      %v2073 = vunpack.c.h.b16 %v644
      %v2074 = vunpack.c.l.b16 %v645
      %v2075 = vunpack.c.h.b16 %v645
      %v2076 = vunpack.c.l.b16 %v646
      %v2077 = vunpack.c.h.b16 %v646
      %v2078 = vunpack.c.l.b16 %v647
      %v2079 = vunpack.c.h.b16 %v647
      %v2080 = vunpack.c.l.b16 %v648
      %v2081 = vunpack.c.h.b16 %v648
      %v2082 = vunpack.c.l.b16 %v649
      %v2083 = vunpack.c.h.b16 %v649
      %v2084 = vunpack.c.l.b16 %v650
      %v2085 = vunpack.c.h.b16 %v650
      %v2086 = vunpack.c.l.b16 %v651
      %v2087 = vunpack.c.h.b16 %v651
      %v2088 = vunpack.c.l.b16 %v652
      %v2089 = vpack.c.b16 %v1234, %v1139
      %v2090 = vpack.c.b16 %v1235, %v1140
      %v2091 = vpack.c.b16 %v1236, %v1141
      %v2092 = vpack.c.b16 %v1237, %v1142
      %v2093 = vpack.c.b16 %v1238, %v1143
      %v2094 = vpack.c.b16 %v1239, %v1144
      %v2095 = vpack.c.b16 %v1240, %v1145
      %v2096 = vpack.c.b16 %v1241, %v1146
      %v2097 = vpack.c.b16 %v1242, %v1147
      %v2098 = vpack.c.b16 %v1243, %v1148
      %v2099 = vpack.c.b16 %v1244, %v1149
      %v2100 = vpack.c.b16 %v1245, %v1150
      %v2101 = vpack.c.b16 %v1246, %v1151
      %v2102 = vpack.c.b16 %v1247, %v1152
      %v2103 = vpack.c.b16 %v1248, %v1153
      %v2104 = vpack.c.b16 %v1249, %v1154
      %v2105 = vpack.c.b16 %v1250, %v1155
      %v2106 = vpack.c.b16 %v1251, %v1156
      %v2107 = vpack.c.b16 %v1252, %v1157
      %v2108 = vpack.c.b16 %v1253, %v1158
      %v2109 = vpack.c.b16 %v1254, %v1159
      %v2110 = vpack.c.b16 %v1255, %v1160
      %v2111 = vpack.c.b16 %v1256, %v1161
      %v2112 = vpack.c.b16 %v1257, %v1162
      %v2113 = vpack.c.b16 %v1258, %v1163
      %v2114 = vpack.c.b16 %v1259, %v1164
      %v2115 = vpack.c.b16 %v1260, %v1165
      %v2116 = vpack.c.b16 %v1261, %v1166
      %v2117 = vpack.c.b16 %v1262, %v1167
      %v2118 = vpack.c.b16 %v1263, %v1168
      %v2119 = vpack.c.b16 %v1264, %v1169
      %v2120 = vpack.c.b16 %v1265, %v1170
      %v2121 = vpack.c.b16 %v1266, %v1171
      %v2122 = vpack.c.b16 %v1267, %v1172
      %v2123 = vpack.c.b16 %v1268, %v1173
      %v2124 = vpack.c.b16 %v1269, %v1174
      %v2125 = vpack.c.b16 %v1270, %v1175
      %v2126 = vpack.c.b16 %v1271, %v1176
      %v2127 = vpack.c.b16 %v1272, %v1177
      %v2128 = vpack.c.b16 %v1273, %v1178
      %v2129 = vpack.c.b16 %v1274, %v1179
      %v2130 = vpack.c.b16 %v1275, %v1180
      %v2131 = vpack.c.b16 %v1276, %v1181
      %v2132 = vpack.c.b16 %v1277, %v1182
      %v2133 = vpack.c.b16 %v1278, %v1183
      %v2134 = vpack.c.b16 %v1279, %v1184
      %v2135 = vpack.c.b16 %v1280, %v1185
      %v2136 = vpack.c.b16 %v1281, %v1186
      %v2137 = vpack.c.b16 %v1282, %v1187
      %v2138 = vpack.c.b16 %v1283, %v1188
      %v2139 = vpack.c.b16 %v1284, %v1189
      %v2140 = vpack.c.b16 %v1285, %v1190
      %v2141 = vpack.c.b16 %v1286, %v1191
      %v2142 = vpack.c.b16 %v1287, %v1192
      %v2143 = vpack.c.b16 %v1288, %v1193
      %v2144 = vpack.c.b16 %v1289, %v1194
      %v2145 = vpack.c.b16 %v1290, %v1195
      %v2146 = vpack.c.b16 %v1291, %v1196
      %v2147 = vpack.c.b16 %v1292, %v1197
      %v2148 = vpack.c.b16 %v1293, %v1198
      %v2149 = vpack.c.b16 %v1294, %v1199
      %v2150 = vpack.c.b16 %v1295, %v1200
      %v2151 = vpack.c.b16 %v1296, %v1201
      %v2152 = vpack.c.b16 %v1297, %v1202
      %v2153 = vpack.c.b16 %v1298, %v1203
      %v2154 = vpack.c.b16 %v1299, %v1204
      %v2155 = vpack.c.b16 %v1300, %v1205
      %v2156 = vpack.c.b16 %v1301, %v1206
      %v2157 = vpack.c.b16 %v1302, %v1207
      %v2158 = vpack.c.b16 %v1303, %v1208
      %v2159 = vpack.c.b16 %v1304, %v1209
      %v2160 = vpack.c.b16 %v1305, %v1210
      %v2161 = vpack.c.b16 %v1306, %v1211
      %v2162 = vpack.c.b16 %v1307, %v1212
      %v2163 = vpack.c.b16 %v1308, %v1213
      %v2164 = vpack.c.b16 %v1309, %v1214
      %v2165 = vpack.c.b16 %v1310, %v1215
      %v2166 = vpack.c.b16 %v1311, %v1216
      %v2167 = vpack.c.b16 %v1312, %v1217
      %v2168 = vpack.c.b16 %v1313, %v1218
      %v2169 = vpack.c.b16 %v1314, %v1219
      %v2170 = vpack.c.b16 %v1315, %v1220
      %v2171 = vpack.c.b16 %v1316, %v1221
      %v2172 = vpack.c.b16 %v1317, %v1222
      %v2173 = vpack.c.b16 %v1318, %v1223
      %v2174 = vpack.c.b16 %v1319, %v1224
      %v2175 = vpack.c.b16 %v1320, %v1225
      %v2176 = vpack.c.b16 %v1321, %v1226
      %v2177 = vpack.c.b16 %v1322, %v1227
      %v2178 = vpack.c.b16 %v1323, %v1228
      %v2179 = vpack.c.b16 %v1324, %v1229
      %v2180 = vpack.c.b16 %v1325, %v1230
      %v2181 = vpack.c.b16 %v1326, %v1231
      %v2182 = vpack.c.b16 %v1327, %v1232
      %v2183 = vpack.c.b16 %v1328, %v1233
      %v2184 = vpack.c.b16 %v1424, %v1329
      %v2185 = vpack.c.b16 %v1425, %v1330
      %v2186 = vpack.c.b16 %v1426, %v1331
      %v2187 = vpack.c.b16 %v1427, %v1332
      %v2188 = vpack.c.b16 %v1428, %v1333
      %v2189 = vpack.c.b16 %v1429, %v1334
      %v2190 = vpack.c.b16 %v1430, %v1335
      %v2191 = vpack.c.b16 %v1431, %v1336
      %v2192 = vpack.c.b16 %v1432, %v1337
      %v2193 = vpack.c.b16 %v1433, %v1338
      %v2194 = vpack.c.b16 %v1434, %v1339
      %v2195 = vpack.c.b16 %v1435, %v1340
      %v2196 = vpack.c.b16 %v1436, %v1341
      %v2197 = vpack.c.b16 %v1437, %v1342
      %v2198 = vpack.c.b16 %v1438, %v1343
      %v2199 = vpack.c.b16 %v1439, %v1344
      %v2200 = vpack.c.b16 %v1440, %v1345
      %v2201 = vpack.c.b16 %v1441, %v1346
      %v2202 = vpack.c.b16 %v1442, %v1347
      %v2203 = vpack.c.b16 %v1443, %v1348
      %v2204 = vpack.c.b16 %v1444, %v1349
      %v2205 = vpack.c.b16 %v1445, %v1350
      %v2206 = vpack.c.b16 %v1446, %v1351
      %v2207 = vpack.c.b16 %v1447, %v1352
      %v2208 = vpack.c.b16 %v1448, %v1353
      %v2209 = vpack.c.b16 %v1449, %v1354
      %v2210 = vpack.c.b16 %v1450, %v1355
      %v2211 = vpack.c.b16 %v1451, %v1356
      %v2212 = vpack.c.b16 %v1452, %v1357
      %v2213 = vpack.c.b16 %v1453, %v1358
      %v2214 = vpack.c.b16 %v1454, %v1359
      %v2215 = vpack.c.b16 %v1455, %v1360
      %v2216 = vpack.c.b16 %v1456, %v1361
      %v2217 = vpack.c.b16 %v1457, %v1362
      %v2218 = vpack.c.b16 %v1458, %v1363
      %v2219 = vpack.c.b16 %v1459, %v1364
      %v2220 = vpack.c.b16 %v1460, %v1365
      %v2221 = vpack.c.b16 %v1461, %v1366
      %v2222 = vpack.c.b16 %v1462, %v1367
      %v2223 = vpack.c.b16 %v1463, %v1368
      %v2224 = vpack.c.b16 %v1464, %v1369
      %v2225 = vpack.c.b16 %v1465, %v1370
      %v2226 = vpack.c.b16 %v1466, %v1371
      %v2227 = vpack.c.b16 %v1467, %v1372
      %v2228 = vpack.c.b16 %v1468, %v1373
      %v2229 = vpack.c.b16 %v1469, %v1374
      %v2230 = vpack.c.b16 %v1470, %v1375
      %v2231 = vpack.c.b16 %v1471, %v1376
      %v2232 = vpack.c.b16 %v1472, %v1377
      %v2233 = vpack.c.b16 %v1473, %v1378
      %v2234 = vpack.c.b16 %v1474, %v1379
      %v2235 = vpack.c.b16 %v1475, %v1380
      %v2236 = vpack.c.b16 %v1476, %v1381
      %v2237 = vpack.c.b16 %v1477, %v1382
      %v2238 = vpack.c.b16 %v1478, %v1383
      %v2239 = vpack.c.b16 %v1479, %v1384
      %v2240 = vpack.c.b16 %v1480, %v1385
      %v2241 = vpack.c.b16 %v1481, %v1386
      %v2242 = vpack.c.b16 %v1482, %v1387
      %v2243 = vpack.c.b16 %v1483, %v1388
      %v2244 = vpack.c.b16 %v1484, %v1389
      %v2245 = vpack.c.b16 %v1485, %v1390
      %v2246 = vpack.c.b16 %v1486, %v1391
      %v2247 = vpack.c.b16 %v1487, %v1392
      %v2248 = vpack.c.b16 %v1488, %v1393
      %v2249 = vpack.c.b16 %v1489, %v1394
      %v2250 = vpack.c.b16 %v1490, %v1395
      %v2251 = vpack.c.b16 %v1491, %v1396
      %v2252 = vpack.c.b16 %v1492, %v1397
      %v2253 = vpack.c.b16 %v1493, %v1398
      %v2254 = vpack.c.b16 %v1494, %v1399
      %v2255 = vpack.c.b16 %v1495, %v1400
      %v2256 = vpack.c.b16 %v1496, %v1401
      %v2257 = vpack.c.b16 %v1497, %v1402
      %v2258 = vpack.c.b16 %v1498, %v1403
      %v2259 = vpack.c.b16 %v1499, %v1404
      %v2260 = vpack.c.b16 %v1500, %v1405
      %v2261 = vpack.c.b16 %v1501, %v1406
      %v2262 = vpack.c.b16 %v1502, %v1407
      %v2263 = vpack.c.b16 %v1503, %v1408
      %v2264 = vpack.c.b16 %v1504, %v1409
      %v2265 = vpack.c.b16 %v1505, %v1410
      %v2266 = vpack.c.b16 %v1506, %v1411
      %v2267 = vpack.c.b16 %v1507, %v1412
      %v2268 = vpack.c.b16 %v1508, %v1413
      %v2269 = vpack.c.b16 %v1509, %v1414
      %v2270 = vpack.c.b16 %v1510, %v1415
      %v2271 = vpack.c.b16 %v1511, %v1416
      %v2272 = vpack.c.b16 %v1512, %v1417
      %v2273 = vpack.c.b16 %v1513, %v1418
      %v2274 = vpack.c.b16 %v1514, %v1419
      %v2275 = vpack.c.b16 %v1515, %v1420
      %v2276 = vpack.c.b16 %v1516, %v1421
      %v2277 = vpack.c.b16 %v1517, %v1422
      %v2278 = vpack.c.b16 %v1518, %v1423
      %v2279 = vpack.c.b16 %v1614, %v1519
      %v2280 = vpack.c.b16 %v1615, %v1520
      %v2281 = vpack.c.b16 %v1616, %v1521
      %v2282 = vpack.c.b16 %v1617, %v1522
      %v2283 = vpack.c.b16 %v1618, %v1523
      %v2284 = vpack.c.b16 %v1619, %v1524
      %v2285 = vpack.c.b16 %v1620, %v1525
      %v2286 = vpack.c.b16 %v1621, %v1526
      %v2287 = vpack.c.b16 %v1622, %v1527
      %v2288 = vpack.c.b16 %v1623, %v1528
      %v2289 = vpack.c.b16 %v1624, %v1529
      %v2290 = vpack.c.b16 %v1625, %v1530
      %v2291 = vpack.c.b16 %v1626, %v1531
      %v2292 = vpack.c.b16 %v1627, %v1532
      %v2293 = vpack.c.b16 %v1628, %v1533
      %v2294 = vpack.c.b16 %v1629, %v1534
      %v2295 = vpack.c.b16 %v1630, %v1535
      %v2296 = vpack.c.b16 %v1631, %v1536
      %v2297 = vpack.c.b16 %v1632, %v1537
      %v2298 = vpack.c.b16 %v1633, %v1538
      %v2299 = vpack.c.b16 %v1634, %v1539
      %v2300 = vpack.c.b16 %v1635, %v1540
      %v2301 = vpack.c.b16 %v1636, %v1541
      %v2302 = vpack.c.b16 %v1637, %v1542
      %v2303 = vpack.c.b16 %v1638, %v1543
      %v2304 = vpack.c.b16 %v1639, %v1544
      %v2305 = vpack.c.b16 %v1640, %v1545
      %v2306 = vpack.c.b16 %v1641, %v1546
      %v2307 = vpack.c.b16 %v1642, %v1547
      %v2308 = vpack.c.b16 %v1643, %v1548
      %v2309 = vpack.c.b16 %v1644, %v1549
      %v2310 = vpack.c.b16 %v1645, %v1550
      %v2311 = vpack.c.b16 %v1646, %v1551
      %v2312 = vpack.c.b16 %v1647, %v1552
      %v2313 = vpack.c.b16 %v1648, %v1553
      %v2314 = vpack.c.b16 %v1649, %v1554
      %v2315 = vpack.c.b16 %v1650, %v1555
      %v2316 = vpack.c.b16 %v1651, %v1556
      %v2317 = vpack.c.b16 %v1652, %v1557
      %v2318 = vpack.c.b16 %v1653, %v1558
      %v2319 = vpack.c.b16 %v1654, %v1559
      %v2320 = vpack.c.b16 %v1655, %v1560
      %v2321 = vpack.c.b16 %v1656, %v1561
      %v2322 = vpack.c.b16 %v1657, %v1562
      %v2323 = vpack.c.b16 %v1658, %v1563
      %v2324 = vpack.c.b16 %v1659, %v1564
      %v2325 = vpack.c.b16 %v1660, %v1565
      %v2326 = vpack.c.b16 %v1661, %v1566
      %v2327 = vpack.c.b16 %v1662, %v1567
      %v2328 = vpack.c.b16 %v1663, %v1568
      %v2329 = vpack.c.b16 %v1664, %v1569
      %v2330 = vpack.c.b16 %v1665, %v1570
      %v2331 = vpack.c.b16 %v1666, %v1571
      %v2332 = vpack.c.b16 %v1667, %v1572
      %v2333 = vpack.c.b16 %v1668, %v1573
      %v2334 = vpack.c.b16 %v1669, %v1574
      %v2335 = vpack.c.b16 %v1670, %v1575
      %v2336 = vpack.c.b16 %v1671, %v1576
      %v2337 = vpack.c.b16 %v1672, %v1577
      %v2338 = vpack.c.b16 %v1673, %v1578
      %v2339 = vpack.c.b16 %v1674, %v1579
      %v2340 = vpack.c.b16 %v1675, %v1580
      %v2341 = vpack.c.b16 %v1676, %v1581
      %v2342 = vpack.c.b16 %v1677, %v1582
      %v2343 = vpack.c.b16 %v1678, %v1583
      %v2344 = vpack.c.b16 %v1679, %v1584
      %v2345 = vpack.c.b16 %v1680, %v1585
      %v2346 = vpack.c.b16 %v1681, %v1586
      %v2347 = vpack.c.b16 %v1682, %v1587
      %v2348 = vpack.c.b16 %v1683, %v1588
      %v2349 = vpack.c.b16 %v1684, %v1589
      %v2350 = vpack.c.b16 %v1685, %v1590
      %v2351 = vpack.c.b16 %v1686, %v1591
      %v2352 = vpack.c.b16 %v1687, %v1592
      %v2353 = vpack.c.b16 %v1688, %v1593
      %v2354 = vpack.c.b16 %v1689, %v1594
      %v2355 = vpack.c.b16 %v1690, %v1595
      %v2356 = vpack.c.b16 %v1691, %v1596
      %v2357 = vpack.c.b16 %v1692, %v1597
      %v2358 = vpack.c.b16 %v1693, %v1598
      %v2359 = vpack.c.b16 %v1694, %v1599
      %v2360 = vpack.c.b16 %v1695, %v1600
      %v2361 = vpack.c.b16 %v1696, %v1601
      %v2362 = vpack.c.b16 %v1697, %v1602
      %v2363 = vpack.c.b16 %v1698, %v1603
      %v2364 = vpack.c.b16 %v1699, %v1604
      %v2365 = vpack.c.b16 %v1700, %v1605
      %v2366 = vpack.c.b16 %v1701, %v1606
      %v2367 = vpack.c.b16 %v1702, %v1607
      %v2368 = vpack.c.b16 %v1703, %v1608
      %v2369 = vpack.c.b16 %v1704, %v1609
      %v2370 = vpack.c.b16 %v1705, %v1610
      %v2371 = vpack.c.b16 %v1706, %v1611
      %v2372 = vpack.c.b16 %v1707, %v1612
      %v2373 = vpack.c.b16 %v1708, %v1613
      %v2374 = vpack.c.b16 %v1804, %v1709
      %v2375 = vpack.c.b16 %v1805, %v1710
      %v2376 = vpack.c.b16 %v1806, %v1711
      %v2377 = vpack.c.b16 %v1807, %v1712
      %v2378 = vpack.c.b16 %v1808, %v1713
      %v2379 = vpack.c.b16 %v1809, %v1714
      %v2380 = vpack.c.b16 %v1810, %v1715
      %v2381 = vpack.c.b16 %v1811, %v1716
      %v2382 = vpack.c.b16 %v1812, %v1717
      %v2383 = vpack.c.b16 %v1813, %v1718
      %v2384 = vpack.c.b16 %v1814, %v1719
      %v2385 = vpack.c.b16 %v1815, %v1720
      %v2386 = vpack.c.b16 %v1816, %v1721
      %v2387 = vpack.c.b16 %v1817, %v1722
      %v2388 = vpack.c.b16 %v1818, %v1723
      %v2389 = vpack.c.b16 %v1819, %v1724
      %v2390 = vpack.c.b16 %v1820, %v1725
      %v2391 = vpack.c.b16 %v1821, %v1726
      %v2392 = vpack.c.b16 %v1822, %v1727
      %v2393 = vpack.c.b16 %v1823, %v1728
      %v2394 = vpack.c.b16 %v1824, %v1729
      %v2395 = vpack.c.b16 %v1825, %v1730
      %v2396 = vpack.c.b16 %v1826, %v1731
      %v2397 = vpack.c.b16 %v1827, %v1732
      %v2398 = vpack.c.b16 %v1828, %v1733
      %v2399 = vpack.c.b16 %v1829, %v1734
      %v2400 = vpack.c.b16 %v1830, %v1735
      %v2401 = vpack.c.b16 %v1831, %v1736
      %v2402 = vpack.c.b16 %v1832, %v1737
      %v2403 = vpack.c.b16 %v1833, %v1738
      %v2404 = vpack.c.b16 %v1834, %v1739
      %v2405 = vpack.c.b16 %v1835, %v1740
      %v2406 = vpack.c.b16 %v1836, %v1741
      %v2407 = vpack.c.b16 %v1837, %v1742
      %v2408 = vpack.c.b16 %v1838, %v1743
      %v2409 = vpack.c.b16 %v1839, %v1744
      %v2410 = vpack.c.b16 %v1840, %v1745
      %v2411 = vpack.c.b16 %v1841, %v1746
      %v2412 = vpack.c.b16 %v1842, %v1747
      %v2413 = vpack.c.b16 %v1843, %v1748
      %v2414 = vpack.c.b16 %v1844, %v1749
      %v2415 = vpack.c.b16 %v1845, %v1750
      %v2416 = vpack.c.b16 %v1846, %v1751
      %v2417 = vpack.c.b16 %v1847, %v1752
      %v2418 = vpack.c.b16 %v1848, %v1753
      %v2419 = vpack.c.b16 %v1849, %v1754
      %v2420 = vpack.c.b16 %v1850, %v1755
      %v2421 = vpack.c.b16 %v1851, %v1756
      %v2422 = vpack.c.b16 %v1852, %v1757
      %v2423 = vpack.c.b16 %v1853, %v1758
      %v2424 = vpack.c.b16 %v1854, %v1759
      %v2425 = vpack.c.b16 %v1855, %v1760
      %v2426 = vpack.c.b16 %v1856, %v1761
      %v2427 = vpack.c.b16 %v1857, %v1762
      %v2428 = vpack.c.b16 %v1858, %v1763
      %v2429 = vpack.c.b16 %v1859, %v1764
      %v2430 = vpack.c.b16 %v1860, %v1765
      %v2431 = vpack.c.b16 %v1861, %v1766
      %v2432 = vpack.c.b16 %v1862, %v1767
      %v2433 = vpack.c.b16 %v1863, %v1768
      %v2434 = vpack.c.b16 %v1864, %v1769
      %v2435 = vpack.c.b16 %v1865, %v1770
      %v2436 = vpack.c.b16 %v1866, %v1771
      %v2437 = vpack.c.b16 %v1867, %v1772
      %v2438 = vpack.c.b16 %v1868, %v1773
      %v2439 = vpack.c.b16 %v1869, %v1774
      %v2440 = vpack.c.b16 %v1870, %v1775
      %v2441 = vpack.c.b16 %v1871, %v1776
      %v2442 = vpack.c.b16 %v1872, %v1777
      %v2443 = vpack.c.b16 %v1873, %v1778
      %v2444 = vpack.c.b16 %v1874, %v1779
      %v2445 = vpack.c.b16 %v1875, %v1780
      %v2446 = vpack.c.b16 %v1876, %v1781
      %v2447 = vpack.c.b16 %v1877, %v1782
      %v2448 = vpack.c.b16 %v1878, %v1783
      %v2449 = vpack.c.b16 %v1879, %v1784
      %v2450 = vpack.c.b16 %v1880, %v1785
      %v2451 = vpack.c.b16 %v1881, %v1786
      %v2452 = vpack.c.b16 %v1882, %v1787
      %v2453 = vpack.c.b16 %v1883, %v1788
      %v2454 = vpack.c.b16 %v1884, %v1789
      %v2455 = vpack.c.b16 %v1885, %v1790
      %v2456 = vpack.c.b16 %v1886, %v1791
      %v2457 = vpack.c.b16 %v1887, %v1792
      %v2458 = vpack.c.b16 %v1888, %v1793
      %v2459 = vpack.c.b16 %v1889, %v1794
      %v2460 = vpack.c.b16 %v1890, %v1795
      %v2461 = vpack.c.b16 %v1891, %v1796
      %v2462 = vpack.c.b16 %v1892, %v1797
      %v2463 = vpack.c.b16 %v1893, %v1798
      %v2464 = vpack.c.b16 %v1894, %v1799
      %v2465 = vpack.c.b16 %v1895, %v1800
      %v2466 = vpack.c.b16 %v1896, %v1801
      %v2467 = vpack.c.b16 %v1897, %v1802
      %v2468 = vpack.c.b16 %v1898, %v1803
      %v2469 = vpack.c.b16 %v1994, %v1899
      %v2470 = vpack.c.b16 %v1995, %v1900
      %v2471 = vpack.c.b16 %v1996, %v1901
      %v2472 = vpack.c.b16 %v1997, %v1902
      %v2473 = vpack.c.b16 %v1998, %v1903
      %v2474 = vpack.c.b16 %v1999, %v1904
      %v2475 = vpack.c.b16 %v2000, %v1905
      %v2476 = vpack.c.b16 %v2001, %v1906
      %v2477 = vpack.c.b16 %v2002, %v1907
      %v2478 = vpack.c.b16 %v2003, %v1908
      %v2479 = vpack.c.b16 %v2004, %v1909
      %v2480 = vpack.c.b16 %v2005, %v1910
      %v2481 = vpack.c.b16 %v2006, %v1911
      %v2482 = vpack.c.b16 %v2007, %v1912
      %v2483 = vpack.c.b16 %v2008, %v1913
      %v2484 = vpack.c.b16 %v2009, %v1914
      %v2485 = vpack.c.b16 %v2010, %v1915
      %v2486 = vpack.c.b16 %v2011, %v1916
      %v2487 = vpack.c.b16 %v2012, %v1917
      %v2488 = vpack.c.b16 %v2013, %v1918
      %v2489 = vpack.c.b16 %v2014, %v1919
      %v2490 = vpack.c.b16 %v2015, %v1920
      %v2491 = vpack.c.b16 %v2016, %v1921
      %v2492 = vpack.c.b16 %v2017, %v1922
      %v2493 = vpack.c.b16 %v2018, %v1923
      %v2494 = vpack.c.b16 %v2019, %v1924
      %v2495 = vpack.c.b16 %v2020, %v1925
      %v2496 = vpack.c.b16 %v2021, %v1926
      %v2497 = vpack.c.b16 %v2022, %v1927
      %v2498 = vpack.c.b16 %v2023, %v1928
      %v2499 = vpack.c.b16 %v2024, %v1929
      %v2500 = vpack.c.b16 %v2025, %v1930
      %v2501 = vpack.c.b16 %v2026, %v1931
      %v2502 = vpack.c.b16 %v2027, %v1932
      %v2503 = vpack.c.b16 %v2028, %v1933
      %v2504 = vpack.c.b16 %v2029, %v1934
      %v2505 = vpack.c.b16 %v2030, %v1935
      %v2506 = vpack.c.b16 %v2031, %v1936
      %v2507 = vpack.c.b16 %v2032, %v1937
      %v2508 = vpack.c.b16 %v2033, %v1938
      %v2509 = vpack.c.b16 %v2034, %v1939
      %v2510 = vpack.c.b16 %v2035, %v1940
      %v2511 = vpack.c.b16 %v2036, %v1941
      %v2512 = vpack.c.b16 %v2037, %v1942
      %v2513 = vpack.c.b16 %v2038, %v1943
      %v2514 = vpack.c.b16 %v2039, %v1944
      %v2515 = vpack.c.b16 %v2040, %v1945
      %v2516 = vpack.c.b16 %v2041, %v1946
      %v2517 = vpack.c.b16 %v2042, %v1947
      %v2518 = vpack.c.b16 %v2043, %v1948
      %v2519 = vpack.c.b16 %v2044, %v1949
      %v2520 = vpack.c.b16 %v2045, %v1950
      %v2521 = vpack.c.b16 %v2046, %v1951
      %v2522 = vpack.c.b16 %v2047, %v1952
      %v2523 = vpack.c.b16 %v2048, %v1953
      %v2524 = vpack.c.b16 %v2049, %v1954
      %v2525 = vpack.c.b16 %v2050, %v1955
      %v2526 = vpack.c.b16 %v2051, %v1956
      %v2527 = vpack.c.b16 %v2052, %v1957
      %v2528 = vpack.c.b16 %v2053, %v1958
      %v2529 = vpack.c.b16 %v2054, %v1959
      %v2530 = vpack.c.b16 %v2055, %v1960
      %v2531 = vpack.c.b16 %v2056, %v1961
      %v2532 = vpack.c.b16 %v2057, %v1962
      %v2533 = vpack.c.b16 %v2058, %v1963
      %v2534 = vpack.c.b16 %v2059, %v1964
      %v2535 = vpack.c.b16 %v2060, %v1965
      %v2536 = vpack.c.b16 %v2061, %v1966
      %v2537 = vpack.c.b16 %v2062, %v1967
      %v2538 = vpack.c.b16 %v2063, %v1968
      %v2539 = vpack.c.b16 %v2064, %v1969
      %v2540 = vpack.c.b16 %v2065, %v1970
      %v2541 = vpack.c.b16 %v2066, %v1971
      %v2542 = vpack.c.b16 %v2067, %v1972
      %v2543 = vpack.c.b16 %v2068, %v1973
      %v2544 = vpack.c.b16 %v2069, %v1974
      %v2545 = vpack.c.b16 %v2070, %v1975
      %v2546 = vpack.c.b16 %v2071, %v1976
      %v2547 = vpack.c.b16 %v2072, %v1977
      %v2548 = vpack.c.b16 %v2073, %v1978
      %v2549 = vpack.c.b16 %v2074, %v1979
      %v2550 = vpack.c.b16 %v2075, %v1980
      %v2551 = vpack.c.b16 %v2076, %v1981
      %v2552 = vpack.c.b16 %v2077, %v1982
      %v2553 = vpack.c.b16 %v2078, %v1983
      %v2554 = vpack.c.b16 %v2079, %v1984
      %v2555 = vpack.c.b16 %v2080, %v1985
      %v2556 = vpack.c.b16 %v2081, %v1986
      %v2557 = vpack.c.b16 %v2082, %v1987
      %v2558 = vpack.c.b16 %v2083, %v1988
      %v2559 = vpack.c.b16 %v2084, %v1989
      %v2560 = vpack.c.b16 %v2085, %v1990
      %v2561 = vpack.c.b16 %v2086, %v1991
      %v2562 = vpack.c.b16 %v2087, %v1992
      %v2563 = vpack.c.b16 %v2088, %v1993
      %vm2944 = vcmask 613376
      %v2946 = vsel %vm2944, %v172, 0
      %vm2948 = vcmask 1044480
      %vm2949 = vcmask 1045504
      %v2950 = vsel %vm2948, 4294967295, 65535
      %v2951 = vsel %vm2949, %v2950, 0
      %v2953 = vand.u32 %v2469, %v2951
      %v2956 = vand.u32 %v2470, %v2951
      %v2959 = vand.u32 %v2471, %v2951
      %v2962 = vand.u32 %v2472, %v2951
      %v2965 = vand.u32 %v2473, %v2951
      %v2968 = vand.u32 %v2474, %v2951
      %v2971 = vand.u32 %v2475, %v2951
      %v2974 = vand.u32 %v2476, %v2951
      %v2977 = vand.u32 %v2477, %v2951
      %v2980 = vand.u32 %v2478, %v2951
      %v2983 = vand.u32 %v2479, %v2951
      %v2986 = vand.u32 %v2480, %v2951
      %v2989 = vand.u32 %v2481, %v2951
      %v2992 = vand.u32 %v2482, %v2951
      %v2995 = vand.u32 %v2483, %v2951
      %v2998 = vand.u32 %v2484, %v2951
      %v3001 = vand.u32 %v2485, %v2951
      %v3004 = vand.u32 %v2486, %v2951
      %v3007 = vand.u32 %v2487, %v2951
      %v3010 = vand.u32 %v2488, %v2951
      %v3013 = vand.u32 %v2489, %v2951
      %v3016 = vand.u32 %v2490, %v2951
      %v3019 = vand.u32 %v2491, %v2951
      %v3022 = vand.u32 %v2492, %v2951
      %v3025 = vand.u32 %v2493, %v2951
      %v3028 = vand.u32 %v2494, %v2951
      %v3031 = vand.u32 %v2495, %v2951
      %v3034 = vand.u32 %v2496, %v2951
      %v3037 = vand.u32 %v2497, %v2951
      %v3040 = vand.u32 %v2498, %v2951
      %v3043 = vand.u32 %v2499, %v2951
      %v3046 = vand.u32 %v2500, %v2951
      %v3049 = vand.u32 %v2501, %v2951
      %v3052 = vand.u32 %v2502, %v2951
      %v3055 = vand.u32 %v2503, %v2951
      %v3058 = vand.u32 %v2504, %v2951
      %v3061 = vand.u32 %v2505, %v2951
      %v3064 = vand.u32 %v2506, %v2951
      %v3067 = vand.u32 %v2507, %v2951
      %v3070 = vand.u32 %v2508, %v2951
      %v3073 = vand.u32 %v2509, %v2951
      %v3076 = vand.u32 %v2510, %v2951
      %v3079 = vand.u32 %v2511, %v2951
      %v3082 = vand.u32 %v2512, %v2951
      %v3085 = vand.u32 %v2513, %v2951
      %v3088 = vand.u32 %v2514, %v2951
      %v3091 = vand.u32 %v2515, %v2951
      %v3094 = vand.u32 %v2516, %v2951
      %v3097 = vand.u32 %v2517, %v2951
      %v3100 = vand.u32 %v2518, %v2951
      %v3103 = vand.u32 %v2519, %v2951
      %v3106 = vand.u32 %v2520, %v2951
      %v3109 = vand.u32 %v2521, %v2951
      %v3112 = vand.u32 %v2522, %v2951
      %v3115 = vand.u32 %v2523, %v2951
      %v3118 = vand.u32 %v2524, %v2951
      %v3121 = vand.u32 %v2525, %v2951
      %v3124 = vand.u32 %v2526, %v2951
      %v3127 = vand.u32 %v2527, %v2951
      %v3130 = vand.u32 %v2528, %v2951
      %v3133 = vand.u32 %v2529, %v2951
      %v3136 = vand.u32 %v2530, %v2951
      %v3139 = vand.u32 %v2531, %v2951
      %v3142 = vand.u32 %v2532, %v2951
      %v3145 = vand.u32 %v2533, %v2951
      %v3148 = vand.u32 %v2534, %v2951
      %v3151 = vand.u32 %v2535, %v2951
      %v3154 = vand.u32 %v2536, %v2951
      %v3157 = vand.u32 %v2537, %v2951
      %v3160 = vand.u32 %v2538, %v2951
      %v3163 = vand.u32 %v2539, %v2951
      %v3166 = vand.u32 %v2540, %v2951
      %v3169 = vand.u32 %v2541, %v2951
      %v3172 = vand.u32 %v2542, %v2951
      %v3175 = vand.u32 %v2543, %v2951
      %v3178 = vand.u32 %v2544, %v2951
      %v3181 = vand.u32 %v2545, %v2951
      %v3184 = vand.u32 %v2546, %v2951
      %v3187 = vand.u32 %v2547, %v2951
      %v3190 = vand.u32 %v2548, %v2951
      %v3193 = vand.u32 %v2549, %v2951
      %v3196 = vand.u32 %v2550, %v2951
      %v3199 = vand.u32 %v2551, %v2951
      %v3202 = vand.u32 %v2552, %v2951
      %v3205 = vand.u32 %v2553, %v2951
      %v3208 = vand.u32 %v2554, %v2951
      %v3211 = vand.u32 %v2555, %v2951
      %v3214 = vand.u32 %v2556, %v2951
      %v3217 = vand.u32 %v2557, %v2951
      %v3220 = vand.u32 %v2558, %v2951
      %v3223 = vand.u32 %v2559, %v2951
      %v3226 = vand.u32 %v2560, %v2951
      %v3229 = vand.u32 %v2561, %v2951
      %v3232 = vand.u32 %v2562, %v2951
      %v3235 = vand.u32 %v2563, %v2951
      %3237 = vmatprep.subr.bf16.mxu0 %v2090
      %3238 = vmatpush1.bf16.msra.mxu0 %v2089
      %3239 = vmatprep.subr.bf16.mxu0 %v2185
      %3240 = vmatpush1.bf16.msra.mxu0 %v2184
      %3241 = vmatprep.subr.bf16.mxu0 %v2280
      %3242 = vmatpush1.bf16.msra.mxu0 %v2279
      %3243 = vmatprep.subr.bf16.mxu0 %v2375
      %3244 = vmatpush1.bf16.msra.mxu0 %v2374
      %3245 = vmatprep.subr.bf16.mxu0 %v2956
      %3246 = vmatpush1.bf16.msra.mxu0 %v2953
      %3247 = vmatprep.subr.bf16.mxu0 0
      %3248 = vmatpush1.bf16.msra.mxu0 0
      %3249 = vmatprep.subr.bf16.mxu0 0
      %3250 = vmatpush1.bf16.msra.mxu0 0
      %3251 = vmatprep.subr.bf16.mxu0 0
      %3252 = vmatpush1.bf16.msra.mxu0 0
      %3253 = vmatprep.subr.bf16.mxu0 0
      %3254 = vmatpush1.bf16.msra.mxu0 0
      %3255 = vmatprep.subr.bf16.mxu0 0
      %3256 = vmatpush1.bf16.msra.mxu0 0
      %3257 = vmatprep.subr.bf16.mxu0 0
      %3258 = vmatpush1.bf16.msra.mxu0 0
      %3259 = vmatprep.subr.bf16.mxu0 0
      %3260 = vmatpush1.bf16.msra.mxu0 0
      %3261 = vmatprep.subr.bf16.mxu0 0
      %3262 = vmatpush1.bf16.msra.mxu0 0
      %3263 = vmatprep.subr.bf16.mxu0 0
      %3264 = vmatpush1.bf16.msra.mxu0 0
      %3265 = vmatprep.subr.bf16.mxu0 0
      %3266 = vmatpush1.bf16.msra.mxu0 0
      %3267 = vmatprep.subr.bf16.mxu0 0
      %3268 = vmatpush1.bf16.msra.mxu0 0
      %3269 = vmatprep.mubr.bf16.mxu0 0
      %3270 = vmatmul.mubr.bf16.gmra.mrb[0].mxu0 %v2946
      %v3271 = vpop.f32.mrb[0].mxu0
      %v3272 = vadd.f32 %v657, %v3271
      %v3273 = vpop.f32.mrb[0].mxu0
      %v3274 = vadd.f32 %v657, %v3273
      %v3275 = vpop.f32.mrb[0].mxu0
      %v3276 = vpop.f32.mrb[0].mxu0
      %3277 = vdwg.mxu0
      %3278 = vmatprep.subr.bf16.mxu0 %v2092
      %3279 = vmatpush1.bf16.msra.mxu0 %v2091
      %3280 = vmatprep.subr.bf16.mxu0 %v2187
      %3281 = vmatpush1.bf16.msra.mxu0 %v2186
      %3282 = vmatprep.subr.bf16.mxu0 %v2282
      %3283 = vmatpush1.bf16.msra.mxu0 %v2281
      %3284 = vmatprep.subr.bf16.mxu0 %v2377
      %3285 = vmatpush1.bf16.msra.mxu0 %v2376
      %3286 = vmatprep.subr.bf16.mxu0 %v2962
      %3287 = vmatpush1.bf16.msra.mxu0 %v2959
      %3288 = vmatprep.subr.bf16.mxu0 0
      %3289 = vmatpush1.bf16.msra.mxu0 0
      %3290 = vmatprep.subr.bf16.mxu0 0
      %3291 = vmatpush1.bf16.msra.mxu0 0
      %3292 = vmatprep.subr.bf16.mxu0 0
      %3293 = vmatpush1.bf16.msra.mxu0 0
      %3294 = vmatprep.subr.bf16.mxu0 0
      %3295 = vmatpush1.bf16.msra.mxu0 0
      %3296 = vmatprep.subr.bf16.mxu0 0
      %3297 = vmatpush1.bf16.msra.mxu0 0
      %3298 = vmatprep.subr.bf16.mxu0 0
      %3299 = vmatpush1.bf16.msra.mxu0 0
      %3300 = vmatprep.subr.bf16.mxu0 0
      %3301 = vmatpush1.bf16.msra.mxu0 0
      %3302 = vmatprep.subr.bf16.mxu0 0
      %3303 = vmatpush1.bf16.msra.mxu0 0
      %3304 = vmatprep.subr.bf16.mxu0 0
      %3305 = vmatpush1.bf16.msra.mxu0 0
      %3306 = vmatprep.subr.bf16.mxu0 0
      %3307 = vmatpush1.bf16.msra.mxu0 0
      %3308 = vmatprep.subr.bf16.mxu0 0
      %3309 = vmatpush1.bf16.msra.mxu0 0
      %3310 = vmatprep.mubr.bf16.mxu0 0
      %3311 = vmatmul.mubr.bf16.gmra.mrb[0].mxu0 %v2946
      %v3312 = vpop.f32.mrb[0].mxu0
      %v3313 = vadd.f32 %v657, %v3312
      %v3314 = vpop.f32.mrb[0].mxu0
      %v3315 = vadd.f32 %v657, %v3314
      %v3316 = vpop.f32.mrb[0].mxu0
      %v3317 = vpop.f32.mrb[0].mxu0
      %3318 = vdwg.mxu0
      %3319 = vmatprep.subr.bf16.mxu0 %v2094
      %3320 = vmatpush1.bf16.msra.mxu0 %v2093
      %3321 = vmatprep.subr.bf16.mxu0 %v2189
      %3322 = vmatpush1.bf16.msra.mxu0 %v2188
      %3323 = vmatprep.subr.bf16.mxu0 %v2284
      %3324 = vmatpush1.bf16.msra.mxu0 %v2283
      %3325 = vmatprep.subr.bf16.mxu0 %v2379
      %3326 = vmatpush1.bf16.msra.mxu0 %v2378
      %3327 = vmatprep.subr.bf16.mxu0 %v2968
      %3328 = vmatpush1.bf16.msra.mxu0 %v2965
      %3329 = vmatprep.subr.bf16.mxu0 0
      %3330 = vmatpush1.bf16.msra.mxu0 0
      %3331 = vmatprep.subr.bf16.mxu0 0
      %3332 = vmatpush1.bf16.msra.mxu0 0
      %3333 = vmatprep.subr.bf16.mxu0 0
      %3334 = vmatpush1.bf16.msra.mxu0 0
      %3335 = vmatprep.subr.bf16.mxu0 0
      %3336 = vmatpush1.bf16.msra.mxu0 0
      %3337 = vmatprep.subr.bf16.mxu0 0
      %3338 = vmatpush1.bf16.msra.mxu0 0
      %3339 = vmatprep.subr.bf16.mxu0 0
      %3340 = vmatpush1.bf16.msra.mxu0 0
      %3341 = vmatprep.subr.bf16.mxu0 0
      %3342 = vmatpush1.bf16.msra.mxu0 0
      %3343 = vmatprep.subr.bf16.mxu0 0
      %3344 = vmatpush1.bf16.msra.mxu0 0
      %3345 = vmatprep.subr.bf16.mxu0 0
      %3346 = vmatpush1.bf16.msra.mxu0 0
      %3347 = vmatprep.subr.bf16.mxu0 0
      %3348 = vmatpush1.bf16.msra.mxu0 0
      %3349 = vmatprep.subr.bf16.mxu0 0
      %3350 = vmatpush1.bf16.msra.mxu0 0
      %3351 = vmatprep.mubr.bf16.mxu0 0
      %3352 = vmatmul.mubr.bf16.gmra.mrb[0].mxu0 %v2946
      %v3353 = vpop.f32.mrb[0].mxu0
      %v3354 = vadd.f32 %v657, %v3353
      %v3355 = vpop.f32.mrb[0].mxu0
      %v3356 = vadd.f32 %v657, %v3355
      %v3357 = vpop.f32.mrb[0].mxu0
      %v3358 = vpop.f32.mrb[0].mxu0
      %3359 = vdwg.mxu0
      %3360 = vmatprep.subr.bf16.mxu0 %v2096
      %3361 = vmatpush1.bf16.msra.mxu0 %v2095
      %3362 = vmatprep.subr.bf16.mxu0 %v2191
      %3363 = vmatpush1.bf16.msra.mxu0 %v2190
      %3364 = vmatprep.subr.bf16.mxu0 %v2286
      %3365 = vmatpush1.bf16.msra.mxu0 %v2285
      %3366 = vmatprep.subr.bf16.mxu0 %v2381
      %3367 = vmatpush1.bf16.msra.mxu0 %v2380
      %3368 = vmatprep.subr.bf16.mxu0 %v2974
      %3369 = vmatpush1.bf16.msra.mxu0 %v2971
      %3370 = vmatprep.subr.bf16.mxu0 0
      %3371 = vmatpush1.bf16.msra.mxu0 0
      %3372 = vmatprep.subr.bf16.mxu0 0
      %3373 = vmatpush1.bf16.msra.mxu0 0
      %3374 = vmatprep.subr.bf16.mxu0 0
      %3375 = vmatpush1.bf16.msra.mxu0 0
      %3376 = vmatprep.subr.bf16.mxu0 0
      %3377 = vmatpush1.bf16.msra.mxu0 0
      %3378 = vmatprep.subr.bf16.mxu0 0
      %3379 = vmatpush1.bf16.msra.mxu0 0
      %3380 = vmatprep.subr.bf16.mxu0 0
      %3381 = vmatpush1.bf16.msra.mxu0 0
      %3382 = vmatprep.subr.bf16.mxu0 0
      %3383 = vmatpush1.bf16.msra.mxu0 0
      %3384 = vmatprep.subr.bf16.mxu0 0
      %3385 = vmatpush1.bf16.msra.mxu0 0
      %3386 = vmatprep.subr.bf16.mxu0 0
      %3387 = vmatpush1.bf16.msra.mxu0 0
      %3388 = vmatprep.subr.bf16.mxu0 0
      %3389 = vmatpush1.bf16.msra.mxu0 0
      %3390 = vmatprep.subr.bf16.mxu0 0
      %3391 = vmatpush1.bf16.msra.mxu0 0
      %3392 = vmatprep.mubr.bf16.mxu0 0
      %3393 = vmatmul.mubr.bf16.gmra.mrb[0].mxu0 %v2946
      %v3394 = vpop.f32.mrb[0].mxu0
      %v3395 = vadd.f32 %v657, %v3394
      %v3396 = vpop.f32.mrb[0].mxu0
      %v3397 = vadd.f32 %v657, %v3396
      %v3398 = vpop.f32.mrb[0].mxu0
      %v3399 = vpop.f32.mrb[0].mxu0
      %3400 = vdwg.mxu0
      %3401 = vmatprep.subr.bf16.mxu0 %v2098
      %3402 = vmatpush1.bf16.msra.mxu0 %v2097
      %3403 = vmatprep.subr.bf16.mxu0 %v2193
      %3404 = vmatpush1.bf16.msra.mxu0 %v2192
      %3405 = vmatprep.subr.bf16.mxu0 %v2288
      %3406 = vmatpush1.bf16.msra.mxu0 %v2287
      %3407 = vmatprep.subr.bf16.mxu0 %v2383
      %3408 = vmatpush1.bf16.msra.mxu0 %v2382
      %3409 = vmatprep.subr.bf16.mxu0 %v2980
      %3410 = vmatpush1.bf16.msra.mxu0 %v2977
      %3411 = vmatprep.subr.bf16.mxu0 0
      %3412 = vmatpush1.bf16.msra.mxu0 0
      %3413 = vmatprep.subr.bf16.mxu0 0
      %3414 = vmatpush1.bf16.msra.mxu0 0
      %3415 = vmatprep.subr.bf16.mxu0 0
      %3416 = vmatpush1.bf16.msra.mxu0 0
      %3417 = vmatprep.subr.bf16.mxu0 0
      %3418 = vmatpush1.bf16.msra.mxu0 0
      %3419 = vmatprep.subr.bf16.mxu0 0
      %3420 = vmatpush1.bf16.msra.mxu0 0
      %3421 = vmatprep.subr.bf16.mxu0 0
      %3422 = vmatpush1.bf16.msra.mxu0 0
      %3423 = vmatprep.subr.bf16.mxu0 0
      %3424 = vmatpush1.bf16.msra.mxu0 0
      %3425 = vmatprep.subr.bf16.mxu0 0
      %3426 = vmatpush1.bf16.msra.mxu0 0
      %3427 = vmatprep.subr.bf16.mxu0 0
      %3428 = vmatpush1.bf16.msra.mxu0 0
      %3429 = vmatprep.subr.bf16.mxu0 0
      %3430 = vmatpush1.bf16.msra.mxu0 0
      %3431 = vmatprep.subr.bf16.mxu0 0
      %3432 = vmatpush1.bf16.msra.mxu0 0
      %3433 = vmatprep.mubr.bf16.mxu0 0
      %3434 = vmatmul.mubr.bf16.gmra.mrb[0].mxu0 %v2946
      %v3435 = vpop.f32.mrb[0].mxu0
      %v3436 = vadd.f32 %v657, %v3435
      %v3437 = vpop.f32.mrb[0].mxu0
      %v3438 = vadd.f32 %v657, %v3437
      %v3439 = vpop.f32.mrb[0].mxu0
      %v3440 = vpop.f32.mrb[0].mxu0
      %3441 = vdwg.mxu0
      %3442 = vmatprep.subr.bf16.mxu0 %v2100
      %3443 = vmatpush1.bf16.msra.mxu0 %v2099
      %3444 = vmatprep.subr.bf16.mxu0 %v2195
      %3445 = vmatpush1.bf16.msra.mxu0 %v2194
      %3446 = vmatprep.subr.bf16.mxu0 %v2290
      %3447 = vmatpush1.bf16.msra.mxu0 %v2289
      %3448 = vmatprep.subr.bf16.mxu0 %v2385
      %3449 = vmatpush1.bf16.msra.mxu0 %v2384
      %3450 = vmatprep.subr.bf16.mxu0 %v2986
      %3451 = vmatpush1.bf16.msra.mxu0 %v2983
      %3452 = vmatprep.subr.bf16.mxu0 0
      %3453 = vmatpush1.bf16.msra.mxu0 0
      %3454 = vmatprep.subr.bf16.mxu0 0
      %3455 = vmatpush1.bf16.msra.mxu0 0
      %3456 = vmatprep.subr.bf16.mxu0 0
      %3457 = vmatpush1.bf16.msra.mxu0 0
      %3458 = vmatprep.subr.bf16.mxu0 0
      %3459 = vmatpush1.bf16.msra.mxu0 0
      %3460 = vmatprep.subr.bf16.mxu0 0
      %3461 = vmatpush1.bf16.msra.mxu0 0
      %3462 = vmatprep.subr.bf16.mxu0 0
      %3463 = vmatpush1.bf16.msra.mxu0 0
      %3464 = vmatprep.subr.bf16.mxu0 0
      %3465 = vmatpush1.bf16.msra.mxu0 0
      %3466 = vmatprep.subr.bf16.mxu0 0
      %3467 = vmatpush1.bf16.msra.mxu0 0
      %3468 = vmatprep.subr.bf16.mxu0 0
      %3469 = vmatpush1.bf16.msra.mxu0 0
      %3470 = vmatprep.subr.bf16.mxu0 0
      %3471 = vmatpush1.bf16.msra.mxu0 0
      %3472 = vmatprep.subr.bf16.mxu0 0
      %3473 = vmatpush1.bf16.msra.mxu0 0
      %3474 = vmatprep.mubr.bf16.mxu0 0
      %3475 = vmatmul.mubr.bf16.gmra.mrb[0].mxu0 %v2946
      %v3476 = vpop.f32.mrb[0].mxu0
      %v3477 = vadd.f32 %v657, %v3476
      %v3478 = vpop.f32.mrb[0].mxu0
      %v3479 = vadd.f32 %v657, %v3478
      %v3480 = vpop.f32.mrb[0].mxu0
      %v3481 = vpop.f32.mrb[0].mxu0
      %3482 = vdwg.mxu0
      %3483 = vmatprep.subr.bf16.mxu0 %v2102
      %3484 = vmatpush1.bf16.msra.mxu0 %v2101
      %3485 = vmatprep.subr.bf16.mxu0 %v2197
      %3486 = vmatpush1.bf16.msra.mxu0 %v2196
      %3487 = vmatprep.subr.bf16.mxu0 %v2292
      %3488 = vmatpush1.bf16.msra.mxu0 %v2291
      %3489 = vmatprep.subr.bf16.mxu0 %v2387
      %3490 = vmatpush1.bf16.msra.mxu0 %v2386
      %3491 = vmatprep.subr.bf16.mxu0 %v2992
      %3492 = vmatpush1.bf16.msra.mxu0 %v2989
      %3493 = vmatprep.subr.bf16.mxu0 0
      %3494 = vmatpush1.bf16.msra.mxu0 0
      %3495 = vmatprep.subr.bf16.mxu0 0
      %3496 = vmatpush1.bf16.msra.mxu0 0
      %3497 = vmatprep.subr.bf16.mxu0 0
      %3498 = vmatpush1.bf16.msra.mxu0 0
      %3499 = vmatprep.subr.bf16.mxu0 0
      %3500 = vmatpush1.bf16.msra.mxu0 0
      %3501 = vmatprep.subr.bf16.mxu0 0
      %3502 = vmatpush1.bf16.msra.mxu0 0
      %3503 = vmatprep.subr.bf16.mxu0 0
      %3504 = vmatpush1.bf16.msra.mxu0 0
      %3505 = vmatprep.subr.bf16.mxu0 0
      %3506 = vmatpush1.bf16.msra.mxu0 0
      %3507 = vmatprep.subr.bf16.mxu0 0
      %3508 = vmatpush1.bf16.msra.mxu0 0
      %3509 = vmatprep.subr.bf16.mxu0 0
      %3510 = vmatpush1.bf16.msra.mxu0 0
      %3511 = vmatprep.subr.bf16.mxu0 0
      %3512 = vmatpush1.bf16.msra.mxu0 0
      %3513 = vmatprep.subr.bf16.mxu0 0
      %3514 = vmatpush1.bf16.msra.mxu0 0
      %3515 = vmatprep.mubr.bf16.mxu0 0
      %3516 = vmatmul.mubr.bf16.gmra.mrb[0].mxu0 %v2946
      %v3517 = vpop.f32.mrb[0].mxu0
      %v3518 = vadd.f32 %v657, %v3517
      %v3519 = vpop.f32.mrb[0].mxu0
      %v3520 = vadd.f32 %v657, %v3519
      %v3521 = vpop.f32.mrb[0].mxu0
      %v3522 = vpop.f32.mrb[0].mxu0
      %3523 = vdwg.mxu0
      %3524 = vmatprep.subr.bf16.mxu0 %v2104
      %3525 = vmatpush1.bf16.msra.mxu0 %v2103
      %3526 = vmatprep.subr.bf16.mxu0 %v2199
      %3527 = vmatpush1.bf16.msra.mxu0 %v2198
      %3528 = vmatprep.subr.bf16.mxu0 %v2294
      %3529 = vmatpush1.bf16.msra.mxu0 %v2293
      %3530 = vmatprep.subr.bf16.mxu0 %v2389
      %3531 = vmatpush1.bf16.msra.mxu0 %v2388
      %3532 = vmatprep.subr.bf16.mxu0 %v2998
      %3533 = vmatpush1.bf16.msra.mxu0 %v2995
      %3534 = vmatprep.subr.bf16.mxu0 0
      %3535 = vmatpush1.bf16.msra.mxu0 0
      %3536 = vmatprep.subr.bf16.mxu0 0
      %3537 = vmatpush1.bf16.msra.mxu0 0
      %3538 = vmatprep.subr.bf16.mxu0 0
      %3539 = vmatpush1.bf16.msra.mxu0 0
      %3540 = vmatprep.subr.bf16.mxu0 0
      %3541 = vmatpush1.bf16.msra.mxu0 0
      %3542 = vmatprep.subr.bf16.mxu0 0
      %3543 = vmatpush1.bf16.msra.mxu0 0
      %3544 = vmatprep.subr.bf16.mxu0 0
      %3545 = vmatpush1.bf16.msra.mxu0 0
      %3546 = vmatprep.subr.bf16.mxu0 0
      %3547 = vmatpush1.bf16.msra.mxu0 0
      %3548 = vmatprep.subr.bf16.mxu0 0
      %3549 = vmatpush1.bf16.msra.mxu0 0
      %3550 = vmatprep.subr.bf16.mxu0 0
      %3551 = vmatpush1.bf16.msra.mxu0 0
      %3552 = vmatprep.subr.bf16.mxu0 0
      %3553 = vmatpush1.bf16.msra.mxu0 0
      %3554 = vmatprep.subr.bf16.mxu0 0
      %3555 = vmatpush1.bf16.msra.mxu0 0
      %3556 = vmatprep.mubr.bf16.mxu0 0
      %3557 = vmatmul.mubr.bf16.gmra.mrb[0].mxu0 %v2946
      %v3558 = vpop.f32.mrb[0].mxu0
      %v3559 = vadd.f32 %v657, %v3558
      %v3560 = vpop.f32.mrb[0].mxu0
      %v3561 = vadd.f32 %v657, %v3560
      %v3562 = vpop.f32.mrb[0].mxu0
      %v3563 = vpop.f32.mrb[0].mxu0
      %3564 = vdwg.mxu0
      %3565 = vmatprep.subr.bf16.mxu0 %v2106
      %3566 = vmatpush1.bf16.msra.mxu0 %v2105
      %3567 = vmatprep.subr.bf16.mxu0 %v2201
      %3568 = vmatpush1.bf16.msra.mxu0 %v2200
      %3569 = vmatprep.subr.bf16.mxu0 %v2296
      %3570 = vmatpush1.bf16.msra.mxu0 %v2295
      %3571 = vmatprep.subr.bf16.mxu0 %v2391
      %3572 = vmatpush1.bf16.msra.mxu0 %v2390
      %3573 = vmatprep.subr.bf16.mxu0 %v3004
      %3574 = vmatpush1.bf16.msra.mxu0 %v3001
      %3575 = vmatprep.subr.bf16.mxu0 0
      %3576 = vmatpush1.bf16.msra.mxu0 0
      %3577 = vmatprep.subr.bf16.mxu0 0
      %3578 = vmatpush1.bf16.msra.mxu0 0
      %3579 = vmatprep.subr.bf16.mxu0 0
      %3580 = vmatpush1.bf16.msra.mxu0 0
      %3581 = vmatprep.subr.bf16.mxu0 0
      %3582 = vmatpush1.bf16.msra.mxu0 0
      %3583 = vmatprep.subr.bf16.mxu0 0
      %3584 = vmatpush1.bf16.msra.mxu0 0
      %3585 = vmatprep.subr.bf16.mxu0 0
      %3586 = vmatpush1.bf16.msra.mxu0 0
      %3587 = vmatprep.subr.bf16.mxu0 0
      %3588 = vmatpush1.bf16.msra.mxu0 0
      %3589 = vmatprep.subr.bf16.mxu0 0
      %3590 = vmatpush1.bf16.msra.mxu0 0
      %3591 = vmatprep.subr.bf16.mxu0 0
      %3592 = vmatpush1.bf16.msra.mxu0 0
      %3593 = vmatprep.subr.bf16.mxu0 0
      %3594 = vmatpush1.bf16.msra.mxu0 0
      %3595 = vmatprep.subr.bf16.mxu0 0
      %3596 = vmatpush1.bf16.msra.mxu0 0
      %3597 = vmatprep.mubr.bf16.mxu0 0
      %3598 = vmatmul.mubr.bf16.gmra.mrb[0].mxu0 %v2946
      %v3599 = vpop.f32.mrb[0].mxu0
      %v3600 = vadd.f32 %v657, %v3599
      %v3601 = vpop.f32.mrb[0].mxu0
      %v3602 = vadd.f32 %v657, %v3601
      %v3603 = vpop.f32.mrb[0].mxu0
      %v3604 = vpop.f32.mrb[0].mxu0
      %3605 = vdwg.mxu0
      %3606 = vmatprep.subr.bf16.mxu0 %v2108
      %3607 = vmatpush1.bf16.msra.mxu0 %v2107
      %3608 = vmatprep.subr.bf16.mxu0 %v2203
      %3609 = vmatpush1.bf16.msra.mxu0 %v2202
      %3610 = vmatprep.subr.bf16.mxu0 %v2298
      %3611 = vmatpush1.bf16.msra.mxu0 %v2297
      %3612 = vmatprep.subr.bf16.mxu0 %v2393
      %3613 = vmatpush1.bf16.msra.mxu0 %v2392
      %3614 = vmatprep.subr.bf16.mxu0 %v3010
      %3615 = vmatpush1.bf16.msra.mxu0 %v3007
      %3616 = vmatprep.subr.bf16.mxu0 0
      %3617 = vmatpush1.bf16.msra.mxu0 0
      %3618 = vmatprep.subr.bf16.mxu0 0
      %3619 = vmatpush1.bf16.msra.mxu0 0
      %3620 = vmatprep.subr.bf16.mxu0 0
      %3621 = vmatpush1.bf16.msra.mxu0 0
      %3622 = vmatprep.subr.bf16.mxu0 0
      %3623 = vmatpush1.bf16.msra.mxu0 0
      %3624 = vmatprep.subr.bf16.mxu0 0
      %3625 = vmatpush1.bf16.msra.mxu0 0
      %3626 = vmatprep.subr.bf16.mxu0 0
      %3627 = vmatpush1.bf16.msra.mxu0 0
      %3628 = vmatprep.subr.bf16.mxu0 0
      %3629 = vmatpush1.bf16.msra.mxu0 0
      %3630 = vmatprep.subr.bf16.mxu0 0
      %3631 = vmatpush1.bf16.msra.mxu0 0
      %3632 = vmatprep.subr.bf16.mxu0 0
      %3633 = vmatpush1.bf16.msra.mxu0 0
      %3634 = vmatprep.subr.bf16.mxu0 0
      %3635 = vmatpush1.bf16.msra.mxu0 0
      %3636 = vmatprep.subr.bf16.mxu0 0
      %3637 = vmatpush1.bf16.msra.mxu0 0
      %3638 = vmatprep.mubr.bf16.mxu0 0
      %3639 = vmatmul.mubr.bf16.gmra.mrb[0].mxu0 %v2946
      %v3640 = vpop.f32.mrb[0].mxu0
      %v3641 = vadd.f32 %v657, %v3640
      %v3642 = vpop.f32.mrb[0].mxu0
      %v3643 = vadd.f32 %v657, %v3642
      %v3644 = vpop.f32.mrb[0].mxu0
      %v3645 = vpop.f32.mrb[0].mxu0
      %3646 = vdwg.mxu0
      %3647 = vmatprep.subr.bf16.mxu0 %v2110
      %3648 = vmatpush1.bf16.msra.mxu0 %v2109
      %3649 = vmatprep.subr.bf16.mxu0 %v2205
      %3650 = vmatpush1.bf16.msra.mxu0 %v2204
      %3651 = vmatprep.subr.bf16.mxu0 %v2300
      %3652 = vmatpush1.bf16.msra.mxu0 %v2299
      %3653 = vmatprep.subr.bf16.mxu0 %v2395
      %3654 = vmatpush1.bf16.msra.mxu0 %v2394
      %3655 = vmatprep.subr.bf16.mxu0 %v3016
      %3656 = vmatpush1.bf16.msra.mxu0 %v3013
      %3657 = vmatprep.subr.bf16.mxu0 0
      %3658 = vmatpush1.bf16.msra.mxu0 0
      %3659 = vmatprep.subr.bf16.mxu0 0
      %3660 = vmatpush1.bf16.msra.mxu0 0
      %3661 = vmatprep.subr.bf16.mxu0 0
      %3662 = vmatpush1.bf16.msra.mxu0 0
      %3663 = vmatprep.subr.bf16.mxu0 0
      %3664 = vmatpush1.bf16.msra.mxu0 0
      %3665 = vmatprep.subr.bf16.mxu0 0
      %3666 = vmatpush1.bf16.msra.mxu0 0
      %3667 = vmatprep.subr.bf16.mxu0 0
      %3668 = vmatpush1.bf16.msra.mxu0 0
      %3669 = vmatprep.subr.bf16.mxu0 0
      %3670 = vmatpush1.bf16.msra.mxu0 0
      %3671 = vmatprep.subr.bf16.mxu0 0
      %3672 = vmatpush1.bf16.msra.mxu0 0
      %3673 = vmatprep.subr.bf16.mxu0 0
      %3674 = vmatpush1.bf16.msra.mxu0 0
      %3675 = vmatprep.subr.bf16.mxu0 0
      %3676 = vmatpush1.bf16.msra.mxu0 0
      %3677 = vmatprep.subr.bf16.mxu0 0
      %3678 = vmatpush1.bf16.msra.mxu0 0
      %3679 = vmatprep.mubr.bf16.mxu0 0
      %3680 = vmatmul.mubr.bf16.gmra.mrb[0].mxu0 %v2946
      %v3681 = vpop.f32.mrb[0].mxu0
      %v3682 = vadd.f32 %v657, %v3681
      %v3683 = vpop.f32.mrb[0].mxu0
      %v3684 = vadd.f32 %v657, %v3683
      %v3685 = vpop.f32.mrb[0].mxu0
      %v3686 = vpop.f32.mrb[0].mxu0
      %3687 = vdwg.mxu0
      %3688 = vmatprep.subr.bf16.mxu0 %v2112
      %3689 = vmatpush1.bf16.msra.mxu0 %v2111
      %3690 = vmatprep.subr.bf16.mxu0 %v2207
      %3691 = vmatpush1.bf16.msra.mxu0 %v2206
      %3692 = vmatprep.subr.bf16.mxu0 %v2302
      %3693 = vmatpush1.bf16.msra.mxu0 %v2301
      %3694 = vmatprep.subr.bf16.mxu0 %v2397
      %3695 = vmatpush1.bf16.msra.mxu0 %v2396
      %3696 = vmatprep.subr.bf16.mxu0 %v3022
      %3697 = vmatpush1.bf16.msra.mxu0 %v3019
      %3698 = vmatprep.subr.bf16.mxu0 0
      %3699 = vmatpush1.bf16.msra.mxu0 0
      %3700 = vmatprep.subr.bf16.mxu0 0
      %3701 = vmatpush1.bf16.msra.mxu0 0
      %3702 = vmatprep.subr.bf16.mxu0 0
      %3703 = vmatpush1.bf16.msra.mxu0 0
      %3704 = vmatprep.subr.bf16.mxu0 0
      %3705 = vmatpush1.bf16.msra.mxu0 0
      %3706 = vmatprep.subr.bf16.mxu0 0
      %3707 = vmatpush1.bf16.msra.mxu0 0
      %3708 = vmatprep.subr.bf16.mxu0 0
      %3709 = vmatpush1.bf16.msra.mxu0 0
      %3710 = vmatprep.subr.bf16.mxu0 0
      %3711 = vmatpush1.bf16.msra.mxu0 0
      %3712 = vmatprep.subr.bf16.mxu0 0
      %3713 = vmatpush1.bf16.msra.mxu0 0
      %3714 = vmatprep.subr.bf16.mxu0 0
      %3715 = vmatpush1.bf16.msra.mxu0 0
      %3716 = vmatprep.subr.bf16.mxu0 0
      %3717 = vmatpush1.bf16.msra.mxu0 0
      %3718 = vmatprep.subr.bf16.mxu0 0
      %3719 = vmatpush1.bf16.msra.mxu0 0
      %3720 = vmatprep.mubr.bf16.mxu0 0
      %3721 = vmatmul.mubr.bf16.gmra.mrb[0].mxu0 %v2946
      %v3722 = vpop.f32.mrb[0].mxu0
      %v3723 = vadd.f32 %v657, %v3722
      %v3724 = vpop.f32.mrb[0].mxu0
      %v3725 = vadd.f32 %v657, %v3724
      %v3726 = vpop.f32.mrb[0].mxu0
      %v3727 = vpop.f32.mrb[0].mxu0
      %3728 = vdwg.mxu0
      %3729 = vmatprep.subr.bf16.mxu0 %v2114
      %3730 = vmatpush1.bf16.msra.mxu0 %v2113
      %3731 = vmatprep.subr.bf16.mxu0 %v2209
      %3732 = vmatpush1.bf16.msra.mxu0 %v2208
      %3733 = vmatprep.subr.bf16.mxu0 %v2304
      %3734 = vmatpush1.bf16.msra.mxu0 %v2303
      %3735 = vmatprep.subr.bf16.mxu0 %v2399
      %3736 = vmatpush1.bf16.msra.mxu0 %v2398
      %3737 = vmatprep.subr.bf16.mxu0 %v3028
      %3738 = vmatpush1.bf16.msra.mxu0 %v3025
      %3739 = vmatprep.subr.bf16.mxu0 0
      %3740 = vmatpush1.bf16.msra.mxu0 0
      %3741 = vmatprep.subr.bf16.mxu0 0
      %3742 = vmatpush1.bf16.msra.mxu0 0
      %3743 = vmatprep.subr.bf16.mxu0 0
      %3744 = vmatpush1.bf16.msra.mxu0 0
      %3745 = vmatprep.subr.bf16.mxu0 0
      %3746 = vmatpush1.bf16.msra.mxu0 0
      %3747 = vmatprep.subr.bf16.mxu0 0
      %3748 = vmatpush1.bf16.msra.mxu0 0
      %3749 = vmatprep.subr.bf16.mxu0 0
      %3750 = vmatpush1.bf16.msra.mxu0 0
      %3751 = vmatprep.subr.bf16.mxu0 0
      %3752 = vmatpush1.bf16.msra.mxu0 0
      %3753 = vmatprep.subr.bf16.mxu0 0
      %3754 = vmatpush1.bf16.msra.mxu0 0
      %3755 = vmatprep.subr.bf16.mxu0 0
      %3756 = vmatpush1.bf16.msra.mxu0 0
      %3757 = vmatprep.subr.bf16.mxu0 0
      %3758 = vmatpush1.bf16.msra.mxu0 0
      %3759 = vmatprep.subr.bf16.mxu0 0
      %3760 = vmatpush1.bf16.msra.mxu0 0
      %3761 = vmatprep.mubr.bf16.mxu0 0
      %3762 = vmatmul.mubr.bf16.gmra.mrb[0].mxu0 %v2946
      %v3763 = vpop.f32.mrb[0].mxu0
      %v3764 = vadd.f32 %v657, %v3763
      %v3765 = vpop.f32.mrb[0].mxu0
      %v3766 = vadd.f32 %v657, %v3765
      %v3767 = vpop.f32.mrb[0].mxu0
      %v3768 = vpop.f32.mrb[0].mxu0
      %3769 = vdwg.mxu0
      %3770 = vmatprep.subr.bf16.mxu0 %v2116
      %3771 = vmatpush1.bf16.msra.mxu0 %v2115
      %3772 = vmatprep.subr.bf16.mxu0 %v2211
      %3773 = vmatpush1.bf16.msra.mxu0 %v2210
      %3774 = vmatprep.subr.bf16.mxu0 %v2306
      %3775 = vmatpush1.bf16.msra.mxu0 %v2305
      %3776 = vmatprep.subr.bf16.mxu0 %v2401
      %3777 = vmatpush1.bf16.msra.mxu0 %v2400
      %3778 = vmatprep.subr.bf16.mxu0 %v3034
      %3779 = vmatpush1.bf16.msra.mxu0 %v3031
      %3780 = vmatprep.subr.bf16.mxu0 0
      %3781 = vmatpush1.bf16.msra.mxu0 0
      %3782 = vmatprep.subr.bf16.mxu0 0
      %3783 = vmatpush1.bf16.msra.mxu0 0
      %3784 = vmatprep.subr.bf16.mxu0 0
      %3785 = vmatpush1.bf16.msra.mxu0 0
      %3786 = vmatprep.subr.bf16.mxu0 0
      %3787 = vmatpush1.bf16.msra.mxu0 0
      %3788 = vmatprep.subr.bf16.mxu0 0
      %3789 = vmatpush1.bf16.msra.mxu0 0
      %3790 = vmatprep.subr.bf16.mxu0 0
      %3791 = vmatpush1.bf16.msra.mxu0 0
      %3792 = vmatprep.subr.bf16.mxu0 0
      %3793 = vmatpush1.bf16.msra.mxu0 0
      %3794 = vmatprep.subr.bf16.mxu0 0
      %3795 = vmatpush1.bf16.msra.mxu0 0
      %3796 = vmatprep.subr.bf16.mxu0 0
      %3797 = vmatpush1.bf16.msra.mxu0 0
      %3798 = vmatprep.subr.bf16.mxu0 0
      %3799 = vmatpush1.bf16.msra.mxu0 0
      %3800 = vmatprep.subr.bf16.mxu0 0
      %3801 = vmatpush1.bf16.msra.mxu0 0
      %3802 = vmatprep.mubr.bf16.mxu0 0
      %3803 = vmatmul.mubr.bf16.gmra.mrb[0].mxu0 %v2946
      %v3804 = vpop.f32.mrb[0].mxu0
      %v3805 = vadd.f32 %v657, %v3804
      %v3806 = vpop.f32.mrb[0].mxu0
      %v3807 = vadd.f32 %v657, %v3806
      %v3808 = vpop.f32.mrb[0].mxu0
      %v3809 = vpop.f32.mrb[0].mxu0
      %3810 = vdwg.mxu0
      %3811 = vmatprep.subr.bf16.mxu0 %v2118
      %3812 = vmatpush1.bf16.msra.mxu0 %v2117
      %3813 = vmatprep.subr.bf16.mxu0 %v2213
      %3814 = vmatpush1.bf16.msra.mxu0 %v2212
      %3815 = vmatprep.subr.bf16.mxu0 %v2308
      %3816 = vmatpush1.bf16.msra.mxu0 %v2307
      %3817 = vmatprep.subr.bf16.mxu0 %v2403
      %3818 = vmatpush1.bf16.msra.mxu0 %v2402
      %3819 = vmatprep.subr.bf16.mxu0 %v3040
      %3820 = vmatpush1.bf16.msra.mxu0 %v3037
      %3821 = vmatprep.subr.bf16.mxu0 0
      %3822 = vmatpush1.bf16.msra.mxu0 0
      %3823 = vmatprep.subr.bf16.mxu0 0
      %3824 = vmatpush1.bf16.msra.mxu0 0
      %3825 = vmatprep.subr.bf16.mxu0 0
      %3826 = vmatpush1.bf16.msra.mxu0 0
      %3827 = vmatprep.subr.bf16.mxu0 0
      %3828 = vmatpush1.bf16.msra.mxu0 0
      %3829 = vmatprep.subr.bf16.mxu0 0
      %3830 = vmatpush1.bf16.msra.mxu0 0
      %3831 = vmatprep.subr.bf16.mxu0 0
      %3832 = vmatpush1.bf16.msra.mxu0 0
      %3833 = vmatprep.subr.bf16.mxu0 0
      %3834 = vmatpush1.bf16.msra.mxu0 0
      %3835 = vmatprep.subr.bf16.mxu0 0
      %3836 = vmatpush1.bf16.msra.mxu0 0
      %3837 = vmatprep.subr.bf16.mxu0 0
      %3838 = vmatpush1.bf16.msra.mxu0 0
      %3839 = vmatprep.subr.bf16.mxu0 0
      %3840 = vmatpush1.bf16.msra.mxu0 0
      %3841 = vmatprep.subr.bf16.mxu0 0
      %3842 = vmatpush1.bf16.msra.mxu0 0
      %3843 = vmatprep.mubr.bf16.mxu0 0
      %3844 = vmatmul.mubr.bf16.gmra.mrb[0].mxu0 %v2946
      %v3845 = vpop.f32.mrb[0].mxu0
      %v3846 = vadd.f32 %v657, %v3845
      %v3847 = vpop.f32.mrb[0].mxu0
      %v3848 = vadd.f32 %v657, %v3847
      %v3849 = vpop.f32.mrb[0].mxu0
      %v3850 = vpop.f32.mrb[0].mxu0
      %3851 = vdwg.mxu0
      %3852 = vmatprep.subr.bf16.mxu0 %v2120
      %3853 = vmatpush1.bf16.msra.mxu0 %v2119
      %3854 = vmatprep.subr.bf16.mxu0 %v2215
      %3855 = vmatpush1.bf16.msra.mxu0 %v2214
      %3856 = vmatprep.subr.bf16.mxu0 %v2310
      %3857 = vmatpush1.bf16.msra.mxu0 %v2309
      %3858 = vmatprep.subr.bf16.mxu0 %v2405
      %3859 = vmatpush1.bf16.msra.mxu0 %v2404
      %3860 = vmatprep.subr.bf16.mxu0 %v3046
      %3861 = vmatpush1.bf16.msra.mxu0 %v3043
      %3862 = vmatprep.subr.bf16.mxu0 0
      %3863 = vmatpush1.bf16.msra.mxu0 0
      %3864 = vmatprep.subr.bf16.mxu0 0
      %3865 = vmatpush1.bf16.msra.mxu0 0
      %3866 = vmatprep.subr.bf16.mxu0 0
      %3867 = vmatpush1.bf16.msra.mxu0 0
      %3868 = vmatprep.subr.bf16.mxu0 0
      %3869 = vmatpush1.bf16.msra.mxu0 0
      %3870 = vmatprep.subr.bf16.mxu0 0
      %3871 = vmatpush1.bf16.msra.mxu0 0
      %3872 = vmatprep.subr.bf16.mxu0 0
      %3873 = vmatpush1.bf16.msra.mxu0 0
      %3874 = vmatprep.subr.bf16.mxu0 0
      %3875 = vmatpush1.bf16.msra.mxu0 0
      %3876 = vmatprep.subr.bf16.mxu0 0
      %3877 = vmatpush1.bf16.msra.mxu0 0
      %3878 = vmatprep.subr.bf16.mxu0 0
      %3879 = vmatpush1.bf16.msra.mxu0 0
      %3880 = vmatprep.subr.bf16.mxu0 0
      %3881 = vmatpush1.bf16.msra.mxu0 0
      %3882 = vmatprep.subr.bf16.mxu0 0
      %3883 = vmatpush1.bf16.msra.mxu0 0
      %3884 = vmatprep.mubr.bf16.mxu0 0
      %3885 = vmatmul.mubr.bf16.gmra.mrb[0].mxu0 %v2946
      %v3886 = vpop.f32.mrb[0].mxu0
      %v3887 = vadd.f32 %v657, %v3886
      %v3888 = vpop.f32.mrb[0].mxu0
      %v3889 = vadd.f32 %v657, %v3888
      %v3890 = vpop.f32.mrb[0].mxu0
      %v3891 = vpop.f32.mrb[0].mxu0
      %3892 = vdwg.mxu0
      %3893 = vmatprep.subr.bf16.mxu0 %v2122
      %3894 = vmatpush1.bf16.msra.mxu0 %v2121
      %3895 = vmatprep.subr.bf16.mxu0 %v2217
      %3896 = vmatpush1.bf16.msra.mxu0 %v2216
      %3897 = vmatprep.subr.bf16.mxu0 %v2312
      %3898 = vmatpush1.bf16.msra.mxu0 %v2311
      %3899 = vmatprep.subr.bf16.mxu0 %v2407
      %3900 = vmatpush1.bf16.msra.mxu0 %v2406
      %3901 = vmatprep.subr.bf16.mxu0 %v3052
      %3902 = vmatpush1.bf16.msra.mxu0 %v3049
      %3903 = vmatprep.subr.bf16.mxu0 0
      %3904 = vmatpush1.bf16.msra.mxu0 0
      %3905 = vmatprep.subr.bf16.mxu0 0
      %3906 = vmatpush1.bf16.msra.mxu0 0
      %3907 = vmatprep.subr.bf16.mxu0 0
      %3908 = vmatpush1.bf16.msra.mxu0 0
      %3909 = vmatprep.subr.bf16.mxu0 0
      %3910 = vmatpush1.bf16.msra.mxu0 0
      %3911 = vmatprep.subr.bf16.mxu0 0
      %3912 = vmatpush1.bf16.msra.mxu0 0
      %3913 = vmatprep.subr.bf16.mxu0 0
      %3914 = vmatpush1.bf16.msra.mxu0 0
      %3915 = vmatprep.subr.bf16.mxu0 0
      %3916 = vmatpush1.bf16.msra.mxu0 0
      %3917 = vmatprep.subr.bf16.mxu0 0
      %3918 = vmatpush1.bf16.msra.mxu0 0
      %3919 = vmatprep.subr.bf16.mxu0 0
      %3920 = vmatpush1.bf16.msra.mxu0 0
      %3921 = vmatprep.subr.bf16.mxu0 0
      %3922 = vmatpush1.bf16.msra.mxu0 0
      %3923 = vmatprep.subr.bf16.mxu0 0
      %3924 = vmatpush1.bf16.msra.mxu0 0
      %3925 = vmatprep.mubr.bf16.mxu0 0
      %3926 = vmatmul.mubr.bf16.gmra.mrb[0].mxu0 %v2946
      %v3927 = vpop.f32.mrb[0].mxu0
      %v3928 = vadd.f32 %v657, %v3927
      %v3929 = vpop.f32.mrb[0].mxu0
      %v3930 = vadd.f32 %v657, %v3929
      %v3931 = vpop.f32.mrb[0].mxu0
      %v3932 = vpop.f32.mrb[0].mxu0
      %3933 = vdwg.mxu0
      %3934 = vmatprep.subr.bf16.mxu0 %v2124
      %3935 = vmatpush1.bf16.msra.mxu0 %v2123
      %3936 = vmatprep.subr.bf16.mxu0 %v2219
      %3937 = vmatpush1.bf16.msra.mxu0 %v2218
      %3938 = vmatprep.subr.bf16.mxu0 %v2314
      %3939 = vmatpush1.bf16.msra.mxu0 %v2313
      %3940 = vmatprep.subr.bf16.mxu0 %v2409
      %3941 = vmatpush1.bf16.msra.mxu0 %v2408
      %3942 = vmatprep.subr.bf16.mxu0 %v3058
      %3943 = vmatpush1.bf16.msra.mxu0 %v3055
      %3944 = vmatprep.subr.bf16.mxu0 0
      %3945 = vmatpush1.bf16.msra.mxu0 0
      %3946 = vmatprep.subr.bf16.mxu0 0
      %3947 = vmatpush1.bf16.msra.mxu0 0
      %3948 = vmatprep.subr.bf16.mxu0 0
      %3949 = vmatpush1.bf16.msra.mxu0 0
      %3950 = vmatprep.subr.bf16.mxu0 0
      %3951 = vmatpush1.bf16.msra.mxu0 0
      %3952 = vmatprep.subr.bf16.mxu0 0
      %3953 = vmatpush1.bf16.msra.mxu0 0
      %3954 = vmatprep.subr.bf16.mxu0 0
      %3955 = vmatpush1.bf16.msra.mxu0 0
      %3956 = vmatprep.subr.bf16.mxu0 0
      %3957 = vmatpush1.bf16.msra.mxu0 0
      %3958 = vmatprep.subr.bf16.mxu0 0
      %3959 = vmatpush1.bf16.msra.mxu0 0
      %3960 = vmatprep.subr.bf16.mxu0 0
      %3961 = vmatpush1.bf16.msra.mxu0 0
      %3962 = vmatprep.subr.bf16.mxu0 0
      %3963 = vmatpush1.bf16.msra.mxu0 0
      %3964 = vmatprep.subr.bf16.mxu0 0
      %3965 = vmatpush1.bf16.msra.mxu0 0
      %3966 = vmatprep.mubr.bf16.mxu0 0
      %3967 = vmatmul.mubr.bf16.gmra.mrb[0].mxu0 %v2946
      %v3968 = vpop.f32.mrb[0].mxu0
      %v3969 = vadd.f32 %v657, %v3968
      %v3970 = vpop.f32.mrb[0].mxu0
      %v3971 = vadd.f32 %v657, %v3970
      %v3972 = vpop.f32.mrb[0].mxu0
      %v3973 = vpop.f32.mrb[0].mxu0
      %3974 = vdwg.mxu0
      %3975 = vmatprep.subr.bf16.mxu0 %v2126
      %3976 = vmatpush1.bf16.msra.mxu0 %v2125
      %3977 = vmatprep.subr.bf16.mxu0 %v2221
      %3978 = vmatpush1.bf16.msra.mxu0 %v2220
      %3979 = vmatprep.subr.bf16.mxu0 %v2316
      %3980 = vmatpush1.bf16.msra.mxu0 %v2315
      %3981 = vmatprep.subr.bf16.mxu0 %v2411
      %3982 = vmatpush1.bf16.msra.mxu0 %v2410
      %3983 = vmatprep.subr.bf16.mxu0 %v3064
      %3984 = vmatpush1.bf16.msra.mxu0 %v3061
      %3985 = vmatprep.subr.bf16.mxu0 0
      %3986 = vmatpush1.bf16.msra.mxu0 0
      %3987 = vmatprep.subr.bf16.mxu0 0
      %3988 = vmatpush1.bf16.msra.mxu0 0
      %3989 = vmatprep.subr.bf16.mxu0 0
      %3990 = vmatpush1.bf16.msra.mxu0 0
      %3991 = vmatprep.subr.bf16.mxu0 0
      %3992 = vmatpush1.bf16.msra.mxu0 0
      %3993 = vmatprep.subr.bf16.mxu0 0
      %3994 = vmatpush1.bf16.msra.mxu0 0
      %3995 = vmatprep.subr.bf16.mxu0 0
      %3996 = vmatpush1.bf16.msra.mxu0 0
      %3997 = vmatprep.subr.bf16.mxu0 0
      %3998 = vmatpush1.bf16.msra.mxu0 0
      %3999 = vmatprep.subr.bf16.mxu0 0
      %4000 = vmatpush1.bf16.msra.mxu0 0
      %4001 = vmatprep.subr.bf16.mxu0 0
      %4002 = vmatpush1.bf16.msra.mxu0 0
      %4003 = vmatprep.subr.bf16.mxu0 0
      %4004 = vmatpush1.bf16.msra.mxu0 0
      %4005 = vmatprep.subr.bf16.mxu0 0
      %4006 = vmatpush1.bf16.msra.mxu0 0
      %4007 = vmatprep.mubr.bf16.mxu0 0
      %4008 = vmatmul.mubr.bf16.gmra.mrb[0].mxu0 %v2946
      %v4009 = vpop.f32.mrb[0].mxu0
      %v4010 = vadd.f32 %v657, %v4009
      %v4011 = vpop.f32.mrb[0].mxu0
      %v4012 = vadd.f32 %v657, %v4011
      %v4013 = vpop.f32.mrb[0].mxu0
      %v4014 = vpop.f32.mrb[0].mxu0
      %4015 = vdwg.mxu0
      %4016 = vmatprep.subr.bf16.mxu0 %v2128
      %4017 = vmatpush1.bf16.msra.mxu0 %v2127
      %4018 = vmatprep.subr.bf16.mxu0 %v2223
      %4019 = vmatpush1.bf16.msra.mxu0 %v2222
      %4020 = vmatprep.subr.bf16.mxu0 %v2318
      %4021 = vmatpush1.bf16.msra.mxu0 %v2317
      %4022 = vmatprep.subr.bf16.mxu0 %v2413
      %4023 = vmatpush1.bf16.msra.mxu0 %v2412
      %4024 = vmatprep.subr.bf16.mxu0 %v3070
      %4025 = vmatpush1.bf16.msra.mxu0 %v3067
      %4026 = vmatprep.subr.bf16.mxu0 0
      %4027 = vmatpush1.bf16.msra.mxu0 0
      %4028 = vmatprep.subr.bf16.mxu0 0
      %4029 = vmatpush1.bf16.msra.mxu0 0
      %4030 = vmatprep.subr.bf16.mxu0 0
      %4031 = vmatpush1.bf16.msra.mxu0 0
      %4032 = vmatprep.subr.bf16.mxu0 0
      %4033 = vmatpush1.bf16.msra.mxu0 0
      %4034 = vmatprep.subr.bf16.mxu0 0
      %4035 = vmatpush1.bf16.msra.mxu0 0
      %4036 = vmatprep.subr.bf16.mxu0 0
      %4037 = vmatpush1.bf16.msra.mxu0 0
      %4038 = vmatprep.subr.bf16.mxu0 0
      %4039 = vmatpush1.bf16.msra.mxu0 0
      %4040 = vmatprep.subr.bf16.mxu0 0
      %4041 = vmatpush1.bf16.msra.mxu0 0
      %4042 = vmatprep.subr.bf16.mxu0 0
      %4043 = vmatpush1.bf16.msra.mxu0 0
      %4044 = vmatprep.subr.bf16.mxu0 0
      %4045 = vmatpush1.bf16.msra.mxu0 0
      %4046 = vmatprep.subr.bf16.mxu0 0
      %4047 = vmatpush1.bf16.msra.mxu0 0
      %4048 = vmatprep.mubr.bf16.mxu0 0
      %4049 = vmatmul.mubr.bf16.gmra.mrb[0].mxu0 %v2946
      %v4050 = vpop.f32.mrb[0].mxu0
      %v4051 = vadd.f32 %v657, %v4050
      %v4052 = vpop.f32.mrb[0].mxu0
      %v4053 = vadd.f32 %v657, %v4052
      %v4054 = vpop.f32.mrb[0].mxu0
      %v4055 = vpop.f32.mrb[0].mxu0
      %4056 = vdwg.mxu0
      %4057 = vmatprep.subr.bf16.mxu0 %v2130
      %4058 = vmatpush1.bf16.msra.mxu0 %v2129
      %4059 = vmatprep.subr.bf16.mxu0 %v2225
      %4060 = vmatpush1.bf16.msra.mxu0 %v2224
      %4061 = vmatprep.subr.bf16.mxu0 %v2320
      %4062 = vmatpush1.bf16.msra.mxu0 %v2319
      %4063 = vmatprep.subr.bf16.mxu0 %v2415
      %4064 = vmatpush1.bf16.msra.mxu0 %v2414
      %4065 = vmatprep.subr.bf16.mxu0 %v3076
      %4066 = vmatpush1.bf16.msra.mxu0 %v3073
      %4067 = vmatprep.subr.bf16.mxu0 0
      %4068 = vmatpush1.bf16.msra.mxu0 0
      %4069 = vmatprep.subr.bf16.mxu0 0
      %4070 = vmatpush1.bf16.msra.mxu0 0
      %4071 = vmatprep.subr.bf16.mxu0 0
      %4072 = vmatpush1.bf16.msra.mxu0 0
      %4073 = vmatprep.subr.bf16.mxu0 0
      %4074 = vmatpush1.bf16.msra.mxu0 0
      %4075 = vmatprep.subr.bf16.mxu0 0
      %4076 = vmatpush1.bf16.msra.mxu0 0
      %4077 = vmatprep.subr.bf16.mxu0 0
      %4078 = vmatpush1.bf16.msra.mxu0 0
      %4079 = vmatprep.subr.bf16.mxu0 0
      %4080 = vmatpush1.bf16.msra.mxu0 0
      %4081 = vmatprep.subr.bf16.mxu0 0
      %4082 = vmatpush1.bf16.msra.mxu0 0
      %4083 = vmatprep.subr.bf16.mxu0 0
      %4084 = vmatpush1.bf16.msra.mxu0 0
      %4085 = vmatprep.subr.bf16.mxu0 0
      %4086 = vmatpush1.bf16.msra.mxu0 0
      %4087 = vmatprep.subr.bf16.mxu0 0
      %4088 = vmatpush1.bf16.msra.mxu0 0
      %4089 = vmatprep.mubr.bf16.mxu0 0
      %4090 = vmatmul.mubr.bf16.gmra.mrb[0].mxu0 %v2946
      %v4091 = vpop.f32.mrb[0].mxu0
      %v4092 = vadd.f32 %v657, %v4091
      %v4093 = vpop.f32.mrb[0].mxu0
      %v4094 = vadd.f32 %v657, %v4093
      %v4095 = vpop.f32.mrb[0].mxu0
      %v4096 = vpop.f32.mrb[0].mxu0
      %4097 = vdwg.mxu0
      %4098 = vmatprep.subr.bf16.mxu0 %v2132
      %4099 = vmatpush1.bf16.msra.mxu0 %v2131
      %4100 = vmatprep.subr.bf16.mxu0 %v2227
      %4101 = vmatpush1.bf16.msra.mxu0 %v2226
      %4102 = vmatprep.subr.bf16.mxu0 %v2322
      %4103 = vmatpush1.bf16.msra.mxu0 %v2321
      %4104 = vmatprep.subr.bf16.mxu0 %v2417
      %4105 = vmatpush1.bf16.msra.mxu0 %v2416
      %4106 = vmatprep.subr.bf16.mxu0 %v3082
      %4107 = vmatpush1.bf16.msra.mxu0 %v3079
      %4108 = vmatprep.subr.bf16.mxu0 0
      %4109 = vmatpush1.bf16.msra.mxu0 0
      %4110 = vmatprep.subr.bf16.mxu0 0
      %4111 = vmatpush1.bf16.msra.mxu0 0
      %4112 = vmatprep.subr.bf16.mxu0 0
      %4113 = vmatpush1.bf16.msra.mxu0 0
      %4114 = vmatprep.subr.bf16.mxu0 0
      %4115 = vmatpush1.bf16.msra.mxu0 0
      %4116 = vmatprep.subr.bf16.mxu0 0
      %4117 = vmatpush1.bf16.msra.mxu0 0
      %4118 = vmatprep.subr.bf16.mxu0 0
      %4119 = vmatpush1.bf16.msra.mxu0 0
      %4120 = vmatprep.subr.bf16.mxu0 0
      %4121 = vmatpush1.bf16.msra.mxu0 0
      %4122 = vmatprep.subr.bf16.mxu0 0
      %4123 = vmatpush1.bf16.msra.mxu0 0
      %4124 = vmatprep.subr.bf16.mxu0 0
      %4125 = vmatpush1.bf16.msra.mxu0 0
      %4126 = vmatprep.subr.bf16.mxu0 0
      %4127 = vmatpush1.bf16.msra.mxu0 0
      %4128 = vmatprep.subr.bf16.mxu0 0
      %4129 = vmatpush1.bf16.msra.mxu0 0
      %4130 = vmatprep.mubr.bf16.mxu0 0
      %4131 = vmatmul.mubr.bf16.gmra.mrb[0].mxu0 %v2946
      %v4132 = vpop.f32.mrb[0].mxu0
      %v4133 = vadd.f32 %v657, %v4132
      %v4134 = vpop.f32.mrb[0].mxu0
      %v4135 = vadd.f32 %v657, %v4134
      %v4136 = vpop.f32.mrb[0].mxu0
      %v4137 = vpop.f32.mrb[0].mxu0
      %4138 = vdwg.mxu0
      %4139 = vmatprep.subr.bf16.mxu0 %v2134
      %4140 = vmatpush1.bf16.msra.mxu0 %v2133
      %4141 = vmatprep.subr.bf16.mxu0 %v2229
      %4142 = vmatpush1.bf16.msra.mxu0 %v2228
      %4143 = vmatprep.subr.bf16.mxu0 %v2324
      %4144 = vmatpush1.bf16.msra.mxu0 %v2323
      %4145 = vmatprep.subr.bf16.mxu0 %v2419
      %4146 = vmatpush1.bf16.msra.mxu0 %v2418
      %4147 = vmatprep.subr.bf16.mxu0 %v3088
      %4148 = vmatpush1.bf16.msra.mxu0 %v3085
      %4149 = vmatprep.subr.bf16.mxu0 0
      %4150 = vmatpush1.bf16.msra.mxu0 0
      %4151 = vmatprep.subr.bf16.mxu0 0
      %4152 = vmatpush1.bf16.msra.mxu0 0
      %4153 = vmatprep.subr.bf16.mxu0 0
      %4154 = vmatpush1.bf16.msra.mxu0 0
      %4155 = vmatprep.subr.bf16.mxu0 0
      %4156 = vmatpush1.bf16.msra.mxu0 0
      %4157 = vmatprep.subr.bf16.mxu0 0
      %4158 = vmatpush1.bf16.msra.mxu0 0
      %4159 = vmatprep.subr.bf16.mxu0 0
      %4160 = vmatpush1.bf16.msra.mxu0 0
      %4161 = vmatprep.subr.bf16.mxu0 0
      %4162 = vmatpush1.bf16.msra.mxu0 0
      %4163 = vmatprep.subr.bf16.mxu0 0
      %4164 = vmatpush1.bf16.msra.mxu0 0
      %4165 = vmatprep.subr.bf16.mxu0 0
      %4166 = vmatpush1.bf16.msra.mxu0 0
      %4167 = vmatprep.subr.bf16.mxu0 0
      %4168 = vmatpush1.bf16.msra.mxu0 0
      %4169 = vmatprep.subr.bf16.mxu0 0
      %4170 = vmatpush1.bf16.msra.mxu0 0
      %4171 = vmatprep.mubr.bf16.mxu0 0
      %4172 = vmatmul.mubr.bf16.gmra.mrb[0].mxu0 %v2946
      %v4173 = vpop.f32.mrb[0].mxu0
      %v4174 = vadd.f32 %v657, %v4173
      %v4175 = vpop.f32.mrb[0].mxu0
      %v4176 = vadd.f32 %v657, %v4175
      %v4177 = vpop.f32.mrb[0].mxu0
      %v4178 = vpop.f32.mrb[0].mxu0
      %4179 = vdwg.mxu0
      %4180 = vmatprep.subr.bf16.mxu0 %v2136
      %4181 = vmatpush1.bf16.msra.mxu0 %v2135
      %4182 = vmatprep.subr.bf16.mxu0 %v2231
      %4183 = vmatpush1.bf16.msra.mxu0 %v2230
      %4184 = vmatprep.subr.bf16.mxu0 %v2326
      %4185 = vmatpush1.bf16.msra.mxu0 %v2325
      %4186 = vmatprep.subr.bf16.mxu0 %v2421
      %4187 = vmatpush1.bf16.msra.mxu0 %v2420
      %4188 = vmatprep.subr.bf16.mxu0 %v3094
      %4189 = vmatpush1.bf16.msra.mxu0 %v3091
      %4190 = vmatprep.subr.bf16.mxu0 0
      %4191 = vmatpush1.bf16.msra.mxu0 0
      %4192 = vmatprep.subr.bf16.mxu0 0
      %4193 = vmatpush1.bf16.msra.mxu0 0
      %4194 = vmatprep.subr.bf16.mxu0 0
      %4195 = vmatpush1.bf16.msra.mxu0 0
      %4196 = vmatprep.subr.bf16.mxu0 0
      %4197 = vmatpush1.bf16.msra.mxu0 0
      %4198 = vmatprep.subr.bf16.mxu0 0
      %4199 = vmatpush1.bf16.msra.mxu0 0
      %4200 = vmatprep.subr.bf16.mxu0 0
      %4201 = vmatpush1.bf16.msra.mxu0 0
      %4202 = vmatprep.subr.bf16.mxu0 0
      %4203 = vmatpush1.bf16.msra.mxu0 0
      %4204 = vmatprep.subr.bf16.mxu0 0
      %4205 = vmatpush1.bf16.msra.mxu0 0
      %4206 = vmatprep.subr.bf16.mxu0 0
      %4207 = vmatpush1.bf16.msra.mxu0 0
      %4208 = vmatprep.subr.bf16.mxu0 0
      %4209 = vmatpush1.bf16.msra.mxu0 0
      %4210 = vmatprep.subr.bf16.mxu0 0
      %4211 = vmatpush1.bf16.msra.mxu0 0
      %4212 = vmatprep.mubr.bf16.mxu0 0
      %4213 = vmatmul.mubr.bf16.gmra.mrb[0].mxu0 %v2946
      %v4214 = vpop.f32.mrb[0].mxu0
      %v4215 = vadd.f32 %v657, %v4214
      %v4216 = vpop.f32.mrb[0].mxu0
      %v4217 = vadd.f32 %v657, %v4216
      %v4218 = vpop.f32.mrb[0].mxu0
      %v4219 = vpop.f32.mrb[0].mxu0
      %4220 = vdwg.mxu0
      %4221 = vmatprep.subr.bf16.mxu0 %v2138
      %4222 = vmatpush1.bf16.msra.mxu0 %v2137
      %4223 = vmatprep.subr.bf16.mxu0 %v2233
      %4224 = vmatpush1.bf16.msra.mxu0 %v2232
      %4225 = vmatprep.subr.bf16.mxu0 %v2328
      %4226 = vmatpush1.bf16.msra.mxu0 %v2327
      %4227 = vmatprep.subr.bf16.mxu0 %v2423
      %4228 = vmatpush1.bf16.msra.mxu0 %v2422
      %4229 = vmatprep.subr.bf16.mxu0 %v3100
      %4230 = vmatpush1.bf16.msra.mxu0 %v3097
      %4231 = vmatprep.subr.bf16.mxu0 0
      %4232 = vmatpush1.bf16.msra.mxu0 0
      %4233 = vmatprep.subr.bf16.mxu0 0
      %4234 = vmatpush1.bf16.msra.mxu0 0
      %4235 = vmatprep.subr.bf16.mxu0 0
      %4236 = vmatpush1.bf16.msra.mxu0 0
      %4237 = vmatprep.subr.bf16.mxu0 0
      %4238 = vmatpush1.bf16.msra.mxu0 0
      %4239 = vmatprep.subr.bf16.mxu0 0
      %4240 = vmatpush1.bf16.msra.mxu0 0
      %4241 = vmatprep.subr.bf16.mxu0 0
      %4242 = vmatpush1.bf16.msra.mxu0 0
      %4243 = vmatprep.subr.bf16.mxu0 0
      %4244 = vmatpush1.bf16.msra.mxu0 0
      %4245 = vmatprep.subr.bf16.mxu0 0
      %4246 = vmatpush1.bf16.msra.mxu0 0
      %4247 = vmatprep.subr.bf16.mxu0 0
      %4248 = vmatpush1.bf16.msra.mxu0 0
      %4249 = vmatprep.subr.bf16.mxu0 0
      %4250 = vmatpush1.bf16.msra.mxu0 0
      %4251 = vmatprep.subr.bf16.mxu0 0
      %4252 = vmatpush1.bf16.msra.mxu0 0
      %4253 = vmatprep.mubr.bf16.mxu0 0
      %4254 = vmatmul.mubr.bf16.gmra.mrb[0].mxu0 %v2946
      %v4255 = vpop.f32.mrb[0].mxu0
      %v4256 = vadd.f32 %v657, %v4255
      %v4257 = vpop.f32.mrb[0].mxu0
      %v4258 = vadd.f32 %v657, %v4257
      %v4259 = vpop.f32.mrb[0].mxu0
      %v4260 = vpop.f32.mrb[0].mxu0
      %4261 = vdwg.mxu0
      %4262 = vmatprep.subr.bf16.mxu0 %v2140
      %4263 = vmatpush1.bf16.msra.mxu0 %v2139
      %4264 = vmatprep.subr.bf16.mxu0 %v2235
      %4265 = vmatpush1.bf16.msra.mxu0 %v2234
      %4266 = vmatprep.subr.bf16.mxu0 %v2330
      %4267 = vmatpush1.bf16.msra.mxu0 %v2329
      %4268 = vmatprep.subr.bf16.mxu0 %v2425
      %4269 = vmatpush1.bf16.msra.mxu0 %v2424
      %4270 = vmatprep.subr.bf16.mxu0 %v3106
      %4271 = vmatpush1.bf16.msra.mxu0 %v3103
      %4272 = vmatprep.subr.bf16.mxu0 0
      %4273 = vmatpush1.bf16.msra.mxu0 0
      %4274 = vmatprep.subr.bf16.mxu0 0
      %4275 = vmatpush1.bf16.msra.mxu0 0
      %4276 = vmatprep.subr.bf16.mxu0 0
      %4277 = vmatpush1.bf16.msra.mxu0 0
      %4278 = vmatprep.subr.bf16.mxu0 0
      %4279 = vmatpush1.bf16.msra.mxu0 0
      %4280 = vmatprep.subr.bf16.mxu0 0
      %4281 = vmatpush1.bf16.msra.mxu0 0
      %4282 = vmatprep.subr.bf16.mxu0 0
      %4283 = vmatpush1.bf16.msra.mxu0 0
      %4284 = vmatprep.subr.bf16.mxu0 0
      %4285 = vmatpush1.bf16.msra.mxu0 0
      %4286 = vmatprep.subr.bf16.mxu0 0
      %4287 = vmatpush1.bf16.msra.mxu0 0
      %4288 = vmatprep.subr.bf16.mxu0 0
      %4289 = vmatpush1.bf16.msra.mxu0 0
      %4290 = vmatprep.subr.bf16.mxu0 0
      %4291 = vmatpush1.bf16.msra.mxu0 0
      %4292 = vmatprep.subr.bf16.mxu0 0
      %4293 = vmatpush1.bf16.msra.mxu0 0
      %4294 = vmatprep.mubr.bf16.mxu0 0
      %4295 = vmatmul.mubr.bf16.gmra.mrb[0].mxu0 %v2946
      %v4296 = vpop.f32.mrb[0].mxu0
      %v4297 = vadd.f32 %v657, %v4296
      %v4298 = vpop.f32.mrb[0].mxu0
      %v4299 = vadd.f32 %v657, %v4298
      %v4300 = vpop.f32.mrb[0].mxu0
      %v4301 = vpop.f32.mrb[0].mxu0
      %4302 = vdwg.mxu0
      %4303 = vmatprep.subr.bf16.mxu0 %v2142
      %4304 = vmatpush1.bf16.msra.mxu0 %v2141
      %4305 = vmatprep.subr.bf16.mxu0 %v2237
      %4306 = vmatpush1.bf16.msra.mxu0 %v2236
      %4307 = vmatprep.subr.bf16.mxu0 %v2332
      %4308 = vmatpush1.bf16.msra.mxu0 %v2331
      %4309 = vmatprep.subr.bf16.mxu0 %v2427
      %4310 = vmatpush1.bf16.msra.mxu0 %v2426
      %4311 = vmatprep.subr.bf16.mxu0 %v3112
      %4312 = vmatpush1.bf16.msra.mxu0 %v3109
      %4313 = vmatprep.subr.bf16.mxu0 0
      %4314 = vmatpush1.bf16.msra.mxu0 0
      %4315 = vmatprep.subr.bf16.mxu0 0
      %4316 = vmatpush1.bf16.msra.mxu0 0
      %4317 = vmatprep.subr.bf16.mxu0 0
      %4318 = vmatpush1.bf16.msra.mxu0 0
      %4319 = vmatprep.subr.bf16.mxu0 0
      %4320 = vmatpush1.bf16.msra.mxu0 0
      %4321 = vmatprep.subr.bf16.mxu0 0
      %4322 = vmatpush1.bf16.msra.mxu0 0
      %4323 = vmatprep.subr.bf16.mxu0 0
      %4324 = vmatpush1.bf16.msra.mxu0 0
      %4325 = vmatprep.subr.bf16.mxu0 0
      %4326 = vmatpush1.bf16.msra.mxu0 0
      %4327 = vmatprep.subr.bf16.mxu0 0
      %4328 = vmatpush1.bf16.msra.mxu0 0
      %4329 = vmatprep.subr.bf16.mxu0 0
      %4330 = vmatpush1.bf16.msra.mxu0 0
      %4331 = vmatprep.subr.bf16.mxu0 0
      %4332 = vmatpush1.bf16.msra.mxu0 0
      %4333 = vmatprep.subr.bf16.mxu0 0
      %4334 = vmatpush1.bf16.msra.mxu0 0
      %4335 = vmatprep.mubr.bf16.mxu0 0
      %4336 = vmatmul.mubr.bf16.gmra.mrb[0].mxu0 %v2946
      %v4337 = vpop.f32.mrb[0].mxu0
      %v4338 = vadd.f32 %v657, %v4337
      %v4339 = vpop.f32.mrb[0].mxu0
      %v4340 = vadd.f32 %v657, %v4339
      %v4341 = vpop.f32.mrb[0].mxu0
      %v4342 = vpop.f32.mrb[0].mxu0
      %4343 = vdwg.mxu0
      %4344 = vmatprep.subr.bf16.mxu0 %v2144
      %4345 = vmatpush1.bf16.msra.mxu0 %v2143
      %4346 = vmatprep.subr.bf16.mxu0 %v2239
      %4347 = vmatpush1.bf16.msra.mxu0 %v2238
      %4348 = vmatprep.subr.bf16.mxu0 %v2334
      %4349 = vmatpush1.bf16.msra.mxu0 %v2333
      %4350 = vmatprep.subr.bf16.mxu0 %v2429
      %4351 = vmatpush1.bf16.msra.mxu0 %v2428
      %4352 = vmatprep.subr.bf16.mxu0 %v3118
      %4353 = vmatpush1.bf16.msra.mxu0 %v3115
      %4354 = vmatprep.subr.bf16.mxu0 0
      %4355 = vmatpush1.bf16.msra.mxu0 0
      %4356 = vmatprep.subr.bf16.mxu0 0
      %4357 = vmatpush1.bf16.msra.mxu0 0
      %4358 = vmatprep.subr.bf16.mxu0 0
      %4359 = vmatpush1.bf16.msra.mxu0 0
      %4360 = vmatprep.subr.bf16.mxu0 0
      %4361 = vmatpush1.bf16.msra.mxu0 0
      %4362 = vmatprep.subr.bf16.mxu0 0
      %4363 = vmatpush1.bf16.msra.mxu0 0
      %4364 = vmatprep.subr.bf16.mxu0 0
      %4365 = vmatpush1.bf16.msra.mxu0 0
      %4366 = vmatprep.subr.bf16.mxu0 0
      %4367 = vmatpush1.bf16.msra.mxu0 0
      %4368 = vmatprep.subr.bf16.mxu0 0
      %4369 = vmatpush1.bf16.msra.mxu0 0
      %4370 = vmatprep.subr.bf16.mxu0 0
      %4371 = vmatpush1.bf16.msra.mxu0 0
      %4372 = vmatprep.subr.bf16.mxu0 0
      %4373 = vmatpush1.bf16.msra.mxu0 0
      %4374 = vmatprep.subr.bf16.mxu0 0
      %4375 = vmatpush1.bf16.msra.mxu0 0
      %4376 = vmatprep.mubr.bf16.mxu0 0
      %4377 = vmatmul.mubr.bf16.gmra.mrb[0].mxu0 %v2946
      %v4378 = vpop.f32.mrb[0].mxu0
      %v4379 = vadd.f32 %v657, %v4378
      %v4380 = vpop.f32.mrb[0].mxu0
      %v4381 = vadd.f32 %v657, %v4380
      %v4382 = vpop.f32.mrb[0].mxu0
      %v4383 = vpop.f32.mrb[0].mxu0
      %4384 = vdwg.mxu0
      %4385 = vmatprep.subr.bf16.mxu0 %v2146
      %4386 = vmatpush1.bf16.msra.mxu0 %v2145
      %4387 = vmatprep.subr.bf16.mxu0 %v2241
      %4388 = vmatpush1.bf16.msra.mxu0 %v2240
      %4389 = vmatprep.subr.bf16.mxu0 %v2336
      %4390 = vmatpush1.bf16.msra.mxu0 %v2335
      %4391 = vmatprep.subr.bf16.mxu0 %v2431
      %4392 = vmatpush1.bf16.msra.mxu0 %v2430
      %4393 = vmatprep.subr.bf16.mxu0 %v3124
      %4394 = vmatpush1.bf16.msra.mxu0 %v3121
      %4395 = vmatprep.subr.bf16.mxu0 0
      %4396 = vmatpush1.bf16.msra.mxu0 0
      %4397 = vmatprep.subr.bf16.mxu0 0
      %4398 = vmatpush1.bf16.msra.mxu0 0
      %4399 = vmatprep.subr.bf16.mxu0 0
      %4400 = vmatpush1.bf16.msra.mxu0 0
      %4401 = vmatprep.subr.bf16.mxu0 0
      %4402 = vmatpush1.bf16.msra.mxu0 0
      %4403 = vmatprep.subr.bf16.mxu0 0
      %4404 = vmatpush1.bf16.msra.mxu0 0
      %4405 = vmatprep.subr.bf16.mxu0 0
      %4406 = vmatpush1.bf16.msra.mxu0 0
      %4407 = vmatprep.subr.bf16.mxu0 0
      %4408 = vmatpush1.bf16.msra.mxu0 0
      %4409 = vmatprep.subr.bf16.mxu0 0
      %4410 = vmatpush1.bf16.msra.mxu0 0
      %4411 = vmatprep.subr.bf16.mxu0 0
      %4412 = vmatpush1.bf16.msra.mxu0 0
      %4413 = vmatprep.subr.bf16.mxu0 0
      %4414 = vmatpush1.bf16.msra.mxu0 0
      %4415 = vmatprep.subr.bf16.mxu0 0
      %4416 = vmatpush1.bf16.msra.mxu0 0
      %4417 = vmatprep.mubr.bf16.mxu0 0
      %4418 = vmatmul.mubr.bf16.gmra.mrb[0].mxu0 %v2946
      %v4419 = vpop.f32.mrb[0].mxu0
      %v4420 = vadd.f32 %v657, %v4419
      %v4421 = vpop.f32.mrb[0].mxu0
      %v4422 = vadd.f32 %v657, %v4421
      %v4423 = vpop.f32.mrb[0].mxu0
      %v4424 = vpop.f32.mrb[0].mxu0
      %4425 = vdwg.mxu0
      %4426 = vmatprep.subr.bf16.mxu0 %v2148
      %4427 = vmatpush1.bf16.msra.mxu0 %v2147
      %4428 = vmatprep.subr.bf16.mxu0 %v2243
      %4429 = vmatpush1.bf16.msra.mxu0 %v2242
      %4430 = vmatprep.subr.bf16.mxu0 %v2338
      %4431 = vmatpush1.bf16.msra.mxu0 %v2337
      %4432 = vmatprep.subr.bf16.mxu0 %v2433
      %4433 = vmatpush1.bf16.msra.mxu0 %v2432
      %4434 = vmatprep.subr.bf16.mxu0 %v3130
      %4435 = vmatpush1.bf16.msra.mxu0 %v3127
      %4436 = vmatprep.subr.bf16.mxu0 0
      %4437 = vmatpush1.bf16.msra.mxu0 0
      %4438 = vmatprep.subr.bf16.mxu0 0
      %4439 = vmatpush1.bf16.msra.mxu0 0
      %4440 = vmatprep.subr.bf16.mxu0 0
      %4441 = vmatpush1.bf16.msra.mxu0 0
      %4442 = vmatprep.subr.bf16.mxu0 0
      %4443 = vmatpush1.bf16.msra.mxu0 0
      %4444 = vmatprep.subr.bf16.mxu0 0
      %4445 = vmatpush1.bf16.msra.mxu0 0
      %4446 = vmatprep.subr.bf16.mxu0 0
      %4447 = vmatpush1.bf16.msra.mxu0 0
      %4448 = vmatprep.subr.bf16.mxu0 0
      %4449 = vmatpush1.bf16.msra.mxu0 0
      %4450 = vmatprep.subr.bf16.mxu0 0
      %4451 = vmatpush1.bf16.msra.mxu0 0
      %4452 = vmatprep.subr.bf16.mxu0 0
      %4453 = vmatpush1.bf16.msra.mxu0 0
      %4454 = vmatprep.subr.bf16.mxu0 0
      %4455 = vmatpush1.bf16.msra.mxu0 0
      %4456 = vmatprep.subr.bf16.mxu0 0
      %4457 = vmatpush1.bf16.msra.mxu0 0
      %4458 = vmatprep.mubr.bf16.mxu0 0
      %4459 = vmatmul.mubr.bf16.gmra.mrb[0].mxu0 %v2946
      %v4460 = vpop.f32.mrb[0].mxu0
      %v4461 = vadd.f32 %v657, %v4460
      %v4462 = vpop.f32.mrb[0].mxu0
      %v4463 = vadd.f32 %v657, %v4462
      %v4464 = vpop.f32.mrb[0].mxu0
      %v4465 = vpop.f32.mrb[0].mxu0
      %4466 = vdwg.mxu0
      %4467 = vmatprep.subr.bf16.mxu0 %v2150
      %4468 = vmatpush1.bf16.msra.mxu0 %v2149
      %4469 = vmatprep.subr.bf16.mxu0 %v2245
      %4470 = vmatpush1.bf16.msra.mxu0 %v2244
      %4471 = vmatprep.subr.bf16.mxu0 %v2340
      %4472 = vmatpush1.bf16.msra.mxu0 %v2339
      %4473 = vmatprep.subr.bf16.mxu0 %v2435
      %4474 = vmatpush1.bf16.msra.mxu0 %v2434
      %4475 = vmatprep.subr.bf16.mxu0 %v3136
      %4476 = vmatpush1.bf16.msra.mxu0 %v3133
      %4477 = vmatprep.subr.bf16.mxu0 0
      %4478 = vmatpush1.bf16.msra.mxu0 0
      %4479 = vmatprep.subr.bf16.mxu0 0
      %4480 = vmatpush1.bf16.msra.mxu0 0
      %4481 = vmatprep.subr.bf16.mxu0 0
      %4482 = vmatpush1.bf16.msra.mxu0 0
      %4483 = vmatprep.subr.bf16.mxu0 0
      %4484 = vmatpush1.bf16.msra.mxu0 0
      %4485 = vmatprep.subr.bf16.mxu0 0
      %4486 = vmatpush1.bf16.msra.mxu0 0
      %4487 = vmatprep.subr.bf16.mxu0 0
      %4488 = vmatpush1.bf16.msra.mxu0 0
      %4489 = vmatprep.subr.bf16.mxu0 0
      %4490 = vmatpush1.bf16.msra.mxu0 0
      %4491 = vmatprep.subr.bf16.mxu0 0
      %4492 = vmatpush1.bf16.msra.mxu0 0
      %4493 = vmatprep.subr.bf16.mxu0 0
      %4494 = vmatpush1.bf16.msra.mxu0 0
      %4495 = vmatprep.subr.bf16.mxu0 0
      %4496 = vmatpush1.bf16.msra.mxu0 0
      %4497 = vmatprep.subr.bf16.mxu0 0
      %4498 = vmatpush1.bf16.msra.mxu0 0
      %4499 = vmatprep.mubr.bf16.mxu0 0
      %4500 = vmatmul.mubr.bf16.gmra.mrb[0].mxu0 %v2946
      %v4501 = vpop.f32.mrb[0].mxu0
      %v4502 = vadd.f32 %v657, %v4501
      %v4503 = vpop.f32.mrb[0].mxu0
      %v4504 = vadd.f32 %v657, %v4503
      %v4505 = vpop.f32.mrb[0].mxu0
      %v4506 = vpop.f32.mrb[0].mxu0
      %4507 = vdwg.mxu0
      %4508 = vmatprep.subr.bf16.mxu0 %v2152
      %4509 = vmatpush1.bf16.msra.mxu0 %v2151
      %4510 = vmatprep.subr.bf16.mxu0 %v2247
      %4511 = vmatpush1.bf16.msra.mxu0 %v2246
      %4512 = vmatprep.subr.bf16.mxu0 %v2342
      %4513 = vmatpush1.bf16.msra.mxu0 %v2341
      %4514 = vmatprep.subr.bf16.mxu0 %v2437
      %4515 = vmatpush1.bf16.msra.mxu0 %v2436
      %4516 = vmatprep.subr.bf16.mxu0 %v3142
      %4517 = vmatpush1.bf16.msra.mxu0 %v3139
      %4518 = vmatprep.subr.bf16.mxu0 0
      %4519 = vmatpush1.bf16.msra.mxu0 0
      %4520 = vmatprep.subr.bf16.mxu0 0
      %4521 = vmatpush1.bf16.msra.mxu0 0
      %4522 = vmatprep.subr.bf16.mxu0 0
      %4523 = vmatpush1.bf16.msra.mxu0 0
      %4524 = vmatprep.subr.bf16.mxu0 0
      %4525 = vmatpush1.bf16.msra.mxu0 0
      %4526 = vmatprep.subr.bf16.mxu0 0
      %4527 = vmatpush1.bf16.msra.mxu0 0
      %4528 = vmatprep.subr.bf16.mxu0 0
      %4529 = vmatpush1.bf16.msra.mxu0 0
      %4530 = vmatprep.subr.bf16.mxu0 0
      %4531 = vmatpush1.bf16.msra.mxu0 0
      %4532 = vmatprep.subr.bf16.mxu0 0
      %4533 = vmatpush1.bf16.msra.mxu0 0
      %4534 = vmatprep.subr.bf16.mxu0 0
      %4535 = vmatpush1.bf16.msra.mxu0 0
      %4536 = vmatprep.subr.bf16.mxu0 0
      %4537 = vmatpush1.bf16.msra.mxu0 0
      %4538 = vmatprep.subr.bf16.mxu0 0
      %4539 = vmatpush1.bf16.msra.mxu0 0
      %4540 = vmatprep.mubr.bf16.mxu0 0
      %4541 = vmatmul.mubr.bf16.gmra.mrb[0].mxu0 %v2946
      %v4542 = vpop.f32.mrb[0].mxu0
      %v4543 = vadd.f32 %v657, %v4542
      %v4544 = vpop.f32.mrb[0].mxu0
      %v4545 = vadd.f32 %v657, %v4544
      %v4546 = vpop.f32.mrb[0].mxu0
      %v4547 = vpop.f32.mrb[0].mxu0
      %4548 = vdwg.mxu0
      %4549 = vmatprep.subr.bf16.mxu0 %v2154
      %4550 = vmatpush1.bf16.msra.mxu0 %v2153
      %4551 = vmatprep.subr.bf16.mxu0 %v2249
      %4552 = vmatpush1.bf16.msra.mxu0 %v2248
      %4553 = vmatprep.subr.bf16.mxu0 %v2344
      %4554 = vmatpush1.bf16.msra.mxu0 %v2343
      %4555 = vmatprep.subr.bf16.mxu0 %v2439
      %4556 = vmatpush1.bf16.msra.mxu0 %v2438
      %4557 = vmatprep.subr.bf16.mxu0 %v3148
      %4558 = vmatpush1.bf16.msra.mxu0 %v3145
      %4559 = vmatprep.subr.bf16.mxu0 0
      %4560 = vmatpush1.bf16.msra.mxu0 0
      %4561 = vmatprep.subr.bf16.mxu0 0
      %4562 = vmatpush1.bf16.msra.mxu0 0
      %4563 = vmatprep.subr.bf16.mxu0 0
      %4564 = vmatpush1.bf16.msra.mxu0 0
      %4565 = vmatprep.subr.bf16.mxu0 0
      %4566 = vmatpush1.bf16.msra.mxu0 0
      %4567 = vmatprep.subr.bf16.mxu0 0
      %4568 = vmatpush1.bf16.msra.mxu0 0
      %4569 = vmatprep.subr.bf16.mxu0 0
      %4570 = vmatpush1.bf16.msra.mxu0 0
      %4571 = vmatprep.subr.bf16.mxu0 0
      %4572 = vmatpush1.bf16.msra.mxu0 0
      %4573 = vmatprep.subr.bf16.mxu0 0
      %4574 = vmatpush1.bf16.msra.mxu0 0
      %4575 = vmatprep.subr.bf16.mxu0 0
      %4576 = vmatpush1.bf16.msra.mxu0 0
      %4577 = vmatprep.subr.bf16.mxu0 0
      %4578 = vmatpush1.bf16.msra.mxu0 0
      %4579 = vmatprep.subr.bf16.mxu0 0
      %4580 = vmatpush1.bf16.msra.mxu0 0
      %4581 = vmatprep.mubr.bf16.mxu0 0
      %4582 = vmatmul.mubr.bf16.gmra.mrb[0].mxu0 %v2946
      %v4583 = vpop.f32.mrb[0].mxu0
      %v4584 = vadd.f32 %v657, %v4583
      %v4585 = vpop.f32.mrb[0].mxu0
      %v4586 = vadd.f32 %v657, %v4585
      %v4587 = vpop.f32.mrb[0].mxu0
      %v4588 = vpop.f32.mrb[0].mxu0
      %4589 = vdwg.mxu0
      %4590 = vmatprep.subr.bf16.mxu0 %v2156
      %4591 = vmatpush1.bf16.msra.mxu0 %v2155
      %4592 = vmatprep.subr.bf16.mxu0 %v2251
      %4593 = vmatpush1.bf16.msra.mxu0 %v2250
      %4594 = vmatprep.subr.bf16.mxu0 %v2346
      %4595 = vmatpush1.bf16.msra.mxu0 %v2345
      %4596 = vmatprep.subr.bf16.mxu0 %v2441
      %4597 = vmatpush1.bf16.msra.mxu0 %v2440
      %4598 = vmatprep.subr.bf16.mxu0 %v3154
      %4599 = vmatpush1.bf16.msra.mxu0 %v3151
      %4600 = vmatprep.subr.bf16.mxu0 0
      %4601 = vmatpush1.bf16.msra.mxu0 0
      %4602 = vmatprep.subr.bf16.mxu0 0
      %4603 = vmatpush1.bf16.msra.mxu0 0
      %4604 = vmatprep.subr.bf16.mxu0 0
      %4605 = vmatpush1.bf16.msra.mxu0 0
      %4606 = vmatprep.subr.bf16.mxu0 0
      %4607 = vmatpush1.bf16.msra.mxu0 0
      %4608 = vmatprep.subr.bf16.mxu0 0
      %4609 = vmatpush1.bf16.msra.mxu0 0
      %4610 = vmatprep.subr.bf16.mxu0 0
      %4611 = vmatpush1.bf16.msra.mxu0 0
      %4612 = vmatprep.subr.bf16.mxu0 0
      %4613 = vmatpush1.bf16.msra.mxu0 0
      %4614 = vmatprep.subr.bf16.mxu0 0
      %4615 = vmatpush1.bf16.msra.mxu0 0
      %4616 = vmatprep.subr.bf16.mxu0 0
      %4617 = vmatpush1.bf16.msra.mxu0 0
      %4618 = vmatprep.subr.bf16.mxu0 0
      %4619 = vmatpush1.bf16.msra.mxu0 0
      %4620 = vmatprep.subr.bf16.mxu0 0
      %4621 = vmatpush1.bf16.msra.mxu0 0
      %4622 = vmatprep.mubr.bf16.mxu0 0
      %4623 = vmatmul.mubr.bf16.gmra.mrb[0].mxu0 %v2946
      %v4624 = vpop.f32.mrb[0].mxu0
      %v4625 = vadd.f32 %v657, %v4624
      %v4626 = vpop.f32.mrb[0].mxu0
      %v4627 = vadd.f32 %v657, %v4626
      %v4628 = vpop.f32.mrb[0].mxu0
      %v4629 = vpop.f32.mrb[0].mxu0
      %4630 = vdwg.mxu0
      %4631 = vmatprep.subr.bf16.mxu0 %v2158
      %4632 = vmatpush1.bf16.msra.mxu0 %v2157
      %4633 = vmatprep.subr.bf16.mxu0 %v2253
      %4634 = vmatpush1.bf16.msra.mxu0 %v2252
      %4635 = vmatprep.subr.bf16.mxu0 %v2348
      %4636 = vmatpush1.bf16.msra.mxu0 %v2347
      %4637 = vmatprep.subr.bf16.mxu0 %v2443
      %4638 = vmatpush1.bf16.msra.mxu0 %v2442
      %4639 = vmatprep.subr.bf16.mxu0 %v3160
      %4640 = vmatpush1.bf16.msra.mxu0 %v3157
      %4641 = vmatprep.subr.bf16.mxu0 0
      %4642 = vmatpush1.bf16.msra.mxu0 0
      %4643 = vmatprep.subr.bf16.mxu0 0
      %4644 = vmatpush1.bf16.msra.mxu0 0
      %4645 = vmatprep.subr.bf16.mxu0 0
      %4646 = vmatpush1.bf16.msra.mxu0 0
      %4647 = vmatprep.subr.bf16.mxu0 0
      %4648 = vmatpush1.bf16.msra.mxu0 0
      %4649 = vmatprep.subr.bf16.mxu0 0
      %4650 = vmatpush1.bf16.msra.mxu0 0
      %4651 = vmatprep.subr.bf16.mxu0 0
      %4652 = vmatpush1.bf16.msra.mxu0 0
      %4653 = vmatprep.subr.bf16.mxu0 0
      %4654 = vmatpush1.bf16.msra.mxu0 0
      %4655 = vmatprep.subr.bf16.mxu0 0
      %4656 = vmatpush1.bf16.msra.mxu0 0
      %4657 = vmatprep.subr.bf16.mxu0 0
      %4658 = vmatpush1.bf16.msra.mxu0 0
      %4659 = vmatprep.subr.bf16.mxu0 0
      %4660 = vmatpush1.bf16.msra.mxu0 0
      %4661 = vmatprep.subr.bf16.mxu0 0
      %4662 = vmatpush1.bf16.msra.mxu0 0
      %4663 = vmatprep.mubr.bf16.mxu0 0
      %4664 = vmatmul.mubr.bf16.gmra.mrb[0].mxu0 %v2946
      %v4665 = vpop.f32.mrb[0].mxu0
      %v4666 = vadd.f32 %v657, %v4665
      %v4667 = vpop.f32.mrb[0].mxu0
      %v4668 = vadd.f32 %v657, %v4667
      %v4669 = vpop.f32.mrb[0].mxu0
      %v4670 = vpop.f32.mrb[0].mxu0
      %4671 = vdwg.mxu0
      %4672 = vmatprep.subr.bf16.mxu0 %v2160
      %4673 = vmatpush1.bf16.msra.mxu0 %v2159
      %4674 = vmatprep.subr.bf16.mxu0 %v2255
      %4675 = vmatpush1.bf16.msra.mxu0 %v2254
      %4676 = vmatprep.subr.bf16.mxu0 %v2350
      %4677 = vmatpush1.bf16.msra.mxu0 %v2349
      %4678 = vmatprep.subr.bf16.mxu0 %v2445
      %4679 = vmatpush1.bf16.msra.mxu0 %v2444
      %4680 = vmatprep.subr.bf16.mxu0 %v3166
      %4681 = vmatpush1.bf16.msra.mxu0 %v3163
      %4682 = vmatprep.subr.bf16.mxu0 0
      %4683 = vmatpush1.bf16.msra.mxu0 0
      %4684 = vmatprep.subr.bf16.mxu0 0
      %4685 = vmatpush1.bf16.msra.mxu0 0
      %4686 = vmatprep.subr.bf16.mxu0 0
      %4687 = vmatpush1.bf16.msra.mxu0 0
      %4688 = vmatprep.subr.bf16.mxu0 0
      %4689 = vmatpush1.bf16.msra.mxu0 0
      %4690 = vmatprep.subr.bf16.mxu0 0
      %4691 = vmatpush1.bf16.msra.mxu0 0
      %4692 = vmatprep.subr.bf16.mxu0 0
      %4693 = vmatpush1.bf16.msra.mxu0 0
      %4694 = vmatprep.subr.bf16.mxu0 0
      %4695 = vmatpush1.bf16.msra.mxu0 0
      %4696 = vmatprep.subr.bf16.mxu0 0
      %4697 = vmatpush1.bf16.msra.mxu0 0
      %4698 = vmatprep.subr.bf16.mxu0 0
      %4699 = vmatpush1.bf16.msra.mxu0 0
      %4700 = vmatprep.subr.bf16.mxu0 0
      %4701 = vmatpush1.bf16.msra.mxu0 0
      %4702 = vmatprep.subr.bf16.mxu0 0
      %4703 = vmatpush1.bf16.msra.mxu0 0
      %4704 = vmatprep.mubr.bf16.mxu0 0
      %4705 = vmatmul.mubr.bf16.gmra.mrb[0].mxu0 %v2946
      %v4706 = vpop.f32.mrb[0].mxu0
      %v4707 = vadd.f32 %v657, %v4706
      %v4708 = vpop.f32.mrb[0].mxu0
      %v4709 = vadd.f32 %v657, %v4708
      %v4710 = vpop.f32.mrb[0].mxu0
      %v4711 = vpop.f32.mrb[0].mxu0
      %4712 = vdwg.mxu0
      %4713 = vmatprep.subr.bf16.mxu0 %v2162
      %4714 = vmatpush1.bf16.msra.mxu0 %v2161
      %4715 = vmatprep.subr.bf16.mxu0 %v2257
      %4716 = vmatpush1.bf16.msra.mxu0 %v2256
      %4717 = vmatprep.subr.bf16.mxu0 %v2352
      %4718 = vmatpush1.bf16.msra.mxu0 %v2351
      %4719 = vmatprep.subr.bf16.mxu0 %v2447
      %4720 = vmatpush1.bf16.msra.mxu0 %v2446
      %4721 = vmatprep.subr.bf16.mxu0 %v3172
      %4722 = vmatpush1.bf16.msra.mxu0 %v3169
      %4723 = vmatprep.subr.bf16.mxu0 0
      %4724 = vmatpush1.bf16.msra.mxu0 0
      %4725 = vmatprep.subr.bf16.mxu0 0
      %4726 = vmatpush1.bf16.msra.mxu0 0
      %4727 = vmatprep.subr.bf16.mxu0 0
      %4728 = vmatpush1.bf16.msra.mxu0 0
      %4729 = vmatprep.subr.bf16.mxu0 0
      %4730 = vmatpush1.bf16.msra.mxu0 0
      %4731 = vmatprep.subr.bf16.mxu0 0
      %4732 = vmatpush1.bf16.msra.mxu0 0
      %4733 = vmatprep.subr.bf16.mxu0 0
      %4734 = vmatpush1.bf16.msra.mxu0 0
      %4735 = vmatprep.subr.bf16.mxu0 0
      %4736 = vmatpush1.bf16.msra.mxu0 0
      %4737 = vmatprep.subr.bf16.mxu0 0
      %4738 = vmatpush1.bf16.msra.mxu0 0
      %4739 = vmatprep.subr.bf16.mxu0 0
      %4740 = vmatpush1.bf16.msra.mxu0 0
      %4741 = vmatprep.subr.bf16.mxu0 0
      %4742 = vmatpush1.bf16.msra.mxu0 0
      %4743 = vmatprep.subr.bf16.mxu0 0
      %4744 = vmatpush1.bf16.msra.mxu0 0
      %4745 = vmatprep.mubr.bf16.mxu0 0
      %4746 = vmatmul.mubr.bf16.gmra.mrb[0].mxu0 %v2946
      %v4747 = vpop.f32.mrb[0].mxu0
      %v4748 = vadd.f32 %v657, %v4747
      %v4749 = vpop.f32.mrb[0].mxu0
      %v4750 = vadd.f32 %v657, %v4749
      %v4751 = vpop.f32.mrb[0].mxu0
      %v4752 = vpop.f32.mrb[0].mxu0
      %4753 = vdwg.mxu0
      %4754 = vmatprep.subr.bf16.mxu0 %v2164
      %4755 = vmatpush1.bf16.msra.mxu0 %v2163
      %4756 = vmatprep.subr.bf16.mxu0 %v2259
      %4757 = vmatpush1.bf16.msra.mxu0 %v2258
      %4758 = vmatprep.subr.bf16.mxu0 %v2354
      %4759 = vmatpush1.bf16.msra.mxu0 %v2353
      %4760 = vmatprep.subr.bf16.mxu0 %v2449
      %4761 = vmatpush1.bf16.msra.mxu0 %v2448
      %4762 = vmatprep.subr.bf16.mxu0 %v3178
      %4763 = vmatpush1.bf16.msra.mxu0 %v3175
      %4764 = vmatprep.subr.bf16.mxu0 0
      %4765 = vmatpush1.bf16.msra.mxu0 0
      %4766 = vmatprep.subr.bf16.mxu0 0
      %4767 = vmatpush1.bf16.msra.mxu0 0
      %4768 = vmatprep.subr.bf16.mxu0 0
      %4769 = vmatpush1.bf16.msra.mxu0 0
      %4770 = vmatprep.subr.bf16.mxu0 0
      %4771 = vmatpush1.bf16.msra.mxu0 0
      %4772 = vmatprep.subr.bf16.mxu0 0
      %4773 = vmatpush1.bf16.msra.mxu0 0
      %4774 = vmatprep.subr.bf16.mxu0 0
      %4775 = vmatpush1.bf16.msra.mxu0 0
      %4776 = vmatprep.subr.bf16.mxu0 0
      %4777 = vmatpush1.bf16.msra.mxu0 0
      %4778 = vmatprep.subr.bf16.mxu0 0
      %4779 = vmatpush1.bf16.msra.mxu0 0
      %4780 = vmatprep.subr.bf16.mxu0 0
      %4781 = vmatpush1.bf16.msra.mxu0 0
      %4782 = vmatprep.subr.bf16.mxu0 0
      %4783 = vmatpush1.bf16.msra.mxu0 0
      %4784 = vmatprep.subr.bf16.mxu0 0
      %4785 = vmatpush1.bf16.msra.mxu0 0
      %4786 = vmatprep.mubr.bf16.mxu0 0
      %4787 = vmatmul.mubr.bf16.gmra.mrb[0].mxu0 %v2946
      %v4788 = vpop.f32.mrb[0].mxu0
      %v4789 = vadd.f32 %v657, %v4788
      %v4790 = vpop.f32.mrb[0].mxu0
      %v4791 = vadd.f32 %v657, %v4790
      %v4792 = vpop.f32.mrb[0].mxu0
      %v4793 = vpop.f32.mrb[0].mxu0
      %4794 = vdwg.mxu0
      %4795 = vmatprep.subr.bf16.mxu0 %v2166
      %4796 = vmatpush1.bf16.msra.mxu0 %v2165
      %4797 = vmatprep.subr.bf16.mxu0 %v2261
      %4798 = vmatpush1.bf16.msra.mxu0 %v2260
      %4799 = vmatprep.subr.bf16.mxu0 %v2356
      %4800 = vmatpush1.bf16.msra.mxu0 %v2355
      %4801 = vmatprep.subr.bf16.mxu0 %v2451
      %4802 = vmatpush1.bf16.msra.mxu0 %v2450
      %4803 = vmatprep.subr.bf16.mxu0 %v3184
      %4804 = vmatpush1.bf16.msra.mxu0 %v3181
      %4805 = vmatprep.subr.bf16.mxu0 0
      %4806 = vmatpush1.bf16.msra.mxu0 0
      %4807 = vmatprep.subr.bf16.mxu0 0
      %4808 = vmatpush1.bf16.msra.mxu0 0
      %4809 = vmatprep.subr.bf16.mxu0 0
      %4810 = vmatpush1.bf16.msra.mxu0 0
      %4811 = vmatprep.subr.bf16.mxu0 0
      %4812 = vmatpush1.bf16.msra.mxu0 0
      %4813 = vmatprep.subr.bf16.mxu0 0
      %4814 = vmatpush1.bf16.msra.mxu0 0
      %4815 = vmatprep.subr.bf16.mxu0 0
      %4816 = vmatpush1.bf16.msra.mxu0 0
      %4817 = vmatprep.subr.bf16.mxu0 0
      %4818 = vmatpush1.bf16.msra.mxu0 0
      %4819 = vmatprep.subr.bf16.mxu0 0
      %4820 = vmatpush1.bf16.msra.mxu0 0
      %4821 = vmatprep.subr.bf16.mxu0 0
      %4822 = vmatpush1.bf16.msra.mxu0 0
      %4823 = vmatprep.subr.bf16.mxu0 0
      %4824 = vmatpush1.bf16.msra.mxu0 0
      %4825 = vmatprep.subr.bf16.mxu0 0
      %4826 = vmatpush1.bf16.msra.mxu0 0
      %4827 = vmatprep.mubr.bf16.mxu0 0
      %4828 = vmatmul.mubr.bf16.gmra.mrb[0].mxu0 %v2946
      %v4829 = vpop.f32.mrb[0].mxu0
      %v4830 = vadd.f32 %v657, %v4829
      %v4831 = vpop.f32.mrb[0].mxu0
      %v4832 = vadd.f32 %v657, %v4831
      %v4833 = vpop.f32.mrb[0].mxu0
      %v4834 = vpop.f32.mrb[0].mxu0
      %4835 = vdwg.mxu0
      %4836 = vmatprep.subr.bf16.mxu0 %v2168
      %4837 = vmatpush1.bf16.msra.mxu0 %v2167
      %4838 = vmatprep.subr.bf16.mxu0 %v2263
      %4839 = vmatpush1.bf16.msra.mxu0 %v2262
      %4840 = vmatprep.subr.bf16.mxu0 %v2358
      %4841 = vmatpush1.bf16.msra.mxu0 %v2357
      %4842 = vmatprep.subr.bf16.mxu0 %v2453
      %4843 = vmatpush1.bf16.msra.mxu0 %v2452
      %4844 = vmatprep.subr.bf16.mxu0 %v3190
      %4845 = vmatpush1.bf16.msra.mxu0 %v3187
      %4846 = vmatprep.subr.bf16.mxu0 0
      %4847 = vmatpush1.bf16.msra.mxu0 0
      %4848 = vmatprep.subr.bf16.mxu0 0
      %4849 = vmatpush1.bf16.msra.mxu0 0
      %4850 = vmatprep.subr.bf16.mxu0 0
      %4851 = vmatpush1.bf16.msra.mxu0 0
      %4852 = vmatprep.subr.bf16.mxu0 0
      %4853 = vmatpush1.bf16.msra.mxu0 0
      %4854 = vmatprep.subr.bf16.mxu0 0
      %4855 = vmatpush1.bf16.msra.mxu0 0
      %4856 = vmatprep.subr.bf16.mxu0 0
      %4857 = vmatpush1.bf16.msra.mxu0 0
      %4858 = vmatprep.subr.bf16.mxu0 0
      %4859 = vmatpush1.bf16.msra.mxu0 0
      %4860 = vmatprep.subr.bf16.mxu0 0
      %4861 = vmatpush1.bf16.msra.mxu0 0
      %4862 = vmatprep.subr.bf16.mxu0 0
      %4863 = vmatpush1.bf16.msra.mxu0 0
      %4864 = vmatprep.subr.bf16.mxu0 0
      %4865 = vmatpush1.bf16.msra.mxu0 0
      %4866 = vmatprep.subr.bf16.mxu0 0
      %4867 = vmatpush1.bf16.msra.mxu0 0
      %4868 = vmatprep.mubr.bf16.mxu0 0
      %4869 = vmatmul.mubr.bf16.gmra.mrb[0].mxu0 %v2946
      %v4870 = vpop.f32.mrb[0].mxu0
      %v4871 = vadd.f32 %v657, %v4870
      %v4872 = vpop.f32.mrb[0].mxu0
      %v4873 = vadd.f32 %v657, %v4872
      %v4874 = vpop.f32.mrb[0].mxu0
      %v4875 = vpop.f32.mrb[0].mxu0
      %4876 = vdwg.mxu0
      %4877 = vmatprep.subr.bf16.mxu0 %v2170
      %4878 = vmatpush1.bf16.msra.mxu0 %v2169
      %4879 = vmatprep.subr.bf16.mxu0 %v2265
      %4880 = vmatpush1.bf16.msra.mxu0 %v2264
      %4881 = vmatprep.subr.bf16.mxu0 %v2360
      %4882 = vmatpush1.bf16.msra.mxu0 %v2359
      %4883 = vmatprep.subr.bf16.mxu0 %v2455
      %4884 = vmatpush1.bf16.msra.mxu0 %v2454
      %4885 = vmatprep.subr.bf16.mxu0 %v3196
      %4886 = vmatpush1.bf16.msra.mxu0 %v3193
      %4887 = vmatprep.subr.bf16.mxu0 0
      %4888 = vmatpush1.bf16.msra.mxu0 0
      %4889 = vmatprep.subr.bf16.mxu0 0
      %4890 = vmatpush1.bf16.msra.mxu0 0
      %4891 = vmatprep.subr.bf16.mxu0 0
      %4892 = vmatpush1.bf16.msra.mxu0 0
      %4893 = vmatprep.subr.bf16.mxu0 0
      %4894 = vmatpush1.bf16.msra.mxu0 0
      %4895 = vmatprep.subr.bf16.mxu0 0
      %4896 = vmatpush1.bf16.msra.mxu0 0
      %4897 = vmatprep.subr.bf16.mxu0 0
      %4898 = vmatpush1.bf16.msra.mxu0 0
      %4899 = vmatprep.subr.bf16.mxu0 0
      %4900 = vmatpush1.bf16.msra.mxu0 0
      %4901 = vmatprep.subr.bf16.mxu0 0
      %4902 = vmatpush1.bf16.msra.mxu0 0
      %4903 = vmatprep.subr.bf16.mxu0 0
      %4904 = vmatpush1.bf16.msra.mxu0 0
      %4905 = vmatprep.subr.bf16.mxu0 0
      %4906 = vmatpush1.bf16.msra.mxu0 0
      %4907 = vmatprep.subr.bf16.mxu0 0
      %4908 = vmatpush1.bf16.msra.mxu0 0
      %4909 = vmatprep.mubr.bf16.mxu0 0
      %4910 = vmatmul.mubr.bf16.gmra.mrb[0].mxu0 %v2946
      %v4911 = vpop.f32.mrb[0].mxu0
      %v4912 = vadd.f32 %v657, %v4911
      %v4913 = vpop.f32.mrb[0].mxu0
      %v4914 = vadd.f32 %v657, %v4913
      %v4915 = vpop.f32.mrb[0].mxu0
      %v4916 = vpop.f32.mrb[0].mxu0
      %4917 = vdwg.mxu0
      %4918 = vmatprep.subr.bf16.mxu0 %v2172
      %4919 = vmatpush1.bf16.msra.mxu0 %v2171
      %4920 = vmatprep.subr.bf16.mxu0 %v2267
      %4921 = vmatpush1.bf16.msra.mxu0 %v2266
      %4922 = vmatprep.subr.bf16.mxu0 %v2362
      %4923 = vmatpush1.bf16.msra.mxu0 %v2361
      %4924 = vmatprep.subr.bf16.mxu0 %v2457
      %4925 = vmatpush1.bf16.msra.mxu0 %v2456
      %4926 = vmatprep.subr.bf16.mxu0 %v3202
      %4927 = vmatpush1.bf16.msra.mxu0 %v3199
      %4928 = vmatprep.subr.bf16.mxu0 0
      %4929 = vmatpush1.bf16.msra.mxu0 0
      %4930 = vmatprep.subr.bf16.mxu0 0
      %4931 = vmatpush1.bf16.msra.mxu0 0
      %4932 = vmatprep.subr.bf16.mxu0 0
      %4933 = vmatpush1.bf16.msra.mxu0 0
      %4934 = vmatprep.subr.bf16.mxu0 0
      %4935 = vmatpush1.bf16.msra.mxu0 0
      %4936 = vmatprep.subr.bf16.mxu0 0
      %4937 = vmatpush1.bf16.msra.mxu0 0
      %4938 = vmatprep.subr.bf16.mxu0 0
      %4939 = vmatpush1.bf16.msra.mxu0 0
      %4940 = vmatprep.subr.bf16.mxu0 0
      %4941 = vmatpush1.bf16.msra.mxu0 0
      %4942 = vmatprep.subr.bf16.mxu0 0
      %4943 = vmatpush1.bf16.msra.mxu0 0
      %4944 = vmatprep.subr.bf16.mxu0 0
      %4945 = vmatpush1.bf16.msra.mxu0 0
      %4946 = vmatprep.subr.bf16.mxu0 0
      %4947 = vmatpush1.bf16.msra.mxu0 0
      %4948 = vmatprep.subr.bf16.mxu0 0
      %4949 = vmatpush1.bf16.msra.mxu0 0
      %4950 = vmatprep.mubr.bf16.mxu0 0
      %4951 = vmatmul.mubr.bf16.gmra.mrb[0].mxu0 %v2946
      %v4952 = vpop.f32.mrb[0].mxu0
      %v4953 = vadd.f32 %v657, %v4952
      %v4954 = vpop.f32.mrb[0].mxu0
      %v4955 = vadd.f32 %v657, %v4954
      %v4956 = vpop.f32.mrb[0].mxu0
      %v4957 = vpop.f32.mrb[0].mxu0
      %4958 = vdwg.mxu0
      %4959 = vmatprep.subr.bf16.mxu0 %v2174
      %4960 = vmatpush1.bf16.msra.mxu0 %v2173
      %4961 = vmatprep.subr.bf16.mxu0 %v2269
      %4962 = vmatpush1.bf16.msra.mxu0 %v2268
      %4963 = vmatprep.subr.bf16.mxu0 %v2364
      %4964 = vmatpush1.bf16.msra.mxu0 %v2363
      %4965 = vmatprep.subr.bf16.mxu0 %v2459
      %4966 = vmatpush1.bf16.msra.mxu0 %v2458
      %4967 = vmatprep.subr.bf16.mxu0 %v3208
      %4968 = vmatpush1.bf16.msra.mxu0 %v3205
      %4969 = vmatprep.subr.bf16.mxu0 0
      %4970 = vmatpush1.bf16.msra.mxu0 0
      %4971 = vmatprep.subr.bf16.mxu0 0
      %4972 = vmatpush1.bf16.msra.mxu0 0
      %4973 = vmatprep.subr.bf16.mxu0 0
      %4974 = vmatpush1.bf16.msra.mxu0 0
      %4975 = vmatprep.subr.bf16.mxu0 0
      %4976 = vmatpush1.bf16.msra.mxu0 0
      %4977 = vmatprep.subr.bf16.mxu0 0
      %4978 = vmatpush1.bf16.msra.mxu0 0
      %4979 = vmatprep.subr.bf16.mxu0 0
      %4980 = vmatpush1.bf16.msra.mxu0 0
      %4981 = vmatprep.subr.bf16.mxu0 0
      %4982 = vmatpush1.bf16.msra.mxu0 0
      %4983 = vmatprep.subr.bf16.mxu0 0
      %4984 = vmatpush1.bf16.msra.mxu0 0
      %4985 = vmatprep.subr.bf16.mxu0 0
      %4986 = vmatpush1.bf16.msra.mxu0 0
      %4987 = vmatprep.subr.bf16.mxu0 0
      %4988 = vmatpush1.bf16.msra.mxu0 0
      %4989 = vmatprep.subr.bf16.mxu0 0
      %4990 = vmatpush1.bf16.msra.mxu0 0
      %4991 = vmatprep.mubr.bf16.mxu0 0
      %4992 = vmatmul.mubr.bf16.gmra.mrb[0].mxu0 %v2946
      %v4993 = vpop.f32.mrb[0].mxu0
      %v4994 = vadd.f32 %v657, %v4993
      %v4995 = vpop.f32.mrb[0].mxu0
      %v4996 = vadd.f32 %v657, %v4995
      %v4997 = vpop.f32.mrb[0].mxu0
      %v4998 = vpop.f32.mrb[0].mxu0
      %4999 = vdwg.mxu0
      %5000 = vmatprep.subr.bf16.mxu0 %v2176
      %5001 = vmatpush1.bf16.msra.mxu0 %v2175
      %5002 = vmatprep.subr.bf16.mxu0 %v2271
      %5003 = vmatpush1.bf16.msra.mxu0 %v2270
      %5004 = vmatprep.subr.bf16.mxu0 %v2366
      %5005 = vmatpush1.bf16.msra.mxu0 %v2365
      %5006 = vmatprep.subr.bf16.mxu0 %v2461
      %5007 = vmatpush1.bf16.msra.mxu0 %v2460
      %5008 = vmatprep.subr.bf16.mxu0 %v3214
      %5009 = vmatpush1.bf16.msra.mxu0 %v3211
      %5010 = vmatprep.subr.bf16.mxu0 0
      %5011 = vmatpush1.bf16.msra.mxu0 0
      %5012 = vmatprep.subr.bf16.mxu0 0
      %5013 = vmatpush1.bf16.msra.mxu0 0
      %5014 = vmatprep.subr.bf16.mxu0 0
      %5015 = vmatpush1.bf16.msra.mxu0 0
      %5016 = vmatprep.subr.bf16.mxu0 0
      %5017 = vmatpush1.bf16.msra.mxu0 0
      %5018 = vmatprep.subr.bf16.mxu0 0
      %5019 = vmatpush1.bf16.msra.mxu0 0
      %5020 = vmatprep.subr.bf16.mxu0 0
      %5021 = vmatpush1.bf16.msra.mxu0 0
      %5022 = vmatprep.subr.bf16.mxu0 0
      %5023 = vmatpush1.bf16.msra.mxu0 0
      %5024 = vmatprep.subr.bf16.mxu0 0
      %5025 = vmatpush1.bf16.msra.mxu0 0
      %5026 = vmatprep.subr.bf16.mxu0 0
      %5027 = vmatpush1.bf16.msra.mxu0 0
      %5028 = vmatprep.subr.bf16.mxu0 0
      %5029 = vmatpush1.bf16.msra.mxu0 0
      %5030 = vmatprep.subr.bf16.mxu0 0
      %5031 = vmatpush1.bf16.msra.mxu0 0
      %5032 = vmatprep.mubr.bf16.mxu0 0
      %5033 = vmatmul.mubr.bf16.gmra.mrb[0].mxu0 %v2946
      %v5034 = vpop.f32.mrb[0].mxu0
      %v5035 = vadd.f32 %v657, %v5034
      %v5036 = vpop.f32.mrb[0].mxu0
      %v5037 = vadd.f32 %v657, %v5036
      %v5038 = vpop.f32.mrb[0].mxu0
      %v5039 = vpop.f32.mrb[0].mxu0
      %5040 = vdwg.mxu0
      %5041 = vmatprep.subr.bf16.mxu0 %v2178
      %5042 = vmatpush1.bf16.msra.mxu0 %v2177
      %5043 = vmatprep.subr.bf16.mxu0 %v2273
      %5044 = vmatpush1.bf16.msra.mxu0 %v2272
      %5045 = vmatprep.subr.bf16.mxu0 %v2368
      %5046 = vmatpush1.bf16.msra.mxu0 %v2367
      %5047 = vmatprep.subr.bf16.mxu0 %v2463
      %5048 = vmatpush1.bf16.msra.mxu0 %v2462
      %5049 = vmatprep.subr.bf16.mxu0 %v3220
      %5050 = vmatpush1.bf16.msra.mxu0 %v3217
      %5051 = vmatprep.subr.bf16.mxu0 0
      %5052 = vmatpush1.bf16.msra.mxu0 0
      %5053 = vmatprep.subr.bf16.mxu0 0
      %5054 = vmatpush1.bf16.msra.mxu0 0
      %5055 = vmatprep.subr.bf16.mxu0 0
      %5056 = vmatpush1.bf16.msra.mxu0 0
      %5057 = vmatprep.subr.bf16.mxu0 0
      %5058 = vmatpush1.bf16.msra.mxu0 0
      %5059 = vmatprep.subr.bf16.mxu0 0
      %5060 = vmatpush1.bf16.msra.mxu0 0
      %5061 = vmatprep.subr.bf16.mxu0 0
      %5062 = vmatpush1.bf16.msra.mxu0 0
      %5063 = vmatprep.subr.bf16.mxu0 0
      %5064 = vmatpush1.bf16.msra.mxu0 0
      %5065 = vmatprep.subr.bf16.mxu0 0
      %5066 = vmatpush1.bf16.msra.mxu0 0
      %5067 = vmatprep.subr.bf16.mxu0 0
      %5068 = vmatpush1.bf16.msra.mxu0 0
      %5069 = vmatprep.subr.bf16.mxu0 0
      %5070 = vmatpush1.bf16.msra.mxu0 0
      %5071 = vmatprep.subr.bf16.mxu0 0
      %5072 = vmatpush1.bf16.msra.mxu0 0
      %5073 = vmatprep.mubr.bf16.mxu0 0
      %5074 = vmatmul.mubr.bf16.gmra.mrb[0].mxu0 %v2946
      %v5075 = vpop.f32.mrb[0].mxu0
      %v5076 = vadd.f32 %v657, %v5075
      %v5077 = vpop.f32.mrb[0].mxu0
      %v5078 = vadd.f32 %v657, %v5077
      %v5079 = vpop.f32.mrb[0].mxu0
      %v5080 = vpop.f32.mrb[0].mxu0
      %5081 = vdwg.mxu0
      %5082 = vmatprep.subr.bf16.mxu0 %v2180
      %5083 = vmatpush1.bf16.msra.mxu0 %v2179
      %5084 = vmatprep.subr.bf16.mxu0 %v2275
      %5085 = vmatpush1.bf16.msra.mxu0 %v2274
      %5086 = vmatprep.subr.bf16.mxu0 %v2370
      %5087 = vmatpush1.bf16.msra.mxu0 %v2369
      %5088 = vmatprep.subr.bf16.mxu0 %v2465
      %5089 = vmatpush1.bf16.msra.mxu0 %v2464
      %5090 = vmatprep.subr.bf16.mxu0 %v3226
      %5091 = vmatpush1.bf16.msra.mxu0 %v3223
      %5092 = vmatprep.subr.bf16.mxu0 0
      %5093 = vmatpush1.bf16.msra.mxu0 0
      %5094 = vmatprep.subr.bf16.mxu0 0
      %5095 = vmatpush1.bf16.msra.mxu0 0
      %5096 = vmatprep.subr.bf16.mxu0 0
      %5097 = vmatpush1.bf16.msra.mxu0 0
      %5098 = vmatprep.subr.bf16.mxu0 0
      %5099 = vmatpush1.bf16.msra.mxu0 0
      %5100 = vmatprep.subr.bf16.mxu0 0
      %5101 = vmatpush1.bf16.msra.mxu0 0
      %5102 = vmatprep.subr.bf16.mxu0 0
      %5103 = vmatpush1.bf16.msra.mxu0 0
      %5104 = vmatprep.subr.bf16.mxu0 0
      %5105 = vmatpush1.bf16.msra.mxu0 0
      %5106 = vmatprep.subr.bf16.mxu0 0
      %5107 = vmatpush1.bf16.msra.mxu0 0
      %5108 = vmatprep.subr.bf16.mxu0 0
      %5109 = vmatpush1.bf16.msra.mxu0 0
      %5110 = vmatprep.subr.bf16.mxu0 0
      %5111 = vmatpush1.bf16.msra.mxu0 0
      %5112 = vmatprep.subr.bf16.mxu0 0
      %5113 = vmatpush1.bf16.msra.mxu0 0
      %5114 = vmatprep.mubr.bf16.mxu0 0
      %5115 = vmatmul.mubr.bf16.gmra.mrb[0].mxu0 %v2946
      %v5116 = vpop.f32.mrb[0].mxu0
      %v5117 = vadd.f32 %v657, %v5116
      %v5118 = vpop.f32.mrb[0].mxu0
      %v5119 = vadd.f32 %v657, %v5118
      %v5120 = vpop.f32.mrb[0].mxu0
      %v5121 = vpop.f32.mrb[0].mxu0
      %5122 = vdwg.mxu0
      %5123 = vmatprep.subr.bf16.mxu0 %v2182
      %5124 = vmatpush1.bf16.msra.mxu0 %v2181
      %5125 = vmatprep.subr.bf16.mxu0 %v2277
      %5126 = vmatpush1.bf16.msra.mxu0 %v2276
      %5127 = vmatprep.subr.bf16.mxu0 %v2372
      %5128 = vmatpush1.bf16.msra.mxu0 %v2371
      %5129 = vmatprep.subr.bf16.mxu0 %v2467
      %5130 = vmatpush1.bf16.msra.mxu0 %v2466
      %5131 = vmatprep.subr.bf16.mxu0 %v3232
      %5132 = vmatpush1.bf16.msra.mxu0 %v3229
      %5133 = vmatprep.subr.bf16.mxu0 0
      %5134 = vmatpush1.bf16.msra.mxu0 0
      %5135 = vmatprep.subr.bf16.mxu0 0
      %5136 = vmatpush1.bf16.msra.mxu0 0
      %5137 = vmatprep.subr.bf16.mxu0 0
      %5138 = vmatpush1.bf16.msra.mxu0 0
      %5139 = vmatprep.subr.bf16.mxu0 0
      %5140 = vmatpush1.bf16.msra.mxu0 0
      %5141 = vmatprep.subr.bf16.mxu0 0
      %5142 = vmatpush1.bf16.msra.mxu0 0
      %5143 = vmatprep.subr.bf16.mxu0 0
      %5144 = vmatpush1.bf16.msra.mxu0 0
      %5145 = vmatprep.subr.bf16.mxu0 0
      %5146 = vmatpush1.bf16.msra.mxu0 0
      %5147 = vmatprep.subr.bf16.mxu0 0
      %5148 = vmatpush1.bf16.msra.mxu0 0
      %5149 = vmatprep.subr.bf16.mxu0 0
      %5150 = vmatpush1.bf16.msra.mxu0 0
      %5151 = vmatprep.subr.bf16.mxu0 0
      %5152 = vmatpush1.bf16.msra.mxu0 0
      %5153 = vmatprep.subr.bf16.mxu0 0
      %5154 = vmatpush1.bf16.msra.mxu0 0
      %5155 = vmatprep.mubr.bf16.mxu0 0
      %5156 = vmatmul.mubr.bf16.gmra.mrb[0].mxu0 %v2946
      %v5157 = vpop.f32.mrb[0].mxu0
      %v5158 = vadd.f32 %v657, %v5157
      %v5159 = vpop.f32.mrb[0].mxu0
      %v5160 = vadd.f32 %v657, %v5159
      %v5161 = vpop.f32.mrb[0].mxu0
      %v5162 = vpop.f32.mrb[0].mxu0
      %5163 = vdwg.mxu0
      %5164 = vmatprep.subr.bf16.mxu0 0
      %5165 = vmatpush1.bf16.msra.mxu0 %v2183
      %5166 = vmatprep.subr.bf16.mxu0 0
      %5167 = vmatpush1.bf16.msra.mxu0 %v2278
      %5168 = vmatprep.subr.bf16.mxu0 0
      %5169 = vmatpush1.bf16.msra.mxu0 %v2373
      %5170 = vmatprep.subr.bf16.mxu0 0
      %5171 = vmatpush1.bf16.msra.mxu0 %v2468
      %5172 = vmatprep.subr.bf16.mxu0 0
      %5173 = vmatpush1.bf16.msra.mxu0 %v3235
      %5174 = vmatprep.subr.bf16.mxu0 0
      %5175 = vmatpush1.bf16.msra.mxu0 0
      %5176 = vmatprep.subr.bf16.mxu0 0
      %5177 = vmatpush1.bf16.msra.mxu0 0
      %5178 = vmatprep.subr.bf16.mxu0 0
      %5179 = vmatpush1.bf16.msra.mxu0 0
      %5180 = vmatprep.subr.bf16.mxu0 0
      %5181 = vmatpush1.bf16.msra.mxu0 0
      %5182 = vmatprep.subr.bf16.mxu0 0
      %5183 = vmatpush1.bf16.msra.mxu0 0
      %5184 = vmatprep.subr.bf16.mxu0 0
      %5185 = vmatpush1.bf16.msra.mxu0 0
      %5186 = vmatprep.subr.bf16.mxu0 0
      %5187 = vmatpush1.bf16.msra.mxu0 0
      %5188 = vmatprep.subr.bf16.mxu0 0
      %5189 = vmatpush1.bf16.msra.mxu0 0
      %5190 = vmatprep.subr.bf16.mxu0 0
      %5191 = vmatpush1.bf16.msra.mxu0 0
      %5192 = vmatprep.subr.bf16.mxu0 0
      %5193 = vmatpush1.bf16.msra.mxu0 0
      %5194 = vmatprep.subr.bf16.mxu0 0
      %5195 = vmatpush1.bf16.msra.mxu0 0
      %5196 = vmatprep.mubr.bf16.mxu0 0
      %5197 = vmatmul.mubr.bf16.gmra.mrb[0].mxu0 %v2946
      %v5198 = vpop.f32.mrb[0].mxu0
      %v5199 = vadd.f32 %v657, %v5198
      %v5200 = vpop.f32.mrb[0].mxu0
      %v5201 = vpop.f32.mrb[0].mxu0
      %v5202 = vpop.f32.mrb[0].mxu0
      %5203 = vdwg.mxu0
      %v5204 = vmax.f32 %v3272, 0.0
      %v5205 = vmax.f32 %v3274, 0.0
      %v5206 = vmax.f32 %v3313, 0.0
      %v5207 = vmax.f32 %v3315, 0.0
      %v5208 = vmax.f32 %v3354, 0.0
      %v5209 = vmax.f32 %v3356, 0.0
      %v5210 = vmax.f32 %v3395, 0.0
      %v5211 = vmax.f32 %v3397, 0.0
      %v5212 = vmax.f32 %v3436, 0.0
      %v5213 = vmax.f32 %v3438, 0.0
      %v5214 = vmax.f32 %v3477, 0.0
      %v5215 = vmax.f32 %v3479, 0.0
      %v5216 = vmax.f32 %v3518, 0.0
      %v5217 = vmax.f32 %v3520, 0.0
      %v5218 = vmax.f32 %v3559, 0.0
      %v5219 = vmax.f32 %v3561, 0.0
      %v5220 = vmax.f32 %v3600, 0.0
      %v5221 = vmax.f32 %v3602, 0.0
      %v5222 = vmax.f32 %v3641, 0.0
      %v5223 = vmax.f32 %v3643, 0.0
      %v5224 = vmax.f32 %v3682, 0.0
      %v5225 = vmax.f32 %v3684, 0.0
      %v5226 = vmax.f32 %v3723, 0.0
      %v5227 = vmax.f32 %v3725, 0.0
      %v5228 = vmax.f32 %v3764, 0.0
      %v5229 = vmax.f32 %v3766, 0.0
      %v5230 = vmax.f32 %v3805, 0.0
      %v5231 = vmax.f32 %v3807, 0.0
      %v5232 = vmax.f32 %v3846, 0.0
      %v5233 = vmax.f32 %v3848, 0.0
      %v5234 = vmax.f32 %v3887, 0.0
      %v5235 = vmax.f32 %v3889, 0.0
      %v5236 = vmax.f32 %v3928, 0.0
      %v5237 = vmax.f32 %v3930, 0.0
      %v5238 = vmax.f32 %v3969, 0.0
      %v5239 = vmax.f32 %v3971, 0.0
      %v5240 = vmax.f32 %v4010, 0.0
      %v5241 = vmax.f32 %v4012, 0.0
      %v5242 = vmax.f32 %v4051, 0.0
      %v5243 = vmax.f32 %v4053, 0.0
      %v5244 = vmax.f32 %v4092, 0.0
      %v5245 = vmax.f32 %v4094, 0.0
      %v5246 = vmax.f32 %v4133, 0.0
      %v5247 = vmax.f32 %v4135, 0.0
      %v5248 = vmax.f32 %v4174, 0.0
      %v5249 = vmax.f32 %v4176, 0.0
      %v5250 = vmax.f32 %v4215, 0.0
      %v5251 = vmax.f32 %v4217, 0.0
      %v5252 = vmax.f32 %v4256, 0.0
      %v5253 = vmax.f32 %v4258, 0.0
      %v5254 = vmax.f32 %v4297, 0.0
      %v5255 = vmax.f32 %v4299, 0.0
      %v5256 = vmax.f32 %v4338, 0.0
      %v5257 = vmax.f32 %v4340, 0.0
      %v5258 = vmax.f32 %v4379, 0.0
      %v5259 = vmax.f32 %v4381, 0.0
      %v5260 = vmax.f32 %v4420, 0.0
      %v5261 = vmax.f32 %v4422, 0.0
      %v5262 = vmax.f32 %v4461, 0.0
      %v5263 = vmax.f32 %v4463, 0.0
      %v5264 = vmax.f32 %v4502, 0.0
      %v5265 = vmax.f32 %v4504, 0.0
      %v5266 = vmax.f32 %v4543, 0.0
      %v5267 = vmax.f32 %v4545, 0.0
      %v5268 = vmax.f32 %v4584, 0.0
      %v5269 = vmax.f32 %v4586, 0.0
      %v5270 = vmax.f32 %v4625, 0.0
      %v5271 = vmax.f32 %v4627, 0.0
      %v5272 = vmax.f32 %v4666, 0.0
      %v5273 = vmax.f32 %v4668, 0.0
      %v5274 = vmax.f32 %v4707, 0.0
      %v5275 = vmax.f32 %v4709, 0.0
      %v5276 = vmax.f32 %v4748, 0.0
      %v5277 = vmax.f32 %v4750, 0.0
      %v5278 = vmax.f32 %v4789, 0.0
      %v5279 = vmax.f32 %v4791, 0.0
      %v5280 = vmax.f32 %v4830, 0.0
      %v5281 = vmax.f32 %v4832, 0.0
      %v5282 = vmax.f32 %v4871, 0.0
      %v5283 = vmax.f32 %v4873, 0.0
      %v5284 = vmax.f32 %v4912, 0.0
      %v5285 = vmax.f32 %v4914, 0.0
      %v5286 = vmax.f32 %v4953, 0.0
      %v5287 = vmax.f32 %v4955, 0.0
      %v5288 = vmax.f32 %v4994, 0.0
      %v5289 = vmax.f32 %v4996, 0.0
      %v5290 = vmax.f32 %v5035, 0.0
      %v5291 = vmax.f32 %v5037, 0.0
      %v5292 = vmax.f32 %v5076, 0.0
      %v5293 = vmax.f32 %v5078, 0.0
      %v5294 = vmax.f32 %v5117, 0.0
      %v5295 = vmax.f32 %v5119, 0.0
      %v5296 = vmax.f32 %v5158, 0.0
      %v5297 = vmax.f32 %v5160, 0.0
      %v5298 = vmax.f32 %v5199, 0.0
      %5299 = vst [vmem:[%s170] sm:$0x1f] %v5204
      %5300 = vst [vmem:[%s170 + $0x8] sm:$0x1f] %v5205
      %5301 = vst [vmem:[%s170 + $0x10] sm:$0x1f] %v5206
      %5302 = vst [vmem:[%s170 + $0x18] sm:$0x1f] %v5207
      %5303 = vst [vmem:[%s170 + $0x20] sm:$0x1f] %v5208
      %5304 = vst [vmem:[%s170 + $0x28] sm:$0x1f] %v5209
      %5305 = vst [vmem:[%s170 + $0x30] sm:$0x1f] %v5210
      %5306 = vst [vmem:[%s170 + $0x38] sm:$0x1f] %v5211
      %5307 = vst [vmem:[%s170 + $0x40] sm:$0x1f] %v5212
      %5308 = vst [vmem:[%s170 + $0x48] sm:$0x1f] %v5213
      %5309 = vst [vmem:[%s170 + $0x50] sm:$0x1f] %v5214
      %5310 = vst [vmem:[%s170 + $0x58] sm:$0x1f] %v5215
      %5311 = vst [vmem:[%s170 + $0x60] sm:$0x1f] %v5216
      %5312 = vst [vmem:[%s170 + $0x68] sm:$0x1f] %v5217
      %5313 = vst [vmem:[%s170 + $0x70] sm:$0x1f] %v5218
      %5314 = vst [vmem:[%s170 + $0x78] sm:$0x1f] %v5219
      %5315 = vst [vmem:[%s170 + $0x80] sm:$0x1f] %v5220
      %5316 = vst [vmem:[%s170 + $0x88] sm:$0x1f] %v5221
      %5317 = vst [vmem:[%s170 + $0x90] sm:$0x1f] %v5222
      %5318 = vst [vmem:[%s170 + $0x98] sm:$0x1f] %v5223
      %5319 = vst [vmem:[%s170 + $0xa0] sm:$0x1f] %v5224
      %5320 = vst [vmem:[%s170 + $0xa8] sm:$0x1f] %v5225
      %5321 = vst [vmem:[%s170 + $0xb0] sm:$0x1f] %v5226
      %5322 = vst [vmem:[%s170 + $0xb8] sm:$0x1f] %v5227
      %5323 = vst [vmem:[%s170 + $0xc0] sm:$0x1f] %v5228
      %5324 = vst [vmem:[%s170 + $0xc8] sm:$0x1f] %v5229
      %5325 = vst [vmem:[%s170 + $0xd0] sm:$0x1f] %v5230
      %5326 = vst [vmem:[%s170 + $0xd8] sm:$0x1f] %v5231
      %5327 = vst [vmem:[%s170 + $0xe0] sm:$0x1f] %v5232
      %5328 = vst [vmem:[%s170 + $0xe8] sm:$0x1f] %v5233
      %5329 = vst [vmem:[%s170 + $0xf0] sm:$0x1f] %v5234
      %5330 = vst [vmem:[%s170 + $0xf8] sm:$0x1f] %v5235
      %5331 = vst [vmem:[%s170 + $0x100] sm:$0x1f] %v5236
      %5332 = vst [vmem:[%s170 + $0x108] sm:$0x1f] %v5237
      %5333 = vst [vmem:[%s170 + $0x110] sm:$0x1f] %v5238
      %5334 = vst [vmem:[%s170 + $0x118] sm:$0x1f] %v5239
      %5335 = vst [vmem:[%s170 + $0x120] sm:$0x1f] %v5240
      %5336 = vst [vmem:[%s170 + $0x128] sm:$0x1f] %v5241
      %5337 = vst [vmem:[%s170 + $0x130] sm:$0x1f] %v5242
      %5338 = vst [vmem:[%s170 + $0x138] sm:$0x1f] %v5243
      %5339 = vst [vmem:[%s170 + $0x140] sm:$0x1f] %v5244
      %5340 = vst [vmem:[%s170 + $0x148] sm:$0x1f] %v5245
      %5341 = vst [vmem:[%s170 + $0x150] sm:$0x1f] %v5246
      %5342 = vst [vmem:[%s170 + $0x158] sm:$0x1f] %v5247
      %5343 = vst [vmem:[%s170 + $0x160] sm:$0x1f] %v5248
      %5344 = vst [vmem:[%s170 + $0x168] sm:$0x1f] %v5249
      %5345 = vst [vmem:[%s170 + $0x170] sm:$0x1f] %v5250
      %5346 = vst [vmem:[%s170 + $0x178] sm:$0x1f] %v5251
      %5347 = vst [vmem:[%s170 + $0x180] sm:$0x1f] %v5252
      %5348 = vst [vmem:[%s170 + $0x188] sm:$0x1f] %v5253
      %5349 = vst [vmem:[%s170 + $0x190] sm:$0x1f] %v5254
      %5350 = vst [vmem:[%s170 + $0x198] sm:$0x1f] %v5255
      %5351 = vst [vmem:[%s170 + $0x1a0] sm:$0x1f] %v5256
      %5352 = vst [vmem:[%s170 + $0x1a8] sm:$0x1f] %v5257
      %5353 = vst [vmem:[%s170 + $0x1b0] sm:$0x1f] %v5258
      %5354 = vst [vmem:[%s170 + $0x1b8] sm:$0x1f] %v5259
      %5355 = vst [vmem:[%s170 + $0x1c0] sm:$0x1f] %v5260
      %5356 = vst [vmem:[%s170 + $0x1c8] sm:$0x1f] %v5261
      %5357 = vst [vmem:[%s170 + $0x1d0] sm:$0x1f] %v5262
      %5358 = vst [vmem:[%s170 + $0x1d8] sm:$0x1f] %v5263
      %5359 = vst [vmem:[%s170 + $0x1e0] sm:$0x1f] %v5264
      %5360 = vst [vmem:[%s170 + $0x1e8] sm:$0x1f] %v5265
      %5361 = vst [vmem:[%s170 + $0x1f0] sm:$0x1f] %v5266
      %5362 = vst [vmem:[%s170 + $0x1f8] sm:$0x1f] %v5267
      %5363 = vst [vmem:[%s170 + $0x200] sm:$0x1f] %v5268
      %5364 = vst [vmem:[%s170 + $0x208] sm:$0x1f] %v5269
      %5365 = vst [vmem:[%s170 + $0x210] sm:$0x1f] %v5270
      %5366 = vst [vmem:[%s170 + $0x218] sm:$0x1f] %v5271
      %5367 = vst [vmem:[%s170 + $0x220] sm:$0x1f] %v5272
      %5368 = vst [vmem:[%s170 + $0x228] sm:$0x1f] %v5273
      %5369 = vst [vmem:[%s170 + $0x230] sm:$0x1f] %v5274
      %5370 = vst [vmem:[%s170 + $0x238] sm:$0x1f] %v5275
      %5371 = vst [vmem:[%s170 + $0x240] sm:$0x1f] %v5276
      %5372 = vst [vmem:[%s170 + $0x248] sm:$0x1f] %v5277
      %5373 = vst [vmem:[%s170 + $0x250] sm:$0x1f] %v5278
      %5374 = vst [vmem:[%s170 + $0x258] sm:$0x1f] %v5279
      %5375 = vst [vmem:[%s170 + $0x260] sm:$0x1f] %v5280
      %5376 = vst [vmem:[%s170 + $0x268] sm:$0x1f] %v5281
      %5377 = vst [vmem:[%s170 + $0x270] sm:$0x1f] %v5282
      %5378 = vst [vmem:[%s170 + $0x278] sm:$0x1f] %v5283
      %5379 = vst [vmem:[%s170 + $0x280] sm:$0x1f] %v5284
      %5380 = vst [vmem:[%s170 + $0x288] sm:$0x1f] %v5285
      %5381 = vst [vmem:[%s170 + $0x290] sm:$0x1f] %v5286
      %5382 = vst [vmem:[%s170 + $0x298] sm:$0x1f] %v5287
      %5383 = vst [vmem:[%s170 + $0x2a0] sm:$0x1f] %v5288
      %5384 = vst [vmem:[%s170 + $0x2a8] sm:$0x1f] %v5289
      %5385 = vst [vmem:[%s170 + $0x2b0] sm:$0x1f] %v5290
      %5386 = vst [vmem:[%s170 + $0x2b8] sm:$0x1f] %v5291
      %5387 = vst [vmem:[%s170 + $0x2c0] sm:$0x1f] %v5292
      %5388 = vst [vmem:[%s170 + $0x2c8] sm:$0x1f] %v5293
      %5389 = vst [vmem:[%s170 + $0x2d0] sm:$0x1f] %v5294
      %5390 = vst [vmem:[%s170 + $0x2d8] sm:$0x1f] %v5295
      %5391 = vst [vmem:[%s170 + $0x2e0] sm:$0x1f] %v5296
      %5392 = vst [vmem:[%s170 + $0x2e8] sm:$0x1f] %v5297
      %vm5393 = vcmask 552960
      %5394 = vst.msk [vmem:[%s170 + $0x2f0] sm:$0x1f] %vm5393, %v5298
      %p5395 = scmp.lt.s32.totalorder %s14, 1
      %s5396 = scalar_select %p5395, %s14, 1
      %s5397 = smul.addr %s5396, 95
      %s5398 = smul.addr %s5397, 8
      %s5399 = scalar_lea.vmem %s3, %s5398
      // Predicated region
      $region33: #{net_forward.4} parent=31 // pred_check
        %p5400 = pneg %p100
      $region34: #{net_forward.4} parent=31 // pred_check_branch
        %5402 = sbr.rel (%p5400) target = $region36
      $region35: #{net_forward.4} parent=31 // pred_region
        _
      $region36: #{net_forward.4} parent=31 // pred_fallthru
        _
    $region32: #{net_forward.4} parent=5 // pred_fallthru
      _
    %p5403 = scmp.le.s32.totalorder 2, %s9
    // Predicated region
    $region37: #{net_forward.4} parent=5 // pred_check
      %p5404 = pneg %p5403
    $region38: #{net_forward.4} parent=5 // pred_check_branch
      %5406 = sbr.rel (%p5404) target = $region40
    $region39: #{net_forward.4} parent=5 // pred_region
      %s5407 = ssub.s32 %s9, 2
      // Predicated region
      $region41: #{net_forward.4} parent=39 // pred_check
        %p5408 = pneg %p106
      $region42: #{net_forward.4} parent=39 // pred_check_branch
        %5410 = sbr.rel (%p5408) target = $region44
      $region43: #{net_forward.4} parent=39 // pred_region
        %p5411 = scmp.lt.s32.totalorder %s15, 1
        %s5412 = scalar_select %p5411, %s15, 1
        %s5413 = smul.addr %s5412, 95
        %s5414 = smul.addr %s5413, 8
        %s5415 = scalar_lea.vmem %s3, %s5414
      $region44: #{net_forward.4} parent=39 // pred_fallthru
        _
    $region40: #{net_forward.4} parent=5 // pred_fallthru
      _
  $region6: #{net_forward.4} parent=0 // loop_footer
    %s13 = sadd.s32 1, %s9
  $region7: #{net_forward.4} parent=0 // loop_footer_branch
    %8 = sbr.rel target = $region3
  $region8: #{net_forward.4} parent=0 // loop_exit
    _

// kernel: net_forward.5
$region0: #{net_forward.5}
  #allocation0 [shape = 'u32[]', space=smem, size = 0x4, offset = 0x4, fixed_abs, tag = 'smem constant byte address 0x4 - core index']
  #allocation1 [shape = 'u32[144,128]{1,0:T(1,128)}', space=vmem, size = 0x12000, scoped, tag = 'internal scratch']
  %s0 = inlined_call_operand.vmem [shape: bf16[2,45,2916], index: 0, kind: input, shape index: {}]
  %s1 = inlined_call_operand.vmem [shape: bf16[7,45], index: 1, kind: input, shape index: {}]
  %s2 = inlined_call_operand.vmem [shape: f32[7,1], index: 2, kind: input, shape index: {}]
  %s3 = inlined_call_operand.vmem [shape: f32[2,7,2916], index: 3, kind: output, shape index: {}]
  %s4 = sld [smem:[#allocation0]]
  $region45: #{net_forward.5} parent=0
    _
  %s6 = ssub.s32 1, %s4
  %s7 = scalar_select 0, %s6, %s4
  loop: start=0, step=1, limit=4
  $region2: #{net_forward.5} parent=0 // loop_pre_header
    _
  $region3: #{net_forward.5} parent=0 // loop_header
    %s9 = sphi 0, %s13
    %p10 = scmp.ge.s32.totalorder %s9, 4
    %s19 = sphi 0, %s21
    %s22 = sphi 0, %s19
    %s23 = sphi 0, %s22
    %s39 = sphi 0, %s23
    %s43 = sphi 0, %s43
    %s45 = sphi 0, %s43
    %s46 = sphi 0, %s45
    %s60 = sphi 0, %s46
    %s64 = sphi 0, %s64
    %s66 = sphi 0, %s64
    %s67 = sphi 0, %s66
    %s81 = sphi 0, %s67
    %s87 = sphi 0, %s89
    %s90 = sphi 0, %s87
    %s91 = sphi 0, %s90
    %s107 = sphi 0, %s91
  $region4: #{net_forward.5} parent=0 // loop_header_branch
    %12 = sbr.rel (%p10) target = $region8
  $region5: #{net_forward.5} parent=0 // loop_body
    %s14 = ssub.s32 %s9, 1
    %s15 = ssub.s32 %s9, 2
    %s16 = sadd.s32 %s9, 1
    %s17 = ssub.s32 %s9, %s16
    %p18 = scmp.eq.s32.totalorder %s17, 0
    %s20 = sadd.s32 %s19, 1
    %s21 = scalar_select %p18, %s19, %s20
    %p24 = pneg %p18
    %p25 = scmp.eq.s32.totalorder %s9, 1
    %p26 = por %p24, %p25
    %p27 = scmp.ne.s32.totalorder %s19, %s22
    %p28 = scmp.eq.s32.totalorder %s9, 0
    %p29 = por %p27, %p28
    %p30 = scmp.ne.s32.totalorder %s19, %s22
    %p31 = scmp.eq.s32.totalorder %s14, 1
    %p32 = por %p30, %p31
    %p33 = scmp.ne.s32.totalorder %s22, %s23
    %p34 = scmp.eq.s32.totalorder %s14, 0
    %p35 = por %p33, %p34
    %p36 = scmp.ne.s32.totalorder %s22, %s23
    %p37 = scmp.eq.s32.totalorder %s15, 1
    %p38 = por %p36, %p37
    %p40 = scmp.ne.s32.totalorder %s23, %s39
    %p41 = scmp.eq.s32.totalorder %s15, 0
    %p42 = por %p40, %p41
    %s44 = sadd.s32 %s43, 1
    %p47 = scmp.eq.s32.totalorder %s9, 1
    %p48 = scmp.ne.s32.totalorder %s43, %s45
    %p49 = scmp.eq.s32.totalorder %s9, 0
    %p50 = por %p48, %p49
    %p51 = scmp.ne.s32.totalorder %s43, %s45
    %p52 = scmp.eq.s32.totalorder %s14, 1
    %p53 = por %p51, %p52
    %p54 = scmp.ne.s32.totalorder %s45, %s46
    %p55 = scmp.eq.s32.totalorder %s14, 0
    %p56 = por %p54, %p55
    %p57 = scmp.ne.s32.totalorder %s45, %s46
    %p58 = scmp.eq.s32.totalorder %s15, 1
    %p59 = por %p57, %p58
    %p61 = scmp.ne.s32.totalorder %s46, %s60
    %p62 = scmp.eq.s32.totalorder %s15, 0
    %p63 = por %p61, %p62
    %s65 = sadd.s32 %s64, 1
    %p68 = scmp.eq.s32.totalorder %s9, 1
    %p69 = scmp.ne.s32.totalorder %s64, %s66
    %p70 = scmp.eq.s32.totalorder %s9, 0
    %p71 = por %p69, %p70
    %p72 = scmp.ne.s32.totalorder %s64, %s66
    %p73 = scmp.eq.s32.totalorder %s14, 1
    %p74 = por %p72, %p73
    %p75 = scmp.ne.s32.totalorder %s66, %s67
    %p76 = scmp.eq.s32.totalorder %s14, 0
    %p77 = por %p75, %p76
    %p78 = scmp.ne.s32.totalorder %s66, %s67
    %p79 = scmp.eq.s32.totalorder %s15, 1
    %p80 = por %p78, %p79
    %p82 = scmp.ne.s32.totalorder %s67, %s81
    %p83 = scmp.eq.s32.totalorder %s15, 0
    %p84 = por %p82, %p83
    %s85 = ssub.s32 %s9, %s16
    %p86 = scmp.eq.s32.totalorder %s85, 0
    %s88 = sadd.s32 %s87, 1
    %s89 = scalar_select %p86, %s87, %s88
    %p92 = pneg %p86
    %p93 = scmp.eq.s32.totalorder %s9, 1
    %p94 = por %p92, %p93
    %p95 = scmp.ne.s32.totalorder %s87, %s90
    %p96 = scmp.eq.s32.totalorder %s9, 0
    %p97 = por %p95, %p96
    %p98 = scmp.ne.s32.totalorder %s87, %s90
    %p99 = scmp.eq.s32.totalorder %s14, 1
    %p100 = por %p98, %p99
    %p101 = scmp.ne.s32.totalorder %s90, %s91
    %p102 = scmp.eq.s32.totalorder %s14, 0
    %p103 = por %p101, %p102
    %p104 = scmp.ne.s32.totalorder %s90, %s91
    %p105 = scmp.eq.s32.totalorder %s15, 1
    %p106 = por %p104, %p105
    %p108 = scmp.ne.s32.totalorder %s91, %s107
    %p109 = scmp.eq.s32.totalorder %s15, 0
    %p110 = por %p108, %p109
    %p111 = scmp.le.s32.totalorder 1, %s9
    %p112 = scmp.lt.s32.totalorder %s9, 3
    %p113 = pnand %p111, %p112
    %p114 = pneg %p113
    // Predicated region
    $region9: #{net_forward.5} parent=5 // pred_check
      _
    $region10: #{net_forward.5} parent=5 // pred_check_branch
      %116 = sbr.rel (%p113) target = $region12
    $region11: #{net_forward.5} parent=5 // pred_region
      %s117 = ssub.s32 %s9, 1
      // Predicated region
      $region13: #{net_forward.5} parent=11 // pred_check
        %p118 = pneg %p56
      $region14: #{net_forward.5} parent=11 // pred_check_branch
        %120 = sbr.rel (%p118) target = $region16
      $region15: #{net_forward.5} parent=11 // pred_region
        _
      $region16: #{net_forward.5} parent=11 // pred_fallthru
        _
      // Predicated region
      $region17: #{net_forward.5} parent=11 // pred_check
        %p121 = pneg %p77
      $region18: #{net_forward.5} parent=11 // pred_check_branch
        %123 = sbr.rel (%p121) target = $region20
      $region19: #{net_forward.5} parent=11 // pred_region
        _
      $region20: #{net_forward.5} parent=11 // pred_fallthru
        _
    $region12: #{net_forward.5} parent=5 // pred_fallthru
      _
    %p124 = scmp.lt.s32.totalorder %s9, 2
    // Predicated region
    $region21: #{net_forward.5} parent=5 // pred_check
      %p125 = pneg %p124
    $region22: #{net_forward.5} parent=5 // pred_check_branch
      %127 = sbr.rel (%p125) target = $region24
    $region23: #{net_forward.5} parent=5 // pred_region
      // Predicated region
      $region25: #{net_forward.5} parent=23 // pred_check
        %p128 = pneg %p29
      $region26: #{net_forward.5} parent=23 // pred_check_branch
        %130 = sbr.rel (%p128) target = $region28
      $region27: #{net_forward.5} parent=23 // pred_region
        %p131 = scmp.lt.s32.totalorder %s9, 1
        %s132 = scalar_select %p131, %s9, 1
        %s133 = smul.addr %s132, 138
        %s134 = smul.addr %s133, 4
        %s135 = scalar_lea.vmem %s0, %s134
      $region28: #{net_forward.5} parent=23 // pred_fallthru
        _
    $region24: #{net_forward.5} parent=5 // pred_fallthru
      _
    %p136 = scmp.le.s32.totalorder 1, %s9
    %p137 = scmp.lt.s32.totalorder %s9, 3
    %p138 = pnand %p136, %p137
    %p139 = pneg %p138
    // Predicated region
    $region29: #{net_forward.5} parent=5 // pred_check
      _
    $region30: #{net_forward.5} parent=5 // pred_check_branch
      %141 = sbr.rel (%p138) target = $region32
    $region31: #{net_forward.5} parent=5 // pred_region
      %s142 = ssub.s32 %s9, 1
      %p143 = scmp.lt.s32.totalorder %s14, 1
      %s144 = scalar_select %p143, %s14, 1
      %s145 = smul.addr %s144, 138
      %s146 = smul.addr %s145, 4
      %s147 = scalar_lea.vmem %s0, %s146
      %p148 = pneg %p35
      %p149 = pneg %p32
      %p150 = pneg %p56
      %p151 = pneg %p53
      %p152 = pneg %p77
      %p153 = pneg %p74
      %p154 = pneg %p103
      %p155 = pneg %p100
      %p156 = scmp.lt.s32.totalorder %s14, 1
      %s157 = scalar_select %p156, %s14, 1
      %s158 = smul.addr %s157, 23
      %s159 = smul.addr %s158, 8
      %s160 = scalar_lea.vmem %s3, %s159
      %p161 = scmp.lt.s32.totalorder %s14, 1
      %s162 = scalar_select %p161, %s14, 1
      %s163 = smul.addr %s162, 138
      %s164 = smul.addr %s163, 4
      %s165 = scalar_lea.vmem %s0, %s164
      %p166 = scmp.lt.s32.totalorder %s14, 1
      %s167 = scalar_select %p166, %s14, 1
      %s168 = smul.addr %s167, 23
      %s169 = smul.addr %s168, 8
      %s170 = scalar_lea.vmem %s3, %s169
      %v172 = vld [vmem:[%s1] sm:$0xf]
      %v173 = vld [vmem:[%s165] sm:$0xff]
      %v174 = vld [vmem:[%s165 + $0x8] sm:$0xff]
      %v175 = vld [vmem:[%s165 + $0x10] sm:$0xff]
      %v176 = vld [vmem:[%s165 + $0x18] sm:$0xff]
      %v177 = vld [vmem:[%s165 + $0x20] sm:$0xff]
      %v178 = vld [vmem:[%s165 + $0x28] sm:$0xff]
      %v179 = vld [vmem:[%s165 + $0x30] sm:$0xff]
      %v180 = vld [vmem:[%s165 + $0x38] sm:$0xff]
      %v181 = vld [vmem:[%s165 + $0x40] sm:$0xff]
      %v182 = vld [vmem:[%s165 + $0x48] sm:$0xff]
      %v183 = vld [vmem:[%s165 + $0x50] sm:$0xff]
      %v184 = vld [vmem:[%s165 + $0x58] sm:$0xf]
      %v185 = vld [vmem:[%s165 + $0x5c] sm:$0xff]
      %v186 = vld [vmem:[%s165 + $0x64] sm:$0xff]
      %v187 = vld [vmem:[%s165 + $0x6c] sm:$0xff]
      %v188 = vld [vmem:[%s165 + $0x74] sm:$0xff]
      %v189 = vld [vmem:[%s165 + $0x7c] sm:$0xff]
      %v190 = vld [vmem:[%s165 + $0x84] sm:$0xff]
      %v191 = vld [vmem:[%s165 + $0x8c] sm:$0xff]
      %v192 = vld [vmem:[%s165 + $0x94] sm:$0xff]
      %v193 = vld [vmem:[%s165 + $0x9c] sm:$0xff]
      %v194 = vld [vmem:[%s165 + $0xa4] sm:$0xff]
      %v195 = vld [vmem:[%s165 + $0xac] sm:$0xff]
      %v196 = vld [vmem:[%s165 + $0xb4] sm:$0xf]
      %v197 = vld [vmem:[%s165 + $0xb8] sm:$0xff]
      %v198 = vld [vmem:[%s165 + $0xc0] sm:$0xff]
      %v199 = vld [vmem:[%s165 + $0xc8] sm:$0xff]
      %v200 = vld [vmem:[%s165 + $0xd0] sm:$0xff]
      %v201 = vld [vmem:[%s165 + $0xd8] sm:$0xff]
      %v202 = vld [vmem:[%s165 + $0xe0] sm:$0xff]
      %v203 = vld [vmem:[%s165 + $0xe8] sm:$0xff]
      %v204 = vld [vmem:[%s165 + $0xf0] sm:$0xff]
      %v205 = vld [vmem:[%s165 + $0xf8] sm:$0xff]
      %v206 = vld [vmem:[%s165 + $0x100] sm:$0xff]
      %v207 = vld [vmem:[%s165 + $0x108] sm:$0xff]
      %v208 = vld [vmem:[%s165 + $0x110] sm:$0xf]
      %v209 = vld [vmem:[%s165 + $0x114] sm:$0xff]
      %v210 = vld [vmem:[%s165 + $0x11c] sm:$0xff]
      %v211 = vld [vmem:[%s165 + $0x124] sm:$0xff]
      %v212 = vld [vmem:[%s165 + $0x12c] sm:$0xff]
      %v213 = vld [vmem:[%s165 + $0x134] sm:$0xff]
      %v214 = vld [vmem:[%s165 + $0x13c] sm:$0xff]
      %v215 = vld [vmem:[%s165 + $0x144] sm:$0xff]
      %v216 = vld [vmem:[%s165 + $0x14c] sm:$0xff]
      %v217 = vld [vmem:[%s165 + $0x154] sm:$0xff]
      %v218 = vld [vmem:[%s165 + $0x15c] sm:$0xff]
      %v219 = vld [vmem:[%s165 + $0x164] sm:$0xff]
      %v220 = vld [vmem:[%s165 + $0x16c] sm:$0xf]
      %v221 = vld [vmem:[%s165 + $0x170] sm:$0xff]
      %v222 = vld [vmem:[%s165 + $0x178] sm:$0xff]
      %v223 = vld [vmem:[%s165 + $0x180] sm:$0xff]
      %v224 = vld [vmem:[%s165 + $0x188] sm:$0xff]
      %v225 = vld [vmem:[%s165 + $0x190] sm:$0xff]
      %v226 = vld [vmem:[%s165 + $0x198] sm:$0xff]
      %v227 = vld [vmem:[%s165 + $0x1a0] sm:$0xff]
      %v228 = vld [vmem:[%s165 + $0x1a8] sm:$0xff]
      %v229 = vld [vmem:[%s165 + $0x1b0] sm:$0xff]
      %v230 = vld [vmem:[%s165 + $0x1b8] sm:$0xff]
      %v231 = vld [vmem:[%s165 + $0x1c0] sm:$0xff]
      %v232 = vld [vmem:[%s165 + $0x1c8] sm:$0xf]
      %v233 = vld [vmem:[%s165 + $0x1cc] sm:$0x77]
      %v234 = vld [vmem:[%s165 + $0x1d4] sm:$0x77]
      %v235 = vld [vmem:[%s165 + $0x1dc] sm:$0x77]
      %v236 = vld [vmem:[%s165 + $0x1e4] sm:$0x77]
      %v237 = vld [vmem:[%s165 + $0x1ec] sm:$0x77]
      %v238 = vld [vmem:[%s165 + $0x1f4] sm:$0x77]
      %v239 = vld [vmem:[%s165 + $0x1fc] sm:$0x77]
      %v240 = vld [vmem:[%s165 + $0x204] sm:$0x77]
      %v241 = vld [vmem:[%s165 + $0x20c] sm:$0x77]
      %v242 = vld [vmem:[%s165 + $0x214] sm:$0x77]
      %v243 = vld [vmem:[%s165 + $0x21c] sm:$0x77]
      %v244 = vld [vmem:[%s165 + $0x224] sm:$0x7]
      %v245 = vld [vmem:[%s2] sm:$0x7f]
      %247 = vset.pattern.permute.xlu0 0
      %248 = vperm.xlu0 %247, %v245
      %v249 = vpop.permute.xlu0 %248
      %v323 = vunpack.c.l.b16 %v173
      %v324 = vunpack.c.h.b16 %v173
      %v325 = vunpack.c.l.b16 %v174
      %v326 = vunpack.c.h.b16 %v174
      %v327 = vunpack.c.l.b16 %v175
      %v328 = vunpack.c.h.b16 %v175
      %v329 = vunpack.c.l.b16 %v176
      %v330 = vunpack.c.h.b16 %v176
      %v331 = vunpack.c.l.b16 %v177
      %v332 = vunpack.c.h.b16 %v177
      %v333 = vunpack.c.l.b16 %v178
      %v334 = vunpack.c.h.b16 %v178
      %v335 = vunpack.c.l.b16 %v179
      %v336 = vunpack.c.h.b16 %v179
      %v337 = vunpack.c.l.b16 %v180
      %v338 = vunpack.c.h.b16 %v180
      %v339 = vunpack.c.l.b16 %v181
      %v340 = vunpack.c.h.b16 %v181
      %v341 = vunpack.c.l.b16 %v182
      %v342 = vunpack.c.h.b16 %v182
      %v343 = vunpack.c.l.b16 %v183
      %v344 = vunpack.c.h.b16 %v183
      %v345 = vunpack.c.l.b16 %v184
      %v346 = vunpack.c.l.b16 %v185
      %v347 = vunpack.c.h.b16 %v185
      %v348 = vunpack.c.l.b16 %v186
      %v349 = vunpack.c.h.b16 %v186
      %v350 = vunpack.c.l.b16 %v187
      %v351 = vunpack.c.h.b16 %v187
      %v352 = vunpack.c.l.b16 %v188
      %v353 = vunpack.c.h.b16 %v188
      %v354 = vunpack.c.l.b16 %v189
      %v355 = vunpack.c.h.b16 %v189
      %v356 = vunpack.c.l.b16 %v190
      %v357 = vunpack.c.h.b16 %v190
      %v358 = vunpack.c.l.b16 %v191
      %v359 = vunpack.c.h.b16 %v191
      %v360 = vunpack.c.l.b16 %v192
      %v361 = vunpack.c.h.b16 %v192
      %v362 = vunpack.c.l.b16 %v193
      %v363 = vunpack.c.h.b16 %v193
      %v364 = vunpack.c.l.b16 %v194
      %v365 = vunpack.c.h.b16 %v194
      %v366 = vunpack.c.l.b16 %v195
      %v367 = vunpack.c.h.b16 %v195
      %v368 = vunpack.c.l.b16 %v196
      %v369 = vunpack.c.l.b16 %v197
      %v370 = vunpack.c.h.b16 %v197
      %v371 = vunpack.c.l.b16 %v198
      %v372 = vunpack.c.h.b16 %v198
      %v373 = vunpack.c.l.b16 %v199
      %v374 = vunpack.c.h.b16 %v199
      %v375 = vunpack.c.l.b16 %v200
      %v376 = vunpack.c.h.b16 %v200
      %v377 = vunpack.c.l.b16 %v201
      %v378 = vunpack.c.h.b16 %v201
      %v379 = vunpack.c.l.b16 %v202
      %v380 = vunpack.c.h.b16 %v202
      %v381 = vunpack.c.l.b16 %v203
      %v382 = vunpack.c.h.b16 %v203
      %v383 = vunpack.c.l.b16 %v204
      %v384 = vunpack.c.h.b16 %v204
      %v385 = vunpack.c.l.b16 %v205
      %v386 = vunpack.c.h.b16 %v205
      %v387 = vunpack.c.l.b16 %v206
      %v388 = vunpack.c.h.b16 %v206
      %v389 = vunpack.c.l.b16 %v207
      %v390 = vunpack.c.h.b16 %v207
      %v391 = vunpack.c.l.b16 %v208
      %v392 = vunpack.c.l.b16 %v209
      %v393 = vunpack.c.h.b16 %v209
      %v394 = vunpack.c.l.b16 %v210
      %v395 = vunpack.c.h.b16 %v210
      %v396 = vunpack.c.l.b16 %v211
      %v397 = vunpack.c.h.b16 %v211
      %v398 = vunpack.c.l.b16 %v212
      %v399 = vunpack.c.h.b16 %v212
      %v400 = vunpack.c.l.b16 %v213
      %v401 = vunpack.c.h.b16 %v213
      %v402 = vunpack.c.l.b16 %v214
      %v403 = vunpack.c.h.b16 %v214
      %v404 = vunpack.c.l.b16 %v215
      %v405 = vunpack.c.h.b16 %v215
      %v406 = vunpack.c.l.b16 %v216
      %v407 = vunpack.c.h.b16 %v216
      %v408 = vunpack.c.l.b16 %v217
      %v409 = vunpack.c.h.b16 %v217
      %v410 = vunpack.c.l.b16 %v218
      %v411 = vunpack.c.h.b16 %v218
      %v412 = vunpack.c.l.b16 %v219
      %v413 = vunpack.c.h.b16 %v219
      %v414 = vunpack.c.l.b16 %v220
      %v415 = vunpack.c.l.b16 %v221
      %v416 = vunpack.c.h.b16 %v221
      %v417 = vunpack.c.l.b16 %v222
      %v418 = vunpack.c.h.b16 %v222
      %v419 = vunpack.c.l.b16 %v223
      %v420 = vunpack.c.h.b16 %v223
      %v421 = vunpack.c.l.b16 %v224
      %v422 = vunpack.c.h.b16 %v224
      %v423 = vunpack.c.l.b16 %v225
      %v424 = vunpack.c.h.b16 %v225
      %v425 = vunpack.c.l.b16 %v226
      %v426 = vunpack.c.h.b16 %v226
      %v427 = vunpack.c.l.b16 %v227
      %v428 = vunpack.c.h.b16 %v227
      %v429 = vunpack.c.l.b16 %v228
      %v430 = vunpack.c.h.b16 %v228
      %v431 = vunpack.c.l.b16 %v229
      %v432 = vunpack.c.h.b16 %v229
      %v433 = vunpack.c.l.b16 %v230
      %v434 = vunpack.c.h.b16 %v230
      %v435 = vunpack.c.l.b16 %v231
      %v436 = vunpack.c.h.b16 %v231
      %v437 = vunpack.c.l.b16 %v232
      %v438 = vunpack.c.l.b16 %v233
      %v439 = vunpack.c.h.b16 %v233
      %v440 = vunpack.c.l.b16 %v234
      %v441 = vunpack.c.h.b16 %v234
      %v442 = vunpack.c.l.b16 %v235
      %v443 = vunpack.c.h.b16 %v235
      %v444 = vunpack.c.l.b16 %v236
      %v445 = vunpack.c.h.b16 %v236
      %v446 = vunpack.c.l.b16 %v237
      %v447 = vunpack.c.h.b16 %v237
      %v448 = vunpack.c.l.b16 %v238
      %v449 = vunpack.c.h.b16 %v238
      %v450 = vunpack.c.l.b16 %v239
      %v451 = vunpack.c.h.b16 %v239
      %v452 = vunpack.c.l.b16 %v240
      %v453 = vunpack.c.h.b16 %v240
      %v454 = vunpack.c.l.b16 %v241
      %v455 = vunpack.c.h.b16 %v241
      %v456 = vunpack.c.l.b16 %v242
      %v457 = vunpack.c.h.b16 %v242
      %v458 = vunpack.c.l.b16 %v243
      %v459 = vunpack.c.h.b16 %v243
      %v460 = vunpack.c.l.b16 %v244
      %v461 = vpack.c.b16 %v346, %v323
      %v462 = vpack.c.b16 %v347, %v324
      %v463 = vpack.c.b16 %v348, %v325
      %v464 = vpack.c.b16 %v349, %v326
      %v465 = vpack.c.b16 %v350, %v327
      %v466 = vpack.c.b16 %v351, %v328
      %v467 = vpack.c.b16 %v352, %v329
      %v468 = vpack.c.b16 %v353, %v330
      %v469 = vpack.c.b16 %v354, %v331
      %v470 = vpack.c.b16 %v355, %v332
      %v471 = vpack.c.b16 %v356, %v333
      %v472 = vpack.c.b16 %v357, %v334
      %v473 = vpack.c.b16 %v358, %v335
      %v474 = vpack.c.b16 %v359, %v336
      %v475 = vpack.c.b16 %v360, %v337
      %v476 = vpack.c.b16 %v361, %v338
      %v477 = vpack.c.b16 %v362, %v339
      %v478 = vpack.c.b16 %v363, %v340
      %v479 = vpack.c.b16 %v364, %v341
      %v480 = vpack.c.b16 %v365, %v342
      %v481 = vpack.c.b16 %v366, %v343
      %v482 = vpack.c.b16 %v367, %v344
      %v483 = vpack.c.b16 %v368, %v345
      %v484 = vpack.c.b16 %v392, %v369
      %v485 = vpack.c.b16 %v393, %v370
      %v486 = vpack.c.b16 %v394, %v371
      %v487 = vpack.c.b16 %v395, %v372
      %v488 = vpack.c.b16 %v396, %v373
      %v489 = vpack.c.b16 %v397, %v374
      %v490 = vpack.c.b16 %v398, %v375
      %v491 = vpack.c.b16 %v399, %v376
      %v492 = vpack.c.b16 %v400, %v377
      %v493 = vpack.c.b16 %v401, %v378
      %v494 = vpack.c.b16 %v402, %v379
      %v495 = vpack.c.b16 %v403, %v380
      %v496 = vpack.c.b16 %v404, %v381
      %v497 = vpack.c.b16 %v405, %v382
      %v498 = vpack.c.b16 %v406, %v383
      %v499 = vpack.c.b16 %v407, %v384
      %v500 = vpack.c.b16 %v408, %v385
      %v501 = vpack.c.b16 %v409, %v386
      %v502 = vpack.c.b16 %v410, %v387
      %v503 = vpack.c.b16 %v411, %v388
      %v504 = vpack.c.b16 %v412, %v389
      %v505 = vpack.c.b16 %v413, %v390
      %v506 = vpack.c.b16 %v414, %v391
      %v507 = vpack.c.b16 %v438, %v415
      %v508 = vpack.c.b16 %v439, %v416
      %v509 = vpack.c.b16 %v440, %v417
      %v510 = vpack.c.b16 %v441, %v418
      %v511 = vpack.c.b16 %v442, %v419
      %v512 = vpack.c.b16 %v443, %v420
      %v513 = vpack.c.b16 %v444, %v421
      %v514 = vpack.c.b16 %v445, %v422
      %v515 = vpack.c.b16 %v446, %v423
      %v516 = vpack.c.b16 %v447, %v424
      %v517 = vpack.c.b16 %v448, %v425
      %v518 = vpack.c.b16 %v449, %v426
      %v519 = vpack.c.b16 %v450, %v427
      %v520 = vpack.c.b16 %v451, %v428
      %v521 = vpack.c.b16 %v452, %v429
      %v522 = vpack.c.b16 %v453, %v430
      %v523 = vpack.c.b16 %v454, %v431
      %v524 = vpack.c.b16 %v455, %v432
      %v525 = vpack.c.b16 %v456, %v433
      %v526 = vpack.c.b16 %v457, %v434
      %v527 = vpack.c.b16 %v458, %v435
      %v528 = vpack.c.b16 %v459, %v436
      %v529 = vpack.c.b16 %v460, %v437
      %vm576 = vcmask 367616
      %v578 = vsel %vm576, %v172, 0
      %vm580 = vcmask 1045504
      %vm581 = vcmask 1046528
      %v582 = vsel %vm580, 4294967295, 65535
      %v583 = vsel %vm581, %v582, 0
      %v585 = vand.u32 %v507, %v583
      %v588 = vand.u32 %v508, %v583
      %v591 = vand.u32 %v509, %v583
      %v594 = vand.u32 %v510, %v583
      %v597 = vand.u32 %v511, %v583
      %v600 = vand.u32 %v512, %v583
      %v603 = vand.u32 %v513, %v583
      %v606 = vand.u32 %v514, %v583
      %v609 = vand.u32 %v515, %v583
      %v612 = vand.u32 %v516, %v583
      %v615 = vand.u32 %v517, %v583
      %v618 = vand.u32 %v518, %v583
      %v621 = vand.u32 %v519, %v583
      %v624 = vand.u32 %v520, %v583
      %v627 = vand.u32 %v521, %v583
      %v630 = vand.u32 %v522, %v583
      %v633 = vand.u32 %v523, %v583
      %v636 = vand.u32 %v524, %v583
      %v639 = vand.u32 %v525, %v583
      %v642 = vand.u32 %v526, %v583
      %v645 = vand.u32 %v527, %v583
      %v648 = vand.u32 %v528, %v583
      %v651 = vand.u32 %v529, %v583
      %653 = vmatprep.subr.bf16.mxu0 %v462
      %654 = vmatpush1.bf16.msra.mxu0 %v461
      %655 = vmatprep.subr.bf16.mxu0 %v485
      %656 = vmatpush1.bf16.msra.mxu0 %v484
      %657 = vmatprep.subr.bf16.mxu0 %v588
      %658 = vmatpush1.bf16.msra.mxu0 %v585
      %659 = vmatprep.subr.bf16.mxu0 0
      %660 = vmatpush1.bf16.msra.mxu0 0
      %661 = vmatprep.subr.bf16.mxu0 0
      %662 = vmatpush1.bf16.msra.mxu0 0
      %663 = vmatprep.subr.bf16.mxu0 0
      %664 = vmatpush1.bf16.msra.mxu0 0
      %665 = vmatprep.subr.bf16.mxu0 0
      %666 = vmatpush1.bf16.msra.mxu0 0
      %667 = vmatprep.subr.bf16.mxu0 0
      %668 = vmatpush1.bf16.msra.mxu0 0
      %669 = vmatprep.subr.bf16.mxu0 0
      %670 = vmatpush1.bf16.msra.mxu0 0
      %671 = vmatprep.subr.bf16.mxu0 0
      %672 = vmatpush1.bf16.msra.mxu0 0
      %673 = vmatprep.subr.bf16.mxu0 0
      %674 = vmatpush1.bf16.msra.mxu0 0
      %675 = vmatprep.subr.bf16.mxu0 0
      %676 = vmatpush1.bf16.msra.mxu0 0
      %677 = vmatprep.subr.bf16.mxu0 0
      %678 = vmatpush1.bf16.msra.mxu0 0
      %679 = vmatprep.subr.bf16.mxu0 0
      %680 = vmatpush1.bf16.msra.mxu0 0
      %681 = vmatprep.subr.bf16.mxu0 0
      %682 = vmatpush1.bf16.msra.mxu0 0
      %683 = vmatprep.subr.bf16.mxu0 0
      %684 = vmatpush1.bf16.msra.mxu0 0
      %685 = vmatprep.mubr.bf16.mxu0 0
      %686 = vmatmul.mubr.bf16.gmra.mrb[0].mxu0 %v578
      %v687 = vpop.f32.mrb[0].mxu0
      %v688 = vadd.f32 %v249, %v687
      %v689 = vpop.f32.mrb[0].mxu0
      %v690 = vadd.f32 %v249, %v689
      %v691 = vpop.f32.mrb[0].mxu0
      %v692 = vpop.f32.mrb[0].mxu0
      %693 = vdwg.mxu0
      %694 = vmatprep.subr.bf16.mxu0 %v464
      %695 = vmatpush1.bf16.msra.mxu0 %v463
      %696 = vmatprep.subr.bf16.mxu0 %v487
      %697 = vmatpush1.bf16.msra.mxu0 %v486
      %698 = vmatprep.subr.bf16.mxu0 %v594
      %699 = vmatpush1.bf16.msra.mxu0 %v591
      %700 = vmatprep.subr.bf16.mxu0 0
      %701 = vmatpush1.bf16.msra.mxu0 0
      %702 = vmatprep.subr.bf16.mxu0 0
      %703 = vmatpush1.bf16.msra.mxu0 0
      %704 = vmatprep.subr.bf16.mxu0 0
      %705 = vmatpush1.bf16.msra.mxu0 0
      %706 = vmatprep.subr.bf16.mxu0 0
      %707 = vmatpush1.bf16.msra.mxu0 0
      %708 = vmatprep.subr.bf16.mxu0 0
      %709 = vmatpush1.bf16.msra.mxu0 0
      %710 = vmatprep.subr.bf16.mxu0 0
      %711 = vmatpush1.bf16.msra.mxu0 0
      %712 = vmatprep.subr.bf16.mxu0 0
      %713 = vmatpush1.bf16.msra.mxu0 0
      %714 = vmatprep.subr.bf16.mxu0 0
      %715 = vmatpush1.bf16.msra.mxu0 0
      %716 = vmatprep.subr.bf16.mxu0 0
      %717 = vmatpush1.bf16.msra.mxu0 0
      %718 = vmatprep.subr.bf16.mxu0 0
      %719 = vmatpush1.bf16.msra.mxu0 0
      %720 = vmatprep.subr.bf16.mxu0 0
      %721 = vmatpush1.bf16.msra.mxu0 0
      %722 = vmatprep.subr.bf16.mxu0 0
      %723 = vmatpush1.bf16.msra.mxu0 0
      %724 = vmatprep.subr.bf16.mxu0 0
      %725 = vmatpush1.bf16.msra.mxu0 0
      %726 = vmatprep.mubr.bf16.mxu0 0
      %727 = vmatmul.mubr.bf16.gmra.mrb[0].mxu0 %v578
      %v728 = vpop.f32.mrb[0].mxu0
      %v729 = vadd.f32 %v249, %v728
      %v730 = vpop.f32.mrb[0].mxu0
      %v731 = vadd.f32 %v249, %v730
      %v732 = vpop.f32.mrb[0].mxu0
      %v733 = vpop.f32.mrb[0].mxu0
      %734 = vdwg.mxu0
      %735 = vmatprep.subr.bf16.mxu0 %v466
      %736 = vmatpush1.bf16.msra.mxu0 %v465
      %737 = vmatprep.subr.bf16.mxu0 %v489
      %738 = vmatpush1.bf16.msra.mxu0 %v488
      %739 = vmatprep.subr.bf16.mxu0 %v600
      %740 = vmatpush1.bf16.msra.mxu0 %v597
      %741 = vmatprep.subr.bf16.mxu0 0
      %742 = vmatpush1.bf16.msra.mxu0 0
      %743 = vmatprep.subr.bf16.mxu0 0
      %744 = vmatpush1.bf16.msra.mxu0 0
      %745 = vmatprep.subr.bf16.mxu0 0
      %746 = vmatpush1.bf16.msra.mxu0 0
      %747 = vmatprep.subr.bf16.mxu0 0
      %748 = vmatpush1.bf16.msra.mxu0 0
      %749 = vmatprep.subr.bf16.mxu0 0
      %750 = vmatpush1.bf16.msra.mxu0 0
      %751 = vmatprep.subr.bf16.mxu0 0
      %752 = vmatpush1.bf16.msra.mxu0 0
      %753 = vmatprep.subr.bf16.mxu0 0
      %754 = vmatpush1.bf16.msra.mxu0 0
      %755 = vmatprep.subr.bf16.mxu0 0
      %756 = vmatpush1.bf16.msra.mxu0 0
      %757 = vmatprep.subr.bf16.mxu0 0
      %758 = vmatpush1.bf16.msra.mxu0 0
      %759 = vmatprep.subr.bf16.mxu0 0
      %760 = vmatpush1.bf16.msra.mxu0 0
      %761 = vmatprep.subr.bf16.mxu0 0
      %762 = vmatpush1.bf16.msra.mxu0 0
      %763 = vmatprep.subr.bf16.mxu0 0
      %764 = vmatpush1.bf16.msra.mxu0 0
      %765 = vmatprep.subr.bf16.mxu0 0
      %766 = vmatpush1.bf16.msra.mxu0 0
      %767 = vmatprep.mubr.bf16.mxu0 0
      %768 = vmatmul.mubr.bf16.gmra.mrb[0].mxu0 %v578
      %v769 = vpop.f32.mrb[0].mxu0
      %v770 = vadd.f32 %v249, %v769
      %v771 = vpop.f32.mrb[0].mxu0
      %v772 = vadd.f32 %v249, %v771
      %v773 = vpop.f32.mrb[0].mxu0
      %v774 = vpop.f32.mrb[0].mxu0
      %775 = vdwg.mxu0
      %776 = vmatprep.subr.bf16.mxu0 %v468
      %777 = vmatpush1.bf16.msra.mxu0 %v467
      %778 = vmatprep.subr.bf16.mxu0 %v491
      %779 = vmatpush1.bf16.msra.mxu0 %v490
      %780 = vmatprep.subr.bf16.mxu0 %v606
      %781 = vmatpush1.bf16.msra.mxu0 %v603
      %782 = vmatprep.subr.bf16.mxu0 0
      %783 = vmatpush1.bf16.msra.mxu0 0
      %784 = vmatprep.subr.bf16.mxu0 0
      %785 = vmatpush1.bf16.msra.mxu0 0
      %786 = vmatprep.subr.bf16.mxu0 0
      %787 = vmatpush1.bf16.msra.mxu0 0
      %788 = vmatprep.subr.bf16.mxu0 0
      %789 = vmatpush1.bf16.msra.mxu0 0
      %790 = vmatprep.subr.bf16.mxu0 0
      %791 = vmatpush1.bf16.msra.mxu0 0
      %792 = vmatprep.subr.bf16.mxu0 0
      %793 = vmatpush1.bf16.msra.mxu0 0
      %794 = vmatprep.subr.bf16.mxu0 0
      %795 = vmatpush1.bf16.msra.mxu0 0
      %796 = vmatprep.subr.bf16.mxu0 0
      %797 = vmatpush1.bf16.msra.mxu0 0
      %798 = vmatprep.subr.bf16.mxu0 0
      %799 = vmatpush1.bf16.msra.mxu0 0
      %800 = vmatprep.subr.bf16.mxu0 0
      %801 = vmatpush1.bf16.msra.mxu0 0
      %802 = vmatprep.subr.bf16.mxu0 0
      %803 = vmatpush1.bf16.msra.mxu0 0
      %804 = vmatprep.subr.bf16.mxu0 0
      %805 = vmatpush1.bf16.msra.mxu0 0
      %806 = vmatprep.subr.bf16.mxu0 0
      %807 = vmatpush1.bf16.msra.mxu0 0
      %808 = vmatprep.mubr.bf16.mxu0 0
      %809 = vmatmul.mubr.bf16.gmra.mrb[0].mxu0 %v578
      %v810 = vpop.f32.mrb[0].mxu0
      %v811 = vadd.f32 %v249, %v810
      %v812 = vpop.f32.mrb[0].mxu0
      %v813 = vadd.f32 %v249, %v812
      %v814 = vpop.f32.mrb[0].mxu0
      %v815 = vpop.f32.mrb[0].mxu0
      %816 = vdwg.mxu0
      %817 = vmatprep.subr.bf16.mxu0 %v470
      %818 = vmatpush1.bf16.msra.mxu0 %v469
      %819 = vmatprep.subr.bf16.mxu0 %v493
      %820 = vmatpush1.bf16.msra.mxu0 %v492
      %821 = vmatprep.subr.bf16.mxu0 %v612
      %822 = vmatpush1.bf16.msra.mxu0 %v609
      %823 = vmatprep.subr.bf16.mxu0 0
      %824 = vmatpush1.bf16.msra.mxu0 0
      %825 = vmatprep.subr.bf16.mxu0 0
      %826 = vmatpush1.bf16.msra.mxu0 0
      %827 = vmatprep.subr.bf16.mxu0 0
      %828 = vmatpush1.bf16.msra.mxu0 0
      %829 = vmatprep.subr.bf16.mxu0 0
      %830 = vmatpush1.bf16.msra.mxu0 0
      %831 = vmatprep.subr.bf16.mxu0 0
      %832 = vmatpush1.bf16.msra.mxu0 0
      %833 = vmatprep.subr.bf16.mxu0 0
      %834 = vmatpush1.bf16.msra.mxu0 0
      %835 = vmatprep.subr.bf16.mxu0 0
      %836 = vmatpush1.bf16.msra.mxu0 0
      %837 = vmatprep.subr.bf16.mxu0 0
      %838 = vmatpush1.bf16.msra.mxu0 0
      %839 = vmatprep.subr.bf16.mxu0 0
      %840 = vmatpush1.bf16.msra.mxu0 0
      %841 = vmatprep.subr.bf16.mxu0 0
      %842 = vmatpush1.bf16.msra.mxu0 0
      %843 = vmatprep.subr.bf16.mxu0 0
      %844 = vmatpush1.bf16.msra.mxu0 0
      %845 = vmatprep.subr.bf16.mxu0 0
      %846 = vmatpush1.bf16.msra.mxu0 0
      %847 = vmatprep.subr.bf16.mxu0 0
      %848 = vmatpush1.bf16.msra.mxu0 0
      %849 = vmatprep.mubr.bf16.mxu0 0
      %850 = vmatmul.mubr.bf16.gmra.mrb[0].mxu0 %v578
      %v851 = vpop.f32.mrb[0].mxu0
      %v852 = vadd.f32 %v249, %v851
      %v853 = vpop.f32.mrb[0].mxu0
      %v854 = vadd.f32 %v249, %v853
      %v855 = vpop.f32.mrb[0].mxu0
      %v856 = vpop.f32.mrb[0].mxu0
      %857 = vdwg.mxu0
      %858 = vmatprep.subr.bf16.mxu0 %v472
      %859 = vmatpush1.bf16.msra.mxu0 %v471
      %860 = vmatprep.subr.bf16.mxu0 %v495
      %861 = vmatpush1.bf16.msra.mxu0 %v494
      %862 = vmatprep.subr.bf16.mxu0 %v618
      %863 = vmatpush1.bf16.msra.mxu0 %v615
      %864 = vmatprep.subr.bf16.mxu0 0
      %865 = vmatpush1.bf16.msra.mxu0 0
      %866 = vmatprep.subr.bf16.mxu0 0
      %867 = vmatpush1.bf16.msra.mxu0 0
      %868 = vmatprep.subr.bf16.mxu0 0
      %869 = vmatpush1.bf16.msra.mxu0 0
      %870 = vmatprep.subr.bf16.mxu0 0
      %871 = vmatpush1.bf16.msra.mxu0 0
      %872 = vmatprep.subr.bf16.mxu0 0
      %873 = vmatpush1.bf16.msra.mxu0 0
      %874 = vmatprep.subr.bf16.mxu0 0
      %875 = vmatpush1.bf16.msra.mxu0 0
      %876 = vmatprep.subr.bf16.mxu0 0
      %877 = vmatpush1.bf16.msra.mxu0 0
      %878 = vmatprep.subr.bf16.mxu0 0
      %879 = vmatpush1.bf16.msra.mxu0 0
      %880 = vmatprep.subr.bf16.mxu0 0
      %881 = vmatpush1.bf16.msra.mxu0 0
      %882 = vmatprep.subr.bf16.mxu0 0
      %883 = vmatpush1.bf16.msra.mxu0 0
      %884 = vmatprep.subr.bf16.mxu0 0
      %885 = vmatpush1.bf16.msra.mxu0 0
      %886 = vmatprep.subr.bf16.mxu0 0
      %887 = vmatpush1.bf16.msra.mxu0 0
      %888 = vmatprep.subr.bf16.mxu0 0
      %889 = vmatpush1.bf16.msra.mxu0 0
      %890 = vmatprep.mubr.bf16.mxu0 0
      %891 = vmatmul.mubr.bf16.gmra.mrb[0].mxu0 %v578
      %v892 = vpop.f32.mrb[0].mxu0
      %v893 = vadd.f32 %v249, %v892
      %v894 = vpop.f32.mrb[0].mxu0
      %v895 = vadd.f32 %v249, %v894
      %v896 = vpop.f32.mrb[0].mxu0
      %v897 = vpop.f32.mrb[0].mxu0
      %898 = vdwg.mxu0
      %899 = vmatprep.subr.bf16.mxu0 %v474
      %900 = vmatpush1.bf16.msra.mxu0 %v473
      %901 = vmatprep.subr.bf16.mxu0 %v497
      %902 = vmatpush1.bf16.msra.mxu0 %v496
      %903 = vmatprep.subr.bf16.mxu0 %v624
      %904 = vmatpush1.bf16.msra.mxu0 %v621
      %905 = vmatprep.subr.bf16.mxu0 0
      %906 = vmatpush1.bf16.msra.mxu0 0
      %907 = vmatprep.subr.bf16.mxu0 0
      %908 = vmatpush1.bf16.msra.mxu0 0
      %909 = vmatprep.subr.bf16.mxu0 0
      %910 = vmatpush1.bf16.msra.mxu0 0
      %911 = vmatprep.subr.bf16.mxu0 0
      %912 = vmatpush1.bf16.msra.mxu0 0
      %913 = vmatprep.subr.bf16.mxu0 0
      %914 = vmatpush1.bf16.msra.mxu0 0
      %915 = vmatprep.subr.bf16.mxu0 0
      %916 = vmatpush1.bf16.msra.mxu0 0
      %917 = vmatprep.subr.bf16.mxu0 0
      %918 = vmatpush1.bf16.msra.mxu0 0
      %919 = vmatprep.subr.bf16.mxu0 0
      %920 = vmatpush1.bf16.msra.mxu0 0
      %921 = vmatprep.subr.bf16.mxu0 0
      %922 = vmatpush1.bf16.msra.mxu0 0
      %923 = vmatprep.subr.bf16.mxu0 0
      %924 = vmatpush1.bf16.msra.mxu0 0
      %925 = vmatprep.subr.bf16.mxu0 0
      %926 = vmatpush1.bf16.msra.mxu0 0
      %927 = vmatprep.subr.bf16.mxu0 0
      %928 = vmatpush1.bf16.msra.mxu0 0
      %929 = vmatprep.subr.bf16.mxu0 0
      %930 = vmatpush1.bf16.msra.mxu0 0
      %931 = vmatprep.mubr.bf16.mxu0 0
      %932 = vmatmul.mubr.bf16.gmra.mrb[0].mxu0 %v578
      %v933 = vpop.f32.mrb[0].mxu0
      %v934 = vadd.f32 %v249, %v933
      %v935 = vpop.f32.mrb[0].mxu0
      %v936 = vadd.f32 %v249, %v935
      %v937 = vpop.f32.mrb[0].mxu0
      %v938 = vpop.f32.mrb[0].mxu0
      %939 = vdwg.mxu0
      %940 = vmatprep.subr.bf16.mxu0 %v476
      %941 = vmatpush1.bf16.msra.mxu0 %v475
      %942 = vmatprep.subr.bf16.mxu0 %v499
      %943 = vmatpush1.bf16.msra.mxu0 %v498
      %944 = vmatprep.subr.bf16.mxu0 %v630
      %945 = vmatpush1.bf16.msra.mxu0 %v627
      %946 = vmatprep.subr.bf16.mxu0 0
      %947 = vmatpush1.bf16.msra.mxu0 0
      %948 = vmatprep.subr.bf16.mxu0 0
      %949 = vmatpush1.bf16.msra.mxu0 0
      %950 = vmatprep.subr.bf16.mxu0 0
      %951 = vmatpush1.bf16.msra.mxu0 0
      %952 = vmatprep.subr.bf16.mxu0 0
      %953 = vmatpush1.bf16.msra.mxu0 0
      %954 = vmatprep.subr.bf16.mxu0 0
      %955 = vmatpush1.bf16.msra.mxu0 0
      %956 = vmatprep.subr.bf16.mxu0 0
      %957 = vmatpush1.bf16.msra.mxu0 0
      %958 = vmatprep.subr.bf16.mxu0 0
      %959 = vmatpush1.bf16.msra.mxu0 0
      %960 = vmatprep.subr.bf16.mxu0 0
      %961 = vmatpush1.bf16.msra.mxu0 0
      %962 = vmatprep.subr.bf16.mxu0 0
      %963 = vmatpush1.bf16.msra.mxu0 0
      %964 = vmatprep.subr.bf16.mxu0 0
      %965 = vmatpush1.bf16.msra.mxu0 0
      %966 = vmatprep.subr.bf16.mxu0 0
      %967 = vmatpush1.bf16.msra.mxu0 0
      %968 = vmatprep.subr.bf16.mxu0 0
      %969 = vmatpush1.bf16.msra.mxu0 0
      %970 = vmatprep.subr.bf16.mxu0 0
      %971 = vmatpush1.bf16.msra.mxu0 0
      %972 = vmatprep.mubr.bf16.mxu0 0
      %973 = vmatmul.mubr.bf16.gmra.mrb[0].mxu0 %v578
      %v974 = vpop.f32.mrb[0].mxu0
      %v975 = vadd.f32 %v249, %v974
      %v976 = vpop.f32.mrb[0].mxu0
      %v977 = vadd.f32 %v249, %v976
      %v978 = vpop.f32.mrb[0].mxu0
      %v979 = vpop.f32.mrb[0].mxu0
      %980 = vdwg.mxu0
      %981 = vmatprep.subr.bf16.mxu0 %v478
      %982 = vmatpush1.bf16.msra.mxu0 %v477
      %983 = vmatprep.subr.bf16.mxu0 %v501
      %984 = vmatpush1.bf16.msra.mxu0 %v500
      %985 = vmatprep.subr.bf16.mxu0 %v636
      %986 = vmatpush1.bf16.msra.mxu0 %v633
      %987 = vmatprep.subr.bf16.mxu0 0
      %988 = vmatpush1.bf16.msra.mxu0 0
      %989 = vmatprep.subr.bf16.mxu0 0
      %990 = vmatpush1.bf16.msra.mxu0 0
      %991 = vmatprep.subr.bf16.mxu0 0
      %992 = vmatpush1.bf16.msra.mxu0 0
      %993 = vmatprep.subr.bf16.mxu0 0
      %994 = vmatpush1.bf16.msra.mxu0 0
      %995 = vmatprep.subr.bf16.mxu0 0
      %996 = vmatpush1.bf16.msra.mxu0 0
      %997 = vmatprep.subr.bf16.mxu0 0
      %998 = vmatpush1.bf16.msra.mxu0 0
      %999 = vmatprep.subr.bf16.mxu0 0
      %1000 = vmatpush1.bf16.msra.mxu0 0
      %1001 = vmatprep.subr.bf16.mxu0 0
      %1002 = vmatpush1.bf16.msra.mxu0 0
      %1003 = vmatprep.subr.bf16.mxu0 0
      %1004 = vmatpush1.bf16.msra.mxu0 0
      %1005 = vmatprep.subr.bf16.mxu0 0
      %1006 = vmatpush1.bf16.msra.mxu0 0
      %1007 = vmatprep.subr.bf16.mxu0 0
      %1008 = vmatpush1.bf16.msra.mxu0 0
      %1009 = vmatprep.subr.bf16.mxu0 0
      %1010 = vmatpush1.bf16.msra.mxu0 0
      %1011 = vmatprep.subr.bf16.mxu0 0
      %1012 = vmatpush1.bf16.msra.mxu0 0
      %1013 = vmatprep.mubr.bf16.mxu0 0
      %1014 = vmatmul.mubr.bf16.gmra.mrb[0].mxu0 %v578
      %v1015 = vpop.f32.mrb[0].mxu0
      %v1016 = vadd.f32 %v249, %v1015
      %v1017 = vpop.f32.mrb[0].mxu0
      %v1018 = vadd.f32 %v249, %v1017
      %v1019 = vpop.f32.mrb[0].mxu0
      %v1020 = vpop.f32.mrb[0].mxu0
      %1021 = vdwg.mxu0
      %1022 = vmatprep.subr.bf16.mxu0 %v480
      %1023 = vmatpush1.bf16.msra.mxu0 %v479
      %1024 = vmatprep.subr.bf16.mxu0 %v503
      %1025 = vmatpush1.bf16.msra.mxu0 %v502
      %1026 = vmatprep.subr.bf16.mxu0 %v642
      %1027 = vmatpush1.bf16.msra.mxu0 %v639
      %1028 = vmatprep.subr.bf16.mxu0 0
      %1029 = vmatpush1.bf16.msra.mxu0 0
      %1030 = vmatprep.subr.bf16.mxu0 0
      %1031 = vmatpush1.bf16.msra.mxu0 0
      %1032 = vmatprep.subr.bf16.mxu0 0
      %1033 = vmatpush1.bf16.msra.mxu0 0
      %1034 = vmatprep.subr.bf16.mxu0 0
      %1035 = vmatpush1.bf16.msra.mxu0 0
      %1036 = vmatprep.subr.bf16.mxu0 0
      %1037 = vmatpush1.bf16.msra.mxu0 0
      %1038 = vmatprep.subr.bf16.mxu0 0
      %1039 = vmatpush1.bf16.msra.mxu0 0
      %1040 = vmatprep.subr.bf16.mxu0 0
      %1041 = vmatpush1.bf16.msra.mxu0 0
      %1042 = vmatprep.subr.bf16.mxu0 0
      %1043 = vmatpush1.bf16.msra.mxu0 0
      %1044 = vmatprep.subr.bf16.mxu0 0
      %1045 = vmatpush1.bf16.msra.mxu0 0
      %1046 = vmatprep.subr.bf16.mxu0 0
      %1047 = vmatpush1.bf16.msra.mxu0 0
      %1048 = vmatprep.subr.bf16.mxu0 0
      %1049 = vmatpush1.bf16.msra.mxu0 0
      %1050 = vmatprep.subr.bf16.mxu0 0
      %1051 = vmatpush1.bf16.msra.mxu0 0
      %1052 = vmatprep.subr.bf16.mxu0 0
      %1053 = vmatpush1.bf16.msra.mxu0 0
      %1054 = vmatprep.mubr.bf16.mxu0 0
      %1055 = vmatmul.mubr.bf16.gmra.mrb[0].mxu0 %v578
      %v1056 = vpop.f32.mrb[0].mxu0
      %v1057 = vadd.f32 %v249, %v1056
      %v1058 = vpop.f32.mrb[0].mxu0
      %v1059 = vadd.f32 %v249, %v1058
      %v1060 = vpop.f32.mrb[0].mxu0
      %v1061 = vpop.f32.mrb[0].mxu0
      %1062 = vdwg.mxu0
      %1063 = vmatprep.subr.bf16.mxu0 %v482
      %1064 = vmatpush1.bf16.msra.mxu0 %v481
      %1065 = vmatprep.subr.bf16.mxu0 %v505
      %1066 = vmatpush1.bf16.msra.mxu0 %v504
      %1067 = vmatprep.subr.bf16.mxu0 %v648
      %1068 = vmatpush1.bf16.msra.mxu0 %v645
      %1069 = vmatprep.subr.bf16.mxu0 0
      %1070 = vmatpush1.bf16.msra.mxu0 0
      %1071 = vmatprep.subr.bf16.mxu0 0
      %1072 = vmatpush1.bf16.msra.mxu0 0
      %1073 = vmatprep.subr.bf16.mxu0 0
      %1074 = vmatpush1.bf16.msra.mxu0 0
      %1075 = vmatprep.subr.bf16.mxu0 0
      %1076 = vmatpush1.bf16.msra.mxu0 0
      %1077 = vmatprep.subr.bf16.mxu0 0
      %1078 = vmatpush1.bf16.msra.mxu0 0
      %1079 = vmatprep.subr.bf16.mxu0 0
      %1080 = vmatpush1.bf16.msra.mxu0 0
      %1081 = vmatprep.subr.bf16.mxu0 0
      %1082 = vmatpush1.bf16.msra.mxu0 0
      %1083 = vmatprep.subr.bf16.mxu0 0
      %1084 = vmatpush1.bf16.msra.mxu0 0
      %1085 = vmatprep.subr.bf16.mxu0 0
      %1086 = vmatpush1.bf16.msra.mxu0 0
      %1087 = vmatprep.subr.bf16.mxu0 0
      %1088 = vmatpush1.bf16.msra.mxu0 0
      %1089 = vmatprep.subr.bf16.mxu0 0
      %1090 = vmatpush1.bf16.msra.mxu0 0
      %1091 = vmatprep.subr.bf16.mxu0 0
      %1092 = vmatpush1.bf16.msra.mxu0 0
      %1093 = vmatprep.subr.bf16.mxu0 0
      %1094 = vmatpush1.bf16.msra.mxu0 0
      %1095 = vmatprep.mubr.bf16.mxu0 0
      %1096 = vmatmul.mubr.bf16.gmra.mrb[0].mxu0 %v578
      %v1097 = vpop.f32.mrb[0].mxu0
      %v1098 = vadd.f32 %v249, %v1097
      %v1099 = vpop.f32.mrb[0].mxu0
      %v1100 = vadd.f32 %v249, %v1099
      %v1101 = vpop.f32.mrb[0].mxu0
      %v1102 = vpop.f32.mrb[0].mxu0
      %1103 = vdwg.mxu0
      %1104 = vmatprep.subr.bf16.mxu0 0
      %1105 = vmatpush1.bf16.msra.mxu0 %v483
      %1106 = vmatprep.subr.bf16.mxu0 0
      %1107 = vmatpush1.bf16.msra.mxu0 %v506
      %1108 = vmatprep.subr.bf16.mxu0 0
      %1109 = vmatpush1.bf16.msra.mxu0 %v651
      %1110 = vmatprep.subr.bf16.mxu0 0
      %1111 = vmatpush1.bf16.msra.mxu0 0
      %1112 = vmatprep.subr.bf16.mxu0 0
      %1113 = vmatpush1.bf16.msra.mxu0 0
      %1114 = vmatprep.subr.bf16.mxu0 0
      %1115 = vmatpush1.bf16.msra.mxu0 0
      %1116 = vmatprep.subr.bf16.mxu0 0
      %1117 = vmatpush1.bf16.msra.mxu0 0
      %1118 = vmatprep.subr.bf16.mxu0 0
      %1119 = vmatpush1.bf16.msra.mxu0 0
      %1120 = vmatprep.subr.bf16.mxu0 0
      %1121 = vmatpush1.bf16.msra.mxu0 0
      %1122 = vmatprep.subr.bf16.mxu0 0
      %1123 = vmatpush1.bf16.msra.mxu0 0
      %1124 = vmatprep.subr.bf16.mxu0 0
      %1125 = vmatpush1.bf16.msra.mxu0 0
      %1126 = vmatprep.subr.bf16.mxu0 0
      %1127 = vmatpush1.bf16.msra.mxu0 0
      %1128 = vmatprep.subr.bf16.mxu0 0
      %1129 = vmatpush1.bf16.msra.mxu0 0
      %1130 = vmatprep.subr.bf16.mxu0 0
      %1131 = vmatpush1.bf16.msra.mxu0 0
      %1132 = vmatprep.subr.bf16.mxu0 0
      %1133 = vmatpush1.bf16.msra.mxu0 0
      %1134 = vmatprep.subr.bf16.mxu0 0
      %1135 = vmatpush1.bf16.msra.mxu0 0
      %1136 = vmatprep.mubr.bf16.mxu0 0
      %1137 = vmatmul.mubr.bf16.gmra.mrb[0].mxu0 %v578
      %v1138 = vpop.f32.mrb[0].mxu0
      %v1139 = vadd.f32 %v249, %v1138
      %v1140 = vpop.f32.mrb[0].mxu0
      %v1141 = vpop.f32.mrb[0].mxu0
      %v1142 = vpop.f32.mrb[0].mxu0
      %1143 = vdwg.mxu0
      %v1144 = vmax.f32 %v688, 0.0
      %v1145 = vmax.f32 %v690, 0.0
      %v1146 = vmax.f32 %v729, 0.0
      %v1147 = vmax.f32 %v731, 0.0
      %v1148 = vmax.f32 %v770, 0.0
      %v1149 = vmax.f32 %v772, 0.0
      %v1150 = vmax.f32 %v811, 0.0
      %v1151 = vmax.f32 %v813, 0.0
      %v1152 = vmax.f32 %v852, 0.0
      %v1153 = vmax.f32 %v854, 0.0
      %v1154 = vmax.f32 %v893, 0.0
      %v1155 = vmax.f32 %v895, 0.0
      %v1156 = vmax.f32 %v934, 0.0
      %v1157 = vmax.f32 %v936, 0.0
      %v1158 = vmax.f32 %v975, 0.0
      %v1159 = vmax.f32 %v977, 0.0
      %v1160 = vmax.f32 %v1016, 0.0
      %v1161 = vmax.f32 %v1018, 0.0
      %v1162 = vmax.f32 %v1057, 0.0
      %v1163 = vmax.f32 %v1059, 0.0
      %v1164 = vmax.f32 %v1098, 0.0
      %v1165 = vmax.f32 %v1100, 0.0
      %v1166 = vmax.f32 %v1139, 0.0
      %1167 = vst [vmem:[%s170] sm:$0x7f] %v1144
      %1168 = vst [vmem:[%s170 + $0x8] sm:$0x7f] %v1145
      %1169 = vst [vmem:[%s170 + $0x10] sm:$0x7f] %v1146
      %1170 = vst [vmem:[%s170 + $0x18] sm:$0x7f] %v1147
      %1171 = vst [vmem:[%s170 + $0x20] sm:$0x7f] %v1148
      %1172 = vst [vmem:[%s170 + $0x28] sm:$0x7f] %v1149
      %1173 = vst [vmem:[%s170 + $0x30] sm:$0x7f] %v1150
      %1174 = vst [vmem:[%s170 + $0x38] sm:$0x7f] %v1151
      %1175 = vst [vmem:[%s170 + $0x40] sm:$0x7f] %v1152
      %1176 = vst [vmem:[%s170 + $0x48] sm:$0x7f] %v1153
      %1177 = vst [vmem:[%s170 + $0x50] sm:$0x7f] %v1154
      %1178 = vst [vmem:[%s170 + $0x58] sm:$0x7f] %v1155
      %1179 = vst [vmem:[%s170 + $0x60] sm:$0x7f] %v1156
      %1180 = vst [vmem:[%s170 + $0x68] sm:$0x7f] %v1157
      %1181 = vst [vmem:[%s170 + $0x70] sm:$0x7f] %v1158
      %1182 = vst [vmem:[%s170 + $0x78] sm:$0x7f] %v1159
      %1183 = vst [vmem:[%s170 + $0x80] sm:$0x7f] %v1160
      %1184 = vst [vmem:[%s170 + $0x88] sm:$0x7f] %v1161
      %1185 = vst [vmem:[%s170 + $0x90] sm:$0x7f] %v1162
      %1186 = vst [vmem:[%s170 + $0x98] sm:$0x7f] %v1163
      %1187 = vst [vmem:[%s170 + $0xa0] sm:$0x7f] %v1164
      %1188 = vst [vmem:[%s170 + $0xa8] sm:$0x7f] %v1165
      %vm1189 = vcmask 817152
      %1190 = vst.msk [vmem:[%s170 + $0xb0] sm:$0x7f] %vm1189, %v1166
      %p1191 = scmp.lt.s32.totalorder %s14, 1
      %s1192 = scalar_select %p1191, %s14, 1
      %s1193 = smul.addr %s1192, 23
      %s1194 = smul.addr %s1193, 8
      %s1195 = scalar_lea.vmem %s3, %s1194
      // Predicated region
      $region33: #{net_forward.5} parent=31 // pred_check
        %p1196 = pneg %p100
      $region34: #{net_forward.5} parent=31 // pred_check_branch
        %1198 = sbr.rel (%p1196) target = $region36
      $region35: #{net_forward.5} parent=31 // pred_region
        _
      $region36: #{net_forward.5} parent=31 // pred_fallthru
        _
    $region32: #{net_forward.5} parent=5 // pred_fallthru
      _
    %p1199 = scmp.le.s32.totalorder 2, %s9
    // Predicated region
    $region37: #{net_forward.5} parent=5 // pred_check
      %p1200 = pneg %p1199
    $region38: #{net_forward.5} parent=5 // pred_check_branch
      %1202 = sbr.rel (%p1200) target = $region40
    $region39: #{net_forward.5} parent=5 // pred_region
      %s1203 = ssub.s32 %s9, 2
      // Predicated region
      $region41: #{net_forward.5} parent=39 // pred_check
        %p1204 = pneg %p106
      $region42: #{net_forward.5} parent=39 // pred_check_branch
        %1206 = sbr.rel (%p1204) target = $region44
      $region43: #{net_forward.5} parent=39 // pred_region
        %p1207 = scmp.lt.s32.totalorder %s15, 1
        %s1208 = scalar_select %p1207, %s15, 1
        %s1209 = smul.addr %s1208, 23
        %s1210 = smul.addr %s1209, 8
        %s1211 = scalar_lea.vmem %s3, %s1210
      $region44: #{net_forward.5} parent=39 // pred_fallthru
        _
    $region40: #{net_forward.5} parent=5 // pred_fallthru
      _
  $region6: #{net_forward.5} parent=0 // loop_footer
    %s13 = sadd.s32 1, %s9
  $region7: #{net_forward.5} parent=0 // loop_footer_branch
    %8 = sbr.rel target = $region3
  $region8: #{net_forward.5} parent=0 // loop_exit
    _

// kernel: net_forward.6
$region0: #{net_forward.6}
  #allocation0 [shape = 'u32[]', space=smem, size = 0x4, offset = 0x4, fixed_abs, tag = 'smem constant byte address 0x4 - core index']
  #allocation1 [shape = 'u32[144,128]{1,0:T(1,128)}', space=vmem, size = 0x12000, scoped, tag = 'internal scratch']
  %s0 = inlined_call_operand.vmem [shape: bf16[2,63,2704], index: 0, kind: input, shape index: {}]
  %s1 = inlined_call_operand.vmem [shape: bf16[4,63], index: 1, kind: input, shape index: {}]
  %s2 = inlined_call_operand.vmem [shape: f32[4,1], index: 2, kind: input, shape index: {}]
  %s3 = inlined_call_operand.vmem [shape: f32[2,4,2704], index: 3, kind: output, shape index: {}]
  %s4 = sld [smem:[#allocation0]]
  $region45: #{net_forward.6} parent=0
    _
  %s6 = ssub.s32 1, %s4
  %s7 = scalar_select 0, %s6, %s4
  loop: start=0, step=1, limit=4
  $region2: #{net_forward.6} parent=0 // loop_pre_header
    _
  $region3: #{net_forward.6} parent=0 // loop_header
    %s9 = sphi 0, %s13
    %p10 = scmp.ge.s32.totalorder %s9, 4
    %s19 = sphi 0, %s21
    %s22 = sphi 0, %s19
    %s23 = sphi 0, %s22
    %s39 = sphi 0, %s23
    %s43 = sphi 0, %s43
    %s45 = sphi 0, %s43
    %s46 = sphi 0, %s45
    %s60 = sphi 0, %s46
    %s64 = sphi 0, %s64
    %s66 = sphi 0, %s64
    %s67 = sphi 0, %s66
    %s81 = sphi 0, %s67
    %s87 = sphi 0, %s89
    %s90 = sphi 0, %s87
    %s91 = sphi 0, %s90
    %s107 = sphi 0, %s91
  $region4: #{net_forward.6} parent=0 // loop_header_branch
    %12 = sbr.rel (%p10) target = $region8
  $region5: #{net_forward.6} parent=0 // loop_body
    %s14 = ssub.s32 %s9, 1
    %s15 = ssub.s32 %s9, 2
    %s16 = sadd.s32 %s9, 1
    %s17 = ssub.s32 %s9, %s16
    %p18 = scmp.eq.s32.totalorder %s17, 0
    %s20 = sadd.s32 %s19, 1
    %s21 = scalar_select %p18, %s19, %s20
    %p24 = pneg %p18
    %p25 = scmp.eq.s32.totalorder %s9, 1
    %p26 = por %p24, %p25
    %p27 = scmp.ne.s32.totalorder %s19, %s22
    %p28 = scmp.eq.s32.totalorder %s9, 0
    %p29 = por %p27, %p28
    %p30 = scmp.ne.s32.totalorder %s19, %s22
    %p31 = scmp.eq.s32.totalorder %s14, 1
    %p32 = por %p30, %p31
    %p33 = scmp.ne.s32.totalorder %s22, %s23
    %p34 = scmp.eq.s32.totalorder %s14, 0
    %p35 = por %p33, %p34
    %p36 = scmp.ne.s32.totalorder %s22, %s23
    %p37 = scmp.eq.s32.totalorder %s15, 1
    %p38 = por %p36, %p37
    %p40 = scmp.ne.s32.totalorder %s23, %s39
    %p41 = scmp.eq.s32.totalorder %s15, 0
    %p42 = por %p40, %p41
    %s44 = sadd.s32 %s43, 1
    %p47 = scmp.eq.s32.totalorder %s9, 1
    %p48 = scmp.ne.s32.totalorder %s43, %s45
    %p49 = scmp.eq.s32.totalorder %s9, 0
    %p50 = por %p48, %p49
    %p51 = scmp.ne.s32.totalorder %s43, %s45
    %p52 = scmp.eq.s32.totalorder %s14, 1
    %p53 = por %p51, %p52
    %p54 = scmp.ne.s32.totalorder %s45, %s46
    %p55 = scmp.eq.s32.totalorder %s14, 0
    %p56 = por %p54, %p55
    %p57 = scmp.ne.s32.totalorder %s45, %s46
    %p58 = scmp.eq.s32.totalorder %s15, 1
    %p59 = por %p57, %p58
    %p61 = scmp.ne.s32.totalorder %s46, %s60
    %p62 = scmp.eq.s32.totalorder %s15, 0
    %p63 = por %p61, %p62
    %s65 = sadd.s32 %s64, 1
    %p68 = scmp.eq.s32.totalorder %s9, 1
    %p69 = scmp.ne.s32.totalorder %s64, %s66
    %p70 = scmp.eq.s32.totalorder %s9, 0
    %p71 = por %p69, %p70
    %p72 = scmp.ne.s32.totalorder %s64, %s66
    %p73 = scmp.eq.s32.totalorder %s14, 1
    %p74 = por %p72, %p73
    %p75 = scmp.ne.s32.totalorder %s66, %s67
    %p76 = scmp.eq.s32.totalorder %s14, 0
    %p77 = por %p75, %p76
    %p78 = scmp.ne.s32.totalorder %s66, %s67
    %p79 = scmp.eq.s32.totalorder %s15, 1
    %p80 = por %p78, %p79
    %p82 = scmp.ne.s32.totalorder %s67, %s81
    %p83 = scmp.eq.s32.totalorder %s15, 0
    %p84 = por %p82, %p83
    %s85 = ssub.s32 %s9, %s16
    %p86 = scmp.eq.s32.totalorder %s85, 0
    %s88 = sadd.s32 %s87, 1
    %s89 = scalar_select %p86, %s87, %s88
    %p92 = pneg %p86
    %p93 = scmp.eq.s32.totalorder %s9, 1
    %p94 = por %p92, %p93
    %p95 = scmp.ne.s32.totalorder %s87, %s90
    %p96 = scmp.eq.s32.totalorder %s9, 0
    %p97 = por %p95, %p96
    %p98 = scmp.ne.s32.totalorder %s87, %s90
    %p99 = scmp.eq.s32.totalorder %s14, 1
    %p100 = por %p98, %p99
    %p101 = scmp.ne.s32.totalorder %s90, %s91
    %p102 = scmp.eq.s32.totalorder %s14, 0
    %p103 = por %p101, %p102
    %p104 = scmp.ne.s32.totalorder %s90, %s91
    %p105 = scmp.eq.s32.totalorder %s15, 1
    %p106 = por %p104, %p105
    %p108 = scmp.ne.s32.totalorder %s91, %s107
    %p109 = scmp.eq.s32.totalorder %s15, 0
    %p110 = por %p108, %p109
    %p111 = scmp.le.s32.totalorder 1, %s9
    %p112 = scmp.lt.s32.totalorder %s9, 3
    %p113 = pnand %p111, %p112
    %p114 = pneg %p113
    // Predicated region
    $region9: #{net_forward.6} parent=5 // pred_check
      _
    $region10: #{net_forward.6} parent=5 // pred_check_branch
      %116 = sbr.rel (%p113) target = $region12
    $region11: #{net_forward.6} parent=5 // pred_region
      %s117 = ssub.s32 %s9, 1
      // Predicated region
      $region13: #{net_forward.6} parent=11 // pred_check
        %p118 = pneg %p56
      $region14: #{net_forward.6} parent=11 // pred_check_branch
        %120 = sbr.rel (%p118) target = $region16
      $region15: #{net_forward.6} parent=11 // pred_region
        _
      $region16: #{net_forward.6} parent=11 // pred_fallthru
        _
      // Predicated region
      $region17: #{net_forward.6} parent=11 // pred_check
        %p121 = pneg %p77
      $region18: #{net_forward.6} parent=11 // pred_check_branch
        %123 = sbr.rel (%p121) target = $region20
      $region19: #{net_forward.6} parent=11 // pred_region
        _
      $region20: #{net_forward.6} parent=11 // pred_fallthru
        _
    $region12: #{net_forward.6} parent=5 // pred_fallthru
      _
    %p124 = scmp.lt.s32.totalorder %s9, 2
    // Predicated region
    $region21: #{net_forward.6} parent=5 // pred_check
      %p125 = pneg %p124
    $region22: #{net_forward.6} parent=5 // pred_check_branch
      %127 = sbr.rel (%p125) target = $region24
    $region23: #{net_forward.6} parent=5 // pred_region
      // Predicated region
      $region25: #{net_forward.6} parent=23 // pred_check
        %p128 = pneg %p29
      $region26: #{net_forward.6} parent=23 // pred_check_branch
        %130 = sbr.rel (%p128) target = $region28
      $region27: #{net_forward.6} parent=23 // pred_region
        %p131 = scmp.lt.s32.totalorder %s9, 1
        %s132 = scalar_select %p131, %s9, 1
        %s133 = smul.addr %s132, 176
        %s134 = smul.addr %s133, 4
        %s135 = scalar_lea.vmem %s0, %s134
      $region28: #{net_forward.6} parent=23 // pred_fallthru
        _
    $region24: #{net_forward.6} parent=5 // pred_fallthru
      _
    %p136 = scmp.le.s32.totalorder 1, %s9
    %p137 = scmp.lt.s32.totalorder %s9, 3
    %p138 = pnand %p136, %p137
    %p139 = pneg %p138
    // Predicated region
    $region29: #{net_forward.6} parent=5 // pred_check
      _
    $region30: #{net_forward.6} parent=5 // pred_check_branch
      %141 = sbr.rel (%p138) target = $region32
    $region31: #{net_forward.6} parent=5 // pred_region
      %s142 = ssub.s32 %s9, 1
      %p143 = scmp.lt.s32.totalorder %s14, 1
      %s144 = scalar_select %p143, %s14, 1
      %s145 = smul.addr %s144, 176
      %s146 = smul.addr %s145, 4
      %s147 = scalar_lea.vmem %s0, %s146
      %p148 = pneg %p35
      %p149 = pneg %p32
      %p150 = pneg %p56
      %p151 = pneg %p53
      %p152 = pneg %p77
      %p153 = pneg %p74
      %p154 = pneg %p103
      %p155 = pneg %p100
      %p156 = scmp.lt.s32.totalorder %s14, 1
      %s157 = scalar_select %p156, %s14, 1
      %s158 = smul.addr %s157, 22
      %s159 = smul.addr %s158, 4
      %s160 = scalar_lea.vmem %s3, %s159
      %p161 = scmp.lt.s32.totalorder %s14, 1
      %s162 = scalar_select %p161, %s14, 1
      %s163 = smul.addr %s162, 176
      %s164 = smul.addr %s163, 4
      %s165 = scalar_lea.vmem %s0, %s164
      %p166 = scmp.lt.s32.totalorder %s14, 1
      %s167 = scalar_select %p166, %s14, 1
      %s168 = smul.addr %s167, 22
      %s169 = smul.addr %s168, 4
      %s170 = scalar_lea.vmem %s3, %s169
      %v172 = vld [vmem:[%s1] sm:$0x3]
      %v173 = vld [vmem:[%s165] sm:$0xff]
      %v174 = vld [vmem:[%s165 + $0x8] sm:$0xff]
      %v175 = vld [vmem:[%s165 + $0x10] sm:$0xff]
      %v176 = vld [vmem:[%s165 + $0x18] sm:$0xff]
      %v177 = vld [vmem:[%s165 + $0x20] sm:$0xff]
      %v178 = vld [vmem:[%s165 + $0x28] sm:$0xff]
      %v179 = vld [vmem:[%s165 + $0x30] sm:$0xff]
      %v180 = vld [vmem:[%s165 + $0x38] sm:$0xff]
      %v181 = vld [vmem:[%s165 + $0x40] sm:$0xff]
      %v182 = vld [vmem:[%s165 + $0x48] sm:$0xff]
      %v183 = vld [vmem:[%s165 + $0x50] sm:$0xff]
      %v184 = vld [vmem:[%s165 + $0x58] sm:$0xff]
      %v185 = vld [vmem:[%s165 + $0x60] sm:$0xff]
      %v186 = vld [vmem:[%s165 + $0x68] sm:$0xff]
      %v187 = vld [vmem:[%s165 + $0x70] sm:$0xff]
      %v188 = vld [vmem:[%s165 + $0x78] sm:$0xff]
      %v189 = vld [vmem:[%s165 + $0x80] sm:$0xff]
      %v190 = vld [vmem:[%s165 + $0x88] sm:$0xff]
      %v191 = vld [vmem:[%s165 + $0x90] sm:$0xff]
      %v192 = vld [vmem:[%s165 + $0x98] sm:$0xff]
      %v193 = vld [vmem:[%s165 + $0xa0] sm:$0xff]
      %v194 = vld [vmem:[%s165 + $0xa8] sm:$0xff]
      %v195 = vld [vmem:[%s165 + $0xb0] sm:$0xff]
      %v196 = vld [vmem:[%s165 + $0xb8] sm:$0xff]
      %v197 = vld [vmem:[%s165 + $0xc0] sm:$0xff]
      %v198 = vld [vmem:[%s165 + $0xc8] sm:$0xff]
      %v199 = vld [vmem:[%s165 + $0xd0] sm:$0xff]
      %v200 = vld [vmem:[%s165 + $0xd8] sm:$0xff]
      %v201 = vld [vmem:[%s165 + $0xe0] sm:$0xff]
      %v202 = vld [vmem:[%s165 + $0xe8] sm:$0xff]
      %v203 = vld [vmem:[%s165 + $0xf0] sm:$0xff]
      %v204 = vld [vmem:[%s165 + $0xf8] sm:$0xff]
      %v205 = vld [vmem:[%s165 + $0x100] sm:$0xff]
      %v206 = vld [vmem:[%s165 + $0x108] sm:$0xff]
      %v207 = vld [vmem:[%s165 + $0x110] sm:$0xff]
      %v208 = vld [vmem:[%s165 + $0x118] sm:$0xff]
      %v209 = vld [vmem:[%s165 + $0x120] sm:$0xff]
      %v210 = vld [vmem:[%s165 + $0x128] sm:$0xff]
      %v211 = vld [vmem:[%s165 + $0x130] sm:$0xff]
      %v212 = vld [vmem:[%s165 + $0x138] sm:$0xff]
      %v213 = vld [vmem:[%s165 + $0x140] sm:$0xff]
      %v214 = vld [vmem:[%s165 + $0x148] sm:$0xff]
      %v215 = vld [vmem:[%s165 + $0x150] sm:$0xff]
      %v216 = vld [vmem:[%s165 + $0x158] sm:$0xff]
      %v217 = vld [vmem:[%s165 + $0x160] sm:$0xff]
      %v218 = vld [vmem:[%s165 + $0x168] sm:$0xff]
      %v219 = vld [vmem:[%s165 + $0x170] sm:$0xff]
      %v220 = vld [vmem:[%s165 + $0x178] sm:$0xff]
      %v221 = vld [vmem:[%s165 + $0x180] sm:$0xff]
      %v222 = vld [vmem:[%s165 + $0x188] sm:$0xff]
      %v223 = vld [vmem:[%s165 + $0x190] sm:$0xff]
      %v224 = vld [vmem:[%s165 + $0x198] sm:$0xff]
      %v225 = vld [vmem:[%s165 + $0x1a0] sm:$0xff]
      %v226 = vld [vmem:[%s165 + $0x1a8] sm:$0xff]
      %v227 = vld [vmem:[%s165 + $0x1b0] sm:$0xff]
      %v228 = vld [vmem:[%s165 + $0x1b8] sm:$0xff]
      %v229 = vld [vmem:[%s165 + $0x1c0] sm:$0xff]
      %v230 = vld [vmem:[%s165 + $0x1c8] sm:$0xff]
      %v231 = vld [vmem:[%s165 + $0x1d0] sm:$0xff]
      %v232 = vld [vmem:[%s165 + $0x1d8] sm:$0xff]
      %v233 = vld [vmem:[%s165 + $0x1e0] sm:$0xff]
      %v234 = vld [vmem:[%s165 + $0x1e8] sm:$0xff]
      %v235 = vld [vmem:[%s165 + $0x1f0] sm:$0xff]
      %v236 = vld [vmem:[%s165 + $0x1f8] sm:$0xff]
      %v237 = vld [vmem:[%s165 + $0x200] sm:$0xff]
      %v238 = vld [vmem:[%s165 + $0x208] sm:$0xff]
      %v239 = vld [vmem:[%s165 + $0x210] sm:$0xff]
      %v240 = vld [vmem:[%s165 + $0x218] sm:$0xff]
      %v241 = vld [vmem:[%s165 + $0x220] sm:$0xff]
      %v242 = vld [vmem:[%s165 + $0x228] sm:$0xff]
      %v243 = vld [vmem:[%s165 + $0x230] sm:$0xff]
      %v244 = vld [vmem:[%s165 + $0x238] sm:$0xff]
      %v245 = vld [vmem:[%s165 + $0x240] sm:$0xff]
      %v246 = vld [vmem:[%s165 + $0x248] sm:$0xff]
      %v247 = vld [vmem:[%s165 + $0x250] sm:$0xff]
      %v248 = vld [vmem:[%s165 + $0x258] sm:$0xff]
      %v249 = vld [vmem:[%s165 + $0x260] sm:$0xff]
      %v250 = vld [vmem:[%s165 + $0x268] sm:$0xff]
      %v251 = vld [vmem:[%s165 + $0x270] sm:$0xff]
      %v252 = vld [vmem:[%s165 + $0x278] sm:$0xff]
      %v253 = vld [vmem:[%s165 + $0x280] sm:$0xff]
      %v254 = vld [vmem:[%s165 + $0x288] sm:$0xff]
      %v255 = vld [vmem:[%s165 + $0x290] sm:$0xff]
      %v256 = vld [vmem:[%s165 + $0x298] sm:$0xff]
      %v257 = vld [vmem:[%s165 + $0x2a0] sm:$0xff]
      %v258 = vld [vmem:[%s165 + $0x2a8] sm:$0xff]
      %v259 = vld [vmem:[%s165 + $0x2b0] sm:$0xff]
      %v260 = vld [vmem:[%s165 + $0x2b8] sm:$0xff]
      %v261 = vld [vmem:[%s2] sm:$0xf]
      %263 = vset.pattern.permute.xlu0 0
      %264 = vperm.xlu0 %263, %v261
      %v265 = vpop.permute.xlu0 %264
      %v355 = vunpack.c.l.b16 %v173
      %v356 = vunpack.c.h.b16 %v173
      %v357 = vunpack.c.l.b16 %v174
      %v358 = vunpack.c.h.b16 %v174
      %v359 = vunpack.c.l.b16 %v175
      %v360 = vunpack.c.h.b16 %v175
      %v361 = vunpack.c.l.b16 %v176
      %v362 = vunpack.c.h.b16 %v176
      %v363 = vunpack.c.l.b16 %v177
      %v364 = vunpack.c.h.b16 %v177
      %v365 = vunpack.c.l.b16 %v178
      %v366 = vunpack.c.h.b16 %v178
      %v367 = vunpack.c.l.b16 %v179
      %v368 = vunpack.c.h.b16 %v179
      %v369 = vunpack.c.l.b16 %v180
      %v370 = vunpack.c.h.b16 %v180
      %v371 = vunpack.c.l.b16 %v181
      %v372 = vunpack.c.h.b16 %v181
      %v373 = vunpack.c.l.b16 %v182
      %v374 = vunpack.c.h.b16 %v182
      %v375 = vunpack.c.l.b16 %v183
      %v376 = vunpack.c.h.b16 %v183
      %v377 = vunpack.c.l.b16 %v184
      %v378 = vunpack.c.h.b16 %v184
      %v379 = vunpack.c.l.b16 %v185
      %v380 = vunpack.c.h.b16 %v185
      %v381 = vunpack.c.l.b16 %v186
      %v382 = vunpack.c.h.b16 %v186
      %v383 = vunpack.c.l.b16 %v187
      %v384 = vunpack.c.h.b16 %v187
      %v385 = vunpack.c.l.b16 %v188
      %v386 = vunpack.c.h.b16 %v188
      %v387 = vunpack.c.l.b16 %v189
      %v388 = vunpack.c.h.b16 %v189
      %v389 = vunpack.c.l.b16 %v190
      %v390 = vunpack.c.h.b16 %v190
      %v391 = vunpack.c.l.b16 %v191
      %v392 = vunpack.c.h.b16 %v191
      %v393 = vunpack.c.l.b16 %v192
      %v394 = vunpack.c.h.b16 %v192
      %v395 = vunpack.c.l.b16 %v193
      %v396 = vunpack.c.h.b16 %v193
      %v397 = vunpack.c.l.b16 %v194
      %v398 = vunpack.c.h.b16 %v194
      %v399 = vunpack.c.l.b16 %v195
      %v400 = vunpack.c.h.b16 %v195
      %v401 = vunpack.c.l.b16 %v196
      %v402 = vunpack.c.h.b16 %v196
      %v403 = vunpack.c.l.b16 %v197
      %v404 = vunpack.c.h.b16 %v197
      %v405 = vunpack.c.l.b16 %v198
      %v406 = vunpack.c.h.b16 %v198
      %v407 = vunpack.c.l.b16 %v199
      %v408 = vunpack.c.h.b16 %v199
      %v409 = vunpack.c.l.b16 %v200
      %v410 = vunpack.c.h.b16 %v200
      %v411 = vunpack.c.l.b16 %v201
      %v412 = vunpack.c.h.b16 %v201
      %v413 = vunpack.c.l.b16 %v202
      %v414 = vunpack.c.h.b16 %v202
      %v415 = vunpack.c.l.b16 %v203
      %v416 = vunpack.c.h.b16 %v203
      %v417 = vunpack.c.l.b16 %v204
      %v418 = vunpack.c.h.b16 %v204
      %v419 = vunpack.c.l.b16 %v205
      %v420 = vunpack.c.h.b16 %v205
      %v421 = vunpack.c.l.b16 %v206
      %v422 = vunpack.c.h.b16 %v206
      %v423 = vunpack.c.l.b16 %v207
      %v424 = vunpack.c.h.b16 %v207
      %v425 = vunpack.c.l.b16 %v208
      %v426 = vunpack.c.h.b16 %v208
      %v427 = vunpack.c.l.b16 %v209
      %v428 = vunpack.c.h.b16 %v209
      %v429 = vunpack.c.l.b16 %v210
      %v430 = vunpack.c.h.b16 %v210
      %v431 = vunpack.c.l.b16 %v211
      %v432 = vunpack.c.h.b16 %v211
      %v433 = vunpack.c.l.b16 %v212
      %v434 = vunpack.c.h.b16 %v212
      %v435 = vunpack.c.l.b16 %v213
      %v436 = vunpack.c.h.b16 %v213
      %v437 = vunpack.c.l.b16 %v214
      %v438 = vunpack.c.h.b16 %v214
      %v439 = vunpack.c.l.b16 %v215
      %v440 = vunpack.c.h.b16 %v215
      %v441 = vunpack.c.l.b16 %v216
      %v442 = vunpack.c.h.b16 %v216
      %v443 = vunpack.c.l.b16 %v217
      %v444 = vunpack.c.h.b16 %v217
      %v445 = vunpack.c.l.b16 %v218
      %v446 = vunpack.c.h.b16 %v218
      %v447 = vunpack.c.l.b16 %v219
      %v448 = vunpack.c.h.b16 %v219
      %v449 = vunpack.c.l.b16 %v220
      %v450 = vunpack.c.h.b16 %v220
      %v451 = vunpack.c.l.b16 %v221
      %v452 = vunpack.c.h.b16 %v221
      %v453 = vunpack.c.l.b16 %v222
      %v454 = vunpack.c.h.b16 %v222
      %v455 = vunpack.c.l.b16 %v223
      %v456 = vunpack.c.h.b16 %v223
      %v457 = vunpack.c.l.b16 %v224
      %v458 = vunpack.c.h.b16 %v224
      %v459 = vunpack.c.l.b16 %v225
      %v460 = vunpack.c.h.b16 %v225
      %v461 = vunpack.c.l.b16 %v226
      %v462 = vunpack.c.h.b16 %v226
      %v463 = vunpack.c.l.b16 %v227
      %v464 = vunpack.c.h.b16 %v227
      %v465 = vunpack.c.l.b16 %v228
      %v466 = vunpack.c.h.b16 %v228
      %v467 = vunpack.c.l.b16 %v229
      %v468 = vunpack.c.h.b16 %v229
      %v469 = vunpack.c.l.b16 %v230
      %v470 = vunpack.c.h.b16 %v230
      %v471 = vunpack.c.l.b16 %v231
      %v472 = vunpack.c.h.b16 %v231
      %v473 = vunpack.c.l.b16 %v232
      %v474 = vunpack.c.h.b16 %v232
      %v475 = vunpack.c.l.b16 %v233
      %v476 = vunpack.c.h.b16 %v233
      %v477 = vunpack.c.l.b16 %v234
      %v478 = vunpack.c.h.b16 %v234
      %v479 = vunpack.c.l.b16 %v235
      %v480 = vunpack.c.h.b16 %v235
      %v481 = vunpack.c.l.b16 %v236
      %v482 = vunpack.c.h.b16 %v236
      %v483 = vunpack.c.l.b16 %v237
      %v484 = vunpack.c.h.b16 %v237
      %v485 = vunpack.c.l.b16 %v238
      %v486 = vunpack.c.h.b16 %v238
      %v487 = vunpack.c.l.b16 %v239
      %v488 = vunpack.c.h.b16 %v239
      %v489 = vunpack.c.l.b16 %v240
      %v490 = vunpack.c.h.b16 %v240
      %v491 = vunpack.c.l.b16 %v241
      %v492 = vunpack.c.h.b16 %v241
      %v493 = vunpack.c.l.b16 %v242
      %v494 = vunpack.c.h.b16 %v242
      %v495 = vunpack.c.l.b16 %v243
      %v496 = vunpack.c.h.b16 %v243
      %v497 = vunpack.c.l.b16 %v244
      %v498 = vunpack.c.h.b16 %v244
      %v499 = vunpack.c.l.b16 %v245
      %v500 = vunpack.c.h.b16 %v245
      %v501 = vunpack.c.l.b16 %v246
      %v502 = vunpack.c.h.b16 %v246
      %v503 = vunpack.c.l.b16 %v247
      %v504 = vunpack.c.h.b16 %v247
      %v505 = vunpack.c.l.b16 %v248
      %v506 = vunpack.c.h.b16 %v248
      %v507 = vunpack.c.l.b16 %v249
      %v508 = vunpack.c.h.b16 %v249
      %v509 = vunpack.c.l.b16 %v250
      %v510 = vunpack.c.h.b16 %v250
      %v511 = vunpack.c.l.b16 %v251
      %v512 = vunpack.c.h.b16 %v251
      %v513 = vunpack.c.l.b16 %v252
      %v514 = vunpack.c.h.b16 %v252
      %v515 = vunpack.c.l.b16 %v253
      %v516 = vunpack.c.h.b16 %v253
      %v517 = vunpack.c.l.b16 %v254
      %v518 = vunpack.c.h.b16 %v254
      %v519 = vunpack.c.l.b16 %v255
      %v520 = vunpack.c.h.b16 %v255
      %v521 = vunpack.c.l.b16 %v256
      %v522 = vunpack.c.h.b16 %v256
      %v523 = vunpack.c.l.b16 %v257
      %v524 = vunpack.c.h.b16 %v257
      %v525 = vunpack.c.l.b16 %v258
      %v526 = vunpack.c.h.b16 %v258
      %v527 = vunpack.c.l.b16 %v259
      %v528 = vunpack.c.h.b16 %v259
      %v529 = vunpack.c.l.b16 %v260
      %v530 = vunpack.c.h.b16 %v260
      %v531 = vpack.c.b16 %v377, %v355
      %v532 = vpack.c.b16 %v378, %v356
      %v533 = vpack.c.b16 %v379, %v357
      %v534 = vpack.c.b16 %v380, %v358
      %v535 = vpack.c.b16 %v381, %v359
      %v536 = vpack.c.b16 %v382, %v360
      %v537 = vpack.c.b16 %v383, %v361
      %v538 = vpack.c.b16 %v384, %v362
      %v539 = vpack.c.b16 %v385, %v363
      %v540 = vpack.c.b16 %v386, %v364
      %v541 = vpack.c.b16 %v387, %v365
      %v542 = vpack.c.b16 %v388, %v366
      %v543 = vpack.c.b16 %v389, %v367
      %v544 = vpack.c.b16 %v390, %v368
      %v545 = vpack.c.b16 %v391, %v369
      %v546 = vpack.c.b16 %v392, %v370
      %v547 = vpack.c.b16 %v393, %v371
      %v548 = vpack.c.b16 %v394, %v372
      %v549 = vpack.c.b16 %v395, %v373
      %v550 = vpack.c.b16 %v396, %v374
      %v551 = vpack.c.b16 %v397, %v375
      %v552 = vpack.c.b16 %v398, %v376
      %v553 = vpack.c.b16 %v421, %v399
      %v554 = vpack.c.b16 %v422, %v400
      %v555 = vpack.c.b16 %v423, %v401
      %v556 = vpack.c.b16 %v424, %v402
      %v557 = vpack.c.b16 %v425, %v403
      %v558 = vpack.c.b16 %v426, %v404
      %v559 = vpack.c.b16 %v427, %v405
      %v560 = vpack.c.b16 %v428, %v406
      %v561 = vpack.c.b16 %v429, %v407
      %v562 = vpack.c.b16 %v430, %v408
      %v563 = vpack.c.b16 %v431, %v409
      %v564 = vpack.c.b16 %v432, %v410
      %v565 = vpack.c.b16 %v433, %v411
      %v566 = vpack.c.b16 %v434, %v412
      %v567 = vpack.c.b16 %v435, %v413
      %v568 = vpack.c.b16 %v436, %v414
      %v569 = vpack.c.b16 %v437, %v415
      %v570 = vpack.c.b16 %v438, %v416
      %v571 = vpack.c.b16 %v439, %v417
      %v572 = vpack.c.b16 %v440, %v418
      %v573 = vpack.c.b16 %v441, %v419
      %v574 = vpack.c.b16 %v442, %v420
      %v575 = vpack.c.b16 %v465, %v443
      %v576 = vpack.c.b16 %v466, %v444
      %v577 = vpack.c.b16 %v467, %v445
      %v578 = vpack.c.b16 %v468, %v446
      %v579 = vpack.c.b16 %v469, %v447
      %v580 = vpack.c.b16 %v470, %v448
      %v581 = vpack.c.b16 %v471, %v449
      %v582 = vpack.c.b16 %v472, %v450
      %v583 = vpack.c.b16 %v473, %v451
      %v584 = vpack.c.b16 %v474, %v452
      %v585 = vpack.c.b16 %v475, %v453
      %v586 = vpack.c.b16 %v476, %v454
      %v587 = vpack.c.b16 %v477, %v455
      %v588 = vpack.c.b16 %v478, %v456
      %v589 = vpack.c.b16 %v479, %v457
      %v590 = vpack.c.b16 %v480, %v458
      %v591 = vpack.c.b16 %v481, %v459
      %v592 = vpack.c.b16 %v482, %v460
      %v593 = vpack.c.b16 %v483, %v461
      %v594 = vpack.c.b16 %v484, %v462
      %v595 = vpack.c.b16 %v485, %v463
      %v596 = vpack.c.b16 %v486, %v464
      %v597 = vpack.c.b16 %v509, %v487
      %v598 = vpack.c.b16 %v510, %v488
      %v599 = vpack.c.b16 %v511, %v489
      %v600 = vpack.c.b16 %v512, %v490
      %v601 = vpack.c.b16 %v513, %v491
      %v602 = vpack.c.b16 %v514, %v492
      %v603 = vpack.c.b16 %v515, %v493
      %v604 = vpack.c.b16 %v516, %v494
      %v605 = vpack.c.b16 %v517, %v495
      %v606 = vpack.c.b16 %v518, %v496
      %v607 = vpack.c.b16 %v519, %v497
      %v608 = vpack.c.b16 %v520, %v498
      %v609 = vpack.c.b16 %v521, %v499
      %v610 = vpack.c.b16 %v522, %v500
      %v611 = vpack.c.b16 %v523, %v501
      %v612 = vpack.c.b16 %v524, %v502
      %v613 = vpack.c.b16 %v525, %v503
      %v614 = vpack.c.b16 %v526, %v504
      %v615 = vpack.c.b16 %v527, %v505
      %v616 = vpack.c.b16 %v528, %v506
      %v617 = vpack.c.b16 %v529, %v507
      %v618 = vpack.c.b16 %v530, %v508
      %vm685 = vcmask 515072
      %v687 = vsel %vm685, %v172, 0
      %vm689 = vcmask 1046528
      %vm690 = vcmask 1047552
      %v691 = vsel %vm689, 4294967295, 65535
      %v692 = vsel %vm690, %v691, 0
      %v694 = vand.u32 %v597, %v692
      %v697 = vand.u32 %v598, %v692
      %v700 = vand.u32 %v599, %v692
      %v703 = vand.u32 %v600, %v692
      %v706 = vand.u32 %v601, %v692
      %v709 = vand.u32 %v602, %v692
      %v712 = vand.u32 %v603, %v692
      %v715 = vand.u32 %v604, %v692
      %v718 = vand.u32 %v605, %v692
      %v721 = vand.u32 %v606, %v692
      %v724 = vand.u32 %v607, %v692
      %v727 = vand.u32 %v608, %v692
      %v730 = vand.u32 %v609, %v692
      %v733 = vand.u32 %v610, %v692
      %v736 = vand.u32 %v611, %v692
      %v739 = vand.u32 %v612, %v692
      %v742 = vand.u32 %v613, %v692
      %v745 = vand.u32 %v614, %v692
      %v748 = vand.u32 %v615, %v692
      %v751 = vand.u32 %v616, %v692
      %v754 = vand.u32 %v617, %v692
      %v757 = vand.u32 %v618, %v692
      %759 = vmatprep.subr.bf16.mxu0 %v532
      %760 = vmatpush1.bf16.msra.mxu0 %v531
      %761 = vmatprep.subr.bf16.mxu0 %v554
      %762 = vmatpush1.bf16.msra.mxu0 %v553
      %763 = vmatprep.subr.bf16.mxu0 %v576
      %764 = vmatpush1.bf16.msra.mxu0 %v575
      %765 = vmatprep.subr.bf16.mxu0 %v697
      %766 = vmatpush1.bf16.msra.mxu0 %v694
      %767 = vmatprep.subr.bf16.mxu0 0
      %768 = vmatpush1.bf16.msra.mxu0 0
      %769 = vmatprep.subr.bf16.mxu0 0
      %770 = vmatpush1.bf16.msra.mxu0 0
      %771 = vmatprep.subr.bf16.mxu0 0
      %772 = vmatpush1.bf16.msra.mxu0 0
      %773 = vmatprep.subr.bf16.mxu0 0
      %774 = vmatpush1.bf16.msra.mxu0 0
      %775 = vmatprep.subr.bf16.mxu0 0
      %776 = vmatpush1.bf16.msra.mxu0 0
      %777 = vmatprep.subr.bf16.mxu0 0
      %778 = vmatpush1.bf16.msra.mxu0 0
      %779 = vmatprep.subr.bf16.mxu0 0
      %780 = vmatpush1.bf16.msra.mxu0 0
      %781 = vmatprep.subr.bf16.mxu0 0
      %782 = vmatpush1.bf16.msra.mxu0 0
      %783 = vmatprep.subr.bf16.mxu0 0
      %784 = vmatpush1.bf16.msra.mxu0 0
      %785 = vmatprep.subr.bf16.mxu0 0
      %786 = vmatpush1.bf16.msra.mxu0 0
      %787 = vmatprep.subr.bf16.mxu0 0
      %788 = vmatpush1.bf16.msra.mxu0 0
      %789 = vmatprep.subr.bf16.mxu0 0
      %790 = vmatpush1.bf16.msra.mxu0 0
      %791 = vmatprep.mubr.bf16.mxu0 0
      %792 = vmatmul.mubr.bf16.gmra.mrb[0].mxu0 %v687
      %v793 = vpop.f32.mrb[0].mxu0
      %v794 = vadd.f32 %v265, %v793
      %v795 = vpop.f32.mrb[0].mxu0
      %v796 = vadd.f32 %v265, %v795
      %v797 = vpop.f32.mrb[0].mxu0
      %v798 = vpop.f32.mrb[0].mxu0
      %799 = vdwg.mxu0
      %800 = vmatprep.subr.bf16.mxu0 %v534
      %801 = vmatpush1.bf16.msra.mxu0 %v533
      %802 = vmatprep.subr.bf16.mxu0 %v556
      %803 = vmatpush1.bf16.msra.mxu0 %v555
      %804 = vmatprep.subr.bf16.mxu0 %v578
      %805 = vmatpush1.bf16.msra.mxu0 %v577
      %806 = vmatprep.subr.bf16.mxu0 %v703
      %807 = vmatpush1.bf16.msra.mxu0 %v700
      %808 = vmatprep.subr.bf16.mxu0 0
      %809 = vmatpush1.bf16.msra.mxu0 0
      %810 = vmatprep.subr.bf16.mxu0 0
      %811 = vmatpush1.bf16.msra.mxu0 0
      %812 = vmatprep.subr.bf16.mxu0 0
      %813 = vmatpush1.bf16.msra.mxu0 0
      %814 = vmatprep.subr.bf16.mxu0 0
      %815 = vmatpush1.bf16.msra.mxu0 0
      %816 = vmatprep.subr.bf16.mxu0 0
      %817 = vmatpush1.bf16.msra.mxu0 0
      %818 = vmatprep.subr.bf16.mxu0 0
      %819 = vmatpush1.bf16.msra.mxu0 0
      %820 = vmatprep.subr.bf16.mxu0 0
      %821 = vmatpush1.bf16.msra.mxu0 0
      %822 = vmatprep.subr.bf16.mxu0 0
      %823 = vmatpush1.bf16.msra.mxu0 0
      %824 = vmatprep.subr.bf16.mxu0 0
      %825 = vmatpush1.bf16.msra.mxu0 0
      %826 = vmatprep.subr.bf16.mxu0 0
      %827 = vmatpush1.bf16.msra.mxu0 0
      %828 = vmatprep.subr.bf16.mxu0 0
      %829 = vmatpush1.bf16.msra.mxu0 0
      %830 = vmatprep.subr.bf16.mxu0 0
      %831 = vmatpush1.bf16.msra.mxu0 0
      %832 = vmatprep.mubr.bf16.mxu0 0
      %833 = vmatmul.mubr.bf16.gmra.mrb[0].mxu0 %v687
      %v834 = vpop.f32.mrb[0].mxu0
      %v835 = vadd.f32 %v265, %v834
      %v836 = vpop.f32.mrb[0].mxu0
      %v837 = vadd.f32 %v265, %v836
      %v838 = vpop.f32.mrb[0].mxu0
      %v839 = vpop.f32.mrb[0].mxu0
      %840 = vdwg.mxu0
      %841 = vmatprep.subr.bf16.mxu0 %v536
      %842 = vmatpush1.bf16.msra.mxu0 %v535
      %843 = vmatprep.subr.bf16.mxu0 %v558
      %844 = vmatpush1.bf16.msra.mxu0 %v557
      %845 = vmatprep.subr.bf16.mxu0 %v580
      %846 = vmatpush1.bf16.msra.mxu0 %v579
      %847 = vmatprep.subr.bf16.mxu0 %v709
      %848 = vmatpush1.bf16.msra.mxu0 %v706
      %849 = vmatprep.subr.bf16.mxu0 0
      %850 = vmatpush1.bf16.msra.mxu0 0
      %851 = vmatprep.subr.bf16.mxu0 0
      %852 = vmatpush1.bf16.msra.mxu0 0
      %853 = vmatprep.subr.bf16.mxu0 0
      %854 = vmatpush1.bf16.msra.mxu0 0
      %855 = vmatprep.subr.bf16.mxu0 0
      %856 = vmatpush1.bf16.msra.mxu0 0
      %857 = vmatprep.subr.bf16.mxu0 0
      %858 = vmatpush1.bf16.msra.mxu0 0
      %859 = vmatprep.subr.bf16.mxu0 0
      %860 = vmatpush1.bf16.msra.mxu0 0
      %861 = vmatprep.subr.bf16.mxu0 0
      %862 = vmatpush1.bf16.msra.mxu0 0
      %863 = vmatprep.subr.bf16.mxu0 0
      %864 = vmatpush1.bf16.msra.mxu0 0
      %865 = vmatprep.subr.bf16.mxu0 0
      %866 = vmatpush1.bf16.msra.mxu0 0
      %867 = vmatprep.subr.bf16.mxu0 0
      %868 = vmatpush1.bf16.msra.mxu0 0
      %869 = vmatprep.subr.bf16.mxu0 0
      %870 = vmatpush1.bf16.msra.mxu0 0
      %871 = vmatprep.subr.bf16.mxu0 0
      %872 = vmatpush1.bf16.msra.mxu0 0
      %873 = vmatprep.mubr.bf16.mxu0 0
      %874 = vmatmul.mubr.bf16.gmra.mrb[0].mxu0 %v687
      %v875 = vpop.f32.mrb[0].mxu0
      %v876 = vadd.f32 %v265, %v875
      %v877 = vpop.f32.mrb[0].mxu0
      %v878 = vadd.f32 %v265, %v877
      %v879 = vpop.f32.mrb[0].mxu0
      %v880 = vpop.f32.mrb[0].mxu0
      %881 = vdwg.mxu0
      %882 = vmatprep.subr.bf16.mxu0 %v538
      %883 = vmatpush1.bf16.msra.mxu0 %v537
      %884 = vmatprep.subr.bf16.mxu0 %v560
      %885 = vmatpush1.bf16.msra.mxu0 %v559
      %886 = vmatprep.subr.bf16.mxu0 %v582
      %887 = vmatpush1.bf16.msra.mxu0 %v581
      %888 = vmatprep.subr.bf16.mxu0 %v715
      %889 = vmatpush1.bf16.msra.mxu0 %v712
      %890 = vmatprep.subr.bf16.mxu0 0
      %891 = vmatpush1.bf16.msra.mxu0 0
      %892 = vmatprep.subr.bf16.mxu0 0
      %893 = vmatpush1.bf16.msra.mxu0 0
      %894 = vmatprep.subr.bf16.mxu0 0
      %895 = vmatpush1.bf16.msra.mxu0 0
      %896 = vmatprep.subr.bf16.mxu0 0
      %897 = vmatpush1.bf16.msra.mxu0 0
      %898 = vmatprep.subr.bf16.mxu0 0
      %899 = vmatpush1.bf16.msra.mxu0 0
      %900 = vmatprep.subr.bf16.mxu0 0
      %901 = vmatpush1.bf16.msra.mxu0 0
      %902 = vmatprep.subr.bf16.mxu0 0
      %903 = vmatpush1.bf16.msra.mxu0 0
      %904 = vmatprep.subr.bf16.mxu0 0
      %905 = vmatpush1.bf16.msra.mxu0 0
      %906 = vmatprep.subr.bf16.mxu0 0
      %907 = vmatpush1.bf16.msra.mxu0 0
      %908 = vmatprep.subr.bf16.mxu0 0
      %909 = vmatpush1.bf16.msra.mxu0 0
      %910 = vmatprep.subr.bf16.mxu0 0
      %911 = vmatpush1.bf16.msra.mxu0 0
      %912 = vmatprep.subr.bf16.mxu0 0
      %913 = vmatpush1.bf16.msra.mxu0 0
      %914 = vmatprep.mubr.bf16.mxu0 0
      %915 = vmatmul.mubr.bf16.gmra.mrb[0].mxu0 %v687
      %v916 = vpop.f32.mrb[0].mxu0
      %v917 = vadd.f32 %v265, %v916
      %v918 = vpop.f32.mrb[0].mxu0
      %v919 = vadd.f32 %v265, %v918
      %v920 = vpop.f32.mrb[0].mxu0
      %v921 = vpop.f32.mrb[0].mxu0
      %922 = vdwg.mxu0
      %923 = vmatprep.subr.bf16.mxu0 %v540
      %924 = vmatpush1.bf16.msra.mxu0 %v539
      %925 = vmatprep.subr.bf16.mxu0 %v562
      %926 = vmatpush1.bf16.msra.mxu0 %v561
      %927 = vmatprep.subr.bf16.mxu0 %v584
      %928 = vmatpush1.bf16.msra.mxu0 %v583
      %929 = vmatprep.subr.bf16.mxu0 %v721
      %930 = vmatpush1.bf16.msra.mxu0 %v718
      %931 = vmatprep.subr.bf16.mxu0 0
      %932 = vmatpush1.bf16.msra.mxu0 0
      %933 = vmatprep.subr.bf16.mxu0 0
      %934 = vmatpush1.bf16.msra.mxu0 0
      %935 = vmatprep.subr.bf16.mxu0 0
      %936 = vmatpush1.bf16.msra.mxu0 0
      %937 = vmatprep.subr.bf16.mxu0 0
      %938 = vmatpush1.bf16.msra.mxu0 0
      %939 = vmatprep.subr.bf16.mxu0 0
      %940 = vmatpush1.bf16.msra.mxu0 0
      %941 = vmatprep.subr.bf16.mxu0 0
      %942 = vmatpush1.bf16.msra.mxu0 0
      %943 = vmatprep.subr.bf16.mxu0 0
      %944 = vmatpush1.bf16.msra.mxu0 0
      %945 = vmatprep.subr.bf16.mxu0 0
      %946 = vmatpush1.bf16.msra.mxu0 0
      %947 = vmatprep.subr.bf16.mxu0 0
      %948 = vmatpush1.bf16.msra.mxu0 0
      %949 = vmatprep.subr.bf16.mxu0 0
      %950 = vmatpush1.bf16.msra.mxu0 0
      %951 = vmatprep.subr.bf16.mxu0 0
      %952 = vmatpush1.bf16.msra.mxu0 0
      %953 = vmatprep.subr.bf16.mxu0 0
      %954 = vmatpush1.bf16.msra.mxu0 0
      %955 = vmatprep.mubr.bf16.mxu0 0
      %956 = vmatmul.mubr.bf16.gmra.mrb[0].mxu0 %v687
      %v957 = vpop.f32.mrb[0].mxu0
      %v958 = vadd.f32 %v265, %v957
      %v959 = vpop.f32.mrb[0].mxu0
      %v960 = vadd.f32 %v265, %v959
      %v961 = vpop.f32.mrb[0].mxu0
      %v962 = vpop.f32.mrb[0].mxu0
      %963 = vdwg.mxu0
      %964 = vmatprep.subr.bf16.mxu0 %v542
      %965 = vmatpush1.bf16.msra.mxu0 %v541
      %966 = vmatprep.subr.bf16.mxu0 %v564
      %967 = vmatpush1.bf16.msra.mxu0 %v563
      %968 = vmatprep.subr.bf16.mxu0 %v586
      %969 = vmatpush1.bf16.msra.mxu0 %v585
      %970 = vmatprep.subr.bf16.mxu0 %v727
      %971 = vmatpush1.bf16.msra.mxu0 %v724
      %972 = vmatprep.subr.bf16.mxu0 0
      %973 = vmatpush1.bf16.msra.mxu0 0
      %974 = vmatprep.subr.bf16.mxu0 0
      %975 = vmatpush1.bf16.msra.mxu0 0
      %976 = vmatprep.subr.bf16.mxu0 0
      %977 = vmatpush1.bf16.msra.mxu0 0
      %978 = vmatprep.subr.bf16.mxu0 0
      %979 = vmatpush1.bf16.msra.mxu0 0
      %980 = vmatprep.subr.bf16.mxu0 0
      %981 = vmatpush1.bf16.msra.mxu0 0
      %982 = vmatprep.subr.bf16.mxu0 0
      %983 = vmatpush1.bf16.msra.mxu0 0
      %984 = vmatprep.subr.bf16.mxu0 0
      %985 = vmatpush1.bf16.msra.mxu0 0
      %986 = vmatprep.subr.bf16.mxu0 0
      %987 = vmatpush1.bf16.msra.mxu0 0
      %988 = vmatprep.subr.bf16.mxu0 0
      %989 = vmatpush1.bf16.msra.mxu0 0
      %990 = vmatprep.subr.bf16.mxu0 0
      %991 = vmatpush1.bf16.msra.mxu0 0
      %992 = vmatprep.subr.bf16.mxu0 0
      %993 = vmatpush1.bf16.msra.mxu0 0
      %994 = vmatprep.subr.bf16.mxu0 0
      %995 = vmatpush1.bf16.msra.mxu0 0
      %996 = vmatprep.mubr.bf16.mxu0 0
      %997 = vmatmul.mubr.bf16.gmra.mrb[0].mxu0 %v687
      %v998 = vpop.f32.mrb[0].mxu0
      %v999 = vadd.f32 %v265, %v998
      %v1000 = vpop.f32.mrb[0].mxu0
      %v1001 = vadd.f32 %v265, %v1000
      %v1002 = vpop.f32.mrb[0].mxu0
      %v1003 = vpop.f32.mrb[0].mxu0
      %1004 = vdwg.mxu0
      %1005 = vmatprep.subr.bf16.mxu0 %v544
      %1006 = vmatpush1.bf16.msra.mxu0 %v543
      %1007 = vmatprep.subr.bf16.mxu0 %v566
      %1008 = vmatpush1.bf16.msra.mxu0 %v565
      %1009 = vmatprep.subr.bf16.mxu0 %v588
      %1010 = vmatpush1.bf16.msra.mxu0 %v587
      %1011 = vmatprep.subr.bf16.mxu0 %v733
      %1012 = vmatpush1.bf16.msra.mxu0 %v730
      %1013 = vmatprep.subr.bf16.mxu0 0
      %1014 = vmatpush1.bf16.msra.mxu0 0
      %1015 = vmatprep.subr.bf16.mxu0 0
      %1016 = vmatpush1.bf16.msra.mxu0 0
      %1017 = vmatprep.subr.bf16.mxu0 0
      %1018 = vmatpush1.bf16.msra.mxu0 0
      %1019 = vmatprep.subr.bf16.mxu0 0
      %1020 = vmatpush1.bf16.msra.mxu0 0
      %1021 = vmatprep.subr.bf16.mxu0 0
      %1022 = vmatpush1.bf16.msra.mxu0 0
      %1023 = vmatprep.subr.bf16.mxu0 0
      %1024 = vmatpush1.bf16.msra.mxu0 0
      %1025 = vmatprep.subr.bf16.mxu0 0
      %1026 = vmatpush1.bf16.msra.mxu0 0
      %1027 = vmatprep.subr.bf16.mxu0 0
      %1028 = vmatpush1.bf16.msra.mxu0 0
      %1029 = vmatprep.subr.bf16.mxu0 0
      %1030 = vmatpush1.bf16.msra.mxu0 0
      %1031 = vmatprep.subr.bf16.mxu0 0
      %1032 = vmatpush1.bf16.msra.mxu0 0
      %1033 = vmatprep.subr.bf16.mxu0 0
      %1034 = vmatpush1.bf16.msra.mxu0 0
      %1035 = vmatprep.subr.bf16.mxu0 0
      %1036 = vmatpush1.bf16.msra.mxu0 0
      %1037 = vmatprep.mubr.bf16.mxu0 0
      %1038 = vmatmul.mubr.bf16.gmra.mrb[0].mxu0 %v687
      %v1039 = vpop.f32.mrb[0].mxu0
      %v1040 = vadd.f32 %v265, %v1039
      %v1041 = vpop.f32.mrb[0].mxu0
      %v1042 = vadd.f32 %v265, %v1041
      %v1043 = vpop.f32.mrb[0].mxu0
      %v1044 = vpop.f32.mrb[0].mxu0
      %1045 = vdwg.mxu0
      %1046 = vmatprep.subr.bf16.mxu0 %v546
      %1047 = vmatpush1.bf16.msra.mxu0 %v545
      %1048 = vmatprep.subr.bf16.mxu0 %v568
      %1049 = vmatpush1.bf16.msra.mxu0 %v567
      %1050 = vmatprep.subr.bf16.mxu0 %v590
      %1051 = vmatpush1.bf16.msra.mxu0 %v589
      %1052 = vmatprep.subr.bf16.mxu0 %v739
      %1053 = vmatpush1.bf16.msra.mxu0 %v736
      %1054 = vmatprep.subr.bf16.mxu0 0
      %1055 = vmatpush1.bf16.msra.mxu0 0
      %1056 = vmatprep.subr.bf16.mxu0 0
      %1057 = vmatpush1.bf16.msra.mxu0 0
      %1058 = vmatprep.subr.bf16.mxu0 0
      %1059 = vmatpush1.bf16.msra.mxu0 0
      %1060 = vmatprep.subr.bf16.mxu0 0
      %1061 = vmatpush1.bf16.msra.mxu0 0
      %1062 = vmatprep.subr.bf16.mxu0 0
      %1063 = vmatpush1.bf16.msra.mxu0 0
      %1064 = vmatprep.subr.bf16.mxu0 0
      %1065 = vmatpush1.bf16.msra.mxu0 0
      %1066 = vmatprep.subr.bf16.mxu0 0
      %1067 = vmatpush1.bf16.msra.mxu0 0
      %1068 = vmatprep.subr.bf16.mxu0 0
      %1069 = vmatpush1.bf16.msra.mxu0 0
      %1070 = vmatprep.subr.bf16.mxu0 0
      %1071 = vmatpush1.bf16.msra.mxu0 0
      %1072 = vmatprep.subr.bf16.mxu0 0
      %1073 = vmatpush1.bf16.msra.mxu0 0
      %1074 = vmatprep.subr.bf16.mxu0 0
      %1075 = vmatpush1.bf16.msra.mxu0 0
      %1076 = vmatprep.subr.bf16.mxu0 0
      %1077 = vmatpush1.bf16.msra.mxu0 0
      %1078 = vmatprep.mubr.bf16.mxu0 0
      %1079 = vmatmul.mubr.bf16.gmra.mrb[0].mxu0 %v687
      %v1080 = vpop.f32.mrb[0].mxu0
      %v1081 = vadd.f32 %v265, %v1080
      %v1082 = vpop.f32.mrb[0].mxu0
      %v1083 = vadd.f32 %v265, %v1082
      %v1084 = vpop.f32.mrb[0].mxu0
      %v1085 = vpop.f32.mrb[0].mxu0
      %1086 = vdwg.mxu0
      %1087 = vmatprep.subr.bf16.mxu0 %v548
      %1088 = vmatpush1.bf16.msra.mxu0 %v547
      %1089 = vmatprep.subr.bf16.mxu0 %v570
      %1090 = vmatpush1.bf16.msra.mxu0 %v569
      %1091 = vmatprep.subr.bf16.mxu0 %v592
      %1092 = vmatpush1.bf16.msra.mxu0 %v591
      %1093 = vmatprep.subr.bf16.mxu0 %v745
      %1094 = vmatpush1.bf16.msra.mxu0 %v742
      %1095 = vmatprep.subr.bf16.mxu0 0
      %1096 = vmatpush1.bf16.msra.mxu0 0
      %1097 = vmatprep.subr.bf16.mxu0 0
      %1098 = vmatpush1.bf16.msra.mxu0 0
      %1099 = vmatprep.subr.bf16.mxu0 0
      %1100 = vmatpush1.bf16.msra.mxu0 0
      %1101 = vmatprep.subr.bf16.mxu0 0
      %1102 = vmatpush1.bf16.msra.mxu0 0
      %1103 = vmatprep.subr.bf16.mxu0 0
      %1104 = vmatpush1.bf16.msra.mxu0 0
      %1105 = vmatprep.subr.bf16.mxu0 0
      %1106 = vmatpush1.bf16.msra.mxu0 0
      %1107 = vmatprep.subr.bf16.mxu0 0
      %1108 = vmatpush1.bf16.msra.mxu0 0
      %1109 = vmatprep.subr.bf16.mxu0 0
      %1110 = vmatpush1.bf16.msra.mxu0 0
      %1111 = vmatprep.subr.bf16.mxu0 0
      %1112 = vmatpush1.bf16.msra.mxu0 0
      %1113 = vmatprep.subr.bf16.mxu0 0
      %1114 = vmatpush1.bf16.msra.mxu0 0
      %1115 = vmatprep.subr.bf16.mxu0 0
      %1116 = vmatpush1.bf16.msra.mxu0 0
      %1117 = vmatprep.subr.bf16.mxu0 0
      %1118 = vmatpush1.bf16.msra.mxu0 0
      %1119 = vmatprep.mubr.bf16.mxu0 0
      %1120 = vmatmul.mubr.bf16.gmra.mrb[0].mxu0 %v687
      %v1121 = vpop.f32.mrb[0].mxu0
      %v1122 = vadd.f32 %v265, %v1121
      %v1123 = vpop.f32.mrb[0].mxu0
      %v1124 = vadd.f32 %v265, %v1123
      %v1125 = vpop.f32.mrb[0].mxu0
      %v1126 = vpop.f32.mrb[0].mxu0
      %1127 = vdwg.mxu0
      %1128 = vmatprep.subr.bf16.mxu0 %v550
      %1129 = vmatpush1.bf16.msra.mxu0 %v549
      %1130 = vmatprep.subr.bf16.mxu0 %v572
      %1131 = vmatpush1.bf16.msra.mxu0 %v571
      %1132 = vmatprep.subr.bf16.mxu0 %v594
      %1133 = vmatpush1.bf16.msra.mxu0 %v593
      %1134 = vmatprep.subr.bf16.mxu0 %v751
      %1135 = vmatpush1.bf16.msra.mxu0 %v748
      %1136 = vmatprep.subr.bf16.mxu0 0
      %1137 = vmatpush1.bf16.msra.mxu0 0
      %1138 = vmatprep.subr.bf16.mxu0 0
      %1139 = vmatpush1.bf16.msra.mxu0 0
      %1140 = vmatprep.subr.bf16.mxu0 0
      %1141 = vmatpush1.bf16.msra.mxu0 0
      %1142 = vmatprep.subr.bf16.mxu0 0
      %1143 = vmatpush1.bf16.msra.mxu0 0
      %1144 = vmatprep.subr.bf16.mxu0 0
      %1145 = vmatpush1.bf16.msra.mxu0 0
      %1146 = vmatprep.subr.bf16.mxu0 0
      %1147 = vmatpush1.bf16.msra.mxu0 0
      %1148 = vmatprep.subr.bf16.mxu0 0
      %1149 = vmatpush1.bf16.msra.mxu0 0
      %1150 = vmatprep.subr.bf16.mxu0 0
      %1151 = vmatpush1.bf16.msra.mxu0 0
      %1152 = vmatprep.subr.bf16.mxu0 0
      %1153 = vmatpush1.bf16.msra.mxu0 0
      %1154 = vmatprep.subr.bf16.mxu0 0
      %1155 = vmatpush1.bf16.msra.mxu0 0
      %1156 = vmatprep.subr.bf16.mxu0 0
      %1157 = vmatpush1.bf16.msra.mxu0 0
      %1158 = vmatprep.subr.bf16.mxu0 0
      %1159 = vmatpush1.bf16.msra.mxu0 0
      %1160 = vmatprep.mubr.bf16.mxu0 0
      %1161 = vmatmul.mubr.bf16.gmra.mrb[0].mxu0 %v687
      %v1162 = vpop.f32.mrb[0].mxu0
      %v1163 = vadd.f32 %v265, %v1162
      %v1164 = vpop.f32.mrb[0].mxu0
      %v1165 = vadd.f32 %v265, %v1164
      %v1166 = vpop.f32.mrb[0].mxu0
      %v1167 = vpop.f32.mrb[0].mxu0
      %1168 = vdwg.mxu0
      %1169 = vmatprep.subr.bf16.mxu0 %v552
      %1170 = vmatpush1.bf16.msra.mxu0 %v551
      %1171 = vmatprep.subr.bf16.mxu0 %v574
      %1172 = vmatpush1.bf16.msra.mxu0 %v573
      %1173 = vmatprep.subr.bf16.mxu0 %v596
      %1174 = vmatpush1.bf16.msra.mxu0 %v595
      %1175 = vmatprep.subr.bf16.mxu0 %v757
      %1176 = vmatpush1.bf16.msra.mxu0 %v754
      %1177 = vmatprep.subr.bf16.mxu0 0
      %1178 = vmatpush1.bf16.msra.mxu0 0
      %1179 = vmatprep.subr.bf16.mxu0 0
      %1180 = vmatpush1.bf16.msra.mxu0 0
      %1181 = vmatprep.subr.bf16.mxu0 0
      %1182 = vmatpush1.bf16.msra.mxu0 0
      %1183 = vmatprep.subr.bf16.mxu0 0
      %1184 = vmatpush1.bf16.msra.mxu0 0
      %1185 = vmatprep.subr.bf16.mxu0 0
      %1186 = vmatpush1.bf16.msra.mxu0 0
      %1187 = vmatprep.subr.bf16.mxu0 0
      %1188 = vmatpush1.bf16.msra.mxu0 0
      %1189 = vmatprep.subr.bf16.mxu0 0
      %1190 = vmatpush1.bf16.msra.mxu0 0
      %1191 = vmatprep.subr.bf16.mxu0 0
      %1192 = vmatpush1.bf16.msra.mxu0 0
      %1193 = vmatprep.subr.bf16.mxu0 0
      %1194 = vmatpush1.bf16.msra.mxu0 0
      %1195 = vmatprep.subr.bf16.mxu0 0
      %1196 = vmatpush1.bf16.msra.mxu0 0
      %1197 = vmatprep.subr.bf16.mxu0 0
      %1198 = vmatpush1.bf16.msra.mxu0 0
      %1199 = vmatprep.subr.bf16.mxu0 0
      %1200 = vmatpush1.bf16.msra.mxu0 0
      %1201 = vmatprep.mubr.bf16.mxu0 0
      %1202 = vmatmul.mubr.bf16.gmra.mrb[0].mxu0 %v687
      %v1203 = vpop.f32.mrb[0].mxu0
      %v1204 = vadd.f32 %v265, %v1203
      %v1205 = vpop.f32.mrb[0].mxu0
      %v1206 = vadd.f32 %v265, %v1205
      %v1207 = vpop.f32.mrb[0].mxu0
      %v1208 = vpop.f32.mrb[0].mxu0
      %1209 = vdwg.mxu0
      %v1210 = vmax.f32 %v794, 0.0
      %v1211 = vmax.f32 %v796, 0.0
      %v1212 = vmax.f32 %v835, 0.0
      %v1213 = vmax.f32 %v837, 0.0
      %v1214 = vmax.f32 %v876, 0.0
      %v1215 = vmax.f32 %v878, 0.0
      %v1216 = vmax.f32 %v917, 0.0
      %v1217 = vmax.f32 %v919, 0.0
      %v1218 = vmax.f32 %v958, 0.0
      %v1219 = vmax.f32 %v960, 0.0
      %v1220 = vmax.f32 %v999, 0.0
      %v1221 = vmax.f32 %v1001, 0.0
      %v1222 = vmax.f32 %v1040, 0.0
      %v1223 = vmax.f32 %v1042, 0.0
      %v1224 = vmax.f32 %v1081, 0.0
      %v1225 = vmax.f32 %v1083, 0.0
      %v1226 = vmax.f32 %v1122, 0.0
      %v1227 = vmax.f32 %v1124, 0.0
      %v1228 = vmax.f32 %v1163, 0.0
      %v1229 = vmax.f32 %v1165, 0.0
      %v1230 = vmax.f32 %v1204, 0.0
      %v1231 = vmax.f32 %v1206, 0.0
      %v1254 = vcombine.low %v1210, %v1211
      %v1255 = vcombine.low %v1212, %v1213
      %v1256 = vcombine.low %v1214, %v1215
      %v1257 = vcombine.low %v1216, %v1217
      %v1258 = vcombine.low %v1218, %v1219
      %v1259 = vcombine.low %v1220, %v1221
      %v1260 = vcombine.low %v1222, %v1223
      %v1261 = vcombine.low %v1224, %v1225
      %v1262 = vcombine.low %v1226, %v1227
      %v1263 = vcombine.low %v1228, %v1229
      %v1264 = vcombine.low %v1230, %v1231
      %1276 = vst [vmem:[%s170] sm:$0xff] %v1254
      %1277 = vst [vmem:[%s170 + $0x8] sm:$0xff] %v1255
      %1278 = vst [vmem:[%s170 + $0x10] sm:$0xff] %v1256
      %1279 = vst [vmem:[%s170 + $0x18] sm:$0xff] %v1257
      %1280 = vst [vmem:[%s170 + $0x20] sm:$0xff] %v1258
      %1281 = vst [vmem:[%s170 + $0x28] sm:$0xff] %v1259
      %1282 = vst [vmem:[%s170 + $0x30] sm:$0xff] %v1260
      %1283 = vst [vmem:[%s170 + $0x38] sm:$0xff] %v1261
      %1284 = vst [vmem:[%s170 + $0x40] sm:$0xff] %v1262
      %1285 = vst [vmem:[%s170 + $0x48] sm:$0xff] %v1263
      %vm1286 = vcmask 1043456
      %vm1287 = vcmask 130052
      %vm1288 = vmor %vm1287, %vm1286
      %1289 = vst.msk [vmem:[%s170 + $0x50] sm:$0xff] %vm1288, %v1264
      %p1290 = scmp.lt.s32.totalorder %s14, 1
      %s1291 = scalar_select %p1290, %s14, 1
      %s1292 = smul.addr %s1291, 22
      %s1293 = smul.addr %s1292, 4
      %s1294 = scalar_lea.vmem %s3, %s1293
      // Predicated region
      $region33: #{net_forward.6} parent=31 // pred_check
        %p1295 = pneg %p100
      $region34: #{net_forward.6} parent=31 // pred_check_branch
        %1297 = sbr.rel (%p1295) target = $region36
      $region35: #{net_forward.6} parent=31 // pred_region
        _
      $region36: #{net_forward.6} parent=31 // pred_fallthru
        _
    $region32: #{net_forward.6} parent=5 // pred_fallthru
      _
    %p1298 = scmp.le.s32.totalorder 2, %s9
    // Predicated region
    $region37: #{net_forward.6} parent=5 // pred_check
      %p1299 = pneg %p1298
    $region38: #{net_forward.6} parent=5 // pred_check_branch
      %1301 = sbr.rel (%p1299) target = $region40
    $region39: #{net_forward.6} parent=5 // pred_region
      %s1302 = ssub.s32 %s9, 2
      // Predicated region
      $region41: #{net_forward.6} parent=39 // pred_check
        %p1303 = pneg %p106
      $region42: #{net_forward.6} parent=39 // pred_check_branch
        %1305 = sbr.rel (%p1303) target = $region44
      $region43: #{net_forward.6} parent=39 // pred_region
        %p1306 = scmp.lt.s32.totalorder %s15, 1
        %s1307 = scalar_select %p1306, %s15, 1
        %s1308 = smul.addr %s1307, 22
        %s1309 = smul.addr %s1308, 4
        %s1310 = scalar_lea.vmem %s3, %s1309
      $region44: #{net_forward.6} parent=39 // pred_fallthru
        _
    $region40: #{net_forward.6} parent=5 // pred_fallthru
      _
  $region6: #{net_forward.6} parent=0 // loop_footer
    %s13 = sadd.s32 1, %s9
  $region7: #{net_forward.6} parent=0 // loop_footer_branch
    %8 = sbr.rel target = $region3
  $region8: #{net_forward.6} parent=0 // loop_exit
    _

// kernel: net_forward.7
$region0: #{net_forward.7}
  #allocation0 [shape = 'u32[]', space=smem, size = 0x4, offset = 0x4, fixed_abs, tag = 'smem constant byte address 0x4 - core index']
  #allocation1 [shape = 'u32[144,128]{1,0:T(1,128)}', space=vmem, size = 0x12000, scoped, tag = 'internal scratch']
  %s0 = inlined_call_operand.vmem [shape: f32[9,2,1156], index: 0, kind: input, shape index: {}]
  %s1 = inlined_call_operand.vmem [shape: f32[1156,16], index: 1, kind: input, shape index: {}]
  %s2 = inlined_call_operand.vmem [shape: f32[1,16], index: 2, kind: input, shape index: {}]
  %s3 = inlined_call_operand.vmem [shape: f32[16,2], index: 3, kind: input, shape index: {}]
  %s4 = inlined_call_operand.vmem [shape: f32[1,2], index: 4, kind: input, shape index: {}]
  %s5 = inlined_call_operand.hbm [shape: f32[2,2], index: 5, kind: output, shape index: {}]
  %s6 = sld [smem:[#allocation0]]
  $region30: #{net_forward.7} parent=0
    _
  %s8 = ssub.s32 1, %s6
  %s9 = scalar_select 0, %s8, %s6
  $region1: #{net_forward.7} parent=0
    #allocation2 [shape = 'u8[1024]{0}', space=vmem, size = 0x400, scoped, tag = 'output window, operand 0, single buffered']
    #allocation3 [shape = 's32[1]{0}', space=sflag, size = 0x4, scoped, tag = 'scoped memory for net_forward.7']
    %10 = vsyncpa [#allocation3], 0
    // Predicated region
    $region2: #{net_forward.7} parent=1 // pred_check
      _
    $region3: #{net_forward.7} parent=1 // pred_check_branch
      %12 = sbr.rel (0) target = $region5
    $region4: #{net_forward.7} parent=1 // pred_region
      _
    $region5: #{net_forward.7} parent=1 // pred_fallthru
      _
    // Predicated region
    $region6: #{net_forward.7} parent=1 // pred_check
      _
    $region7: #{net_forward.7} parent=1 // pred_check_branch
      %14 = sbr.rel (0) target = $region9
    $region8: #{net_forward.7} parent=1 // pred_region
      _
    $region9: #{net_forward.7} parent=1 // pred_fallthru
      _
    // Predicated region
    $region10: #{net_forward.7} parent=1 // pred_check
      _
    $region11: #{net_forward.7} parent=1 // pred_check_branch
      %16 = sbr.rel (0) target = $region13
    $region12: #{net_forward.7} parent=1 // pred_region
      _
    $region13: #{net_forward.7} parent=1 // pred_fallthru
      _
    // Predicated region
    $region14: #{net_forward.7} parent=1 // pred_check
      _
    $region15: #{net_forward.7} parent=1 // pred_check_branch
      %18 = sbr.rel (0) target = $region17
    $region16: #{net_forward.7} parent=1 // pred_region
      _
    $region17: #{net_forward.7} parent=1 // pred_fallthru
      _
    // Predicated region
    $region18: #{net_forward.7} parent=1 // pred_check
      _
    $region19: #{net_forward.7} parent=1 // pred_check_branch
      %20 = sbr.rel (0) target = $region21
    $region20: #{net_forward.7} parent=1 // pred_region
      _
    $region21: #{net_forward.7} parent=1 // pred_fallthru
      _
    %v21 = vld [vmem:[%s0] sm:$0xff]
    %v22 = vld [vmem:[%s0 + $0x8] sm:$0xff]
    %v23 = vld [vmem:[%s0 + $0x10] sm:$0xf]
    %v24 = vld [vmem:[%s0 + $0x14] sm:$0xff]
    %v25 = vld [vmem:[%s0 + $0x1c] sm:$0xff]
    %v26 = vld [vmem:[%s0 + $0x24] sm:$0xf]
    %v27 = vld [vmem:[%s0 + $0x28] sm:$0xff]
    %v28 = vld [vmem:[%s0 + $0x30] sm:$0xff]
    %v29 = vld [vmem:[%s0 + $0x38] sm:$0xf]
    %v30 = vld [vmem:[%s0 + $0x3c] sm:$0xff]
    %v31 = vld [vmem:[%s0 + $0x44] sm:$0xff]
    %v32 = vld [vmem:[%s0 + $0x4c] sm:$0xf]
    %v33 = vld [vmem:[%s0 + $0x50] sm:$0xff]
    %v34 = vld [vmem:[%s0 + $0x58] sm:$0xff]
    %v35 = vld [vmem:[%s0 + $0x60] sm:$0xf]
    %v36 = vld [vmem:[%s0 + $0x64] sm:$0xff]
    %v37 = vld [vmem:[%s0 + $0x6c] sm:$0xff]
    %v38 = vld [vmem:[%s0 + $0x74] sm:$0xf]
    %v39 = vld [vmem:[%s0 + $0x78] sm:$0xff]
    %v40 = vld [vmem:[%s0 + $0x80] sm:$0xff]
    %v41 = vld [vmem:[%s0 + $0x88] sm:$0xf]
    %v42 = vld [vmem:[%s0 + $0x8c] sm:$0xff]
    %v43 = vld [vmem:[%s0 + $0x94] sm:$0xff]
    %v44 = vld [vmem:[%s0 + $0x9c] sm:$0xf]
    %v45 = vld [vmem:[%s0 + $0xa0] sm:$0xff]
    %v46 = vld [vmem:[%s0 + $0xa8] sm:$0xff]
    %v47 = vld [vmem:[%s0 + $0xb0] sm:$0xf]
    %v48 = vmax.f32 %v21, %v27
    %v49 = vmax.f32 %v24, %v30
    %v50 = vmax.f32 %v48, %v33
    %v51 = vmax.f32 %v49, %v36
    %v52 = vmax.f32 %v50, %v39
    %v53 = vmax.f32 %v51, %v42
    %v54 = vmax.f32 %v52, %v45
    %v55 = vmax.f32 %v54, %v53
    %v56 = vmax.f32 %v22, %v28
    %v57 = vmax.f32 %v25, %v31
    %v58 = vmax.f32 %v56, %v34
    %v59 = vmax.f32 %v57, %v37
    %v60 = vmax.f32 %v58, %v40
    %v61 = vmax.f32 %v59, %v43
    %v62 = vmax.f32 %v60, %v46
    %v63 = vmax.f32 %v62, %v61
    %vm64 = vcmask 1041408
    %vm65 = vcmask 27650
    %vm66 = vmor %vm65, %vm64
    %v67 = vsel %vm66, %v23, -inf
    %v68 = vsel %vm66, %v26, -inf
    %v69 = vsel %vm66, %v29, -inf
    %v70 = vmax.f32 %v67, %v69
    %v71 = vsel %vm66, %v32, -inf
    %v72 = vmax.f32 %v68, %v71
    %v73 = vsel %vm66, %v35, -inf
    %v74 = vmax.f32 %v70, %v73
    %v75 = vsel %vm66, %v38, -inf
    %v76 = vmax.f32 %v72, %v75
    %v77 = vsel %vm66, %v41, -inf
    %v78 = vmax.f32 %v74, %v77
    %v79 = vsel %vm66, %v44, -inf
    %v80 = vmax.f32 %v76, %v79
    %v81 = vsel %vm66, %v47, -inf
    %v82 = vmax.f32 %v78, %v81
    %v83 = vmax.f32 %v82, %v80
    %v84 = vld [vmem:[%s1] sm:$0xff]
    %v85 = vld [vmem:[%s1 + $0x8] sm:$0xff]
    %v86 = vld [vmem:[%s1 + $0x10] sm:$0xff]
    %v87 = vld [vmem:[%s1 + $0x18] sm:$0xff]
    %v88 = vld [vmem:[%s1 + $0x20] sm:$0xff]
    %v89 = vld [vmem:[%s1 + $0x28] sm:$0xff]
    %v90 = vld [vmem:[%s1 + $0x30] sm:$0xff]
    %v91 = vld [vmem:[%s1 + $0x38] sm:$0xff]
    %v92 = vld [vmem:[%s1 + $0x40] sm:$0xff]
    %v93 = vld [vmem:[%s1 + $0x48] sm:$0xff]
    %v94 = vld [vmem:[%s1 + $0x50] sm:$0xff]
    %v95 = vld [vmem:[%s1 + $0x58] sm:$0xff]
    %v96 = vld [vmem:[%s1 + $0x60] sm:$0xff]
    %v97 = vld [vmem:[%s1 + $0x68] sm:$0xff]
    %v98 = vld [vmem:[%s1 + $0x70] sm:$0xff]
    %v99 = vld [vmem:[%s1 + $0x78] sm:$0xff]
    %v100 = vld [vmem:[%s1 + $0x80] sm:$0xff]
    %v101 = vld [vmem:[%s1 + $0x88] sm:$0xff]
    %v102 = vld [vmem:[%s1 + $0x90] sm:$0xff]
    %v103 = vld [vmem:[%s1 + $0x98] sm:$0xff]
    %v104 = vld [vmem:[%s1 + $0xa0] sm:$0xff]
    %v105 = vld [vmem:[%s1 + $0xa8] sm:$0xff]
    %v106 = vld [vmem:[%s1 + $0xb0] sm:$0xff]
    %v107 = vld [vmem:[%s1 + $0xb8] sm:$0xff]
    %v108 = vld [vmem:[%s1 + $0xc0] sm:$0xff]
    %v109 = vld [vmem:[%s1 + $0xc8] sm:$0xff]
    %v110 = vld [vmem:[%s1 + $0xd0] sm:$0xff]
    %v111 = vld [vmem:[%s1 + $0xd8] sm:$0xff]
    %v112 = vld [vmem:[%s1 + $0xe0] sm:$0xff]
    %v113 = vld [vmem:[%s1 + $0xe8] sm:$0xff]
    %v114 = vld [vmem:[%s1 + $0xf0] sm:$0xff]
    %v115 = vld [vmem:[%s1 + $0xf8] sm:$0xff]
    %v116 = vld [vmem:[%s1 + $0x100] sm:$0xff]
    %v117 = vld [vmem:[%s1 + $0x108] sm:$0xff]
    %v118 = vld [vmem:[%s1 + $0x110] sm:$0xff]
    %v119 = vld [vmem:[%s1 + $0x118] sm:$0xff]
    %v120 = vld [vmem:[%s1 + $0x120] sm:$0xff]
    %v121 = vld [vmem:[%s1 + $0x128] sm:$0xff]
    %v122 = vld [vmem:[%s1 + $0x130] sm:$0xff]
    %v123 = vld [vmem:[%s1 + $0x138] sm:$0xff]
    %v124 = vld [vmem:[%s1 + $0x140] sm:$0xff]
    %v125 = vld [vmem:[%s1 + $0x148] sm:$0xff]
    %v126 = vld [vmem:[%s1 + $0x150] sm:$0xff]
    %v127 = vld [vmem:[%s1 + $0x158] sm:$0xff]
    %v128 = vld [vmem:[%s1 + $0x160] sm:$0xff]
    %v129 = vld [vmem:[%s1 + $0x168] sm:$0xff]
    %v130 = vld [vmem:[%s1 + $0x170] sm:$0xff]
    %v131 = vld [vmem:[%s1 + $0x178] sm:$0xff]
    %v132 = vld [vmem:[%s1 + $0x180] sm:$0xff]
    %v133 = vld [vmem:[%s1 + $0x188] sm:$0xff]
    %v134 = vld [vmem:[%s1 + $0x190] sm:$0xff]
    %v135 = vld [vmem:[%s1 + $0x198] sm:$0xff]
    %v136 = vld [vmem:[%s1 + $0x1a0] sm:$0xff]
    %v137 = vld [vmem:[%s1 + $0x1a8] sm:$0xff]
    %v138 = vld [vmem:[%s1 + $0x1b0] sm:$0xff]
    %v139 = vld [vmem:[%s1 + $0x1b8] sm:$0xff]
    %v140 = vld [vmem:[%s1 + $0x1c0] sm:$0xff]
    %v141 = vld [vmem:[%s1 + $0x1c8] sm:$0xff]
    %v142 = vld [vmem:[%s1 + $0x1d0] sm:$0xff]
    %v143 = vld [vmem:[%s1 + $0x1d8] sm:$0xff]
    %v144 = vld [vmem:[%s1 + $0x1e0] sm:$0xff]
    %v145 = vld [vmem:[%s1 + $0x1e8] sm:$0xff]
    %v146 = vld [vmem:[%s1 + $0x1f0] sm:$0xff]
    %v147 = vld [vmem:[%s1 + $0x1f8] sm:$0xff]
    %v148 = vld [vmem:[%s1 + $0x200] sm:$0xff]
    %v149 = vld [vmem:[%s1 + $0x208] sm:$0xff]
    %v150 = vld [vmem:[%s1 + $0x210] sm:$0xff]
    %v151 = vld [vmem:[%s1 + $0x218] sm:$0xff]
    %v152 = vld [vmem:[%s1 + $0x220] sm:$0xff]
    %v153 = vld [vmem:[%s1 + $0x228] sm:$0xff]
    %v154 = vld [vmem:[%s1 + $0x230] sm:$0xff]
    %v155 = vld [vmem:[%s1 + $0x238] sm:$0xff]
    %v156 = vld [vmem:[%s1 + $0x240] sm:$0xff]
    %v157 = vld [vmem:[%s1 + $0x248] sm:$0xff]
    %v158 = vld [vmem:[%s1 + $0x250] sm:$0xff]
    %v159 = vld [vmem:[%s1 + $0x258] sm:$0xff]
    %v160 = vld [vmem:[%s1 + $0x260] sm:$0xff]
    %v161 = vld [vmem:[%s1 + $0x268] sm:$0xff]
    %v162 = vld [vmem:[%s1 + $0x270] sm:$0xff]
    %v163 = vld [vmem:[%s1 + $0x278] sm:$0xff]
    %v164 = vld [vmem:[%s1 + $0x280] sm:$0xff]
    %v165 = vld [vmem:[%s1 + $0x288] sm:$0xff]
    %v166 = vld [vmem:[%s1 + $0x290] sm:$0xff]
    %v167 = vld [vmem:[%s1 + $0x298] sm:$0xff]
    %v168 = vld [vmem:[%s1 + $0x2a0] sm:$0xff]
    %v169 = vld [vmem:[%s1 + $0x2a8] sm:$0xff]
    %v170 = vld [vmem:[%s1 + $0x2b0] sm:$0xff]
    %v171 = vld [vmem:[%s1 + $0x2b8] sm:$0xff]
    %v172 = vld [vmem:[%s1 + $0x2c0] sm:$0xff]
    %v173 = vld [vmem:[%s1 + $0x2c8] sm:$0xff]
    %v174 = vld [vmem:[%s1 + $0x2d0] sm:$0xff]
    %v175 = vld [vmem:[%s1 + $0x2d8] sm:$0xff]
    %v176 = vld [vmem:[%s1 + $0x2e0] sm:$0xff]
    %v177 = vld [vmem:[%s1 + $0x2e8] sm:$0xff]
    %v178 = vld [vmem:[%s1 + $0x2f0] sm:$0xff]
    %v179 = vld [vmem:[%s1 + $0x2f8] sm:$0xff]
    %v180 = vld [vmem:[%s1 + $0x300] sm:$0xff]
    %v181 = vld [vmem:[%s1 + $0x308] sm:$0xff]
    %v182 = vld [vmem:[%s1 + $0x310] sm:$0xff]
    %v183 = vld [vmem:[%s1 + $0x318] sm:$0xff]
    %v184 = vld [vmem:[%s1 + $0x320] sm:$0xff]
    %v185 = vld [vmem:[%s1 + $0x328] sm:$0xff]
    %v186 = vld [vmem:[%s1 + $0x330] sm:$0xff]
    %v187 = vld [vmem:[%s1 + $0x338] sm:$0xff]
    %v188 = vld [vmem:[%s1 + $0x340] sm:$0xff]
    %v189 = vld [vmem:[%s1 + $0x348] sm:$0xff]
    %v190 = vld [vmem:[%s1 + $0x350] sm:$0xff]
    %v191 = vld [vmem:[%s1 + $0x358] sm:$0xff]
    %v192 = vld [vmem:[%s1 + $0x360] sm:$0xff]
    %v193 = vld [vmem:[%s1 + $0x368] sm:$0xff]
    %v194 = vld [vmem:[%s1 + $0x370] sm:$0xff]
    %v195 = vld [vmem:[%s1 + $0x378] sm:$0xff]
    %v196 = vld [vmem:[%s1 + $0x380] sm:$0xff]
    %v197 = vld [vmem:[%s1 + $0x388] sm:$0xff]
    %v198 = vld [vmem:[%s1 + $0x390] sm:$0xff]
    %v199 = vld [vmem:[%s1 + $0x398] sm:$0xff]
    %v200 = vld [vmem:[%s1 + $0x3a0] sm:$0xff]
    %v201 = vld [vmem:[%s1 + $0x3a8] sm:$0xff]
    %v202 = vld [vmem:[%s1 + $0x3b0] sm:$0xff]
    %v203 = vld [vmem:[%s1 + $0x3b8] sm:$0xff]
    %v204 = vld [vmem:[%s1 + $0x3c0] sm:$0xff]
    %v205 = vld [vmem:[%s1 + $0x3c8] sm:$0xff]
    %v206 = vld [vmem:[%s1 + $0x3d0] sm:$0xff]
    %v207 = vld [vmem:[%s1 + $0x3d8] sm:$0xff]
    %v208 = vld [vmem:[%s1 + $0x3e0] sm:$0xff]
    %v209 = vld [vmem:[%s1 + $0x3e8] sm:$0xff]
    %v210 = vld [vmem:[%s1 + $0x3f0] sm:$0xff]
    %v211 = vld [vmem:[%s1 + $0x3f8] sm:$0xff]
    %v212 = vld [vmem:[%s1 + $0x400] sm:$0xff]
    %v213 = vld [vmem:[%s1 + $0x408] sm:$0xff]
    %v214 = vld [vmem:[%s1 + $0x410] sm:$0xff]
    %v215 = vld [vmem:[%s1 + $0x418] sm:$0xff]
    %v216 = vld [vmem:[%s1 + $0x420] sm:$0xff]
    %v217 = vld [vmem:[%s1 + $0x428] sm:$0xff]
    %v218 = vld [vmem:[%s1 + $0x430] sm:$0xff]
    %v219 = vld [vmem:[%s1 + $0x438] sm:$0xff]
    %v220 = vld [vmem:[%s1 + $0x440] sm:$0xff]
    %v221 = vld [vmem:[%s1 + $0x448] sm:$0xff]
    %v222 = vld [vmem:[%s1 + $0x450] sm:$0xff]
    %v223 = vld [vmem:[%s1 + $0x458] sm:$0xff]
    %v224 = vld [vmem:[%s1 + $0x460] sm:$0xff]
    %v225 = vld [vmem:[%s1 + $0x468] sm:$0xff]
    %v226 = vld [vmem:[%s1 + $0x470] sm:$0xff]
    %v227 = vld [vmem:[%s1 + $0x478] sm:$0xff]
    %v228 = vld [vmem:[%s1 + $0x480] sm:$0xf]
    %v229 = vld [vmem:[%s2] sm:$0x1]
    %v231 = vlaneseq
    %v232 = vshrl.u32 %v231, 7
    %v233 = vsub.s32 0, %v232
    %v234 = vrot.slane %v229, %v233
    %v239 = vcombine.high %v55, %v55
    %v241 = vunpack.c.l.s4 1983009808
    %v242 = vunpack.c.0.s8 %v241
    %v243 = vlaneseq
    %v244 = vshrl.u32 %v243, 7
    %v245 = vsub.s32 %v242, %v244
    %v246 = vrot.slane %v55, %v245
    %v248 = vunpack.c.l.s4 1983009808
    %v249 = vunpack.c.0.s8 %v248
    %v250 = vlaneseq
    %v251 = vshrl.u32 %v250, 7
    %v252 = vsub.s32 %v249, %v251
    %v253 = vrot.slane %v239, %v252
    %v254 = vcombine.high %v246, %v246
    %v255 = vcombine.high %v253, %v253
    %v256 = vcombine.high %v63, %v63
    %v258 = vunpack.c.l.s4 1983009808
    %v259 = vunpack.c.0.s8 %v258
    %v260 = vlaneseq
    %v261 = vshrl.u32 %v260, 7
    %v262 = vsub.s32 %v259, %v261
    %v263 = vrot.slane %v63, %v262
    %v265 = vunpack.c.l.s4 1983009808
    %v266 = vunpack.c.0.s8 %v265
    %v267 = vlaneseq
    %v268 = vshrl.u32 %v267, 7
    %v269 = vsub.s32 %v266, %v268
    %v270 = vrot.slane %v256, %v269
    %v271 = vcombine.high %v263, %v263
    %v272 = vcombine.high %v270, %v270
    %v274 = vunpack.c.l.s4 1983009808
    %v275 = vunpack.c.0.s8 %v274
    %v276 = vlaneseq
    %v277 = vshrl.u32 %v276, 7
    %v278 = vsub.s32 %v275, %v277
    %v279 = vrot.slane %v83, %v278
    %v280 = vcombine.high %v279, %v279
    %vm290 = vcmask 31744
    %v291 = vsel %vm290, %v280, 0
    %vm293 = vcmask 1043456
    %v295 = vsel %vm293, %v228, 0
    %297 = vmatprep.subr.mxu0 0.0
    %298 = vmatpush1.msra.mxu0 %v84
    %299 = vmatprep.subr.mxu0 0.0
    %300 = vmatpush1.msra.mxu0 %v85
    %301 = vmatprep.subr.mxu0 0.0
    %302 = vmatpush1.msra.mxu0 %v86
    %303 = vmatprep.subr.mxu0 0.0
    %304 = vmatpush1.msra.mxu0 %v87
    %305 = vmatprep.subr.mxu0 0.0
    %306 = vmatpush1.msra.mxu0 %v88
    %307 = vmatprep.subr.mxu0 0.0
    %308 = vmatpush1.msra.mxu0 %v89
    %309 = vmatprep.subr.mxu0 0.0
    %310 = vmatpush1.msra.mxu0 %v90
    %311 = vmatprep.subr.mxu0 0.0
    %312 = vmatpush1.msra.mxu0 %v91
    %313 = vmatprep.subr.mxu0 0.0
    %314 = vmatpush1.msra.mxu0 %v92
    %315 = vmatprep.subr.mxu0 0.0
    %316 = vmatpush1.msra.mxu0 %v93
    %317 = vmatprep.subr.mxu0 0.0
    %318 = vmatpush1.msra.mxu0 %v94
    %319 = vmatprep.subr.mxu0 0.0
    %320 = vmatpush1.msra.mxu0 %v95
    %321 = vmatprep.subr.mxu0 0.0
    %322 = vmatpush1.msra.mxu0 %v96
    %323 = vmatprep.subr.mxu0 0.0
    %324 = vmatpush1.msra.mxu0 %v97
    %325 = vmatprep.subr.mxu0 0.0
    %326 = vmatpush1.msra.mxu0 %v98
    %327 = vmatprep.subr.mxu0 0.0
    %328 = vmatpush1.msra.mxu0 %v99
    %329 = vmatprep.subr.mxu0 0.0
    %330 = vmatpush1.msra.mxu0 %v100
    %331 = vmatprep.subr.mxu0 0.0
    %332 = vmatpush1.msra.mxu0 %v101
    %333 = vmatprep.subr.mxu0 0.0
    %334 = vmatpush1.msra.mxu0 %v102
    %335 = vmatprep.subr.mxu0 0.0
    %336 = vmatpush1.msra.mxu0 %v103
    %337 = vmatprep.subr.mxu0 0.0
    %338 = vmatpush1.msra.mxu0 %v104
    %339 = vmatprep.subr.mxu0 0.0
    %340 = vmatpush1.msra.mxu0 %v105
    %341 = vmatprep.subr.mxu0 0.0
    %342 = vmatpush1.msra.mxu0 %v106
    %343 = vmatprep.subr.mxu0 0.0
    %344 = vmatpush1.msra.mxu0 %v107
    %345 = vmatprep.subr.mxu0 0.0
    %346 = vmatpush1.msra.mxu0 %v108
    %347 = vmatprep.subr.mxu0 0.0
    %348 = vmatpush1.msra.mxu0 %v109
    %349 = vmatprep.subr.mxu0 0.0
    %350 = vmatpush1.msra.mxu0 %v110
    %351 = vmatprep.subr.mxu0 0.0
    %352 = vmatpush1.msra.mxu0 %v111
    %353 = vmatprep.subr.mxu0 0.0
    %354 = vmatpush1.msra.mxu0 %v112
    %355 = vmatprep.subr.mxu0 0.0
    %356 = vmatpush1.msra.mxu0 %v113
    %357 = vmatprep.subr.mxu0 0.0
    %358 = vmatpush1.msra.mxu0 %v114
    %359 = vmatprep.subr.mxu0 0.0
    %360 = vmatpush1.msra.mxu0 %v115
    %361 = vmatprep.mubr.f32.mxu0 %v254
    %362 = vmatmul.mubr.f32.gmra.mrb[0].mxu0 %v246
    %v363 = vpop.f32.mrb[0].mxu0
    %v364 = vadd.f32 %v234, %v363
    %v365 = vpop.f32.mrb[0].mxu0
    %366 = vdwg.mxu0
    %367 = vmatprep.subr.mxu0 0.0
    %368 = vmatpush1.msra.mxu0 %v116
    %369 = vmatprep.subr.mxu0 0.0
    %370 = vmatpush1.msra.mxu0 %v117
    %371 = vmatprep.subr.mxu0 0.0
    %372 = vmatpush1.msra.mxu0 %v118
    %373 = vmatprep.subr.mxu0 0.0
    %374 = vmatpush1.msra.mxu0 %v119
    %375 = vmatprep.subr.mxu0 0.0
    %376 = vmatpush1.msra.mxu0 %v120
    %377 = vmatprep.subr.mxu0 0.0
    %378 = vmatpush1.msra.mxu0 %v121
    %379 = vmatprep.subr.mxu0 0.0
    %380 = vmatpush1.msra.mxu0 %v122
    %381 = vmatprep.subr.mxu0 0.0
    %382 = vmatpush1.msra.mxu0 %v123
    %383 = vmatprep.subr.mxu0 0.0
    %384 = vmatpush1.msra.mxu0 %v124
    %385 = vmatprep.subr.mxu0 0.0
    %386 = vmatpush1.msra.mxu0 %v125
    %387 = vmatprep.subr.mxu0 0.0
    %388 = vmatpush1.msra.mxu0 %v126
    %389 = vmatprep.subr.mxu0 0.0
    %390 = vmatpush1.msra.mxu0 %v127
    %391 = vmatprep.subr.mxu0 0.0
    %392 = vmatpush1.msra.mxu0 %v128
    %393 = vmatprep.subr.mxu0 0.0
    %394 = vmatpush1.msra.mxu0 %v129
    %395 = vmatprep.subr.mxu0 0.0
    %396 = vmatpush1.msra.mxu0 %v130
    %397 = vmatprep.subr.mxu0 0.0
    %398 = vmatpush1.msra.mxu0 %v131
    %399 = vmatprep.subr.mxu0 0.0
    %400 = vmatpush1.msra.mxu0 %v132
    %401 = vmatprep.subr.mxu0 0.0
    %402 = vmatpush1.msra.mxu0 %v133
    %403 = vmatprep.subr.mxu0 0.0
    %404 = vmatpush1.msra.mxu0 %v134
    %405 = vmatprep.subr.mxu0 0.0
    %406 = vmatpush1.msra.mxu0 %v135
    %407 = vmatprep.subr.mxu0 0.0
    %408 = vmatpush1.msra.mxu0 %v136
    %409 = vmatprep.subr.mxu0 0.0
    %410 = vmatpush1.msra.mxu0 %v137
    %411 = vmatprep.subr.mxu0 0.0
    %412 = vmatpush1.msra.mxu0 %v138
    %413 = vmatprep.subr.mxu0 0.0
    %414 = vmatpush1.msra.mxu0 %v139
    %415 = vmatprep.subr.mxu0 0.0
    %416 = vmatpush1.msra.mxu0 %v140
    %417 = vmatprep.subr.mxu0 0.0
    %418 = vmatpush1.msra.mxu0 %v141
    %419 = vmatprep.subr.mxu0 0.0
    %420 = vmatpush1.msra.mxu0 %v142
    %421 = vmatprep.subr.mxu0 0.0
    %422 = vmatpush1.msra.mxu0 %v143
    %423 = vmatprep.subr.mxu0 0.0
    %424 = vmatpush1.msra.mxu0 %v144
    %425 = vmatprep.subr.mxu0 0.0
    %426 = vmatpush1.msra.mxu0 %v145
    %427 = vmatprep.subr.mxu0 0.0
    %428 = vmatpush1.msra.mxu0 %v146
    %429 = vmatprep.subr.mxu0 0.0
    %430 = vmatpush1.msra.mxu0 %v147
    %431 = vmatprep.mubr.f32.mxu0 %v255
    %432 = vmatmul.mubr.f32.gmra.mrb[0].mxu0 %v253
    %v433 = vpop.f32.mrb[0].mxu0
    %v434 = vadd.f32 %v364, %v433
    %v435 = vpop.f32.mrb[0].mxu0
    %436 = vdwg.mxu0
    %437 = vmatprep.subr.mxu0 0.0
    %438 = vmatpush1.msra.mxu0 %v148
    %439 = vmatprep.subr.mxu0 0.0
    %440 = vmatpush1.msra.mxu0 %v149
    %441 = vmatprep.subr.mxu0 0.0
    %442 = vmatpush1.msra.mxu0 %v150
    %443 = vmatprep.subr.mxu0 0.0
    %444 = vmatpush1.msra.mxu0 %v151
    %445 = vmatprep.subr.mxu0 0.0
    %446 = vmatpush1.msra.mxu0 %v152
    %447 = vmatprep.subr.mxu0 0.0
    %448 = vmatpush1.msra.mxu0 %v153
    %449 = vmatprep.subr.mxu0 0.0
    %450 = vmatpush1.msra.mxu0 %v154
    %451 = vmatprep.subr.mxu0 0.0
    %452 = vmatpush1.msra.mxu0 %v155
    %453 = vmatprep.subr.mxu0 0.0
    %454 = vmatpush1.msra.mxu0 %v156
    %455 = vmatprep.subr.mxu0 0.0
    %456 = vmatpush1.msra.mxu0 %v157
    %457 = vmatprep.subr.mxu0 0.0
    %458 = vmatpush1.msra.mxu0 %v158
    %459 = vmatprep.subr.mxu0 0.0
    %460 = vmatpush1.msra.mxu0 %v159
    %461 = vmatprep.subr.mxu0 0.0
    %462 = vmatpush1.msra.mxu0 %v160
    %463 = vmatprep.subr.mxu0 0.0
    %464 = vmatpush1.msra.mxu0 %v161
    %465 = vmatprep.subr.mxu0 0.0
    %466 = vmatpush1.msra.mxu0 %v162
    %467 = vmatprep.subr.mxu0 0.0
    %468 = vmatpush1.msra.mxu0 %v163
    %469 = vmatprep.subr.mxu0 0.0
    %470 = vmatpush1.msra.mxu0 %v164
    %471 = vmatprep.subr.mxu0 0.0
    %472 = vmatpush1.msra.mxu0 %v165
    %473 = vmatprep.subr.mxu0 0.0
    %474 = vmatpush1.msra.mxu0 %v166
    %475 = vmatprep.subr.mxu0 0.0
    %476 = vmatpush1.msra.mxu0 %v167
    %477 = vmatprep.subr.mxu0 0.0
    %478 = vmatpush1.msra.mxu0 %v168
    %479 = vmatprep.subr.mxu0 0.0
    %480 = vmatpush1.msra.mxu0 %v169
    %481 = vmatprep.subr.mxu0 0.0
    %482 = vmatpush1.msra.mxu0 %v170
    %483 = vmatprep.subr.mxu0 0.0
    %484 = vmatpush1.msra.mxu0 %v171
    %485 = vmatprep.subr.mxu0 0.0
    %486 = vmatpush1.msra.mxu0 %v172
    %487 = vmatprep.subr.mxu0 0.0
    %488 = vmatpush1.msra.mxu0 %v173
    %489 = vmatprep.subr.mxu0 0.0
    %490 = vmatpush1.msra.mxu0 %v174
    %491 = vmatprep.subr.mxu0 0.0
    %492 = vmatpush1.msra.mxu0 %v175
    %493 = vmatprep.subr.mxu0 0.0
    %494 = vmatpush1.msra.mxu0 %v176
    %495 = vmatprep.subr.mxu0 0.0
    %496 = vmatpush1.msra.mxu0 %v177
    %497 = vmatprep.subr.mxu0 0.0
    %498 = vmatpush1.msra.mxu0 %v178
    %499 = vmatprep.subr.mxu0 0.0
    %500 = vmatpush1.msra.mxu0 %v179
    %501 = vmatprep.mubr.f32.mxu0 %v271
    %502 = vmatmul.mubr.f32.gmra.mrb[0].mxu0 %v263
    %v503 = vpop.f32.mrb[0].mxu0
    %v504 = vadd.f32 %v434, %v503
    %v505 = vpop.f32.mrb[0].mxu0
    %506 = vdwg.mxu0
    %507 = vmatprep.subr.mxu0 0.0
    %508 = vmatpush1.msra.mxu0 %v180
    %509 = vmatprep.subr.mxu0 0.0
    %510 = vmatpush1.msra.mxu0 %v181
    %511 = vmatprep.subr.mxu0 0.0
    %512 = vmatpush1.msra.mxu0 %v182
    %513 = vmatprep.subr.mxu0 0.0
    %514 = vmatpush1.msra.mxu0 %v183
    %515 = vmatprep.subr.mxu0 0.0
    %516 = vmatpush1.msra.mxu0 %v184
    %517 = vmatprep.subr.mxu0 0.0
    %518 = vmatpush1.msra.mxu0 %v185
    %519 = vmatprep.subr.mxu0 0.0
    %520 = vmatpush1.msra.mxu0 %v186
    %521 = vmatprep.subr.mxu0 0.0
    %522 = vmatpush1.msra.mxu0 %v187
    %523 = vmatprep.subr.mxu0 0.0
    %524 = vmatpush1.msra.mxu0 %v188
    %525 = vmatprep.subr.mxu0 0.0
    %526 = vmatpush1.msra.mxu0 %v189
    %527 = vmatprep.subr.mxu0 0.0
    %528 = vmatpush1.msra.mxu0 %v190
    %529 = vmatprep.subr.mxu0 0.0
    %530 = vmatpush1.msra.mxu0 %v191
    %531 = vmatprep.subr.mxu0 0.0
    %532 = vmatpush1.msra.mxu0 %v192
    %533 = vmatprep.subr.mxu0 0.0
    %534 = vmatpush1.msra.mxu0 %v193
    %535 = vmatprep.subr.mxu0 0.0
    %536 = vmatpush1.msra.mxu0 %v194
    %537 = vmatprep.subr.mxu0 0.0
    %538 = vmatpush1.msra.mxu0 %v195
    %539 = vmatprep.subr.mxu0 0.0
    %540 = vmatpush1.msra.mxu0 %v196
    %541 = vmatprep.subr.mxu0 0.0
    %542 = vmatpush1.msra.mxu0 %v197
    %543 = vmatprep.subr.mxu0 0.0
    %544 = vmatpush1.msra.mxu0 %v198
    %545 = vmatprep.subr.mxu0 0.0
    %546 = vmatpush1.msra.mxu0 %v199
    %547 = vmatprep.subr.mxu0 0.0
    %548 = vmatpush1.msra.mxu0 %v200
    %549 = vmatprep.subr.mxu0 0.0
    %550 = vmatpush1.msra.mxu0 %v201
    %551 = vmatprep.subr.mxu0 0.0
    %552 = vmatpush1.msra.mxu0 %v202
    %553 = vmatprep.subr.mxu0 0.0
    %554 = vmatpush1.msra.mxu0 %v203
    %555 = vmatprep.subr.mxu0 0.0
    %556 = vmatpush1.msra.mxu0 %v204
    %557 = vmatprep.subr.mxu0 0.0
    %558 = vmatpush1.msra.mxu0 %v205
    %559 = vmatprep.subr.mxu0 0.0
    %560 = vmatpush1.msra.mxu0 %v206
    %561 = vmatprep.subr.mxu0 0.0
    %562 = vmatpush1.msra.mxu0 %v207
    %563 = vmatprep.subr.mxu0 0.0
    %564 = vmatpush1.msra.mxu0 %v208
    %565 = vmatprep.subr.mxu0 0.0
    %566 = vmatpush1.msra.mxu0 %v209
    %567 = vmatprep.subr.mxu0 0.0
    %568 = vmatpush1.msra.mxu0 %v210
    %569 = vmatprep.subr.mxu0 0.0
    %570 = vmatpush1.msra.mxu0 %v211
    %571 = vmatprep.mubr.f32.mxu0 %v272
    %572 = vmatmul.mubr.f32.gmra.mrb[0].mxu0 %v270
    %v573 = vpop.f32.mrb[0].mxu0
    %v574 = vadd.f32 %v504, %v573
    %v575 = vpop.f32.mrb[0].mxu0
    %576 = vdwg.mxu0
    %577 = vmatprep.subr.mxu0 0.0
    %578 = vmatpush1.msra.mxu0 %v212
    %579 = vmatprep.subr.mxu0 0.0
    %580 = vmatpush1.msra.mxu0 %v213
    %581 = vmatprep.subr.mxu0 0.0
    %582 = vmatpush1.msra.mxu0 %v214
    %583 = vmatprep.subr.mxu0 0.0
    %584 = vmatpush1.msra.mxu0 %v215
    %585 = vmatprep.subr.mxu0 0.0
    %586 = vmatpush1.msra.mxu0 %v216
    %587 = vmatprep.subr.mxu0 0.0
    %588 = vmatpush1.msra.mxu0 %v217
    %589 = vmatprep.subr.mxu0 0.0
    %590 = vmatpush1.msra.mxu0 %v218
    %591 = vmatprep.subr.mxu0 0.0
    %592 = vmatpush1.msra.mxu0 %v219
    %593 = vmatprep.subr.mxu0 0.0
    %594 = vmatpush1.msra.mxu0 %v220
    %595 = vmatprep.subr.mxu0 0.0
    %596 = vmatpush1.msra.mxu0 %v221
    %597 = vmatprep.subr.mxu0 0.0
    %598 = vmatpush1.msra.mxu0 %v222
    %599 = vmatprep.subr.mxu0 0.0
    %600 = vmatpush1.msra.mxu0 %v223
    %601 = vmatprep.subr.mxu0 0.0
    %602 = vmatpush1.msra.mxu0 %v224
    %603 = vmatprep.subr.mxu0 0.0
    %604 = vmatpush1.msra.mxu0 %v225
    %605 = vmatprep.subr.mxu0 0.0
    %606 = vmatpush1.msra.mxu0 %v226
    %607 = vmatprep.subr.mxu0 0.0
    %608 = vmatpush1.msra.mxu0 %v227
    %609 = vmatprep.subr.mxu0 0.0
    %610 = vmatpush1.msra.mxu0 %v295
    %611 = vmatprep.subr.mxu0 0.0
    %612 = vmatpush1.msra.mxu0 0.0
    %613 = vmatprep.subr.mxu0 0.0
    %614 = vmatpush1.msra.mxu0 0.0
    %615 = vmatprep.subr.mxu0 0.0
    %616 = vmatpush1.msra.mxu0 0.0
    %617 = vmatprep.subr.mxu0 0.0
    %618 = vmatpush1.msra.mxu0 0.0
    %619 = vmatprep.subr.mxu0 0.0
    %620 = vmatpush1.msra.mxu0 0.0
    %621 = vmatprep.subr.mxu0 0.0
    %622 = vmatpush1.msra.mxu0 0.0
    %623 = vmatprep.subr.mxu0 0.0
    %624 = vmatpush1.msra.mxu0 0.0
    %625 = vmatprep.subr.mxu0 0.0
    %626 = vmatpush1.msra.mxu0 0.0
    %627 = vmatprep.subr.mxu0 0.0
    %628 = vmatpush1.msra.mxu0 0.0
    %629 = vmatprep.subr.mxu0 0.0
    %630 = vmatpush1.msra.mxu0 0.0
    %631 = vmatprep.subr.mxu0 0.0
    %632 = vmatpush1.msra.mxu0 0.0
    %633 = vmatprep.subr.mxu0 0.0
    %634 = vmatpush1.msra.mxu0 0.0
    %635 = vmatprep.subr.mxu0 0.0
    %636 = vmatpush1.msra.mxu0 0.0
    %637 = vmatprep.subr.mxu0 0.0
    %638 = vmatpush1.msra.mxu0 0.0
    %639 = vmatprep.subr.mxu0 0.0
    %640 = vmatpush1.msra.mxu0 0.0
    %641 = vmatprep.mubr.f32.mxu0 %v291
    %642 = vmatmul.mubr.f32.gmra.mrb[0].mxu0 %v279
    %v643 = vpop.f32.mrb[0].mxu0
    %v644 = vadd.f32 %v574, %v643
    %v645 = vpop.f32.mrb[0].mxu0
    %646 = vdwg.mxu0
    %v647 = vld [vmem:[%s3] sm:$0xff]
    %v648 = vld [vmem:[%s3 + $0x8] sm:$0xff]
    %v649 = vld [vmem:[%s4] sm:$0x1]
    %v651 = vlaneseq
    %v652 = vshrl.u32 %v651, 7
    %v653 = vsub.s32 0, %v652
    %v654 = vrot.slane %v649, %v653
    %vm656 = vcmask 130048
    %v658 = vsel %vm656, %v644, 0
    %660 = vmatprep.subr.mxu0 0.0
    %661 = vmatpush1.msra.mxu0 %v647
    %662 = vmatprep.subr.mxu0 0.0
    %663 = vmatpush1.msra.mxu0 %v648
    %664 = vmatprep.subr.mxu0 0.0
    %665 = vmatpush1.msra.mxu0 0.0
    %666 = vmatprep.subr.mxu0 0.0
    %667 = vmatpush1.msra.mxu0 0.0
    %668 = vmatprep.subr.mxu0 0.0
    %669 = vmatpush1.msra.mxu0 0.0
    %670 = vmatprep.subr.mxu0 0.0
    %671 = vmatpush1.msra.mxu0 0.0
    %672 = vmatprep.subr.mxu0 0.0
    %673 = vmatpush1.msra.mxu0 0.0
    %674 = vmatprep.subr.mxu0 0.0
    %675 = vmatpush1.msra.mxu0 0.0
    %676 = vmatprep.subr.mxu0 0.0
    %677 = vmatpush1.msra.mxu0 0.0
    %678 = vmatprep.subr.mxu0 0.0
    %679 = vmatpush1.msra.mxu0 0.0
    %680 = vmatprep.subr.mxu0 0.0
    %681 = vmatpush1.msra.mxu0 0.0
    %682 = vmatprep.subr.mxu0 0.0
    %683 = vmatpush1.msra.mxu0 0.0
    %684 = vmatprep.subr.mxu0 0.0
    %685 = vmatpush1.msra.mxu0 0.0
    %686 = vmatprep.subr.mxu0 0.0
    %687 = vmatpush1.msra.mxu0 0.0
    %688 = vmatprep.subr.mxu0 0.0
    %689 = vmatpush1.msra.mxu0 0.0
    %690 = vmatprep.subr.mxu0 0.0
    %691 = vmatpush1.msra.mxu0 0.0
    %692 = vmatprep.subr.mxu0 0.0
    %693 = vmatpush1.msra.mxu0 0.0
    %694 = vmatprep.subr.mxu0 0.0
    %695 = vmatpush1.msra.mxu0 0.0
    %696 = vmatprep.subr.mxu0 0.0
    %697 = vmatpush1.msra.mxu0 0.0
    %698 = vmatprep.subr.mxu0 0.0
    %699 = vmatpush1.msra.mxu0 0.0
    %700 = vmatprep.subr.mxu0 0.0
    %701 = vmatpush1.msra.mxu0 0.0
    %702 = vmatprep.subr.mxu0 0.0
    %703 = vmatpush1.msra.mxu0 0.0
    %704 = vmatprep.subr.mxu0 0.0
    %705 = vmatpush1.msra.mxu0 0.0
    %706 = vmatprep.subr.mxu0 0.0
    %707 = vmatpush1.msra.mxu0 0.0
    %708 = vmatprep.subr.mxu0 0.0
    %709 = vmatpush1.msra.mxu0 0.0
    %710 = vmatprep.subr.mxu0 0.0
    %711 = vmatpush1.msra.mxu0 0.0
    %712 = vmatprep.subr.mxu0 0.0
    %713 = vmatpush1.msra.mxu0 0.0
    %714 = vmatprep.subr.mxu0 0.0
    %715 = vmatpush1.msra.mxu0 0.0
    %716 = vmatprep.subr.mxu0 0.0
    %717 = vmatpush1.msra.mxu0 0.0
    %718 = vmatprep.subr.mxu0 0.0
    %719 = vmatpush1.msra.mxu0 0.0
    %720 = vmatprep.subr.mxu0 0.0
    %721 = vmatpush1.msra.mxu0 0.0
    %722 = vmatprep.subr.mxu0 0.0
    %723 = vmatpush1.msra.mxu0 0.0
    %724 = vmatprep.mubr.f32.mxu0 0.0
    %725 = vmatmul.mubr.f32.gmra.mrb[0].mxu0 %v658
    %v726 = vpop.f32.mrb[0].mxu0
    %v727 = vadd.f32 %v654, %v726
    %v728 = vpop.f32.mrb[0].mxu0
    %729 = vdwg.mxu0
    %vm730 = vcmask 9216
    %v731 = vsel %vm730, %v727, -inf
    %732 = vmax.xlane.f32.xlu0 %v731
    %v733 = vpop.xlane.xlu0 %732
    %v734 = vsub.f32 %v727, %v733
    %v735 = vmul.f32 %v734, 1.442695
    %v736 = vpow.pop %v735
    %v737 = vsel %vm730, %v736, 0.0
    %738 = vadd.xlane.f32.xlu0 %v737
    %v739 = vpop.xlane.xlu0 %738
    %v740 = vrcp.pop %v739
    %v741 = vmul.f32 %v736, %v740
    %742 = vst.msk [vmem:[#allocation2] sm:$0x3] %vm730, %v741
    // Predicated region
    $region22: #{net_forward.7} parent=1 // pred_check
      _
    $region23: #{net_forward.7} parent=1 // pred_check_branch
      %744 = sbr.rel (0) target = $region25
    $region24: #{net_forward.7} parent=1 // pred_region
      %s746 = ssub.s32 32, 32
      %747 = vsyncadd [#allocation3], %s746
      %s749 = sshll.u32 [#allocation2], 4
      %s750 = int_to_ptr.vmem [resolvable:$true] %s749
      %752 = dma.vmem_to_hbm [thread:$0]  %s750, 32, %s5, [#allocation3]
    $region25: #{net_forward.7} parent=1 // pred_fallthru
      _
    // Predicated region
    $region26: #{net_forward.7} parent=1 // pred_check
      _
    $region27: #{net_forward.7} parent=1 // pred_check_branch
      %754 = sbr.rel (0) target = $region29
    $region28: #{net_forward.7} parent=1 // pred_region
      %755 = dma.done [#allocation3], 32
    $region29: #{net_forward.7} parent=1 // pred_fallthru
      _
    %756 = vsyncpa [#allocation3], 1

</llo_original>
